<compile_context>
chip_gen: v5e
topology: v5e:2x2
jax: 0.10.0
libtpu: 0.0.40
codegen_flags: <defaults>
</compile_context>

<pallas_src>
import functools

import jax
import jax.numpy as jnp
from jax.experimental import pallas as pl
from jax.experimental.pallas import tpu as pltpu

_LANE = 128
_DEFAULT_SCOPED_VMEM = 32 * 1024 * 1024


def _round_up(n, m):
    return ((n + m - 1) // m) * m


def _gelu_exact(x):
    # Matches torch.nn.functional.gelu default (erf-based, exact).
    return 0.5 * x * (1.0 + jax.lax.erf(x * (1.0 / jnp.sqrt(2.0))))


def _device_vmem_bytes():
    try:
        return int(pltpu.get_tpu_info().vmem_capacity_bytes)
    except Exception:  # pragma: no cover - conservative fallback (v7x-sized)
        return 64 * 1024 * 1024


# ----------------------------------------------------------------------------
# Kernels
# ----------------------------------------------------------------------------
def _ln_kernel(x_ref, g_ref, b_ref, o_ref, *, eps):
    """Row-tiled LayerNorm over the last (channel) axis, f32 statistics."""
    x = x_ref[...].astype(jnp.float32)
    mu = jnp.mean(x, axis=-1, keepdims=True)
    xc = x - mu
    var = jnp.mean(xc * xc, axis=-1, keepdims=True)
    y = xc * jax.lax.rsqrt(var + eps)
    y = y * g_ref[...].astype(jnp.float32) + b_ref[...].astype(jnp.float32)
    o_ref[...] = y.astype(o_ref.dtype)


def _mlp_kernel(x_ref, w1_ref, b1_ref, w2_ref, b2_ref, o_ref):
    """fc1 -> exact GELU -> fc2 on one (tm, d_in) row tile.

    Dot operands are cast to the (bf16) weight dtype; accumulation is f32.
    Biases / GELU stay f32.
    """
    h = jnp.dot(x_ref[...].astype(w1_ref.dtype), w1_ref[...],
                preferred_element_type=jnp.float32)
    h = _gelu_exact(h + b1_ref[...].astype(jnp.float32))
    y = jnp.dot(h.astype(w2_ref.dtype), w2_ref[...],
                preferred_element_type=jnp.float32)
    o_ref[...] = (y + b2_ref[...].astype(jnp.float32)).astype(o_ref.dtype)


def _add_ln_mlp_res_kernel(xa_ref, xs_ref, g_ref, bt_ref,
                           w1_ref, b1_ref, w2_ref, b2_ref, o_ref, *, eps):
    """Fused: (afno_out + skip_1) -> LayerNorm -> MLP -> + skip_2.

    `x = afno_out + skip_1` is exactly the skip_2 residual of the reference
    module, so one add suffices and nothing extra hits HBM.
    """
    x = xa_ref[...].astype(jnp.float32) + xs_ref[...].astype(jnp.float32)
    mu = jnp.mean(x, axis=-1, keepdims=True)
    xc = x - mu
    var = jnp.mean(xc * xc, axis=-1, keepdims=True)
    y = xc * jax.lax.rsqrt(var + eps)
    y = y * g_ref[...].astype(jnp.float32) + bt_ref[...].astype(jnp.float32)
    h = jnp.dot(y.astype(w1_ref.dtype), w1_ref[...],
                preferred_element_type=jnp.float32)
    h = _gelu_exact(h + b1_ref[...].astype(jnp.float32))
    z = jnp.dot(h.astype(w2_ref.dtype), w2_ref[...],
                preferred_element_type=jnp.float32)
    o_ref[...] = (z + b2_ref[...].astype(jnp.float32) + x).astype(o_ref.dtype)


# ----------------------------------------------------------------------------
# Row-tiled launcher
# ----------------------------------------------------------------------------
def _pick_tm(n, tm):
    """Clamp the row tile: multiple of 8, <= n (rounded), and keep >= 2 grid
    steps when possible so the "parallel" axis shards over v7x's two TCs."""
    tm = max(8, min(_round_up(tm, 8), _round_up(n, 8)))
    if n > 8 and tm >= n:
        tm = max(8, _round_up((n + 1) // 2, 8))
    return tm


def _compiler_params(vmem_est_bytes):
    vmem_limit = None
    if vmem_est_bytes > _DEFAULT_SCOPED_VMEM:
        # Cap below the physical VMEM of the *current* chip (v7x: 64 MiB),
        # leaving headroom for the pipeline's double buffers.
        cap = int(0.8 * _device_vmem_bytes())
        vmem_limit = max(_DEFAULT_SCOPED_VMEM,
                         min(int(vmem_est_bytes * 5 // 4), cap))
    return pltpu.CompilerParams(
        dimension_semantics=("parallel",),
        vmem_limit_bytes=vmem_limit,
    )


def _row_tiled_call(kernel, row_args, const_args, *, out_cols, out_dtype, tm,
                    flops=0, transcendentals=0, f32_temp_cols=0):
    """Launch `kernel` over (tm, cols) row tiles of the arrays in `row_args`.

    * const_args (weights / biases / LN params) use a constant index_map, so
      they are DMA'd into VMEM once and stay resident across the grid.
    * No wrapper-side padding: grid = cdiv(n, tm).  All kernels here are
      purely row-wise, so the ragged tail block is masked by Pallas and its
      garbage rows never reach HBM.
    """
    n = row_args[0].shape[0]
    tm = _pick_tm(n, tm)
    grid = (pl.cdiv(n, tm),)

    in_specs = [pl.BlockSpec((tm, a.shape[1]), lambda i: (i, 0)) for a in row_args]
    in_specs += [pl.BlockSpec(a.shape, lambda i: (0, 0)) for a in const_args]
    out_spec = pl.BlockSpec((tm, out_cols), lambda i: (i, 0))

    out_itemsize = jnp.dtype(out_dtype).itemsize
    bytes_accessed = sum(int(a.size) * a.dtype.itemsize
                         for a in list(row_args) + list(const_args))
    bytes_accessed += n * out_cols * out_itemsize

    # Double-buffered row tiles + resident weights + f32 temporaries.
    # TODO(synk): for very large weights on v7x (64 MiB VMEM), single-buffer
    # the const specs (pipeline_mode=pl.Buffered(1)) / use hidden-dim tiling
    # instead of raising the limit; unnecessary at these dims.
    vmem_est = 2 * sum(tm * a.shape[1] * a.dtype.itemsize for a in row_args)
    vmem_est += 2 * tm * out_cols * out_itemsize
    vmem_est += 2 * sum(int(a.size) * a.dtype.itemsize for a in const_args)
    vmem_est += 4 * tm * f32_temp_cols

    return pl.pallas_call(
        kernel,
        out_shape=jax.ShapeDtypeStruct((n, out_cols), out_dtype),
        grid_spec=pltpu.PrefetchScalarGridSpec(
            num_scalar_prefetch=0,
            grid=grid,
            in_specs=in_specs,
            out_specs=out_spec,
        ),
        compiler_params=_compiler_params(vmem_est),
        cost_estimate=pl.CostEstimate(
            flops=int(flops),
            transcendentals=int(transcendentals),
            bytes_accessed=int(bytes_accessed),
        ),
    )(*row_args, *const_args)


def layernorm_tokens(x2d, gamma, beta, *, eps=1e-5, tm=512):
    n, c = x2d.shape
    return _row_tiled_call(
        functools.partial(_ln_kernel, eps=eps),
        [x2d], [gamma, beta],
        out_cols=c, out_dtype=x2d.dtype, tm=tm,
        flops=8 * n * c, transcendentals=n,
        f32_temp_cols=c,
    )


def mlp_tokens(x2d, w1, b1, w2, b2, *, tm=512):
    n, d_in = x2d.shape
    d_h, d_out = w1.shape[1], w2.shape[1]
    flops = 2 * n * d_in * d_h + 2 * n * d_h * d_out + 4 * n * d_h
    return _row_tiled_call(
        _mlp_kernel,
        [x2d], [w1, b1, w2, b2],
        out_cols=d_out, out_dtype=x2d.dtype, tm=tm,
        flops=flops, transcendentals=n * d_h,
        f32_temp_cols=d_h + d_out,
    )


def add_ln_mlp_residual_tokens(x_a, x_s, gamma, beta, w1, b1, w2, b2,
                               *, eps=1e-5, tm=512):
    n, c = x_a.shape
    d_h = w1.shape[1]
    flops = 2 * n * c * d_h + 2 * n * d_h * c + 16 * n * c
    return _row_tiled_call(
        functools.partial(_add_ln_mlp_res_kernel, eps=eps),
        [x_a, x_s], [gamma, beta, w1, b1, w2, b2],
        out_cols=c, out_dtype=x_a.dtype, tm=tm,
        flops=flops, transcendentals=n * (d_h + 1),
        f32_temp_cols=d_h + 2 * c,
    )


def _pack_block_diag(w, b, reps):
    """Replicate a shared (d_in, d_out) linear layer `reps` times along a block
    diagonal so that `reps` feature-groups packed along the lane axis are all
    filtered independently by a single lane-dense matmul (off-diagonal blocks
    are exact zeros, so the result is bit-equivalent to the per-group matmul).
    """
    if reps == 1:
        return w, b
    eye = jnp.eye(reps, dtype=w.dtype)
    return jnp.kron(eye, w), jnp.tile(b, (1, reps))


# ----------------------------------------------------------------------------
# Full AFNOTransformerBlock forward (default flags: norm=skip_one=skip_two=True)
# ----------------------------------------------------------------------------
@functools.partial(jax.jit, static_argnames=("num_groups", "tm"))
def afno_transformer_block(x, params, *, num_groups=8, tm=512):
    """x: (B, C, H, W) -> (B, C, H, W)."""
    B, C, Hs, Ws = x.shape
    gc = C // num_groups
    feat = 2 * gc
    n_tok = B * Hs * Ws

    # One NCHW -> NHWC transpose (module contract); everything below stays
    # channels-last so no further full-tensor permutes are needed.
    x_cl = jnp.transpose(x, (0, 2, 3, 1)).reshape(n_tok, C)

    # ---- norm1 over channels (Pallas) --------------------------------------
    x_ln = layernorm_tokens(x_cl, params["g1"], params["bt1"], tm=tm)

    # ---- AFNO spectral filter -----------------------------------------------
    # TODO(synk): FFT/IFFT have no Pallas primitive; kept in XLA via jnp.fft,
    # applied channels-last over axes (1, 2) to avoid NCHW round-trips.
    xf = jnp.fft.fft2(x_ln.reshape(B, Hs, Ws, C), axes=(1, 2), norm="ortho")
    xf = xf.reshape(B, Hs, Ws, num_groups, gc)
    freq = jnp.concatenate([xf.real, xf.imag], axis=-1)       # (B,H,W,G,2gc) f32

    # Lane-dense frequency MLP: pack `reps` consecutive (2gc)-wide group-tokens
    # into one ~128-lane row; the shared fc1/fc2 become block-diagonal weights.
    n_grp_tok = n_tok * num_groups
    reps = max(1, min(_LANE // feat, n_grp_tok)) if feat < _LANE else 1
    while n_grp_tok % reps:
        reps -= 1
    w1a, b1a = _pack_block_diag(params["w1a"], params["b1a"], reps)
    w2a, b2a = _pack_block_diag(params["w2a"], params["b2a"], reps)
    freq2d = freq.reshape(n_grp_tok // reps, reps * feat)       # zero-cost reshape
    freq2d = mlp_tokens(freq2d, w1a, b1a, w2a, b2a, tm=tm)      # Pallas freq MLP
    freq = freq2d.reshape(B, Hs, Ws, num_groups, feat)

    re, im = freq[..., :gc], freq[..., gc:]
    xff = jax.lax.complex(re, im).reshape(B, Hs, Ws, C)
    x_afno = jnp.fft.ifft2(xff, axes=(1, 2), norm="ortho").real.astype(x.dtype)

    # ---- skip1 add + norm2 + token MLP + skip2, fused in one kernel ---------
    # x_cl *is* skip_1 in channels-last layout; pass it directly.
    out = add_ln_mlp_residual_tokens(
        x_afno.reshape(n_tok, C), x_cl,
        params["g2"], params["bt2"],
        params["w1m"], params["b1m"], params["w2m"], params["b2m"], tm=tm)
    return jnp.transpose(out.reshape(B, Hs, Ws, C), (0, 3, 1, 2))


# ----------------------------------------------------------------------------
# Params (torch-default-like init) and pure-JAX reference
# ----------------------------------------------------------------------------
def init_afno_transformer_params(key, dim, mlp_ratio, hidden_dim_afno,
                                 num_groups, matmul_dtype=jnp.bfloat16):
    gc = dim // num_groups
    d_freq = 2 * gc
    d_mlp = int(dim * mlp_ratio)
    ks = jax.random.split(key, 12)

    def linear(kw, kb, d_in, d_out):
        bound = 1.0 / (d_in ** 0.5)
        # Weights stored in bf16 (fed straight to the MXU); biases stay f32.
        w = jax.random.uniform(kw, (d_in, d_out), jnp.float32, -bound, bound)
        b = jax.random.uniform(kb, (1, d_out), jnp.float32, -bound, bound)
        return w.astype(matmul_dtype), b

    w1a, b1a = linear(ks[0], ks[1], d_freq, hidden_dim_afno)
    w2a, b2a = linear(ks[2], ks[3], hidden_dim_afno, d_freq)
    w1m, b1m = linear(ks[4], ks[5], dim, d_mlp)
    w2m, b2m = linear(ks[6], ks[7], d_mlp, dim)
    # torch LayerNorm default is weight=1, bias=0; perturb slightly so the
    # affine path is actually exercised by the self-test.  Kept in f32.
    g1 = 1.0 + 0.1 * jax.random.normal(ks[8], (1, dim), jnp.float32)
    bt1 = 0.1 * jax.random.normal(ks[9], (1, dim), jnp.float32)
    g2 = 1.0 + 0.1 * jax.random.normal(ks[10], (1, dim), jnp.float32)
    bt2 = 0.1 * jax.random.normal(ks[11], (1, dim), jnp.float32)
    return dict(g1=g1, bt1=bt1, g2=g2, bt2=bt2,
                w1a=w1a, b1a=b1a, w2a=w2a, b2a=b2a,
                w1m=w1m, b1m=b1m, w2m=w2m, b2m=b2m)


def _layernorm_ref(x, gamma, beta, eps=1e-5):
    mu = x.mean(-1, keepdims=True)
    var = ((x - mu) ** 2).mean(-1, keepdims=True)
    return (x - mu) / jnp.sqrt(var + eps) * gamma + beta


def _linear_ref(x, w, b):
    # Mirrors the kernel numerics: bf16 operands, f32 accumulation, f32 bias.
    return jnp.dot(x.astype(w.dtype), w, preferred_element_type=jnp.float32) + b


def reference_forward(x, params, *, num_groups, eps=1e-5):
    B, C, Hs, Ws = x.shape
    gc = C // num_groups
    skip1 = x
    xl = _layernorm_ref(jnp.transpose(x, (0, 2, 3, 1)),
                        params["g1"], params["bt1"], eps)
    xc = jnp.transpose(xl, (0, 3, 1, 2))
    xf = jnp.fft.fft2(xc, norm="ortho").reshape(B, num_groups, gc, Hs, Ws)
    freq = jnp.concatenate([xf.real, xf.imag], axis=2)
    freq = jnp.transpose(freq, (0, 1, 3, 4, 2))
    freq = _gelu_exact(_linear_ref(freq, params["w1a"], params["b1a"]))
    freq = _linear_ref(freq, params["w2a"], params["b2a"])
    freq = jnp.transpose(freq, (0, 1, 4, 2, 3))
    re, im = jnp.split(freq, 2, axis=2)
    xff = jax.lax.complex(re, im).reshape(B, C, Hs, Ws)
    x2 = jnp.fft.ifft2(xff, norm="ortho").real + skip1
    xp = jnp.transpose(x2, (0, 2, 3, 1))
    skip2 = xp
    xn = _layernorm_ref(xp, params["g2"], params["bt2"], eps)
    t = xn.reshape(B, Hs * Ws, C)
    t = _gelu_exact(_linear_ref(t, params["w1m"], params["b1m"]))
    t = _linear_ref(t, params["w2m"], params["b2m"])
    t = t.reshape(B, Hs, Ws, C) + skip2
    return jnp.transpose(t, (0, 3, 1, 2))


if __name__ == "__main__":
    key = jax.random.PRNGKey(0)
    kx, kp = jax.random.split(key)

    # Small shapes consistent with the module: dim=32, 8 groups, H=W=16,
    # hidden_dim_afno=32, mlp_ratio=2.0.
    B, C, Hs, Ws = 2, 32, 16, 16
    num_groups = 8
    mlp_ratio = 2.0
    hidden_dim_afno = 32

    x = jax.random.normal(kx, (B, C, Hs, Ws), jnp.float32)
    params = init_afno_transformer_params(kp, C, mlp_ratio, hidden_dim_afno,
                                          num_groups)

    y = afno_transformer_block(x, params, num_groups=num_groups)
    jax.block_until_ready(y)
    assert y.shape == (B, C, Hs, Ws)

    # Reference uses the same bf16 matmul operands / f32 accumulation as the
    # kernels; residual tolerance covers bf16 rounding-boundary flips only.
    y_ref = reference_forward(x, params, num_groups=num_groups)
    max_err = float(jnp.max(jnp.abs(y - y_ref)))
    assert jnp.allclose(y, y_ref, atol=1e-2, rtol=1e-2), \
        f"mismatch vs reference (max abs err {max_err})"
    print("KERNEL_OK")
</pallas_src>

<mosaic_0001>
module attributes {stable_mosaic.version = 11 : i64} {
  func.func @_ln_kernel(%arg0: i32, %arg1: memref<256x32xf32, #tpu.memory_space<vmem>>, %arg2: memref<1x32xf32, #tpu.memory_space<vmem>>, %arg3: memref<1x32xf32, #tpu.memory_space<vmem>>, %arg4: memref<256x32xf32, #tpu.memory_space<vmem>>) attributes {dimension_semantics = [#tpu.dimension_semantics<parallel>], iteration_bounds = array<i64: 2>, scalar_prefetch = 0 : i64, scratch_operands = 0 : i64, tpu.core_type = #tpu.core_type<tc>, window_params = [{transform_indices = @transform_0, window_bounds = array<i64: 256, 32>}, {pipeline_mode = #tpu.pipeline_mode<synchronous>, transform_indices = @transform_1, window_bounds = array<i64: 1, 32>}, {pipeline_mode = #tpu.pipeline_mode<synchronous>, transform_indices = @transform_2, window_bounds = array<i64: 1, 32>}, {transform_indices = @transform_3, window_bounds = array<i64: 256, 32>}]} {
    %c0 = arith.constant 0 : index
    %c0_0 = arith.constant 0 : index
    %0 = vector.load %arg1[%c0, %c0_0] : memref<256x32xf32, #tpu.memory_space<vmem>>, vector<256x32xf32>
    %cst = arith.constant dense<0.000000e+00> : vector<256xf32>
    %1 = vector.multi_reduction <add>, %0, %cst [1] : vector<256x32xf32> to vector<256xf32>
    %2 = vector.shape_cast %1 : vector<256xf32> to vector<256x1xf32>
    %cst_1 = arith.constant 3.200000e+01 : f32
    %3 = vector.broadcast %cst_1 : f32 to vector<256x1xf32>
    %4 = arith.divf %2, %3 : vector<256x1xf32>
    %5 = vector.broadcast %4 : vector<256x1xf32> to vector<256x32xf32>
    %6 = arith.subf %0, %5 : vector<256x32xf32>
    %7 = arith.mulf %6, %6 : vector<256x32xf32>
    %cst_2 = arith.constant dense<0.000000e+00> : vector<256xf32>
    %8 = vector.multi_reduction <add>, %7, %cst_2 [1] : vector<256x32xf32> to vector<256xf32>
    %9 = vector.shape_cast %8 : vector<256xf32> to vector<256x1xf32>
    %cst_3 = arith.constant 3.200000e+01 : f32
    %10 = vector.broadcast %cst_3 : f32 to vector<256x1xf32>
    %11 = arith.divf %9, %10 : vector<256x1xf32>
    %cst_4 = arith.constant 9.99999974E-6 : f32
    %12 = vector.broadcast %cst_4 : f32 to vector<256x1xf32>
    %13 = arith.addf %11, %12 : vector<256x1xf32>
    %14 = math.rsqrt %13 : vector<256x1xf32>
    %15 = vector.broadcast %14 : vector<256x1xf32> to vector<256x32xf32>
    %16 = arith.mulf %6, %15 : vector<256x32xf32>
    %c0_5 = arith.constant 0 : index
    %c0_6 = arith.constant 0 : index
    %17 = vector.load %arg2[%c0_5, %c0_6] : memref<1x32xf32, #tpu.memory_space<vmem>>, vector<1x32xf32>
    %18 = vector.broadcast %17 : vector<1x32xf32> to vector<256x32xf32>
    %19 = arith.mulf %16, %18 : vector<256x32xf32>
    %c0_7 = arith.constant 0 : index
    %c0_8 = arith.constant 0 : index
    %20 = vector.load %arg3[%c0_7, %c0_8] : memref<1x32xf32, #tpu.memory_space<vmem>>, vector<1x32xf32>
    %21 = vector.broadcast %20 : vector<1x32xf32> to vector<256x32xf32>
    %22 = arith.addf %19, %21 : vector<256x32xf32>
    %c0_9 = arith.constant 0 : index
    %c0_10 = arith.constant 0 : index
    %23 = vector.load %arg4[%c0_9, %c0_10] : memref<256x32xf32, #tpu.memory_space<vmem>>, vector<256x32xf32>
    tpu.vector_store %arg4[%c0_9, %c0_10], %22 {strides = array<i32>} : memref<256x32xf32, #tpu.memory_space<vmem>>, vector<256x32xf32>,
    return
  }
  func.func @transform_0(%arg0: i32) -> (i32, i32) {
    %c0_i32 = arith.constant 0 : i32
    %c0_i32_0 = arith.constant 0 : i32
    return %arg0, %c0_i32 : i32, i32
  }
  func.func @transform_1(%arg0: i32) -> (i32, i32) {
    %c0_i32 = arith.constant 0 : i32
    %c0_i32_0 = arith.constant 0 : i32
    %c0_i32_1 = arith.constant 0 : i32
    return %c0_i32, %c0_i32_0 : i32, i32
  }
  func.func @transform_2(%arg0: i32) -> (i32, i32) {
    %c0_i32 = arith.constant 0 : i32
    %c0_i32_0 = arith.constant 0 : i32
    %c0_i32_1 = arith.constant 0 : i32
    return %c0_i32, %c0_i32_0 : i32, i32
  }
  func.func @transform_3(%arg0: i32) -> (i32, i32) {
    %c0_i32 = arith.constant 0 : i32
    %c0_i32_0 = arith.constant 0 : i32
    return %arg0, %c0_i32 : i32, i32
  }
}

module attributes {stable_mosaic.version = 11 : i64} {
  func.func @_mlp_kernel(%arg0: i32, %arg1: memref<128x128xf32, #tpu.memory_space<vmem>>, %arg2: memref<128x512xbf16, #tpu.memory_space<vmem>>, %arg3: memref<1x512xf32, #tpu.memory_space<vmem>>, %arg4: memref<512x128xbf16, #tpu.memory_space<vmem>>, %arg5: memref<1x128xf32, #tpu.memory_space<vmem>>, %arg6: memref<128x128xf32, #tpu.memory_space<vmem>>) attributes {dimension_semantics = [#tpu.dimension_semantics<parallel>], iteration_bounds = array<i64: 2>, scalar_prefetch = 0 : i64, scratch_operands = 0 : i64, tpu.core_type = #tpu.core_type<tc>, window_params = [{transform_indices = @transform_0, window_bounds = array<i64: 128, 128>}, {pipeline_mode = #tpu.pipeline_mode<synchronous>, transform_indices = @transform_1, window_bounds = array<i64: 128, 512>}, {pipeline_mode = #tpu.pipeline_mode<synchronous>, transform_indices = @transform_2, window_bounds = array<i64: 1, 512>}, {pipeline_mode = #tpu.pipeline_mode<synchronous>, transform_indices = @transform_3, window_bounds = array<i64: 512, 128>}, {pipeline_mode = #tpu.pipeline_mode<synchronous>, transform_indices = @transform_4, window_bounds = array<i64: 1, 128>}, {transform_indices = @transform_5, window_bounds = array<i64: 128, 128>}]} {
    %c0 = arith.constant 0 : index
    %c0_0 = arith.constant 0 : index
    %0 = vector.load %arg1[%c0, %c0_0] : memref<128x128xf32, #tpu.memory_space<vmem>>, vector<128x128xf32>
    %1 = arith.truncf %0 : vector<128x128xf32> to vector<128x128xbf16>
    %c0_1 = arith.constant 0 : index
    %c0_2 = arith.constant 0 : index
    %2 = vector.load %arg2[%c0_1, %c0_2] : memref<128x512xbf16, #tpu.memory_space<vmem>>, vector<128x512xbf16>
    %cst = arith.constant dense<0.000000e+00> : vector<128x512xf32>
    %3 = tpu.matmul %1, %2, %cst {dimension_numbers = #tpu.dot_dimension_numbers<[1], [0], [0], [1], [0, 0, 1, 1], [], []>} : vector<128x128xbf16>, vector<128x512xbf16>, vector<128x512xf32> -> vector<128x512xf32>
    %c0_3 = arith.constant 0 : index
    %c0_4 = arith.constant 0 : index
    %4 = vector.load %arg3[%c0_3, %c0_4] : memref<1x512xf32, #tpu.memory_space<vmem>>, vector<1x512xf32>
    %5 = vector.broadcast %4 : vector<1x512xf32> to vector<128x512xf32>
    %6 = arith.addf %3, %5 : vector<128x512xf32>
    %cst_5 = arith.constant 5.000000e-01 : f32
    %7 = vector.broadcast %cst_5 : f32 to vector<128x512xf32>
    %8 = arith.mulf %7, %6 : vector<128x512xf32>
    %cst_6 = arith.constant 2.000000e+00 : f32
    %9 = math.sqrt %cst_6 : f32
    %cst_7 = arith.constant 1.000000e+00 : f32
    %10 = arith.divf %cst_7, %9 : f32
    %11 = vector.broadcast %10 : f32 to vector<128x512xf32>
    %12 = arith.mulf %6, %11 : vector<128x512xf32>
    %13 = math.erf %12 : vector<128x512xf32>
    %cst_8 = arith.constant 1.000000e+00 : f32
    %14 = vector.broadcast %cst_8 : f32 to vector<128x512xf32>
    %15 = arith.addf %14, %13 : vector<128x512xf32>
    %16 = arith.mulf %8, %15 : vector<128x512xf32>
    %17 = arith.truncf %16 : vector<128x512xf32> to vector<128x512xbf16>
    %c0_9 = arith.constant 0 : index
    %c0_10 = arith.constant 0 : index
    %18 = vector.load %arg4[%c0_9, %c0_10] : memref<512x128xbf16, #tpu.memory_space<vmem>>, vector<512x128xbf16>
    %cst_11 = arith.constant dense<0.000000e+00> : vector<128x128xf32>
    %19 = tpu.matmul %17, %18, %cst_11 {dimension_numbers = #tpu.dot_dimension_numbers<[1], [0], [0], [1], [0, 0, 1, 1], [], []>} : vector<128x512xbf16>, vector<512x128xbf16>, vector<128x128xf32> -> vector<128x128xf32>
    %c0_12 = arith.constant 0 : index
    %c0_13 = arith.constant 0 : index
    %20 = vector.load %arg5[%c0_12, %c0_13] : memref<1x128xf32, #tpu.memory_space<vmem>>, vector<1x128xf32>
    %21 = vector.broadcast %20 : vector<1x128xf32> to vector<128x128xf32>
    %22 = arith.addf %19, %21 : vector<128x128xf32>
    %c0_14 = arith.constant 0 : index
    %c0_15 = arith.constant 0 : index
    %23 = vector.load %arg6[%c0_14, %c0_15] : memref<128x128xf32, #tpu.memory_space<vmem>>, vector<128x128xf32>
    tpu.vector_store %arg6[%c0_14, %c0_15], %22 {strides = array<i32>} : memref<128x128xf32, #tpu.memory_space<vmem>>, vector<128x128xf32>,
    return
  }
  func.func @transform_0(%arg0: i32) -> (i32, i32) {
    %c0_i32 = arith.constant 0 : i32
    %c0_i32_0 = arith.constant 0 : i32
    return %arg0, %c0_i32 : i32, i32
  }
  func.func @transform_1(%arg0: i32) -> (i32, i32) {
    %c0_i32 = arith.constant 0 : i32
    %c0_i32_0 = arith.constant 0 : i32
    %c0_i32_1 = arith.constant 0 : i32
    return %c0_i32, %c0_i32_0 : i32, i32
  }
  func.func @transform_2(%arg0: i32) -> (i32, i32) {
    %c0_i32 = arith.constant 0 : i32
    %c0_i32_0 = arith.constant 0 : i32
    %c0_i32_1 = arith.constant 0 : i32
    return %c0_i32, %c0_i32_0 : i32, i32
  }
  func.func @transform_3(%arg0: i32) -> (i32, i32) {
    %c0_i32 = arith.constant 0 : i32
    %c0_i32_0 = arith.constant 0 : i32
    %c0_i32_1 = arith.constant 0 : i32
    return %c0_i32, %c0_i32_0 : i32, i32
  }
  func.func @transform_4(%arg0: i32) -> (i32, i32) {
    %c0_i32 = arith.constant 0 : i32
    %c0_i32_0 = arith.constant 0 : i32
    %c0_i32_1 = arith.constant 0 : i32
    return %c0_i32, %c0_i32_0 : i32, i32
  }
  func.func @transform_5(%arg0: i32) -> (i32, i32) {
    %c0_i32 = arith.constant 0 : i32
    %c0_i32_0 = arith.constant 0 : i32
    return %arg0, %c0_i32 : i32, i32
  }
}

module attributes {stable_mosaic.version = 11 : i64} {
  func.func @_add_ln_mlp_res_kernel(%arg0: i32, %arg1: memref<256x32xf32, #tpu.memory_space<vmem>>, %arg2: memref<256x32xf32, #tpu.memory_space<vmem>>, %arg3: memref<1x32xf32, #tpu.memory_space<vmem>>, %arg4: memref<1x32xf32, #tpu.memory_space<vmem>>, %arg5: memref<32x64xbf16, #tpu.memory_space<vmem>>, %arg6: memref<1x64xf32, #tpu.memory_space<vmem>>, %arg7: memref<64x32xbf16, #tpu.memory_space<vmem>>, %arg8: memref<1x32xf32, #tpu.memory_space<vmem>>, %arg9: memref<256x32xf32, #tpu.memory_space<vmem>>) attributes {dimension_semantics = [#tpu.dimension_semantics<parallel>], iteration_bounds = array<i64: 2>, scalar_prefetch = 0 : i64, scratch_operands = 0 : i64, tpu.core_type = #tpu.core_type<tc>, window_params = [{transform_indices = @transform_0, window_bounds = array<i64: 256, 32>}, {transform_indices = @transform_1, window_bounds = array<i64: 256, 32>}, {pipeline_mode = #tpu.pipeline_mode<synchronous>, transform_indices = @transform_2, window_bounds = array<i64: 1, 32>}, {pipeline_mode = #tpu.pipeline_mode<synchronous>, transform_indices = @transform_3, window_bounds = array<i64: 1, 32>}, {pipeline_mode = #tpu.pipeline_mode<synchronous>, transform_indices = @transform_4, window_bounds = array<i64: 32, 64>}, {pipeline_mode = #tpu.pipeline_mode<synchronous>, transform_indices = @transform_5, window_bounds = array<i64: 1, 64>}, {pipeline_mode = #tpu.pipeline_mode<synchronous>, transform_indices = @transform_6, window_bounds = array<i64: 64, 32>}, {pipeline_mode = #tpu.pipeline_mode<synchronous>, transform_indices = @transform_7, window_bounds = array<i64: 1, 32>}, {transform_indices = @transform_8, window_bounds = array<i64: 256, 32>}]} {
    %c0 = arith.constant 0 : index
    %c0_0 = arith.constant 0 : index
    %0 = vector.load %arg1[%c0, %c0_0] : memref<256x32xf32, #tpu.memory_space<vmem>>, vector<256x32xf32>
    %c0_1 = arith.constant 0 : index
    %c0_2 = arith.constant 0 : index
    %1 = vector.load %arg2[%c0_1, %c0_2] : memref<256x32xf32, #tpu.memory_space<vmem>>, vector<256x32xf32>
    %2 = arith.addf %0, %1 : vector<256x32xf32>
    %cst = arith.constant dense<0.000000e+00> : vector<256xf32>
    %3 = vector.multi_reduction <add>, %2, %cst [1] : vector<256x32xf32> to vector<256xf32>
    %4 = vector.shape_cast %3 : vector<256xf32> to vector<256x1xf32>
    %cst_3 = arith.constant 3.200000e+01 : f32
    %5 = vector.broadcast %cst_3 : f32 to vector<256x1xf32>
    %6 = arith.divf %4, %5 : vector<256x1xf32>
    %7 = vector.broadcast %6 : vector<256x1xf32> to vector<256x32xf32>
    %8 = arith.subf %2, %7 : vector<256x32xf32>
    %9 = arith.mulf %8, %8 : vector<256x32xf32>
    %cst_4 = arith.constant dense<0.000000e+00> : vector<256xf32>
    %10 = vector.multi_reduction <add>, %9, %cst_4 [1] : vector<256x32xf32> to vector<256xf32>
    %11 = vector.shape_cast %10 : vector<256xf32> to vector<256x1xf32>
    %cst_5 = arith.constant 3.200000e+01 : f32
    %12 = vector.broadcast %cst_5 : f32 to vector<256x1xf32>
    %13 = arith.divf %11, %12 : vector<256x1xf32>
    %cst_6 = arith.constant 9.99999974E-6 : f32
    %14 = vector.broadcast %cst_6 : f32 to vector<256x1xf32>
    %15 = arith.addf %13, %14 : vector<256x1xf32>
    %16 = math.rsqrt %15 : vector<256x1xf32>
    %17 = vector.broadcast %16 : vector<256x1xf32> to vector<256x32xf32>
    %18 = arith.mulf %8, %17 : vector<256x32xf32>
    %c0_7 = arith.constant 0 : index
    %c0_8 = arith.constant 0 : index
    %19 = vector.load %arg3[%c0_7, %c0_8] : memref<1x32xf32, #tpu.memory_space<vmem>>, vector<1x32xf32>
    %20 = vector.broadcast %19 : vector<1x32xf32> to vector<256x32xf32>
    %21 = arith.mulf %18, %20 : vector<256x32xf32>
    %c0_9 = arith.constant 0 : index
    %c0_10 = arith.constant 0 : index
    %22 = vector.load %arg4[%c0_9, %c0_10] : memref<1x32xf32, #tpu.memory_space<vmem>>, vector<1x32xf32>
    %23 = vector.broadcast %22 : vector<1x32xf32> to vector<256x32xf32>
    %24 = arith.addf %21, %23 : vector<256x32xf32>
    %25 = arith.truncf %24 : vector<256x32xf32> to vector<256x32xbf16>
    %c0_11 = arith.constant 0 : index
    %c0_12 = arith.constant 0 : index
    %26 = vector.load %arg5[%c0_11, %c0_12] : memref<32x64xbf16, #tpu.memory_space<vmem>>, vector<32x64xbf16>
    %cst_13 = arith.constant dense<0.000000e+00> : vector<256x64xf32>
    %27 = tpu.matmul %25, %26, %cst_13 {dimension_numbers = #tpu.dot_dimension_numbers<[1], [0], [0], [1], [0, 0, 1, 1], [], []>} : vector<256x32xbf16>, vector<32x64xbf16>, vector<256x64xf32> -> vector<256x64xf32>
    %c0_14 = arith.constant 0 : index
    %c0_15 = arith.constant 0 : index
    %28 = vector.load %arg6[%c0_14, %c0_15] : memref<1x64xf32, #tpu.memory_space<vmem>>, vector<1x64xf32>
    %29 = vector.broadcast %28 : vector<1x64xf32> to vector<256x64xf32>
    %30 = arith.addf %27, %29 : vector<256x64xf32>
    %cst_16 = arith.constant 5.000000e-01 : f32
    %31 = vector.broadcast %cst_16 : f32 to vector<256x64xf32>
    %32 = arith.mulf %31, %30 : vector<256x64xf32>
    %cst_17 = arith.constant 2.000000e+00 : f32
    %33 = math.sqrt %cst_17 : f32
    %cst_18 = arith.constant 1.000000e+00 : f32
    %34 = arith.divf %cst_18, %33 : f32
    %35 = vector.broadcast %34 : f32 to vector<256x64xf32>
    %36 = arith.mulf %30, %35 : vector<256x64xf32>
    %37 = math.erf %36 : vector<256x64xf32>
    %cst_19 = arith.constant 1.000000e+00 : f32
    %38 = vector.broadcast %cst_19 : f32 to vector<256x64xf32>
    %39 = arith.addf %38, %37 : vector<256x64xf32>
    %40 = arith.mulf %32, %39 : vector<256x64xf32>
    %41 = arith.truncf %40 : vector<256x64xf32> to vector<256x64xbf16>
    %c0_20 = arith.constant 0 : index
    %c0_21 = arith.constant 0 : index
    %42 = vector.load %arg7[%c0_20, %c0_21] : memref<64x32xbf16, #tpu.memory_space<vmem>>, vector<64x32xbf16>
    %cst_22 = arith.constant dense<0.000000e+00> : vector<256x32xf32>
    %43 = tpu.matmul %41, %42, %cst_22 {dimension_numbers = #tpu.dot_dimension_numbers<[1], [0], [0], [1], [0, 0, 1, 1], [], []>} : vector<256x64xbf16>, vector<64x32xbf16>, vector<256x32xf32> -> vector<256x32xf32>
    %c0_23 = arith.constant 0 : index
    %c0_24 = arith.constant 0 : index
    %44 = vector.load %arg8[%c0_23, %c0_24] : memref<1x32xf32, #tpu.memory_space<vmem>>, vector<1x32xf32>
    %45 = vector.broadcast %44 : vector<1x32xf32> to vector<256x32xf32>
    %46 = arith.addf %43, %45 : vector<256x32xf32>
    %47 = arith.addf %46, %2 : vector<256x32xf32>
    %c0_25 = arith.constant 0 : index
    %c0_26 = arith.constant 0 : index
    %48 = vector.load %arg9[%c0_25, %c0_26] : memref<256x32xf32, #tpu.memory_space<vmem>>, vector<256x32xf32>
    tpu.vector_store %arg9[%c0_25, %c0_26], %47 {strides = array<i32>} : memref<256x32xf32, #tpu.memory_space<vmem>>, vector<256x32xf32>,
    return
  }
  func.func @transform_0(%arg0: i32) -> (i32, i32) {
    %c0_i32 = arith.constant 0 : i32
    %c0_i32_0 = arith.constant 0 : i32
    return %arg0, %c0_i32 : i32, i32
  }
  func.func @transform_1(%arg0: i32) -> (i32, i32) {
    %c0_i32 = arith.constant 0 : i32
    %c0_i32_0 = arith.constant 0 : i32
    return %arg0, %c0_i32 : i32, i32
  }
  func.func @transform_2(%arg0: i32) -> (i32, i32) {
    %c0_i32 = arith.constant 0 : i32
    %c0_i32_0 = arith.constant 0 : i32
    %c0_i32_1 = arith.constant 0 : i32
    return %c0_i32, %c0_i32_0 : i32, i32
  }
  func.func @transform_3(%arg0: i32) -> (i32, i32) {
    %c0_i32 = arith.constant 0 : i32
    %c0_i32_0 = arith.constant 0 : i32
    %c0_i32_1 = arith.constant 0 : i32
    return %c0_i32, %c0_i32_0 : i32, i32
  }
  func.func @transform_4(%arg0: i32) -> (i32, i32) {
    %c0_i32 = arith.constant 0 : i32
    %c0_i32_0 = arith.constant 0 : i32
    %c0_i32_1 = arith.constant 0 : i32
    return %c0_i32, %c0_i32_0 : i32, i32
  }
  func.func @transform_5(%arg0: i32) -> (i32, i32) {
    %c0_i32 = arith.constant 0 : i32
    %c0_i32_0 = arith.constant 0 : i32
    %c0_i32_1 = arith.constant 0 : i32
    return %c0_i32, %c0_i32_0 : i32, i32
  }
  func.func @transform_6(%arg0: i32) -> (i32, i32) {
    %c0_i32 = arith.constant 0 : i32
    %c0_i32_0 = arith.constant 0 : i32
    %c0_i32_1 = arith.constant 0 : i32
    return %c0_i32, %c0_i32_0 : i32, i32
  }
  func.func @transform_7(%arg0: i32) -> (i32, i32) {
    %c0_i32 = arith.constant 0 : i32
    %c0_i32_0 = arith.constant 0 : i32
    %c0_i32_1 = arith.constant 0 : i32
    return %c0_i32, %c0_i32_0 : i32, i32
  }
  func.func @transform_8(%arg0: i32) -> (i32, i32) {
    %c0_i32 = arith.constant 0 : i32
    %c0_i32_0 = arith.constant 0 : i32
    return %arg0, %c0_i32 : i32, i32
  }
}

</mosaic_0001>

<llo_original>
// kernel: afno_transformer_block.3
$region0: #{afno_transformer_block.3}
  #allocation0 [shape = 'u32[]', space=smem, size = 0x4, offset = 0x4, fixed_abs, tag = 'smem constant byte address 0x4 - core index']
  #allocation1 [shape = 'u32[72,128]{1,0:T(1,128)}', space=vmem, size = 0x9000, scoped, tag = 'internal scratch']
  %s0 = inlined_call_operand.hbm [shape: f32[512,32], index: 0, kind: input, shape index: {}]
  %s1 = inlined_call_operand.hbm [shape: f32[1,32], index: 1, kind: input, shape index: {}]
  %s2 = inlined_call_operand.hbm [shape: f32[1,32], index: 2, kind: input, shape index: {}]
  %s3 = inlined_call_operand.vmem [shape: f32[512,32], index: 3, kind: output, shape index: {}]
  %s4 = sld [smem:[#allocation0]]
  $region57: #{afno_transformer_block.3} parent=0
    _
  %s6 = ssub.s32 1, %s4
  %s7 = scalar_select 0, %s6, %s4
  $region1: #{afno_transformer_block.3} parent=0
    #allocation2 [shape = 'u8[262144]{0}', space=vmem, size = 0x40000, scoped, tag = 'input window, operand 0']
    #allocation3 [shape = 's32[2]{0}', space=sflag, size = 0x8, scoped, tag = 'scoped memory for afno_transformer_block.3']
    #allocation4 [shape = 'u8[512]{0}', space=vmem, size = 0x400, scoped, tag = 'input window, operand 1, single buffered']
    #allocation5 [shape = 's32[1]{0}', space=sflag, size = 0x4, scoped, tag = 'scoped memory for afno_transformer_block.3']
    #allocation6 [shape = 'u8[512]{0}', space=vmem, size = 0x400, scoped, tag = 'input window, operand 2, single buffered']
    %8 = vsyncpa [#allocation3], 0
    %s9 = scalar_lea.sflag [#allocation3], 1
    %10 = vsyncpa %s9, 0
    %11 = vsyncpa [#allocation5], 0
    loop: start=0, step=1, limit=4
    $region2: #{afno_transformer_block.3} parent=1 // loop_pre_header
      _
    $region3: #{afno_transformer_block.3} parent=1 // loop_header
      %s13 = sphi 0, %s17
      %p14 = scmp.ge.s32.totalorder %s13, 4
      %s23 = sphi 0, %s25
      %s26 = sphi 0, %s23
      %s27 = sphi 0, %s26
      %s43 = sphi 0, %s27
      %s47 = sphi 0, %s47
      %s49 = sphi 0, %s47
      %s50 = sphi 0, %s49
      %s64 = sphi 0, %s50
      %s68 = sphi 0, %s68
      %s70 = sphi 0, %s68
      %s71 = sphi 0, %s70
      %s85 = sphi 0, %s71
      %s91 = sphi 0, %s93
      %s94 = sphi 0, %s91
      %s95 = sphi 0, %s94
      %s111 = sphi 0, %s95
    $region4: #{afno_transformer_block.3} parent=1 // loop_header_branch
      %16 = sbr.rel (%p14) target = $region8
    $region5: #{afno_transformer_block.3} parent=1 // loop_body
      %s18 = ssub.s32 %s13, 1
      %s19 = ssub.s32 %s13, 2
      %s20 = sadd.s32 %s13, 1
      %s21 = ssub.s32 %s13, %s20
      %p22 = scmp.eq.s32.totalorder %s21, 0
      %s24 = sadd.s32 %s23, 1
      %s25 = scalar_select %p22, %s23, %s24
      %p28 = pneg %p22
      %p29 = scmp.eq.s32.totalorder %s13, 1
      %p30 = por %p28, %p29
      %p31 = scmp.ne.s32.totalorder %s23, %s26
      %p32 = scmp.eq.s32.totalorder %s13, 0
      %p33 = por %p31, %p32
      %p34 = scmp.ne.s32.totalorder %s23, %s26
      %p35 = scmp.eq.s32.totalorder %s18, 1
      %p36 = por %p34, %p35
      %p37 = scmp.ne.s32.totalorder %s26, %s27
      %p38 = scmp.eq.s32.totalorder %s18, 0
      %p39 = por %p37, %p38
      %p40 = scmp.ne.s32.totalorder %s26, %s27
      %p41 = scmp.eq.s32.totalorder %s19, 1
      %p42 = por %p40, %p41
      %p44 = scmp.ne.s32.totalorder %s27, %s43
      %p45 = scmp.eq.s32.totalorder %s19, 0
      %p46 = por %p44, %p45
      %s48 = sadd.s32 %s47, 1
      %p51 = scmp.eq.s32.totalorder %s13, 1
      %p52 = scmp.ne.s32.totalorder %s47, %s49
      %p53 = scmp.eq.s32.totalorder %s13, 0
      %p54 = por %p52, %p53
      %p55 = scmp.ne.s32.totalorder %s47, %s49
      %p56 = scmp.eq.s32.totalorder %s18, 1
      %p57 = por %p55, %p56
      %p58 = scmp.ne.s32.totalorder %s49, %s50
      %p59 = scmp.eq.s32.totalorder %s18, 0
      %p60 = por %p58, %p59
      %p61 = scmp.ne.s32.totalorder %s49, %s50
      %p62 = scmp.eq.s32.totalorder %s19, 1
      %p63 = por %p61, %p62
      %p65 = scmp.ne.s32.totalorder %s50, %s64
      %p66 = scmp.eq.s32.totalorder %s19, 0
      %p67 = por %p65, %p66
      %s69 = sadd.s32 %s68, 1
      %p72 = scmp.eq.s32.totalorder %s13, 1
      %p73 = scmp.ne.s32.totalorder %s68, %s70
      %p74 = scmp.eq.s32.totalorder %s13, 0
      %p75 = por %p73, %p74
      %p76 = scmp.ne.s32.totalorder %s68, %s70
      %p77 = scmp.eq.s32.totalorder %s18, 1
      %p78 = por %p76, %p77
      %p79 = scmp.ne.s32.totalorder %s70, %s71
      %p80 = scmp.eq.s32.totalorder %s18, 0
      %p81 = por %p79, %p80
      %p82 = scmp.ne.s32.totalorder %s70, %s71
      %p83 = scmp.eq.s32.totalorder %s19, 1
      %p84 = por %p82, %p83
      %p86 = scmp.ne.s32.totalorder %s71, %s85
      %p87 = scmp.eq.s32.totalorder %s19, 0
      %p88 = por %p86, %p87
      %s89 = ssub.s32 %s13, %s20
      %p90 = scmp.eq.s32.totalorder %s89, 0
      %s92 = sadd.s32 %s91, 1
      %s93 = scalar_select %p90, %s91, %s92
      %p96 = pneg %p90
      %p97 = scmp.eq.s32.totalorder %s13, 1
      %p98 = por %p96, %p97
      %p99 = scmp.ne.s32.totalorder %s91, %s94
      %p100 = scmp.eq.s32.totalorder %s13, 0
      %p101 = por %p99, %p100
      %p102 = scmp.ne.s32.totalorder %s91, %s94
      %p103 = scmp.eq.s32.totalorder %s18, 1
      %p104 = por %p102, %p103
      %p105 = scmp.ne.s32.totalorder %s94, %s95
      %p106 = scmp.eq.s32.totalorder %s18, 0
      %p107 = por %p105, %p106
      %p108 = scmp.ne.s32.totalorder %s94, %s95
      %p109 = scmp.eq.s32.totalorder %s19, 1
      %p110 = por %p108, %p109
      %p112 = scmp.ne.s32.totalorder %s95, %s111
      %p113 = scmp.eq.s32.totalorder %s19, 0
      %p114 = por %p112, %p113
      %p115 = scmp.le.s32.totalorder 1, %s13
      %p116 = scmp.lt.s32.totalorder %s13, 3
      %p117 = pnand %p115, %p116
      %p118 = pneg %p117
      // Predicated region
      $region9: #{afno_transformer_block.3} parent=5 // pred_check
        _
      $region10: #{afno_transformer_block.3} parent=5 // pred_check_branch
        %120 = sbr.rel (%p117) target = $region12
      $region11: #{afno_transformer_block.3} parent=5 // pred_region
        %s121 = ssub.s32 %s13, 1
        // Predicated region
        $region13: #{afno_transformer_block.3} parent=11 // pred_check
          %p122 = pneg %p60
        $region14: #{afno_transformer_block.3} parent=11 // pred_check_branch
          %124 = sbr.rel (%p122) target = $region16
        $region15: #{afno_transformer_block.3} parent=11 // pred_region
          %126 = vsyncadd [#allocation5], 0
          %s128 = sshll.u32 %s1, 4
          %s129 = int_to_ptr.hbm [resolvable:$true] %s128
          %s130 = sshll.u32 [#allocation4], 4
          %s131 = int_to_ptr.vmem [resolvable:$true] %s130
          %133 = dma.hbm_to_vmem [thread:$0]  %s129, 16, %s131, [#allocation5]
        $region16: #{afno_transformer_block.3} parent=11 // pred_fallthru
          _
        // Predicated region
        $region17: #{afno_transformer_block.3} parent=11 // pred_check
          %p134 = pneg %p81
        $region18: #{afno_transformer_block.3} parent=11 // pred_check_branch
          %136 = sbr.rel (%p134) target = $region20
        $region19: #{afno_transformer_block.3} parent=11 // pred_region
          %138 = vsyncadd [#allocation5], 0
          %s140 = sshll.u32 %s2, 4
          %s141 = int_to_ptr.hbm [resolvable:$true] %s140
          %s142 = sshll.u32 [#allocation6], 4
          %s143 = int_to_ptr.vmem [resolvable:$true] %s142
          %145 = dma.hbm_to_vmem [thread:$0]  %s141, 16, %s143, [#allocation5]
        $region20: #{afno_transformer_block.3} parent=11 // pred_fallthru
          _
      $region12: #{afno_transformer_block.3} parent=5 // pred_fallthru
        _
      %p146 = scmp.lt.s32.totalorder %s13, 2
      // Predicated region
      $region21: #{afno_transformer_block.3} parent=5 // pred_check
        %p147 = pneg %p146
      $region22: #{afno_transformer_block.3} parent=5 // pred_check_branch
        %149 = sbr.rel (%p147) target = $region24
      $region23: #{afno_transformer_block.3} parent=5 // pred_region
        // Predicated region
        $region25: #{afno_transformer_block.3} parent=23 // pred_check
          %p150 = pneg %p33
        $region26: #{afno_transformer_block.3} parent=23 // pred_check_branch
          %152 = sbr.rel (%p150) target = $region28
        $region27: #{afno_transformer_block.3} parent=23 // pred_region
          %s153 = sand.u32 %s23, 1
          %s154 = scalar_lea.sflag [#allocation3], %s153
          %s155 = sand.u32 %s23, 1
          %s156 = smul.addr %s155, 256
          %s157 = scalar_lea.vmem [#allocation2], %s156
          %s158 = smul.u32 32, %s13
          %160 = vsyncadd %s154, 0
          %s161 = smul.addr %s158, 8
          %s162 = scalar_lea.hbm %s0, %s161
          %s163 = sshll.u32 %s162, 4
          %s164 = int_to_ptr.hbm [resolvable:$true] %s163
          %s165 = sshll.u32 %s157, 4
          %s166 = int_to_ptr.vmem [resolvable:$true] %s165
          %171 = dma.hbm_to_vmem [thread:$0]  %s164, 4096, %s166, %s154, 128, 128, 8
        $region28: #{afno_transformer_block.3} parent=23 // pred_fallthru
          _
      $region24: #{afno_transformer_block.3} parent=5 // pred_fallthru
        _
      %p172 = scmp.le.s32.totalorder 1, %s13
      %p173 = scmp.lt.s32.totalorder %s13, 3
      %p174 = pnand %p172, %p173
      %p175 = pneg %p174
      // Predicated region
      $region29: #{afno_transformer_block.3} parent=5 // pred_check
        _
      $region30: #{afno_transformer_block.3} parent=5 // pred_check_branch
        %177 = sbr.rel (%p174) target = $region32
      $region31: #{afno_transformer_block.3} parent=5 // pred_region
        %s178 = ssub.s32 %s13, 1
        %s179 = sand.u32 %s26, 1
        %s180 = scalar_lea.sflag [#allocation3], %s179
        %s181 = sand.u32 %s26, 1
        %s182 = smul.addr %s181, 256
        %s183 = scalar_lea.vmem [#allocation2], %s182
        // Predicated region
        $region33: #{afno_transformer_block.3} parent=31 // pred_check
          %p184 = pneg %p39
        $region34: #{afno_transformer_block.3} parent=31 // pred_check_branch
          %186 = sbr.rel (%p184) target = $region36
        $region35: #{afno_transformer_block.3} parent=31 // pred_region
          %188 = dma.done %s180, 4096
        $region36: #{afno_transformer_block.3} parent=31 // pred_fallthru
          _
        // Predicated region
        $region37: #{afno_transformer_block.3} parent=31 // pred_check
          %p189 = pneg %p60
        $region38: #{afno_transformer_block.3} parent=31 // pred_check_branch
          %191 = sbr.rel (%p189) target = $region40
        $region39: #{afno_transformer_block.3} parent=31 // pred_region
          %193 = dma.done [#allocation5], 16
        $region40: #{afno_transformer_block.3} parent=31 // pred_fallthru
          _
        // Predicated region
        $region41: #{afno_transformer_block.3} parent=31 // pred_check
          %p194 = pneg %p81
        $region42: #{afno_transformer_block.3} parent=31 // pred_check_branch
          %196 = sbr.rel (%p194) target = $region44
        $region43: #{afno_transformer_block.3} parent=31 // pred_region
          %198 = dma.done [#allocation5], 16
        $region44: #{afno_transformer_block.3} parent=31 // pred_fallthru
          _
        %s199 = sand.u32 %s26, 1
        %s200 = scalar_lea.sflag [#allocation3], %s199
        %s201 = sand.u32 %s26, 1
        %s202 = smul.addr %s201, 256
        %s203 = scalar_lea.vmem [#allocation2], %s202
        %p204 = pneg %p39
        %p205 = pneg %p36
        %p206 = pneg %p60
        %p207 = pneg %p57
        %p208 = pneg %p81
        %p209 = pneg %p78
        %p210 = pneg %p107
        %p211 = pneg %p104
        %s212 = smul.u32 32, %s18
        %p213 = scmp.lt.s32.totalorder %s212, 63
        %s214 = scalar_select %p213, %s212, 63
        %s215 = smul.addr %s214, 8
        %s216 = scalar_lea.vmem %s3, %s215
        %s217 = smul.u32 32, %s18
        %s218 = smul.u32 32, %s18
        %p219 = scmp.lt.s32.totalorder %s218, 63
        %s220 = scalar_select %p219, %s218, 63
        %s221 = smul.addr %s220, 8
        %s222 = scalar_lea.vmem %s3, %s221
        %s223 = smul.u32 32, %s18
        %v224 = vld [vmem:[%s183] sm:$0xff]
        %v225 = vld [vmem:[%s183 + $0x8] sm:$0xff]
        %v226 = vld [vmem:[%s183 + $0x10] sm:$0xff]
        %v227 = vld [vmem:[%s183 + $0x18] sm:$0xff]
        %v228 = vld [vmem:[%s183 + $0x20] sm:$0xff]
        %v229 = vld [vmem:[%s183 + $0x28] sm:$0xff]
        %v230 = vld [vmem:[%s183 + $0x30] sm:$0xff]
        %v231 = vld [vmem:[%s183 + $0x38] sm:$0xff]
        %v232 = vld [vmem:[%s183 + $0x40] sm:$0xff]
        %v233 = vld [vmem:[%s183 + $0x48] sm:$0xff]
        %v234 = vld [vmem:[%s183 + $0x50] sm:$0xff]
        %v235 = vld [vmem:[%s183 + $0x58] sm:$0xff]
        %v236 = vld [vmem:[%s183 + $0x60] sm:$0xff]
        %v237 = vld [vmem:[%s183 + $0x68] sm:$0xff]
        %v238 = vld [vmem:[%s183 + $0x70] sm:$0xff]
        %v239 = vld [vmem:[%s183 + $0x78] sm:$0xff]
        %v240 = vld [vmem:[%s183 + $0x80] sm:$0xff]
        %v241 = vld [vmem:[%s183 + $0x88] sm:$0xff]
        %v242 = vld [vmem:[%s183 + $0x90] sm:$0xff]
        %v243 = vld [vmem:[%s183 + $0x98] sm:$0xff]
        %v244 = vld [vmem:[%s183 + $0xa0] sm:$0xff]
        %v245 = vld [vmem:[%s183 + $0xa8] sm:$0xff]
        %v246 = vld [vmem:[%s183 + $0xb0] sm:$0xff]
        %v247 = vld [vmem:[%s183 + $0xb8] sm:$0xff]
        %v248 = vld [vmem:[%s183 + $0xc0] sm:$0xff]
        %v249 = vld [vmem:[%s183 + $0xc8] sm:$0xff]
        %v250 = vld [vmem:[%s183 + $0xd0] sm:$0xff]
        %v251 = vld [vmem:[%s183 + $0xd8] sm:$0xff]
        %v252 = vld [vmem:[%s183 + $0xe0] sm:$0xff]
        %v253 = vld [vmem:[%s183 + $0xe8] sm:$0xff]
        %v254 = vld [vmem:[%s183 + $0xf0] sm:$0xff]
        %v255 = vld [vmem:[%s183 + $0xf8] sm:$0xff]
        %vm256 = vcmask 261120
        %v257 = vsel %vm256, %v224, 0.0
        %258 = vadd.xlane.f32.xlu0 %v257
        %v259 = vpop.xlane.xlu0 %258
        %v260 = vsel %vm256, %v225, 0.0
        %261 = vadd.xlane.f32.xlu0 %v260
        %v262 = vpop.xlane.xlu0 %261
        %v263 = vsel %vm256, %v226, 0.0
        %264 = vadd.xlane.f32.xlu0 %v263
        %v265 = vpop.xlane.xlu0 %264
        %v266 = vsel %vm256, %v227, 0.0
        %267 = vadd.xlane.f32.xlu0 %v266
        %v268 = vpop.xlane.xlu0 %267
        %v269 = vsel %vm256, %v228, 0.0
        %270 = vadd.xlane.f32.xlu0 %v269
        %v271 = vpop.xlane.xlu0 %270
        %v272 = vsel %vm256, %v229, 0.0
        %273 = vadd.xlane.f32.xlu0 %v272
        %v274 = vpop.xlane.xlu0 %273
        %v275 = vsel %vm256, %v230, 0.0
        %276 = vadd.xlane.f32.xlu0 %v275
        %v277 = vpop.xlane.xlu0 %276
        %v278 = vsel %vm256, %v231, 0.0
        %279 = vadd.xlane.f32.xlu0 %v278
        %v280 = vpop.xlane.xlu0 %279
        %v281 = vsel %vm256, %v232, 0.0
        %282 = vadd.xlane.f32.xlu0 %v281
        %v283 = vpop.xlane.xlu0 %282
        %v284 = vsel %vm256, %v233, 0.0
        %285 = vadd.xlane.f32.xlu0 %v284
        %v286 = vpop.xlane.xlu0 %285
        %v287 = vsel %vm256, %v234, 0.0
        %288 = vadd.xlane.f32.xlu0 %v287
        %v289 = vpop.xlane.xlu0 %288
        %v290 = vsel %vm256, %v235, 0.0
        %291 = vadd.xlane.f32.xlu0 %v290
        %v292 = vpop.xlane.xlu0 %291
        %v293 = vsel %vm256, %v236, 0.0
        %294 = vadd.xlane.f32.xlu0 %v293
        %v295 = vpop.xlane.xlu0 %294
        %v296 = vsel %vm256, %v237, 0.0
        %297 = vadd.xlane.f32.xlu0 %v296
        %v298 = vpop.xlane.xlu0 %297
        %v299 = vsel %vm256, %v238, 0.0
        %300 = vadd.xlane.f32.xlu0 %v299
        %v301 = vpop.xlane.xlu0 %300
        %v302 = vsel %vm256, %v239, 0.0
        %303 = vadd.xlane.f32.xlu0 %v302
        %v304 = vpop.xlane.xlu0 %303
        %v305 = vsel %vm256, %v240, 0.0
        %306 = vadd.xlane.f32.xlu0 %v305
        %v307 = vpop.xlane.xlu0 %306
        %v308 = vsel %vm256, %v241, 0.0
        %309 = vadd.xlane.f32.xlu0 %v308
        %v310 = vpop.xlane.xlu0 %309
        %v311 = vsel %vm256, %v242, 0.0
        %312 = vadd.xlane.f32.xlu0 %v311
        %v313 = vpop.xlane.xlu0 %312
        %v314 = vsel %vm256, %v243, 0.0
        %315 = vadd.xlane.f32.xlu0 %v314
        %v316 = vpop.xlane.xlu0 %315
        %v317 = vsel %vm256, %v244, 0.0
        %318 = vadd.xlane.f32.xlu0 %v317
        %v319 = vpop.xlane.xlu0 %318
        %v320 = vsel %vm256, %v245, 0.0
        %321 = vadd.xlane.f32.xlu0 %v320
        %v322 = vpop.xlane.xlu0 %321
        %v323 = vsel %vm256, %v246, 0.0
        %324 = vadd.xlane.f32.xlu0 %v323
        %v325 = vpop.xlane.xlu0 %324
        %v326 = vsel %vm256, %v247, 0.0
        %327 = vadd.xlane.f32.xlu0 %v326
        %v328 = vpop.xlane.xlu0 %327
        %v329 = vsel %vm256, %v248, 0.0
        %330 = vadd.xlane.f32.xlu0 %v329
        %v331 = vpop.xlane.xlu0 %330
        %v332 = vsel %vm256, %v249, 0.0
        %333 = vadd.xlane.f32.xlu0 %v332
        %v334 = vpop.xlane.xlu0 %333
        %v335 = vsel %vm256, %v250, 0.0
        %336 = vadd.xlane.f32.xlu0 %v335
        %v337 = vpop.xlane.xlu0 %336
        %v338 = vsel %vm256, %v251, 0.0
        %339 = vadd.xlane.f32.xlu0 %v338
        %v340 = vpop.xlane.xlu0 %339
        %v341 = vsel %vm256, %v252, 0.0
        %342 = vadd.xlane.f32.xlu0 %v341
        %v343 = vpop.xlane.xlu0 %342
        %v344 = vsel %vm256, %v253, 0.0
        %345 = vadd.xlane.f32.xlu0 %v344
        %v346 = vpop.xlane.xlu0 %345
        %v347 = vsel %vm256, %v254, 0.0
        %348 = vadd.xlane.f32.xlu0 %v347
        %v349 = vpop.xlane.xlu0 %348
        %v350 = vsel %vm256, %v255, 0.0
        %351 = vadd.xlane.f32.xlu0 %v350
        %v352 = vpop.xlane.xlu0 %351
        %v353 = vrcp.pop 32.0
        %v354 = vmul.f32 32.0, %v353
        %v355 = vsub.f32 1.0, %v354
        %v356 = vmul.f32 %v353, %v355
        %v357 = vadd.f32 %v353, %v356
        %vm358 = vweird.f32 %v353
        %v359 = vsel %vm358, %v353, %v357
        %v360 = vmul.f32 %v259, %v359
        %v361 = vmul.f32 %v262, %v359
        %v362 = vmul.f32 %v265, %v359
        %v363 = vmul.f32 %v268, %v359
        %v364 = vmul.f32 %v271, %v359
        %v365 = vmul.f32 %v274, %v359
        %v366 = vmul.f32 %v277, %v359
        %v367 = vmul.f32 %v280, %v359
        %v368 = vmul.f32 %v283, %v359
        %v369 = vmul.f32 %v286, %v359
        %v370 = vmul.f32 %v289, %v359
        %v371 = vmul.f32 %v292, %v359
        %v372 = vmul.f32 %v295, %v359
        %v373 = vmul.f32 %v298, %v359
        %v374 = vmul.f32 %v301, %v359
        %v375 = vmul.f32 %v304, %v359
        %v376 = vmul.f32 %v307, %v359
        %v377 = vmul.f32 %v310, %v359
        %v378 = vmul.f32 %v313, %v359
        %v379 = vmul.f32 %v316, %v359
        %v380 = vmul.f32 %v319, %v359
        %v381 = vmul.f32 %v322, %v359
        %v382 = vmul.f32 %v325, %v359
        %v383 = vmul.f32 %v328, %v359
        %v384 = vmul.f32 %v331, %v359
        %v385 = vmul.f32 %v334, %v359
        %v386 = vmul.f32 %v337, %v359
        %v387 = vmul.f32 %v340, %v359
        %v388 = vmul.f32 %v343, %v359
        %v389 = vmul.f32 %v346, %v359
        %v390 = vmul.f32 %v349, %v359
        %v391 = vmul.f32 %v352, %v359
        %v392 = vsub.f32 %v224, %v360
        %v393 = vsub.f32 %v225, %v361
        %v394 = vsub.f32 %v226, %v362
        %v395 = vsub.f32 %v227, %v363
        %v396 = vsub.f32 %v228, %v364
        %v397 = vsub.f32 %v229, %v365
        %v398 = vsub.f32 %v230, %v366
        %v399 = vsub.f32 %v231, %v367
        %v400 = vsub.f32 %v232, %v368
        %v401 = vsub.f32 %v233, %v369
        %v402 = vsub.f32 %v234, %v370
        %v403 = vsub.f32 %v235, %v371
        %v404 = vsub.f32 %v236, %v372
        %v405 = vsub.f32 %v237, %v373
        %v406 = vsub.f32 %v238, %v374
        %v407 = vsub.f32 %v239, %v375
        %v408 = vsub.f32 %v240, %v376
        %v409 = vsub.f32 %v241, %v377
        %v410 = vsub.f32 %v242, %v378
        %v411 = vsub.f32 %v243, %v379
        %v412 = vsub.f32 %v244, %v380
        %v413 = vsub.f32 %v245, %v381
        %v414 = vsub.f32 %v246, %v382
        %v415 = vsub.f32 %v247, %v383
        %v416 = vsub.f32 %v248, %v384
        %v417 = vsub.f32 %v249, %v385
        %v418 = vsub.f32 %v250, %v386
        %v419 = vsub.f32 %v251, %v387
        %v420 = vsub.f32 %v252, %v388
        %v421 = vsub.f32 %v253, %v389
        %v422 = vsub.f32 %v254, %v390
        %v423 = vsub.f32 %v255, %v391
        %v424 = vmul.f32 %v392, %v392
        %v425 = vmul.f32 %v393, %v393
        %v426 = vmul.f32 %v394, %v394
        %v427 = vmul.f32 %v395, %v395
        %v428 = vmul.f32 %v396, %v396
        %v429 = vmul.f32 %v397, %v397
        %v430 = vmul.f32 %v398, %v398
        %v431 = vmul.f32 %v399, %v399
        %v432 = vmul.f32 %v400, %v400
        %v433 = vmul.f32 %v401, %v401
        %v434 = vmul.f32 %v402, %v402
        %v435 = vmul.f32 %v403, %v403
        %v436 = vmul.f32 %v404, %v404
        %v437 = vmul.f32 %v405, %v405
        %v438 = vmul.f32 %v406, %v406
        %v439 = vmul.f32 %v407, %v407
        %v440 = vmul.f32 %v408, %v408
        %v441 = vmul.f32 %v409, %v409
        %v442 = vmul.f32 %v410, %v410
        %v443 = vmul.f32 %v411, %v411
        %v444 = vmul.f32 %v412, %v412
        %v445 = vmul.f32 %v413, %v413
        %v446 = vmul.f32 %v414, %v414
        %v447 = vmul.f32 %v415, %v415
        %v448 = vmul.f32 %v416, %v416
        %v449 = vmul.f32 %v417, %v417
        %v450 = vmul.f32 %v418, %v418
        %v451 = vmul.f32 %v419, %v419
        %v452 = vmul.f32 %v420, %v420
        %v453 = vmul.f32 %v421, %v421
        %v454 = vmul.f32 %v422, %v422
        %v455 = vmul.f32 %v423, %v423
        %v456 = vsel %vm256, %v424, 0.0
        %457 = vadd.xlane.f32.xlu0 %v456
        %v458 = vpop.xlane.xlu0 %457
        %v459 = vsel %vm256, %v425, 0.0
        %460 = vadd.xlane.f32.xlu0 %v459
        %v461 = vpop.xlane.xlu0 %460
        %v462 = vsel %vm256, %v426, 0.0
        %463 = vadd.xlane.f32.xlu0 %v462
        %v464 = vpop.xlane.xlu0 %463
        %v465 = vsel %vm256, %v427, 0.0
        %466 = vadd.xlane.f32.xlu0 %v465
        %v467 = vpop.xlane.xlu0 %466
        %v468 = vsel %vm256, %v428, 0.0
        %469 = vadd.xlane.f32.xlu0 %v468
        %v470 = vpop.xlane.xlu0 %469
        %v471 = vsel %vm256, %v429, 0.0
        %472 = vadd.xlane.f32.xlu0 %v471
        %v473 = vpop.xlane.xlu0 %472
        %v474 = vsel %vm256, %v430, 0.0
        %475 = vadd.xlane.f32.xlu0 %v474
        %v476 = vpop.xlane.xlu0 %475
        %v477 = vsel %vm256, %v431, 0.0
        %478 = vadd.xlane.f32.xlu0 %v477
        %v479 = vpop.xlane.xlu0 %478
        %v480 = vsel %vm256, %v432, 0.0
        %481 = vadd.xlane.f32.xlu0 %v480
        %v482 = vpop.xlane.xlu0 %481
        %v483 = vsel %vm256, %v433, 0.0
        %484 = vadd.xlane.f32.xlu0 %v483
        %v485 = vpop.xlane.xlu0 %484
        %v486 = vsel %vm256, %v434, 0.0
        %487 = vadd.xlane.f32.xlu0 %v486
        %v488 = vpop.xlane.xlu0 %487
        %v489 = vsel %vm256, %v435, 0.0
        %490 = vadd.xlane.f32.xlu0 %v489
        %v491 = vpop.xlane.xlu0 %490
        %v492 = vsel %vm256, %v436, 0.0
        %493 = vadd.xlane.f32.xlu0 %v492
        %v494 = vpop.xlane.xlu0 %493
        %v495 = vsel %vm256, %v437, 0.0
        %496 = vadd.xlane.f32.xlu0 %v495
        %v497 = vpop.xlane.xlu0 %496
        %v498 = vsel %vm256, %v438, 0.0
        %499 = vadd.xlane.f32.xlu0 %v498
        %v500 = vpop.xlane.xlu0 %499
        %v501 = vsel %vm256, %v439, 0.0
        %502 = vadd.xlane.f32.xlu0 %v501
        %v503 = vpop.xlane.xlu0 %502
        %v504 = vsel %vm256, %v440, 0.0
        %505 = vadd.xlane.f32.xlu0 %v504
        %v506 = vpop.xlane.xlu0 %505
        %v507 = vsel %vm256, %v441, 0.0
        %508 = vadd.xlane.f32.xlu0 %v507
        %v509 = vpop.xlane.xlu0 %508
        %v510 = vsel %vm256, %v442, 0.0
        %511 = vadd.xlane.f32.xlu0 %v510
        %v512 = vpop.xlane.xlu0 %511
        %v513 = vsel %vm256, %v443, 0.0
        %514 = vadd.xlane.f32.xlu0 %v513
        %v515 = vpop.xlane.xlu0 %514
        %v516 = vsel %vm256, %v444, 0.0
        %517 = vadd.xlane.f32.xlu0 %v516
        %v518 = vpop.xlane.xlu0 %517
        %v519 = vsel %vm256, %v445, 0.0
        %520 = vadd.xlane.f32.xlu0 %v519
        %v521 = vpop.xlane.xlu0 %520
        %v522 = vsel %vm256, %v446, 0.0
        %523 = vadd.xlane.f32.xlu0 %v522
        %v524 = vpop.xlane.xlu0 %523
        %v525 = vsel %vm256, %v447, 0.0
        %526 = vadd.xlane.f32.xlu0 %v525
        %v527 = vpop.xlane.xlu0 %526
        %v528 = vsel %vm256, %v448, 0.0
        %529 = vadd.xlane.f32.xlu0 %v528
        %v530 = vpop.xlane.xlu0 %529
        %v531 = vsel %vm256, %v449, 0.0
        %532 = vadd.xlane.f32.xlu0 %v531
        %v533 = vpop.xlane.xlu0 %532
        %v534 = vsel %vm256, %v450, 0.0
        %535 = vadd.xlane.f32.xlu0 %v534
        %v536 = vpop.xlane.xlu0 %535
        %v537 = vsel %vm256, %v451, 0.0
        %538 = vadd.xlane.f32.xlu0 %v537
        %v539 = vpop.xlane.xlu0 %538
        %v540 = vsel %vm256, %v452, 0.0
        %541 = vadd.xlane.f32.xlu0 %v540
        %v542 = vpop.xlane.xlu0 %541
        %v543 = vsel %vm256, %v453, 0.0
        %544 = vadd.xlane.f32.xlu0 %v543
        %v545 = vpop.xlane.xlu0 %544
        %v546 = vsel %vm256, %v454, 0.0
        %547 = vadd.xlane.f32.xlu0 %v546
        %v548 = vpop.xlane.xlu0 %547
        %v549 = vsel %vm256, %v455, 0.0
        %550 = vadd.xlane.f32.xlu0 %v549
        %v551 = vpop.xlane.xlu0 %550
        %v552 = vmul.f32 %v458, %v359
        %v553 = vmul.f32 %v461, %v359
        %v554 = vmul.f32 %v464, %v359
        %v555 = vmul.f32 %v467, %v359
        %v556 = vmul.f32 %v470, %v359
        %v557 = vmul.f32 %v473, %v359
        %v558 = vmul.f32 %v476, %v359
        %v559 = vmul.f32 %v479, %v359
        %v560 = vmul.f32 %v482, %v359
        %v561 = vmul.f32 %v485, %v359
        %v562 = vmul.f32 %v488, %v359
        %v563 = vmul.f32 %v491, %v359
        %v564 = vmul.f32 %v494, %v359
        %v565 = vmul.f32 %v497, %v359
        %v566 = vmul.f32 %v500, %v359
        %v567 = vmul.f32 %v503, %v359
        %v568 = vmul.f32 %v506, %v359
        %v569 = vmul.f32 %v509, %v359
        %v570 = vmul.f32 %v512, %v359
        %v571 = vmul.f32 %v515, %v359
        %v572 = vmul.f32 %v518, %v359
        %v573 = vmul.f32 %v521, %v359
        %v574 = vmul.f32 %v524, %v359
        %v575 = vmul.f32 %v527, %v359
        %v576 = vmul.f32 %v530, %v359
        %v577 = vmul.f32 %v533, %v359
        %v578 = vmul.f32 %v536, %v359
        %v579 = vmul.f32 %v539, %v359
        %v580 = vmul.f32 %v542, %v359
        %v581 = vmul.f32 %v545, %v359
        %v582 = vmul.f32 %v548, %v359
        %v583 = vmul.f32 %v551, %v359
        %v584 = vadd.f32 %v552, 1e-05
        %v585 = vadd.f32 %v553, 1e-05
        %v586 = vadd.f32 %v554, 1e-05
        %v587 = vadd.f32 %v555, 1e-05
        %v588 = vadd.f32 %v556, 1e-05
        %v589 = vadd.f32 %v557, 1e-05
        %v590 = vadd.f32 %v558, 1e-05
        %v591 = vadd.f32 %v559, 1e-05
        %v592 = vadd.f32 %v560, 1e-05
        %v593 = vadd.f32 %v561, 1e-05
        %v594 = vadd.f32 %v562, 1e-05
        %v595 = vadd.f32 %v563, 1e-05
        %v596 = vadd.f32 %v564, 1e-05
        %v597 = vadd.f32 %v565, 1e-05
        %v598 = vadd.f32 %v566, 1e-05
        %v599 = vadd.f32 %v567, 1e-05
        %v600 = vadd.f32 %v568, 1e-05
        %v601 = vadd.f32 %v569, 1e-05
        %v602 = vadd.f32 %v570, 1e-05
        %v603 = vadd.f32 %v571, 1e-05
        %v604 = vadd.f32 %v572, 1e-05
        %v605 = vadd.f32 %v573, 1e-05
        %v606 = vadd.f32 %v574, 1e-05
        %v607 = vadd.f32 %v575, 1e-05
        %v608 = vadd.f32 %v576, 1e-05
        %v609 = vadd.f32 %v577, 1e-05
        %v610 = vadd.f32 %v578, 1e-05
        %v611 = vadd.f32 %v579, 1e-05
        %v612 = vadd.f32 %v580, 1e-05
        %v613 = vadd.f32 %v581, 1e-05
        %v614 = vadd.f32 %v582, 1e-05
        %v615 = vadd.f32 %v583, 1e-05
        %v616 = vrsqrt.pop %v584
        %v617 = vmul.f32 %v616, %v584
        %v618 = vmul.f32 %v617, %v616
        %v619 = vmul.f32 0.5, %v618
        %v620 = vsub.f32 1.5, %v619
        %v621 = vmul.f32 %v616, %v620
        %vm622 = vweird.f32 %v584
        %vm623 = vweird.f32 %v616
        %vm624 = vmor %vm622, %vm623
        %v625 = vsel %vm624, %v616, %v621
        %v626 = vrsqrt.pop %v585
        %v627 = vmul.f32 %v626, %v585
        %v628 = vmul.f32 %v627, %v626
        %v629 = vmul.f32 0.5, %v628
        %v630 = vsub.f32 1.5, %v629
        %v631 = vmul.f32 %v626, %v630
        %vm632 = vweird.f32 %v585
        %vm633 = vweird.f32 %v626
        %vm634 = vmor %vm632, %vm633
        %v635 = vsel %vm634, %v626, %v631
        %v636 = vrsqrt.pop %v586
        %v637 = vmul.f32 %v636, %v586
        %v638 = vmul.f32 %v637, %v636
        %v639 = vmul.f32 0.5, %v638
        %v640 = vsub.f32 1.5, %v639
        %v641 = vmul.f32 %v636, %v640
        %vm642 = vweird.f32 %v586
        %vm643 = vweird.f32 %v636
        %vm644 = vmor %vm642, %vm643
        %v645 = vsel %vm644, %v636, %v641
        %v646 = vrsqrt.pop %v587
        %v647 = vmul.f32 %v646, %v587
        %v648 = vmul.f32 %v647, %v646
        %v649 = vmul.f32 0.5, %v648
        %v650 = vsub.f32 1.5, %v649
        %v651 = vmul.f32 %v646, %v650
        %vm652 = vweird.f32 %v587
        %vm653 = vweird.f32 %v646
        %vm654 = vmor %vm652, %vm653
        %v655 = vsel %vm654, %v646, %v651
        %v656 = vrsqrt.pop %v588
        %v657 = vmul.f32 %v656, %v588
        %v658 = vmul.f32 %v657, %v656
        %v659 = vmul.f32 0.5, %v658
        %v660 = vsub.f32 1.5, %v659
        %v661 = vmul.f32 %v656, %v660
        %vm662 = vweird.f32 %v588
        %vm663 = vweird.f32 %v656
        %vm664 = vmor %vm662, %vm663
        %v665 = vsel %vm664, %v656, %v661
        %v666 = vrsqrt.pop %v589
        %v667 = vmul.f32 %v666, %v589
        %v668 = vmul.f32 %v667, %v666
        %v669 = vmul.f32 0.5, %v668
        %v670 = vsub.f32 1.5, %v669
        %v671 = vmul.f32 %v666, %v670
        %vm672 = vweird.f32 %v589
        %vm673 = vweird.f32 %v666
        %vm674 = vmor %vm672, %vm673
        %v675 = vsel %vm674, %v666, %v671
        %v676 = vrsqrt.pop %v590
        %v677 = vmul.f32 %v676, %v590
        %v678 = vmul.f32 %v677, %v676
        %v679 = vmul.f32 0.5, %v678
        %v680 = vsub.f32 1.5, %v679
        %v681 = vmul.f32 %v676, %v680
        %vm682 = vweird.f32 %v590
        %vm683 = vweird.f32 %v676
        %vm684 = vmor %vm682, %vm683
        %v685 = vsel %vm684, %v676, %v681
        %v686 = vrsqrt.pop %v591
        %v687 = vmul.f32 %v686, %v591
        %v688 = vmul.f32 %v687, %v686
        %v689 = vmul.f32 0.5, %v688
        %v690 = vsub.f32 1.5, %v689
        %v691 = vmul.f32 %v686, %v690
        %vm692 = vweird.f32 %v591
        %vm693 = vweird.f32 %v686
        %vm694 = vmor %vm692, %vm693
        %v695 = vsel %vm694, %v686, %v691
        %v696 = vrsqrt.pop %v592
        %v697 = vmul.f32 %v696, %v592
        %v698 = vmul.f32 %v697, %v696
        %v699 = vmul.f32 0.5, %v698
        %v700 = vsub.f32 1.5, %v699
        %v701 = vmul.f32 %v696, %v700
        %vm702 = vweird.f32 %v592
        %vm703 = vweird.f32 %v696
        %vm704 = vmor %vm702, %vm703
        %v705 = vsel %vm704, %v696, %v701
        %v706 = vrsqrt.pop %v593
        %v707 = vmul.f32 %v706, %v593
        %v708 = vmul.f32 %v707, %v706
        %v709 = vmul.f32 0.5, %v708
        %v710 = vsub.f32 1.5, %v709
        %v711 = vmul.f32 %v706, %v710
        %vm712 = vweird.f32 %v593
        %vm713 = vweird.f32 %v706
        %vm714 = vmor %vm712, %vm713
        %v715 = vsel %vm714, %v706, %v711
        %v716 = vrsqrt.pop %v594
        %v717 = vmul.f32 %v716, %v594
        %v718 = vmul.f32 %v717, %v716
        %v719 = vmul.f32 0.5, %v718
        %v720 = vsub.f32 1.5, %v719
        %v721 = vmul.f32 %v716, %v720
        %vm722 = vweird.f32 %v594
        %vm723 = vweird.f32 %v716
        %vm724 = vmor %vm722, %vm723
        %v725 = vsel %vm724, %v716, %v721
        %v726 = vrsqrt.pop %v595
        %v727 = vmul.f32 %v726, %v595
        %v728 = vmul.f32 %v727, %v726
        %v729 = vmul.f32 0.5, %v728
        %v730 = vsub.f32 1.5, %v729
        %v731 = vmul.f32 %v726, %v730
        %vm732 = vweird.f32 %v595
        %vm733 = vweird.f32 %v726
        %vm734 = vmor %vm732, %vm733
        %v735 = vsel %vm734, %v726, %v731
        %v736 = vrsqrt.pop %v596
        %v737 = vmul.f32 %v736, %v596
        %v738 = vmul.f32 %v737, %v736
        %v739 = vmul.f32 0.5, %v738
        %v740 = vsub.f32 1.5, %v739
        %v741 = vmul.f32 %v736, %v740
        %vm742 = vweird.f32 %v596
        %vm743 = vweird.f32 %v736
        %vm744 = vmor %vm742, %vm743
        %v745 = vsel %vm744, %v736, %v741
        %v746 = vrsqrt.pop %v597
        %v747 = vmul.f32 %v746, %v597
        %v748 = vmul.f32 %v747, %v746
        %v749 = vmul.f32 0.5, %v748
        %v750 = vsub.f32 1.5, %v749
        %v751 = vmul.f32 %v746, %v750
        %vm752 = vweird.f32 %v597
        %vm753 = vweird.f32 %v746
        %vm754 = vmor %vm752, %vm753
        %v755 = vsel %vm754, %v746, %v751
        %v756 = vrsqrt.pop %v598
        %v757 = vmul.f32 %v756, %v598
        %v758 = vmul.f32 %v757, %v756
        %v759 = vmul.f32 0.5, %v758
        %v760 = vsub.f32 1.5, %v759
        %v761 = vmul.f32 %v756, %v760
        %vm762 = vweird.f32 %v598
        %vm763 = vweird.f32 %v756
        %vm764 = vmor %vm762, %vm763
        %v765 = vsel %vm764, %v756, %v761
        %v766 = vrsqrt.pop %v599
        %v767 = vmul.f32 %v766, %v599
        %v768 = vmul.f32 %v767, %v766
        %v769 = vmul.f32 0.5, %v768
        %v770 = vsub.f32 1.5, %v769
        %v771 = vmul.f32 %v766, %v770
        %vm772 = vweird.f32 %v599
        %vm773 = vweird.f32 %v766
        %vm774 = vmor %vm772, %vm773
        %v775 = vsel %vm774, %v766, %v771
        %v776 = vrsqrt.pop %v600
        %v777 = vmul.f32 %v776, %v600
        %v778 = vmul.f32 %v777, %v776
        %v779 = vmul.f32 0.5, %v778
        %v780 = vsub.f32 1.5, %v779
        %v781 = vmul.f32 %v776, %v780
        %vm782 = vweird.f32 %v600
        %vm783 = vweird.f32 %v776
        %vm784 = vmor %vm782, %vm783
        %v785 = vsel %vm784, %v776, %v781
        %v786 = vrsqrt.pop %v601
        %v787 = vmul.f32 %v786, %v601
        %v788 = vmul.f32 %v787, %v786
        %v789 = vmul.f32 0.5, %v788
        %v790 = vsub.f32 1.5, %v789
        %v791 = vmul.f32 %v786, %v790
        %vm792 = vweird.f32 %v601
        %vm793 = vweird.f32 %v786
        %vm794 = vmor %vm792, %vm793
        %v795 = vsel %vm794, %v786, %v791
        %v796 = vrsqrt.pop %v602
        %v797 = vmul.f32 %v796, %v602
        %v798 = vmul.f32 %v797, %v796
        %v799 = vmul.f32 0.5, %v798
        %v800 = vsub.f32 1.5, %v799
        %v801 = vmul.f32 %v796, %v800
        %vm802 = vweird.f32 %v602
        %vm803 = vweird.f32 %v796
        %vm804 = vmor %vm802, %vm803
        %v805 = vsel %vm804, %v796, %v801
        %v806 = vrsqrt.pop %v603
        %v807 = vmul.f32 %v806, %v603
        %v808 = vmul.f32 %v807, %v806
        %v809 = vmul.f32 0.5, %v808
        %v810 = vsub.f32 1.5, %v809
        %v811 = vmul.f32 %v806, %v810
        %vm812 = vweird.f32 %v603
        %vm813 = vweird.f32 %v806
        %vm814 = vmor %vm812, %vm813
        %v815 = vsel %vm814, %v806, %v811
        %v816 = vrsqrt.pop %v604
        %v817 = vmul.f32 %v816, %v604
        %v818 = vmul.f32 %v817, %v816
        %v819 = vmul.f32 0.5, %v818
        %v820 = vsub.f32 1.5, %v819
        %v821 = vmul.f32 %v816, %v820
        %vm822 = vweird.f32 %v604
        %vm823 = vweird.f32 %v816
        %vm824 = vmor %vm822, %vm823
        %v825 = vsel %vm824, %v816, %v821
        %v826 = vrsqrt.pop %v605
        %v827 = vmul.f32 %v826, %v605
        %v828 = vmul.f32 %v827, %v826
        %v829 = vmul.f32 0.5, %v828
        %v830 = vsub.f32 1.5, %v829
        %v831 = vmul.f32 %v826, %v830
        %vm832 = vweird.f32 %v605
        %vm833 = vweird.f32 %v826
        %vm834 = vmor %vm832, %vm833
        %v835 = vsel %vm834, %v826, %v831
        %v836 = vrsqrt.pop %v606
        %v837 = vmul.f32 %v836, %v606
        %v838 = vmul.f32 %v837, %v836
        %v839 = vmul.f32 0.5, %v838
        %v840 = vsub.f32 1.5, %v839
        %v841 = vmul.f32 %v836, %v840
        %vm842 = vweird.f32 %v606
        %vm843 = vweird.f32 %v836
        %vm844 = vmor %vm842, %vm843
        %v845 = vsel %vm844, %v836, %v841
        %v846 = vrsqrt.pop %v607
        %v847 = vmul.f32 %v846, %v607
        %v848 = vmul.f32 %v847, %v846
        %v849 = vmul.f32 0.5, %v848
        %v850 = vsub.f32 1.5, %v849
        %v851 = vmul.f32 %v846, %v850
        %vm852 = vweird.f32 %v607
        %vm853 = vweird.f32 %v846
        %vm854 = vmor %vm852, %vm853
        %v855 = vsel %vm854, %v846, %v851
        %v856 = vrsqrt.pop %v608
        %v857 = vmul.f32 %v856, %v608
        %v858 = vmul.f32 %v857, %v856
        %v859 = vmul.f32 0.5, %v858
        %v860 = vsub.f32 1.5, %v859
        %v861 = vmul.f32 %v856, %v860
        %vm862 = vweird.f32 %v608
        %vm863 = vweird.f32 %v856
        %vm864 = vmor %vm862, %vm863
        %v865 = vsel %vm864, %v856, %v861
        %v866 = vrsqrt.pop %v609
        %v867 = vmul.f32 %v866, %v609
        %v868 = vmul.f32 %v867, %v866
        %v869 = vmul.f32 0.5, %v868
        %v870 = vsub.f32 1.5, %v869
        %v871 = vmul.f32 %v866, %v870
        %vm872 = vweird.f32 %v609
        %vm873 = vweird.f32 %v866
        %vm874 = vmor %vm872, %vm873
        %v875 = vsel %vm874, %v866, %v871
        %v876 = vrsqrt.pop %v610
        %v877 = vmul.f32 %v876, %v610
        %v878 = vmul.f32 %v877, %v876
        %v879 = vmul.f32 0.5, %v878
        %v880 = vsub.f32 1.5, %v879
        %v881 = vmul.f32 %v876, %v880
        %vm882 = vweird.f32 %v610
        %vm883 = vweird.f32 %v876
        %vm884 = vmor %vm882, %vm883
        %v885 = vsel %vm884, %v876, %v881
        %v886 = vrsqrt.pop %v611
        %v887 = vmul.f32 %v886, %v611
        %v888 = vmul.f32 %v887, %v886
        %v889 = vmul.f32 0.5, %v888
        %v890 = vsub.f32 1.5, %v889
        %v891 = vmul.f32 %v886, %v890
        %vm892 = vweird.f32 %v611
        %vm893 = vweird.f32 %v886
        %vm894 = vmor %vm892, %vm893
        %v895 = vsel %vm894, %v886, %v891
        %v896 = vrsqrt.pop %v612
        %v897 = vmul.f32 %v896, %v612
        %v898 = vmul.f32 %v897, %v896
        %v899 = vmul.f32 0.5, %v898
        %v900 = vsub.f32 1.5, %v899
        %v901 = vmul.f32 %v896, %v900
        %vm902 = vweird.f32 %v612
        %vm903 = vweird.f32 %v896
        %vm904 = vmor %vm902, %vm903
        %v905 = vsel %vm904, %v896, %v901
        %v906 = vrsqrt.pop %v613
        %v907 = vmul.f32 %v906, %v613
        %v908 = vmul.f32 %v907, %v906
        %v909 = vmul.f32 0.5, %v908
        %v910 = vsub.f32 1.5, %v909
        %v911 = vmul.f32 %v906, %v910
        %vm912 = vweird.f32 %v613
        %vm913 = vweird.f32 %v906
        %vm914 = vmor %vm912, %vm913
        %v915 = vsel %vm914, %v906, %v911
        %v916 = vrsqrt.pop %v614
        %v917 = vmul.f32 %v916, %v614
        %v918 = vmul.f32 %v917, %v916
        %v919 = vmul.f32 0.5, %v918
        %v920 = vsub.f32 1.5, %v919
        %v921 = vmul.f32 %v916, %v920
        %vm922 = vweird.f32 %v614
        %vm923 = vweird.f32 %v916
        %vm924 = vmor %vm922, %vm923
        %v925 = vsel %vm924, %v916, %v921
        %v926 = vrsqrt.pop %v615
        %v927 = vmul.f32 %v926, %v615
        %v928 = vmul.f32 %v927, %v926
        %v929 = vmul.f32 0.5, %v928
        %v930 = vsub.f32 1.5, %v929
        %v931 = vmul.f32 %v926, %v930
        %vm932 = vweird.f32 %v615
        %vm933 = vweird.f32 %v926
        %vm934 = vmor %vm932, %vm933
        %v935 = vsel %vm934, %v926, %v931
        %v936 = vmul.f32 %v392, %v625
        %v937 = vmul.f32 %v393, %v635
        %v938 = vmul.f32 %v394, %v645
        %v939 = vmul.f32 %v395, %v655
        %v940 = vmul.f32 %v396, %v665
        %v941 = vmul.f32 %v397, %v675
        %v942 = vmul.f32 %v398, %v685
        %v943 = vmul.f32 %v399, %v695
        %v944 = vmul.f32 %v400, %v705
        %v945 = vmul.f32 %v401, %v715
        %v946 = vmul.f32 %v402, %v725
        %v947 = vmul.f32 %v403, %v735
        %v948 = vmul.f32 %v404, %v745
        %v949 = vmul.f32 %v405, %v755
        %v950 = vmul.f32 %v406, %v765
        %v951 = vmul.f32 %v407, %v775
        %v952 = vmul.f32 %v408, %v785
        %v953 = vmul.f32 %v409, %v795
        %v954 = vmul.f32 %v410, %v805
        %v955 = vmul.f32 %v411, %v815
        %v956 = vmul.f32 %v412, %v825
        %v957 = vmul.f32 %v413, %v835
        %v958 = vmul.f32 %v414, %v845
        %v959 = vmul.f32 %v415, %v855
        %v960 = vmul.f32 %v416, %v865
        %v961 = vmul.f32 %v417, %v875
        %v962 = vmul.f32 %v418, %v885
        %v963 = vmul.f32 %v419, %v895
        %v964 = vmul.f32 %v420, %v905
        %v965 = vmul.f32 %v421, %v915
        %v966 = vmul.f32 %v422, %v925
        %v967 = vmul.f32 %v423, %v935
        %v968 = vld [vmem:[#allocation4] sm:$0x1]
        %v970 = vperm.slane %v968, 0
        %v972 = vmul.f32 %v936, %v970
        %v973 = vmul.f32 %v937, %v970
        %v974 = vmul.f32 %v938, %v970
        %v975 = vmul.f32 %v939, %v970
        %v976 = vmul.f32 %v940, %v970
        %v977 = vmul.f32 %v941, %v970
        %v978 = vmul.f32 %v942, %v970
        %v979 = vmul.f32 %v943, %v970
        %v980 = vmul.f32 %v944, %v970
        %v981 = vmul.f32 %v945, %v970
        %v982 = vmul.f32 %v946, %v970
        %v983 = vmul.f32 %v947, %v970
        %v984 = vmul.f32 %v948, %v970
        %v985 = vmul.f32 %v949, %v970
        %v986 = vmul.f32 %v950, %v970
        %v987 = vmul.f32 %v951, %v970
        %v988 = vmul.f32 %v952, %v970
        %v989 = vmul.f32 %v953, %v970
        %v990 = vmul.f32 %v954, %v970
        %v991 = vmul.f32 %v955, %v970
        %v992 = vmul.f32 %v956, %v970
        %v993 = vmul.f32 %v957, %v970
        %v994 = vmul.f32 %v958, %v970
        %v995 = vmul.f32 %v959, %v970
        %v996 = vmul.f32 %v960, %v970
        %v997 = vmul.f32 %v961, %v970
        %v998 = vmul.f32 %v962, %v970
        %v999 = vmul.f32 %v963, %v970
        %v1000 = vmul.f32 %v964, %v970
        %v1001 = vmul.f32 %v965, %v970
        %v1002 = vmul.f32 %v966, %v970
        %v1003 = vmul.f32 %v967, %v970
        %v1004 = vld [vmem:[#allocation6] sm:$0x1]
        %v1006 = vperm.slane %v1004, 0
        %v1008 = vadd.f32 %v972, %v1006
        %v1009 = vadd.f32 %v973, %v1006
        %v1010 = vadd.f32 %v974, %v1006
        %v1011 = vadd.f32 %v975, %v1006
        %v1012 = vadd.f32 %v976, %v1006
        %v1013 = vadd.f32 %v977, %v1006
        %v1014 = vadd.f32 %v978, %v1006
        %v1015 = vadd.f32 %v979, %v1006
        %v1016 = vadd.f32 %v980, %v1006
        %v1017 = vadd.f32 %v981, %v1006
        %v1018 = vadd.f32 %v982, %v1006
        %v1019 = vadd.f32 %v983, %v1006
        %v1020 = vadd.f32 %v984, %v1006
        %v1021 = vadd.f32 %v985, %v1006
        %v1022 = vadd.f32 %v986, %v1006
        %v1023 = vadd.f32 %v987, %v1006
        %v1024 = vadd.f32 %v988, %v1006
        %v1025 = vadd.f32 %v989, %v1006
        %v1026 = vadd.f32 %v990, %v1006
        %v1027 = vadd.f32 %v991, %v1006
        %v1028 = vadd.f32 %v992, %v1006
        %v1029 = vadd.f32 %v993, %v1006
        %v1030 = vadd.f32 %v994, %v1006
        %v1031 = vadd.f32 %v995, %v1006
        %v1032 = vadd.f32 %v996, %v1006
        %v1033 = vadd.f32 %v997, %v1006
        %v1034 = vadd.f32 %v998, %v1006
        %v1035 = vadd.f32 %v999, %v1006
        %v1036 = vadd.f32 %v1000, %v1006
        %v1037 = vadd.f32 %v1001, %v1006
        %v1038 = vadd.f32 %v1002, %v1006
        %v1039 = vadd.f32 %v1003, %v1006
        %1040 = vst.msk [vmem:[%s222] sm:$0xff] %vm256, %v1008
        %1041 = vst.msk [vmem:[%s222 + $0x8] sm:$0xff] %vm256, %v1009
        %1042 = vst.msk [vmem:[%s222 + $0x10] sm:$0xff] %vm256, %v1010
        %1043 = vst.msk [vmem:[%s222 + $0x18] sm:$0xff] %vm256, %v1011
        %1044 = vst.msk [vmem:[%s222 + $0x20] sm:$0xff] %vm256, %v1012
        %1045 = vst.msk [vmem:[%s222 + $0x28] sm:$0xff] %vm256, %v1013
        %1046 = vst.msk [vmem:[%s222 + $0x30] sm:$0xff] %vm256, %v1014
        %1047 = vst.msk [vmem:[%s222 + $0x38] sm:$0xff] %vm256, %v1015
        %1048 = vst.msk [vmem:[%s222 + $0x40] sm:$0xff] %vm256, %v1016
        %1049 = vst.msk [vmem:[%s222 + $0x48] sm:$0xff] %vm256, %v1017
        %1050 = vst.msk [vmem:[%s222 + $0x50] sm:$0xff] %vm256, %v1018
        %1051 = vst.msk [vmem:[%s222 + $0x58] sm:$0xff] %vm256, %v1019
        %1052 = vst.msk [vmem:[%s222 + $0x60] sm:$0xff] %vm256, %v1020
        %1053 = vst.msk [vmem:[%s222 + $0x68] sm:$0xff] %vm256, %v1021
        %1054 = vst.msk [vmem:[%s222 + $0x70] sm:$0xff] %vm256, %v1022
        %1055 = vst.msk [vmem:[%s222 + $0x78] sm:$0xff] %vm256, %v1023
        %1056 = vst.msk [vmem:[%s222 + $0x80] sm:$0xff] %vm256, %v1024
        %1057 = vst.msk [vmem:[%s222 + $0x88] sm:$0xff] %vm256, %v1025
        %1058 = vst.msk [vmem:[%s222 + $0x90] sm:$0xff] %vm256, %v1026
        %1059 = vst.msk [vmem:[%s222 + $0x98] sm:$0xff] %vm256, %v1027
        %1060 = vst.msk [vmem:[%s222 + $0xa0] sm:$0xff] %vm256, %v1028
        %1061 = vst.msk [vmem:[%s222 + $0xa8] sm:$0xff] %vm256, %v1029
        %1062 = vst.msk [vmem:[%s222 + $0xb0] sm:$0xff] %vm256, %v1030
        %1063 = vst.msk [vmem:[%s222 + $0xb8] sm:$0xff] %vm256, %v1031
        %1064 = vst.msk [vmem:[%s222 + $0xc0] sm:$0xff] %vm256, %v1032
        %1065 = vst.msk [vmem:[%s222 + $0xc8] sm:$0xff] %vm256, %v1033
        %1066 = vst.msk [vmem:[%s222 + $0xd0] sm:$0xff] %vm256, %v1034
        %1067 = vst.msk [vmem:[%s222 + $0xd8] sm:$0xff] %vm256, %v1035
        %1068 = vst.msk [vmem:[%s222 + $0xe0] sm:$0xff] %vm256, %v1036
        %1069 = vst.msk [vmem:[%s222 + $0xe8] sm:$0xff] %vm256, %v1037
        %1070 = vst.msk [vmem:[%s222 + $0xf0] sm:$0xff] %vm256, %v1038
        %1071 = vst.msk [vmem:[%s222 + $0xf8] sm:$0xff] %vm256, %v1039
        %s1072 = smul.u32 32, %s18
        %p1073 = scmp.lt.s32.totalorder %s1072, 63
        %s1074 = scalar_select %p1073, %s1072, 63
        %s1075 = smul.addr %s1074, 8
        %s1076 = scalar_lea.vmem %s3, %s1075
        // Predicated region
        $region45: #{afno_transformer_block.3} parent=31 // pred_check
          %p1077 = pneg %p104
        $region46: #{afno_transformer_block.3} parent=31 // pred_check_branch
          %1079 = sbr.rel (%p1077) target = $region48
        $region47: #{afno_transformer_block.3} parent=31 // pred_region
          %s1080 = smul.u32 32, %s18
        $region48: #{afno_transformer_block.3} parent=31 // pred_fallthru
          _
      $region32: #{afno_transformer_block.3} parent=5 // pred_fallthru
        _
      %p1081 = scmp.le.s32.totalorder 2, %s13
      // Predicated region
      $region49: #{afno_transformer_block.3} parent=5 // pred_check
        %p1082 = pneg %p1081
      $region50: #{afno_transformer_block.3} parent=5 // pred_check_branch
        %1084 = sbr.rel (%p1082) target = $region52
      $region51: #{afno_transformer_block.3} parent=5 // pred_region
        %s1085 = ssub.s32 %s13, 2
        // Predicated region
        $region53: #{afno_transformer_block.3} parent=51 // pred_check
          %p1086 = pneg %p110
        $region54: #{afno_transformer_block.3} parent=51 // pred_check_branch
          %1088 = sbr.rel (%p1086) target = $region56
        $region55: #{afno_transformer_block.3} parent=51 // pred_region
          %s1089 = smul.u32 32, %s19
          %p1090 = scmp.lt.s32.totalorder %s1089, 63
          %s1091 = scalar_select %p1090, %s1089, 63
          %s1092 = smul.addr %s1091, 8
          %s1093 = scalar_lea.vmem %s3, %s1092
        $region56: #{afno_transformer_block.3} parent=51 // pred_fallthru
          _
      $region52: #{afno_transformer_block.3} parent=5 // pred_fallthru
        _
    $region6: #{afno_transformer_block.3} parent=1 // loop_footer
      %s17 = sadd.s32 1, %s13
    $region7: #{afno_transformer_block.3} parent=1 // loop_footer_branch
      %12 = sbr.rel target = $region3
    $region8: #{afno_transformer_block.3} parent=1 // loop_exit
      _
    %1094 = vsyncpa [#allocation3], 1
    %s1095 = scalar_lea.sflag [#allocation3], 1
    %1096 = vsyncpa %s1095, 1
    %1097 = vsyncpa [#allocation5], 1

// kernel: afno_transformer_block.4
$region0: #{afno_transformer_block.4}
  #allocation0 [shape = 'u32[]', space=smem, size = 0x4, offset = 0x4, fixed_abs, tag = 'smem constant byte address 0x4 - core index']
  #allocation1 [shape = 'u32[72,128]{1,0:T(1,128)}', space=vmem, size = 0x9000, scoped, tag = 'internal scratch']
  %s0 = inlined_call_operand.vmem [shape: f32[256,128], index: 0, kind: input, shape index: {}]
  %s1 = inlined_call_operand.vmem [shape: bf16[128,512], index: 1, kind: input, shape index: {}]
  %s2 = inlined_call_operand.vmem [shape: f32[1,512], index: 2, kind: input, shape index: {}]
  %s3 = inlined_call_operand.vmem [shape: bf16[512,128], index: 3, kind: input, shape index: {}]
  %s4 = inlined_call_operand.vmem [shape: f32[1,128], index: 4, kind: input, shape index: {}]
  %s5 = inlined_call_operand.vmem [shape: f32[256,128], index: 5, kind: output, shape index: {}]
  %s6 = sld [smem:[#allocation0]]
  $region53: #{afno_transformer_block.4} parent=0
    _
  %s8 = ssub.s32 1, %s6
  %s9 = scalar_select 0, %s8, %s6
  loop: start=0, step=1, limit=4
  $region2: #{afno_transformer_block.4} parent=0 // loop_pre_header
    _
  $region3: #{afno_transformer_block.4} parent=0 // loop_header
    %s11 = sphi 0, %s15
    %p12 = scmp.ge.s32.totalorder %s11, 4
    %s21 = sphi 0, %s23
    %s24 = sphi 0, %s21
    %s25 = sphi 0, %s24
    %s41 = sphi 0, %s25
    %s45 = sphi 0, %s45
    %s47 = sphi 0, %s45
    %s48 = sphi 0, %s47
    %s62 = sphi 0, %s48
    %s66 = sphi 0, %s66
    %s68 = sphi 0, %s66
    %s69 = sphi 0, %s68
    %s83 = sphi 0, %s69
    %s87 = sphi 0, %s87
    %s89 = sphi 0, %s87
    %s90 = sphi 0, %s89
    %s104 = sphi 0, %s90
    %s108 = sphi 0, %s108
    %s110 = sphi 0, %s108
    %s111 = sphi 0, %s110
    %s125 = sphi 0, %s111
    %s131 = sphi 0, %s133
    %s134 = sphi 0, %s131
    %s135 = sphi 0, %s134
    %s151 = sphi 0, %s135
  $region4: #{afno_transformer_block.4} parent=0 // loop_header_branch
    %14 = sbr.rel (%p12) target = $region8
  $region5: #{afno_transformer_block.4} parent=0 // loop_body
    %s16 = ssub.s32 %s11, 1
    %s17 = ssub.s32 %s11, 2
    %s18 = sadd.s32 %s11, 1
    %s19 = ssub.s32 %s11, %s18
    %p20 = scmp.eq.s32.totalorder %s19, 0
    %s22 = sadd.s32 %s21, 1
    %s23 = scalar_select %p20, %s21, %s22
    %p26 = pneg %p20
    %p27 = scmp.eq.s32.totalorder %s11, 1
    %p28 = por %p26, %p27
    %p29 = scmp.ne.s32.totalorder %s21, %s24
    %p30 = scmp.eq.s32.totalorder %s11, 0
    %p31 = por %p29, %p30
    %p32 = scmp.ne.s32.totalorder %s21, %s24
    %p33 = scmp.eq.s32.totalorder %s16, 1
    %p34 = por %p32, %p33
    %p35 = scmp.ne.s32.totalorder %s24, %s25
    %p36 = scmp.eq.s32.totalorder %s16, 0
    %p37 = por %p35, %p36
    %p38 = scmp.ne.s32.totalorder %s24, %s25
    %p39 = scmp.eq.s32.totalorder %s17, 1
    %p40 = por %p38, %p39
    %p42 = scmp.ne.s32.totalorder %s25, %s41
    %p43 = scmp.eq.s32.totalorder %s17, 0
    %p44 = por %p42, %p43
    %s46 = sadd.s32 %s45, 1
    %p49 = scmp.eq.s32.totalorder %s11, 1
    %p50 = scmp.ne.s32.totalorder %s45, %s47
    %p51 = scmp.eq.s32.totalorder %s11, 0
    %p52 = por %p50, %p51
    %p53 = scmp.ne.s32.totalorder %s45, %s47
    %p54 = scmp.eq.s32.totalorder %s16, 1
    %p55 = por %p53, %p54
    %p56 = scmp.ne.s32.totalorder %s47, %s48
    %p57 = scmp.eq.s32.totalorder %s16, 0
    %p58 = por %p56, %p57
    %p59 = scmp.ne.s32.totalorder %s47, %s48
    %p60 = scmp.eq.s32.totalorder %s17, 1
    %p61 = por %p59, %p60
    %p63 = scmp.ne.s32.totalorder %s48, %s62
    %p64 = scmp.eq.s32.totalorder %s17, 0
    %p65 = por %p63, %p64
    %s67 = sadd.s32 %s66, 1
    %p70 = scmp.eq.s32.totalorder %s11, 1
    %p71 = scmp.ne.s32.totalorder %s66, %s68
    %p72 = scmp.eq.s32.totalorder %s11, 0
    %p73 = por %p71, %p72
    %p74 = scmp.ne.s32.totalorder %s66, %s68
    %p75 = scmp.eq.s32.totalorder %s16, 1
    %p76 = por %p74, %p75
    %p77 = scmp.ne.s32.totalorder %s68, %s69
    %p78 = scmp.eq.s32.totalorder %s16, 0
    %p79 = por %p77, %p78
    %p80 = scmp.ne.s32.totalorder %s68, %s69
    %p81 = scmp.eq.s32.totalorder %s17, 1
    %p82 = por %p80, %p81
    %p84 = scmp.ne.s32.totalorder %s69, %s83
    %p85 = scmp.eq.s32.totalorder %s17, 0
    %p86 = por %p84, %p85
    %s88 = sadd.s32 %s87, 1
    %p91 = scmp.eq.s32.totalorder %s11, 1
    %p92 = scmp.ne.s32.totalorder %s87, %s89
    %p93 = scmp.eq.s32.totalorder %s11, 0
    %p94 = por %p92, %p93
    %p95 = scmp.ne.s32.totalorder %s87, %s89
    %p96 = scmp.eq.s32.totalorder %s16, 1
    %p97 = por %p95, %p96
    %p98 = scmp.ne.s32.totalorder %s89, %s90
    %p99 = scmp.eq.s32.totalorder %s16, 0
    %p100 = por %p98, %p99
    %p101 = scmp.ne.s32.totalorder %s89, %s90
    %p102 = scmp.eq.s32.totalorder %s17, 1
    %p103 = por %p101, %p102
    %p105 = scmp.ne.s32.totalorder %s90, %s104
    %p106 = scmp.eq.s32.totalorder %s17, 0
    %p107 = por %p105, %p106
    %s109 = sadd.s32 %s108, 1
    %p112 = scmp.eq.s32.totalorder %s11, 1
    %p113 = scmp.ne.s32.totalorder %s108, %s110
    %p114 = scmp.eq.s32.totalorder %s11, 0
    %p115 = por %p113, %p114
    %p116 = scmp.ne.s32.totalorder %s108, %s110
    %p117 = scmp.eq.s32.totalorder %s16, 1
    %p118 = por %p116, %p117
    %p119 = scmp.ne.s32.totalorder %s110, %s111
    %p120 = scmp.eq.s32.totalorder %s16, 0
    %p121 = por %p119, %p120
    %p122 = scmp.ne.s32.totalorder %s110, %s111
    %p123 = scmp.eq.s32.totalorder %s17, 1
    %p124 = por %p122, %p123
    %p126 = scmp.ne.s32.totalorder %s111, %s125
    %p127 = scmp.eq.s32.totalorder %s17, 0
    %p128 = por %p126, %p127
    %s129 = ssub.s32 %s11, %s18
    %p130 = scmp.eq.s32.totalorder %s129, 0
    %s132 = sadd.s32 %s131, 1
    %s133 = scalar_select %p130, %s131, %s132
    %p136 = pneg %p130
    %p137 = scmp.eq.s32.totalorder %s11, 1
    %p138 = por %p136, %p137
    %p139 = scmp.ne.s32.totalorder %s131, %s134
    %p140 = scmp.eq.s32.totalorder %s11, 0
    %p141 = por %p139, %p140
    %p142 = scmp.ne.s32.totalorder %s131, %s134
    %p143 = scmp.eq.s32.totalorder %s16, 1
    %p144 = por %p142, %p143
    %p145 = scmp.ne.s32.totalorder %s134, %s135
    %p146 = scmp.eq.s32.totalorder %s16, 0
    %p147 = por %p145, %p146
    %p148 = scmp.ne.s32.totalorder %s134, %s135
    %p149 = scmp.eq.s32.totalorder %s17, 1
    %p150 = por %p148, %p149
    %p152 = scmp.ne.s32.totalorder %s135, %s151
    %p153 = scmp.eq.s32.totalorder %s17, 0
    %p154 = por %p152, %p153
    %p155 = scmp.le.s32.totalorder 1, %s11
    %p156 = scmp.lt.s32.totalorder %s11, 3
    %p157 = pnand %p155, %p156
    %p158 = pneg %p157
    // Predicated region
    $region9: #{afno_transformer_block.4} parent=5 // pred_check
      _
    $region10: #{afno_transformer_block.4} parent=5 // pred_check_branch
      %160 = sbr.rel (%p157) target = $region12
    $region11: #{afno_transformer_block.4} parent=5 // pred_region
      %s161 = ssub.s32 %s11, 1
      // Predicated region
      $region13: #{afno_transformer_block.4} parent=11 // pred_check
        %p162 = pneg %p58
      $region14: #{afno_transformer_block.4} parent=11 // pred_check_branch
        %164 = sbr.rel (%p162) target = $region16
      $region15: #{afno_transformer_block.4} parent=11 // pred_region
        _
      $region16: #{afno_transformer_block.4} parent=11 // pred_fallthru
        _
      // Predicated region
      $region17: #{afno_transformer_block.4} parent=11 // pred_check
        %p165 = pneg %p79
      $region18: #{afno_transformer_block.4} parent=11 // pred_check_branch
        %167 = sbr.rel (%p165) target = $region20
      $region19: #{afno_transformer_block.4} parent=11 // pred_region
        _
      $region20: #{afno_transformer_block.4} parent=11 // pred_fallthru
        _
      // Predicated region
      $region21: #{afno_transformer_block.4} parent=11 // pred_check
        %p168 = pneg %p100
      $region22: #{afno_transformer_block.4} parent=11 // pred_check_branch
        %170 = sbr.rel (%p168) target = $region24
      $region23: #{afno_transformer_block.4} parent=11 // pred_region
        _
      $region24: #{afno_transformer_block.4} parent=11 // pred_fallthru
        _
      // Predicated region
      $region25: #{afno_transformer_block.4} parent=11 // pred_check
        %p171 = pneg %p121
      $region26: #{afno_transformer_block.4} parent=11 // pred_check_branch
        %173 = sbr.rel (%p171) target = $region28
      $region27: #{afno_transformer_block.4} parent=11 // pred_region
        _
      $region28: #{afno_transformer_block.4} parent=11 // pred_fallthru
        _
    $region12: #{afno_transformer_block.4} parent=5 // pred_fallthru
      _
    %p174 = scmp.lt.s32.totalorder %s11, 2
    // Predicated region
    $region29: #{afno_transformer_block.4} parent=5 // pred_check
      %p175 = pneg %p174
    $region30: #{afno_transformer_block.4} parent=5 // pred_check_branch
      %177 = sbr.rel (%p175) target = $region32
    $region31: #{afno_transformer_block.4} parent=5 // pred_region
      // Predicated region
      $region33: #{afno_transformer_block.4} parent=31 // pred_check
        %p178 = pneg %p31
      $region34: #{afno_transformer_block.4} parent=31 // pred_check_branch
        %180 = sbr.rel (%p178) target = $region36
      $region35: #{afno_transformer_block.4} parent=31 // pred_region
        %s181 = smul.u32 16, %s11
        %p182 = scmp.lt.s32.totalorder %s181, 31
        %s183 = scalar_select %p182, %s181, 31
        %s184 = smul.addr %s183, 8
        %s185 = scalar_lea.vmem %s0, %s184
        %s186 = smul.u32 16, %s11
      $region36: #{afno_transformer_block.4} parent=31 // pred_fallthru
        _
    $region32: #{afno_transformer_block.4} parent=5 // pred_fallthru
      _
    %p187 = scmp.le.s32.totalorder 1, %s11
    %p188 = scmp.lt.s32.totalorder %s11, 3
    %p189 = pnand %p187, %p188
    %p190 = pneg %p189
    // Predicated region
    $region37: #{afno_transformer_block.4} parent=5 // pred_check
      _
    $region38: #{afno_transformer_block.4} parent=5 // pred_check_branch
      %192 = sbr.rel (%p189) target = $region40
    $region39: #{afno_transformer_block.4} parent=5 // pred_region
      %s193 = ssub.s32 %s11, 1
      %s194 = smul.u32 16, %s16
      %p195 = scmp.lt.s32.totalorder %s194, 31
      %s196 = scalar_select %p195, %s194, 31
      %s197 = smul.addr %s196, 8
      %s198 = scalar_lea.vmem %s0, %s197
      %p199 = pneg %p37
      %p200 = pneg %p34
      %p201 = pneg %p58
      %p202 = pneg %p55
      %p203 = pneg %p79
      %p204 = pneg %p76
      %p205 = pneg %p100
      %p206 = pneg %p97
      %p207 = pneg %p121
      %p208 = pneg %p118
      %p209 = pneg %p147
      %p210 = pneg %p144
      %s211 = smul.u32 16, %s16
      %p212 = scmp.lt.s32.totalorder %s211, 31
      %s213 = scalar_select %p212, %s211, 31
      %s214 = smul.addr %s213, 8
      %s215 = scalar_lea.vmem %s5, %s214
      %s216 = smul.u32 16, %s16
      %p217 = scmp.lt.s32.totalorder %s216, 31
      %s218 = scalar_select %p217, %s216, 31
      %s219 = smul.addr %s218, 8
      %s220 = scalar_lea.vmem %s0, %s219
      %s221 = smul.u32 16, %s16
      %s222 = smul.u32 16, %s16
      %p223 = scmp.lt.s32.totalorder %s222, 31
      %s224 = scalar_select %p223, %s222, 31
      %s225 = smul.addr %s224, 8
      %s226 = scalar_lea.vmem %s5, %s225
      %s227 = smul.u32 16, %s16
      %v228 = vld [vmem:[%s220] sm:$0xff]
      %v229 = vld [vmem:[%s220 + $0x8] sm:$0xff]
      %v230 = vld [vmem:[%s220 + $0x10] sm:$0xff]
      %v231 = vld [vmem:[%s220 + $0x18] sm:$0xff]
      %v232 = vld [vmem:[%s220 + $0x20] sm:$0xff]
      %v233 = vld [vmem:[%s220 + $0x28] sm:$0xff]
      %v234 = vld [vmem:[%s220 + $0x30] sm:$0xff]
      %v235 = vld [vmem:[%s220 + $0x38] sm:$0xff]
      %v236 = vld [vmem:[%s220 + $0x40] sm:$0xff]
      %v237 = vld [vmem:[%s220 + $0x48] sm:$0xff]
      %v238 = vld [vmem:[%s220 + $0x50] sm:$0xff]
      %v239 = vld [vmem:[%s220 + $0x58] sm:$0xff]
      %v240 = vld [vmem:[%s220 + $0x60] sm:$0xff]
      %v241 = vld [vmem:[%s220 + $0x68] sm:$0xff]
      %v242 = vld [vmem:[%s220 + $0x70] sm:$0xff]
      %v243 = vld [vmem:[%s220 + $0x78] sm:$0xff]
      %v244 = vpack.c.bf16 %v229, %v228
      %v245 = vpack.c.bf16 %v231, %v230
      %v246 = vpack.c.bf16 %v233, %v232
      %v247 = vpack.c.bf16 %v235, %v234
      %v248 = vpack.c.bf16 %v237, %v236
      %v249 = vpack.c.bf16 %v239, %v238
      %v250 = vpack.c.bf16 %v241, %v240
      %v251 = vpack.c.bf16 %v243, %v242
      %v252 = vld [vmem:[%s1] sm:$0xff]
      %v253 = vld [vmem:[%s1 + $0x8] sm:$0xff]
      %v254 = vld [vmem:[%s1 + $0x10] sm:$0xff]
      %v255 = vld [vmem:[%s1 + $0x18] sm:$0xff]
      %v256 = vld [vmem:[%s1 + $0x20] sm:$0xff]
      %v257 = vld [vmem:[%s1 + $0x28] sm:$0xff]
      %v258 = vld [vmem:[%s1 + $0x30] sm:$0xff]
      %v259 = vld [vmem:[%s1 + $0x38] sm:$0xff]
      %v260 = vld [vmem:[%s1 + $0x40] sm:$0xff]
      %v261 = vld [vmem:[%s1 + $0x48] sm:$0xff]
      %v262 = vld [vmem:[%s1 + $0x50] sm:$0xff]
      %v263 = vld [vmem:[%s1 + $0x58] sm:$0xff]
      %v264 = vld [vmem:[%s1 + $0x60] sm:$0xff]
      %v265 = vld [vmem:[%s1 + $0x68] sm:$0xff]
      %v266 = vld [vmem:[%s1 + $0x70] sm:$0xff]
      %v267 = vld [vmem:[%s1 + $0x78] sm:$0xff]
      %v268 = vld [vmem:[%s1 + $0x80] sm:$0xff]
      %v269 = vld [vmem:[%s1 + $0x88] sm:$0xff]
      %v270 = vld [vmem:[%s1 + $0x90] sm:$0xff]
      %v271 = vld [vmem:[%s1 + $0x98] sm:$0xff]
      %v272 = vld [vmem:[%s1 + $0xa0] sm:$0xff]
      %v273 = vld [vmem:[%s1 + $0xa8] sm:$0xff]
      %v274 = vld [vmem:[%s1 + $0xb0] sm:$0xff]
      %v275 = vld [vmem:[%s1 + $0xb8] sm:$0xff]
      %v276 = vld [vmem:[%s1 + $0xc0] sm:$0xff]
      %v277 = vld [vmem:[%s1 + $0xc8] sm:$0xff]
      %v278 = vld [vmem:[%s1 + $0xd0] sm:$0xff]
      %v279 = vld [vmem:[%s1 + $0xd8] sm:$0xff]
      %v280 = vld [vmem:[%s1 + $0xe0] sm:$0xff]
      %v281 = vld [vmem:[%s1 + $0xe8] sm:$0xff]
      %v282 = vld [vmem:[%s1 + $0xf0] sm:$0xff]
      %v283 = vld [vmem:[%s1 + $0xf8] sm:$0xff]
      %v284 = vld [vmem:[%s2] sm:$0xf]
      %v286 = vperm.slane %v284, 0
      %v287 = vperm.slane %v284, 1
      %v288 = vperm.slane %v284, 2
      %v289 = vperm.slane %v284, 3
      %v326 = vunpack.c.l.b16 %v252
      %v327 = vunpack.c.h.b16 %v252
      %v328 = vunpack.c.l.b16 %v253
      %v329 = vunpack.c.h.b16 %v253
      %v330 = vunpack.c.l.b16 %v254
      %v331 = vunpack.c.h.b16 %v254
      %v332 = vunpack.c.l.b16 %v255
      %v333 = vunpack.c.h.b16 %v255
      %v334 = vunpack.c.l.b16 %v256
      %v335 = vunpack.c.h.b16 %v256
      %v336 = vunpack.c.l.b16 %v257
      %v337 = vunpack.c.h.b16 %v257
      %v338 = vunpack.c.l.b16 %v258
      %v339 = vunpack.c.h.b16 %v258
      %v340 = vunpack.c.l.b16 %v259
      %v341 = vunpack.c.h.b16 %v259
      %v342 = vunpack.c.l.b16 %v260
      %v343 = vunpack.c.h.b16 %v260
      %v344 = vunpack.c.l.b16 %v261
      %v345 = vunpack.c.h.b16 %v261
      %v346 = vunpack.c.l.b16 %v262
      %v347 = vunpack.c.h.b16 %v262
      %v348 = vunpack.c.l.b16 %v263
      %v349 = vunpack.c.h.b16 %v263
      %v350 = vunpack.c.l.b16 %v264
      %v351 = vunpack.c.h.b16 %v264
      %v352 = vunpack.c.l.b16 %v265
      %v353 = vunpack.c.h.b16 %v265
      %v354 = vunpack.c.l.b16 %v266
      %v355 = vunpack.c.h.b16 %v266
      %v356 = vunpack.c.l.b16 %v267
      %v357 = vunpack.c.h.b16 %v267
      %v358 = vunpack.c.l.b16 %v268
      %v359 = vunpack.c.h.b16 %v268
      %v360 = vunpack.c.l.b16 %v269
      %v361 = vunpack.c.h.b16 %v269
      %v362 = vunpack.c.l.b16 %v270
      %v363 = vunpack.c.h.b16 %v270
      %v364 = vunpack.c.l.b16 %v271
      %v365 = vunpack.c.h.b16 %v271
      %v366 = vunpack.c.l.b16 %v272
      %v367 = vunpack.c.h.b16 %v272
      %v368 = vunpack.c.l.b16 %v273
      %v369 = vunpack.c.h.b16 %v273
      %v370 = vunpack.c.l.b16 %v274
      %v371 = vunpack.c.h.b16 %v274
      %v372 = vunpack.c.l.b16 %v275
      %v373 = vunpack.c.h.b16 %v275
      %v374 = vunpack.c.l.b16 %v276
      %v375 = vunpack.c.h.b16 %v276
      %v376 = vunpack.c.l.b16 %v277
      %v377 = vunpack.c.h.b16 %v277
      %v378 = vunpack.c.l.b16 %v278
      %v379 = vunpack.c.h.b16 %v278
      %v380 = vunpack.c.l.b16 %v279
      %v381 = vunpack.c.h.b16 %v279
      %v382 = vunpack.c.l.b16 %v280
      %v383 = vunpack.c.h.b16 %v280
      %v384 = vunpack.c.l.b16 %v281
      %v385 = vunpack.c.h.b16 %v281
      %v386 = vunpack.c.l.b16 %v282
      %v387 = vunpack.c.h.b16 %v282
      %v388 = vunpack.c.l.b16 %v283
      %v389 = vunpack.c.h.b16 %v283
      %v390 = vpack.c.b16 %v330, %v326
      %v391 = vpack.c.b16 %v331, %v327
      %v392 = vpack.c.b16 %v332, %v328
      %v393 = vpack.c.b16 %v333, %v329
      %v394 = vpack.c.b16 %v338, %v334
      %v395 = vpack.c.b16 %v339, %v335
      %v396 = vpack.c.b16 %v340, %v336
      %v397 = vpack.c.b16 %v341, %v337
      %v398 = vpack.c.b16 %v346, %v342
      %v399 = vpack.c.b16 %v347, %v343
      %v400 = vpack.c.b16 %v348, %v344
      %v401 = vpack.c.b16 %v349, %v345
      %v402 = vpack.c.b16 %v354, %v350
      %v403 = vpack.c.b16 %v355, %v351
      %v404 = vpack.c.b16 %v356, %v352
      %v405 = vpack.c.b16 %v357, %v353
      %v406 = vpack.c.b16 %v362, %v358
      %v407 = vpack.c.b16 %v363, %v359
      %v408 = vpack.c.b16 %v364, %v360
      %v409 = vpack.c.b16 %v365, %v361
      %v410 = vpack.c.b16 %v370, %v366
      %v411 = vpack.c.b16 %v371, %v367
      %v412 = vpack.c.b16 %v372, %v368
      %v413 = vpack.c.b16 %v373, %v369
      %v414 = vpack.c.b16 %v378, %v374
      %v415 = vpack.c.b16 %v379, %v375
      %v416 = vpack.c.b16 %v380, %v376
      %v417 = vpack.c.b16 %v381, %v377
      %v418 = vpack.c.b16 %v386, %v382
      %v419 = vpack.c.b16 %v387, %v383
      %v420 = vpack.c.b16 %v388, %v384
      %v421 = vpack.c.b16 %v389, %v385
      %454 = vmatpush.bf16.msra.mxu0 %v418
      %455 = vmatpush.bf16.msra.mxu0 %v414
      %456 = vmatpush.bf16.msra.mxu0 %v410
      %457 = vmatpush.bf16.msra.mxu0 %v406
      %458 = vmatpush.bf16.msra.mxu0 %v402
      %459 = vmatpush.bf16.msra.mxu0 %v398
      %460 = vmatpush.bf16.msra.mxu0 %v394
      %461 = vmatpush.bf16.msra.mxu0 %v390
      %462 = vmatmul.bf16.gmra.mxu0 %v244
      %v463 = vpop.f32.mrf.mxu0
      %v464 = vadd.f32 %v286, %v463
      %v465 = vpop.f32.mrf.mxu0
      %v466 = vadd.f32 %v286, %v465
      %467 = vmatmul.bf16.gmra.mxu0 %v245
      %v468 = vpop.f32.mrf.mxu0
      %v469 = vadd.f32 %v286, %v468
      %v470 = vpop.f32.mrf.mxu0
      %v471 = vadd.f32 %v286, %v470
      %472 = vmatmul.bf16.gmra.mxu0 %v246
      %v473 = vpop.f32.mrf.mxu0
      %v474 = vadd.f32 %v286, %v473
      %v475 = vpop.f32.mrf.mxu0
      %v476 = vadd.f32 %v286, %v475
      %477 = vmatmul.bf16.gmra.mxu0 %v247
      %v478 = vpop.f32.mrf.mxu0
      %v479 = vadd.f32 %v286, %v478
      %v480 = vpop.f32.mrf.mxu0
      %v481 = vadd.f32 %v286, %v480
      %482 = vmatmul.bf16.gmra.mxu0 %v248
      %v483 = vpop.f32.mrf.mxu0
      %v484 = vadd.f32 %v286, %v483
      %v485 = vpop.f32.mrf.mxu0
      %v486 = vadd.f32 %v286, %v485
      %487 = vmatmul.bf16.gmra.mxu0 %v249
      %v488 = vpop.f32.mrf.mxu0
      %v489 = vadd.f32 %v286, %v488
      %v490 = vpop.f32.mrf.mxu0
      %v491 = vadd.f32 %v286, %v490
      %492 = vmatmul.bf16.gmra.mxu0 %v250
      %v493 = vpop.f32.mrf.mxu0
      %v494 = vadd.f32 %v286, %v493
      %v495 = vpop.f32.mrf.mxu0
      %v496 = vadd.f32 %v286, %v495
      %497 = vmatmul.bf16.gmra.mxu0 %v251
      %v498 = vpop.f32.mrf.mxu0
      %v499 = vadd.f32 %v286, %v498
      %v500 = vpop.f32.mrf.mxu0
      %v501 = vadd.f32 %v286, %v500
      %502 = vdwg.mxu0
      %503 = vmatpush.bf16.msra.mxu0 %v419
      %504 = vmatpush.bf16.msra.mxu0 %v415
      %505 = vmatpush.bf16.msra.mxu0 %v411
      %506 = vmatpush.bf16.msra.mxu0 %v407
      %507 = vmatpush.bf16.msra.mxu0 %v403
      %508 = vmatpush.bf16.msra.mxu0 %v399
      %509 = vmatpush.bf16.msra.mxu0 %v395
      %510 = vmatpush.bf16.msra.mxu0 %v391
      %511 = vmatmul.bf16.gmra.mxu0 %v244
      %v512 = vpop.f32.mrf.mxu0
      %v513 = vadd.f32 %v287, %v512
      %v514 = vpop.f32.mrf.mxu0
      %v515 = vadd.f32 %v287, %v514
      %516 = vmatmul.bf16.gmra.mxu0 %v245
      %v517 = vpop.f32.mrf.mxu0
      %v518 = vadd.f32 %v287, %v517
      %v519 = vpop.f32.mrf.mxu0
      %v520 = vadd.f32 %v287, %v519
      %521 = vmatmul.bf16.gmra.mxu0 %v246
      %v522 = vpop.f32.mrf.mxu0
      %v523 = vadd.f32 %v287, %v522
      %v524 = vpop.f32.mrf.mxu0
      %v525 = vadd.f32 %v287, %v524
      %526 = vmatmul.bf16.gmra.mxu0 %v247
      %v527 = vpop.f32.mrf.mxu0
      %v528 = vadd.f32 %v287, %v527
      %v529 = vpop.f32.mrf.mxu0
      %v530 = vadd.f32 %v287, %v529
      %531 = vmatmul.bf16.gmra.mxu0 %v248
      %v532 = vpop.f32.mrf.mxu0
      %v533 = vadd.f32 %v287, %v532
      %v534 = vpop.f32.mrf.mxu0
      %v535 = vadd.f32 %v287, %v534
      %536 = vmatmul.bf16.gmra.mxu0 %v249
      %v537 = vpop.f32.mrf.mxu0
      %v538 = vadd.f32 %v287, %v537
      %v539 = vpop.f32.mrf.mxu0
      %v540 = vadd.f32 %v287, %v539
      %541 = vmatmul.bf16.gmra.mxu0 %v250
      %v542 = vpop.f32.mrf.mxu0
      %v543 = vadd.f32 %v287, %v542
      %v544 = vpop.f32.mrf.mxu0
      %v545 = vadd.f32 %v287, %v544
      %546 = vmatmul.bf16.gmra.mxu0 %v251
      %v547 = vpop.f32.mrf.mxu0
      %v548 = vadd.f32 %v287, %v547
      %v549 = vpop.f32.mrf.mxu0
      %v550 = vadd.f32 %v287, %v549
      %551 = vdwg.mxu0
      %552 = vmatpush.bf16.msra.mxu0 %v420
      %553 = vmatpush.bf16.msra.mxu0 %v416
      %554 = vmatpush.bf16.msra.mxu0 %v412
      %555 = vmatpush.bf16.msra.mxu0 %v408
      %556 = vmatpush.bf16.msra.mxu0 %v404
      %557 = vmatpush.bf16.msra.mxu0 %v400
      %558 = vmatpush.bf16.msra.mxu0 %v396
      %559 = vmatpush.bf16.msra.mxu0 %v392
      %560 = vmatmul.bf16.gmra.mxu0 %v244
      %v561 = vpop.f32.mrf.mxu0
      %v562 = vadd.f32 %v288, %v561
      %v563 = vpop.f32.mrf.mxu0
      %v564 = vadd.f32 %v288, %v563
      %565 = vmatmul.bf16.gmra.mxu0 %v245
      %v566 = vpop.f32.mrf.mxu0
      %v567 = vadd.f32 %v288, %v566
      %v568 = vpop.f32.mrf.mxu0
      %v569 = vadd.f32 %v288, %v568
      %570 = vmatmul.bf16.gmra.mxu0 %v246
      %v571 = vpop.f32.mrf.mxu0
      %v572 = vadd.f32 %v288, %v571
      %v573 = vpop.f32.mrf.mxu0
      %v574 = vadd.f32 %v288, %v573
      %575 = vmatmul.bf16.gmra.mxu0 %v247
      %v576 = vpop.f32.mrf.mxu0
      %v577 = vadd.f32 %v288, %v576
      %v578 = vpop.f32.mrf.mxu0
      %v579 = vadd.f32 %v288, %v578
      %580 = vmatmul.bf16.gmra.mxu0 %v248
      %v581 = vpop.f32.mrf.mxu0
      %v582 = vadd.f32 %v288, %v581
      %v583 = vpop.f32.mrf.mxu0
      %v584 = vadd.f32 %v288, %v583
      %585 = vmatmul.bf16.gmra.mxu0 %v249
      %v586 = vpop.f32.mrf.mxu0
      %v587 = vadd.f32 %v288, %v586
      %v588 = vpop.f32.mrf.mxu0
      %v589 = vadd.f32 %v288, %v588
      %590 = vmatmul.bf16.gmra.mxu0 %v250
      %v591 = vpop.f32.mrf.mxu0
      %v592 = vadd.f32 %v288, %v591
      %v593 = vpop.f32.mrf.mxu0
      %v594 = vadd.f32 %v288, %v593
      %595 = vmatmul.bf16.gmra.mxu0 %v251
      %v596 = vpop.f32.mrf.mxu0
      %v597 = vadd.f32 %v288, %v596
      %v598 = vpop.f32.mrf.mxu0
      %v599 = vadd.f32 %v288, %v598
      %600 = vdwg.mxu0
      %601 = vmatpush.bf16.msra.mxu0 %v421
      %602 = vmatpush.bf16.msra.mxu0 %v417
      %603 = vmatpush.bf16.msra.mxu0 %v413
      %604 = vmatpush.bf16.msra.mxu0 %v409
      %605 = vmatpush.bf16.msra.mxu0 %v405
      %606 = vmatpush.bf16.msra.mxu0 %v401
      %607 = vmatpush.bf16.msra.mxu0 %v397
      %608 = vmatpush.bf16.msra.mxu0 %v393
      %609 = vmatmul.bf16.gmra.mxu0 %v244
      %v610 = vpop.f32.mrf.mxu0
      %v611 = vadd.f32 %v289, %v610
      %v612 = vpop.f32.mrf.mxu0
      %v613 = vadd.f32 %v289, %v612
      %614 = vmatmul.bf16.gmra.mxu0 %v245
      %v615 = vpop.f32.mrf.mxu0
      %v616 = vadd.f32 %v289, %v615
      %v617 = vpop.f32.mrf.mxu0
      %v618 = vadd.f32 %v289, %v617
      %619 = vmatmul.bf16.gmra.mxu0 %v246
      %v620 = vpop.f32.mrf.mxu0
      %v621 = vadd.f32 %v289, %v620
      %v622 = vpop.f32.mrf.mxu0
      %v623 = vadd.f32 %v289, %v622
      %624 = vmatmul.bf16.gmra.mxu0 %v247
      %v625 = vpop.f32.mrf.mxu0
      %v626 = vadd.f32 %v289, %v625
      %v627 = vpop.f32.mrf.mxu0
      %v628 = vadd.f32 %v289, %v627
      %629 = vmatmul.bf16.gmra.mxu0 %v248
      %v630 = vpop.f32.mrf.mxu0
      %v631 = vadd.f32 %v289, %v630
      %v632 = vpop.f32.mrf.mxu0
      %v633 = vadd.f32 %v289, %v632
      %634 = vmatmul.bf16.gmra.mxu0 %v249
      %v635 = vpop.f32.mrf.mxu0
      %v636 = vadd.f32 %v289, %v635
      %v637 = vpop.f32.mrf.mxu0
      %v638 = vadd.f32 %v289, %v637
      %639 = vmatmul.bf16.gmra.mxu0 %v250
      %v640 = vpop.f32.mrf.mxu0
      %v641 = vadd.f32 %v289, %v640
      %v642 = vpop.f32.mrf.mxu0
      %v643 = vadd.f32 %v289, %v642
      %644 = vmatmul.bf16.gmra.mxu0 %v251
      %v645 = vpop.f32.mrf.mxu0
      %v646 = vadd.f32 %v289, %v645
      %v647 = vpop.f32.mrf.mxu0
      %v648 = vadd.f32 %v289, %v647
      %649 = vdwg.mxu0
      %v650 = vmul.f32 %v464, 0.5
      %v651 = vmul.f32 %v513, 0.5
      %v652 = vmul.f32 %v562, 0.5
      %v653 = vmul.f32 %v611, 0.5
      %v654 = vmul.f32 %v466, 0.5
      %v655 = vmul.f32 %v515, 0.5
      %v656 = vmul.f32 %v564, 0.5
      %v657 = vmul.f32 %v613, 0.5
      %v658 = vmul.f32 %v469, 0.5
      %v659 = vmul.f32 %v518, 0.5
      %v660 = vmul.f32 %v567, 0.5
      %v661 = vmul.f32 %v616, 0.5
      %v662 = vmul.f32 %v471, 0.5
      %v663 = vmul.f32 %v520, 0.5
      %v664 = vmul.f32 %v569, 0.5
      %v665 = vmul.f32 %v618, 0.5
      %v666 = vmul.f32 %v474, 0.5
      %v667 = vmul.f32 %v523, 0.5
      %v668 = vmul.f32 %v572, 0.5
      %v669 = vmul.f32 %v621, 0.5
      %v670 = vmul.f32 %v476, 0.5
      %v671 = vmul.f32 %v525, 0.5
      %v672 = vmul.f32 %v574, 0.5
      %v673 = vmul.f32 %v623, 0.5
      %v674 = vmul.f32 %v479, 0.5
      %v675 = vmul.f32 %v528, 0.5
      %v676 = vmul.f32 %v577, 0.5
      %v677 = vmul.f32 %v626, 0.5
      %v678 = vmul.f32 %v481, 0.5
      %v679 = vmul.f32 %v530, 0.5
      %v680 = vmul.f32 %v579, 0.5
      %v681 = vmul.f32 %v628, 0.5
      %v682 = vmul.f32 %v484, 0.5
      %v683 = vmul.f32 %v533, 0.5
      %v684 = vmul.f32 %v582, 0.5
      %v685 = vmul.f32 %v631, 0.5
      %v686 = vmul.f32 %v486, 0.5
      %v687 = vmul.f32 %v535, 0.5
      %v688 = vmul.f32 %v584, 0.5
      %v689 = vmul.f32 %v633, 0.5
      %v690 = vmul.f32 %v489, 0.5
      %v691 = vmul.f32 %v538, 0.5
      %v692 = vmul.f32 %v587, 0.5
      %v693 = vmul.f32 %v636, 0.5
      %v694 = vmul.f32 %v491, 0.5
      %v695 = vmul.f32 %v540, 0.5
      %v696 = vmul.f32 %v589, 0.5
      %v697 = vmul.f32 %v638, 0.5
      %v698 = vmul.f32 %v494, 0.5
      %v699 = vmul.f32 %v543, 0.5
      %v700 = vmul.f32 %v592, 0.5
      %v701 = vmul.f32 %v641, 0.5
      %v702 = vmul.f32 %v496, 0.5
      %v703 = vmul.f32 %v545, 0.5
      %v704 = vmul.f32 %v594, 0.5
      %v705 = vmul.f32 %v643, 0.5
      %v706 = vmul.f32 %v499, 0.5
      %v707 = vmul.f32 %v548, 0.5
      %v708 = vmul.f32 %v597, 0.5
      %v709 = vmul.f32 %v646, 0.5
      %v710 = vmul.f32 %v501, 0.5
      %v711 = vmul.f32 %v550, 0.5
      %v712 = vmul.f32 %v599, 0.5
      %v713 = vmul.f32 %v648, 0.5
      %v714 = vmul.f32 %v464, 0.70710677
      %v715 = vmul.f32 %v513, 0.70710677
      %v716 = vmul.f32 %v562, 0.70710677
      %v717 = vmul.f32 %v611, 0.70710677
      %v718 = vmul.f32 %v466, 0.70710677
      %v719 = vmul.f32 %v515, 0.70710677
      %v720 = vmul.f32 %v564, 0.70710677
      %v721 = vmul.f32 %v613, 0.70710677
      %v722 = vmul.f32 %v469, 0.70710677
      %v723 = vmul.f32 %v518, 0.70710677
      %v724 = vmul.f32 %v567, 0.70710677
      %v725 = vmul.f32 %v616, 0.70710677
      %v726 = vmul.f32 %v471, 0.70710677
      %v727 = vmul.f32 %v520, 0.70710677
      %v728 = vmul.f32 %v569, 0.70710677
      %v729 = vmul.f32 %v618, 0.70710677
      %v730 = vmul.f32 %v474, 0.70710677
      %v731 = vmul.f32 %v523, 0.70710677
      %v732 = vmul.f32 %v572, 0.70710677
      %v733 = vmul.f32 %v621, 0.70710677
      %v734 = vmul.f32 %v476, 0.70710677
      %v735 = vmul.f32 %v525, 0.70710677
      %v736 = vmul.f32 %v574, 0.70710677
      %v737 = vmul.f32 %v623, 0.70710677
      %v738 = vmul.f32 %v479, 0.70710677
      %v739 = vmul.f32 %v528, 0.70710677
      %v740 = vmul.f32 %v577, 0.70710677
      %v741 = vmul.f32 %v626, 0.70710677
      %v742 = vmul.f32 %v481, 0.70710677
      %v743 = vmul.f32 %v530, 0.70710677
      %v744 = vmul.f32 %v579, 0.70710677
      %v745 = vmul.f32 %v628, 0.70710677
      %v746 = vmul.f32 %v484, 0.70710677
      %v747 = vmul.f32 %v533, 0.70710677
      %v748 = vmul.f32 %v582, 0.70710677
      %v749 = vmul.f32 %v631, 0.70710677
      %v750 = vmul.f32 %v486, 0.70710677
      %v751 = vmul.f32 %v535, 0.70710677
      %v752 = vmul.f32 %v584, 0.70710677
      %v753 = vmul.f32 %v633, 0.70710677
      %v754 = vmul.f32 %v489, 0.70710677
      %v755 = vmul.f32 %v538, 0.70710677
      %v756 = vmul.f32 %v587, 0.70710677
      %v757 = vmul.f32 %v636, 0.70710677
      %v758 = vmul.f32 %v491, 0.70710677
      %v759 = vmul.f32 %v540, 0.70710677
      %v760 = vmul.f32 %v589, 0.70710677
      %v761 = vmul.f32 %v638, 0.70710677
      %v762 = vmul.f32 %v494, 0.70710677
      %v763 = vmul.f32 %v543, 0.70710677
      %v764 = vmul.f32 %v592, 0.70710677
      %v765 = vmul.f32 %v641, 0.70710677
      %v766 = vmul.f32 %v496, 0.70710677
      %v767 = vmul.f32 %v545, 0.70710677
      %v768 = vmul.f32 %v594, 0.70710677
      %v769 = vmul.f32 %v643, 0.70710677
      %v770 = vmul.f32 %v499, 0.70710677
      %v771 = vmul.f32 %v548, 0.70710677
      %v772 = vmul.f32 %v597, 0.70710677
      %v773 = vmul.f32 %v646, 0.70710677
      %v774 = vmul.f32 %v501, 0.70710677
      %v775 = vmul.f32 %v550, 0.70710677
      %v776 = vmul.f32 %v599, 0.70710677
      %v777 = vmul.f32 %v648, 0.70710677
      %v778 = vmul.f32 %v714, %v714
      %v779 = vmin.f32 16.0, %v778
      %v780 = vmul.f32 %v779, 2.1237322e-06
      %v781 = vadd.f32 %v780, 0.00028619796
      %v782 = vmul.f32 %v779, %v781
      %v783 = vadd.f32 %v782, 0.0036580483
      %v784 = vmul.f32 %v779, %v783
      %v785 = vadd.f32 %v784, 0.05243302
      %v786 = vmul.f32 %v779, %v785
      %v787 = vadd.f32 %v786, 0.18741608
      %v788 = vmul.f32 %v779, %v787
      %v789 = vadd.f32 %v788, 1.1283791
      %v790 = vmul.f32 %v714, %v789
      %v791 = vmul.f32 %v779, 3.8918573e-05
      %v792 = vadd.f32 %v791, 0.001143296
      %v793 = vmul.f32 %v779, %v792
      %v794 = vadd.f32 %v793, 0.014752088
      %v795 = vmul.f32 %v779, %v794
      %v796 = vadd.f32 %v795, 0.112945676
      %v797 = vmul.f32 %v779, %v796
      %v798 = vadd.f32 %v797, 0.4994258
      %v799 = vmul.f32 %v779, %v798
      %v800 = vadd.f32 %v799, 1.0
      %v801 = vrcp.pop %v800
      %v802 = vmul.f32 %v800, %v801
      %v803 = vsub.f32 1.0, %v802
      %v804 = vmul.f32 %v801, %v803
      %v805 = vadd.f32 %v801, %v804
      %vm806 = vweird.f32 %v800
      %vm807 = vweird.f32 %v801
      %vm808 = vmor %vm806, %vm807
      %v809 = vsel %vm808, %v801, %v805
      %v810 = vand.u32 2147483647, %v800
      %vm811 = vcmp.eq.f32.partialorder %v810, 8.507059e+37
      %v812 = vand.u32 %v800, 2147483648
      %v813 = vor.u32 1.1754944e-38, %v812
      %v814 = vsel %vm811, %v813, %v809
      %v815 = vmul.f32 %v790, %v814
      %v816 = vmin.f32 %v815, 1.0
      %v817 = vmax.f32 %v816, -1.0
      %v818 = vmul.f32 %v715, %v715
      %v819 = vmin.f32 16.0, %v818
      %v820 = vmul.f32 %v819, 2.1237322e-06
      %v821 = vadd.f32 %v820, 0.00028619796
      %v822 = vmul.f32 %v819, %v821
      %v823 = vadd.f32 %v822, 0.0036580483
      %v824 = vmul.f32 %v819, %v823
      %v825 = vadd.f32 %v824, 0.05243302
      %v826 = vmul.f32 %v819, %v825
      %v827 = vadd.f32 %v826, 0.18741608
      %v828 = vmul.f32 %v819, %v827
      %v829 = vadd.f32 %v828, 1.1283791
      %v830 = vmul.f32 %v715, %v829
      %v831 = vmul.f32 %v819, 3.8918573e-05
      %v832 = vadd.f32 %v831, 0.001143296
      %v833 = vmul.f32 %v819, %v832
      %v834 = vadd.f32 %v833, 0.014752088
      %v835 = vmul.f32 %v819, %v834
      %v836 = vadd.f32 %v835, 0.112945676
      %v837 = vmul.f32 %v819, %v836
      %v838 = vadd.f32 %v837, 0.4994258
      %v839 = vmul.f32 %v819, %v838
      %v840 = vadd.f32 %v839, 1.0
      %v841 = vrcp.pop %v840
      %v842 = vmul.f32 %v840, %v841
      %v843 = vsub.f32 1.0, %v842
      %v844 = vmul.f32 %v841, %v843
      %v845 = vadd.f32 %v841, %v844
      %vm846 = vweird.f32 %v840
      %vm847 = vweird.f32 %v841
      %vm848 = vmor %vm846, %vm847
      %v849 = vsel %vm848, %v841, %v845
      %v850 = vand.u32 2147483647, %v840
      %vm851 = vcmp.eq.f32.partialorder %v850, 8.507059e+37
      %v852 = vand.u32 %v840, 2147483648
      %v853 = vor.u32 1.1754944e-38, %v852
      %v854 = vsel %vm851, %v853, %v849
      %v855 = vmul.f32 %v830, %v854
      %v856 = vmin.f32 %v855, 1.0
      %v857 = vmax.f32 %v856, -1.0
      %v858 = vmul.f32 %v716, %v716
      %v859 = vmin.f32 16.0, %v858
      %v860 = vmul.f32 %v859, 2.1237322e-06
      %v861 = vadd.f32 %v860, 0.00028619796
      %v862 = vmul.f32 %v859, %v861
      %v863 = vadd.f32 %v862, 0.0036580483
      %v864 = vmul.f32 %v859, %v863
      %v865 = vadd.f32 %v864, 0.05243302
      %v866 = vmul.f32 %v859, %v865
      %v867 = vadd.f32 %v866, 0.18741608
      %v868 = vmul.f32 %v859, %v867
      %v869 = vadd.f32 %v868, 1.1283791
      %v870 = vmul.f32 %v716, %v869
      %v871 = vmul.f32 %v859, 3.8918573e-05
      %v872 = vadd.f32 %v871, 0.001143296
      %v873 = vmul.f32 %v859, %v872
      %v874 = vadd.f32 %v873, 0.014752088
      %v875 = vmul.f32 %v859, %v874
      %v876 = vadd.f32 %v875, 0.112945676
      %v877 = vmul.f32 %v859, %v876
      %v878 = vadd.f32 %v877, 0.4994258
      %v879 = vmul.f32 %v859, %v878
      %v880 = vadd.f32 %v879, 1.0
      %v881 = vrcp.pop %v880
      %v882 = vmul.f32 %v880, %v881
      %v883 = vsub.f32 1.0, %v882
      %v884 = vmul.f32 %v881, %v883
      %v885 = vadd.f32 %v881, %v884
      %vm886 = vweird.f32 %v880
      %vm887 = vweird.f32 %v881
      %vm888 = vmor %vm886, %vm887
      %v889 = vsel %vm888, %v881, %v885
      %v890 = vand.u32 2147483647, %v880
      %vm891 = vcmp.eq.f32.partialorder %v890, 8.507059e+37
      %v892 = vand.u32 %v880, 2147483648
      %v893 = vor.u32 1.1754944e-38, %v892
      %v894 = vsel %vm891, %v893, %v889
      %v895 = vmul.f32 %v870, %v894
      %v896 = vmin.f32 %v895, 1.0
      %v897 = vmax.f32 %v896, -1.0
      %v898 = vmul.f32 %v717, %v717
      %v899 = vmin.f32 16.0, %v898
      %v900 = vmul.f32 %v899, 2.1237322e-06
      %v901 = vadd.f32 %v900, 0.00028619796
      %v902 = vmul.f32 %v899, %v901
      %v903 = vadd.f32 %v902, 0.0036580483
      %v904 = vmul.f32 %v899, %v903
      %v905 = vadd.f32 %v904, 0.05243302
      %v906 = vmul.f32 %v899, %v905
      %v907 = vadd.f32 %v906, 0.18741608
      %v908 = vmul.f32 %v899, %v907
      %v909 = vadd.f32 %v908, 1.1283791
      %v910 = vmul.f32 %v717, %v909
      %v911 = vmul.f32 %v899, 3.8918573e-05
      %v912 = vadd.f32 %v911, 0.001143296
      %v913 = vmul.f32 %v899, %v912
      %v914 = vadd.f32 %v913, 0.014752088
      %v915 = vmul.f32 %v899, %v914
      %v916 = vadd.f32 %v915, 0.112945676
      %v917 = vmul.f32 %v899, %v916
      %v918 = vadd.f32 %v917, 0.4994258
      %v919 = vmul.f32 %v899, %v918
      %v920 = vadd.f32 %v919, 1.0
      %v921 = vrcp.pop %v920
      %v922 = vmul.f32 %v920, %v921
      %v923 = vsub.f32 1.0, %v922
      %v924 = vmul.f32 %v921, %v923
      %v925 = vadd.f32 %v921, %v924
      %vm926 = vweird.f32 %v920
      %vm927 = vweird.f32 %v921
      %vm928 = vmor %vm926, %vm927
      %v929 = vsel %vm928, %v921, %v925
      %v930 = vand.u32 2147483647, %v920
      %vm931 = vcmp.eq.f32.partialorder %v930, 8.507059e+37
      %v932 = vand.u32 %v920, 2147483648
      %v933 = vor.u32 1.1754944e-38, %v932
      %v934 = vsel %vm931, %v933, %v929
      %v935 = vmul.f32 %v910, %v934
      %v936 = vmin.f32 %v935, 1.0
      %v937 = vmax.f32 %v936, -1.0
      %v938 = vmul.f32 %v718, %v718
      %v939 = vmin.f32 16.0, %v938
      %v940 = vmul.f32 %v939, 2.1237322e-06
      %v941 = vadd.f32 %v940, 0.00028619796
      %v942 = vmul.f32 %v939, %v941
      %v943 = vadd.f32 %v942, 0.0036580483
      %v944 = vmul.f32 %v939, %v943
      %v945 = vadd.f32 %v944, 0.05243302
      %v946 = vmul.f32 %v939, %v945
      %v947 = vadd.f32 %v946, 0.18741608
      %v948 = vmul.f32 %v939, %v947
      %v949 = vadd.f32 %v948, 1.1283791
      %v950 = vmul.f32 %v718, %v949
      %v951 = vmul.f32 %v939, 3.8918573e-05
      %v952 = vadd.f32 %v951, 0.001143296
      %v953 = vmul.f32 %v939, %v952
      %v954 = vadd.f32 %v953, 0.014752088
      %v955 = vmul.f32 %v939, %v954
      %v956 = vadd.f32 %v955, 0.112945676
      %v957 = vmul.f32 %v939, %v956
      %v958 = vadd.f32 %v957, 0.4994258
      %v959 = vmul.f32 %v939, %v958
      %v960 = vadd.f32 %v959, 1.0
      %v961 = vrcp.pop %v960
      %v962 = vmul.f32 %v960, %v961
      %v963 = vsub.f32 1.0, %v962
      %v964 = vmul.f32 %v961, %v963
      %v965 = vadd.f32 %v961, %v964
      %vm966 = vweird.f32 %v960
      %vm967 = vweird.f32 %v961
      %vm968 = vmor %vm966, %vm967
      %v969 = vsel %vm968, %v961, %v965
      %v970 = vand.u32 2147483647, %v960
      %vm971 = vcmp.eq.f32.partialorder %v970, 8.507059e+37
      %v972 = vand.u32 %v960, 2147483648
      %v973 = vor.u32 1.1754944e-38, %v972
      %v974 = vsel %vm971, %v973, %v969
      %v975 = vmul.f32 %v950, %v974
      %v976 = vmin.f32 %v975, 1.0
      %v977 = vmax.f32 %v976, -1.0
      %v978 = vmul.f32 %v719, %v719
      %v979 = vmin.f32 16.0, %v978
      %v980 = vmul.f32 %v979, 2.1237322e-06
      %v981 = vadd.f32 %v980, 0.00028619796
      %v982 = vmul.f32 %v979, %v981
      %v983 = vadd.f32 %v982, 0.0036580483
      %v984 = vmul.f32 %v979, %v983
      %v985 = vadd.f32 %v984, 0.05243302
      %v986 = vmul.f32 %v979, %v985
      %v987 = vadd.f32 %v986, 0.18741608
      %v988 = vmul.f32 %v979, %v987
      %v989 = vadd.f32 %v988, 1.1283791
      %v990 = vmul.f32 %v719, %v989
      %v991 = vmul.f32 %v979, 3.8918573e-05
      %v992 = vadd.f32 %v991, 0.001143296
      %v993 = vmul.f32 %v979, %v992
      %v994 = vadd.f32 %v993, 0.014752088
      %v995 = vmul.f32 %v979, %v994
      %v996 = vadd.f32 %v995, 0.112945676
      %v997 = vmul.f32 %v979, %v996
      %v998 = vadd.f32 %v997, 0.4994258
      %v999 = vmul.f32 %v979, %v998
      %v1000 = vadd.f32 %v999, 1.0
      %v1001 = vrcp.pop %v1000
      %v1002 = vmul.f32 %v1000, %v1001
      %v1003 = vsub.f32 1.0, %v1002
      %v1004 = vmul.f32 %v1001, %v1003
      %v1005 = vadd.f32 %v1001, %v1004
      %vm1006 = vweird.f32 %v1000
      %vm1007 = vweird.f32 %v1001
      %vm1008 = vmor %vm1006, %vm1007
      %v1009 = vsel %vm1008, %v1001, %v1005
      %v1010 = vand.u32 2147483647, %v1000
      %vm1011 = vcmp.eq.f32.partialorder %v1010, 8.507059e+37
      %v1012 = vand.u32 %v1000, 2147483648
      %v1013 = vor.u32 1.1754944e-38, %v1012
      %v1014 = vsel %vm1011, %v1013, %v1009
      %v1015 = vmul.f32 %v990, %v1014
      %v1016 = vmin.f32 %v1015, 1.0
      %v1017 = vmax.f32 %v1016, -1.0
      %v1018 = vmul.f32 %v720, %v720
      %v1019 = vmin.f32 16.0, %v1018
      %v1020 = vmul.f32 %v1019, 2.1237322e-06
      %v1021 = vadd.f32 %v1020, 0.00028619796
      %v1022 = vmul.f32 %v1019, %v1021
      %v1023 = vadd.f32 %v1022, 0.0036580483
      %v1024 = vmul.f32 %v1019, %v1023
      %v1025 = vadd.f32 %v1024, 0.05243302
      %v1026 = vmul.f32 %v1019, %v1025
      %v1027 = vadd.f32 %v1026, 0.18741608
      %v1028 = vmul.f32 %v1019, %v1027
      %v1029 = vadd.f32 %v1028, 1.1283791
      %v1030 = vmul.f32 %v720, %v1029
      %v1031 = vmul.f32 %v1019, 3.8918573e-05
      %v1032 = vadd.f32 %v1031, 0.001143296
      %v1033 = vmul.f32 %v1019, %v1032
      %v1034 = vadd.f32 %v1033, 0.014752088
      %v1035 = vmul.f32 %v1019, %v1034
      %v1036 = vadd.f32 %v1035, 0.112945676
      %v1037 = vmul.f32 %v1019, %v1036
      %v1038 = vadd.f32 %v1037, 0.4994258
      %v1039 = vmul.f32 %v1019, %v1038
      %v1040 = vadd.f32 %v1039, 1.0
      %v1041 = vrcp.pop %v1040
      %v1042 = vmul.f32 %v1040, %v1041
      %v1043 = vsub.f32 1.0, %v1042
      %v1044 = vmul.f32 %v1041, %v1043
      %v1045 = vadd.f32 %v1041, %v1044
      %vm1046 = vweird.f32 %v1040
      %vm1047 = vweird.f32 %v1041
      %vm1048 = vmor %vm1046, %vm1047
      %v1049 = vsel %vm1048, %v1041, %v1045
      %v1050 = vand.u32 2147483647, %v1040
      %vm1051 = vcmp.eq.f32.partialorder %v1050, 8.507059e+37
      %v1052 = vand.u32 %v1040, 2147483648
      %v1053 = vor.u32 1.1754944e-38, %v1052
      %v1054 = vsel %vm1051, %v1053, %v1049
      %v1055 = vmul.f32 %v1030, %v1054
      %v1056 = vmin.f32 %v1055, 1.0
      %v1057 = vmax.f32 %v1056, -1.0
      %v1058 = vmul.f32 %v721, %v721
      %v1059 = vmin.f32 16.0, %v1058
      %v1060 = vmul.f32 %v1059, 2.1237322e-06
      %v1061 = vadd.f32 %v1060, 0.00028619796
      %v1062 = vmul.f32 %v1059, %v1061
      %v1063 = vadd.f32 %v1062, 0.0036580483
      %v1064 = vmul.f32 %v1059, %v1063
      %v1065 = vadd.f32 %v1064, 0.05243302
      %v1066 = vmul.f32 %v1059, %v1065
      %v1067 = vadd.f32 %v1066, 0.18741608
      %v1068 = vmul.f32 %v1059, %v1067
      %v1069 = vadd.f32 %v1068, 1.1283791
      %v1070 = vmul.f32 %v721, %v1069
      %v1071 = vmul.f32 %v1059, 3.8918573e-05
      %v1072 = vadd.f32 %v1071, 0.001143296
      %v1073 = vmul.f32 %v1059, %v1072
      %v1074 = vadd.f32 %v1073, 0.014752088
      %v1075 = vmul.f32 %v1059, %v1074
      %v1076 = vadd.f32 %v1075, 0.112945676
      %v1077 = vmul.f32 %v1059, %v1076
      %v1078 = vadd.f32 %v1077, 0.4994258
      %v1079 = vmul.f32 %v1059, %v1078
      %v1080 = vadd.f32 %v1079, 1.0
      %v1081 = vrcp.pop %v1080
      %v1082 = vmul.f32 %v1080, %v1081
      %v1083 = vsub.f32 1.0, %v1082
      %v1084 = vmul.f32 %v1081, %v1083
      %v1085 = vadd.f32 %v1081, %v1084
      %vm1086 = vweird.f32 %v1080
      %vm1087 = vweird.f32 %v1081
      %vm1088 = vmor %vm1086, %vm1087
      %v1089 = vsel %vm1088, %v1081, %v1085
      %v1090 = vand.u32 2147483647, %v1080
      %vm1091 = vcmp.eq.f32.partialorder %v1090, 8.507059e+37
      %v1092 = vand.u32 %v1080, 2147483648
      %v1093 = vor.u32 1.1754944e-38, %v1092
      %v1094 = vsel %vm1091, %v1093, %v1089
      %v1095 = vmul.f32 %v1070, %v1094
      %v1096 = vmin.f32 %v1095, 1.0
      %v1097 = vmax.f32 %v1096, -1.0
      %v1098 = vmul.f32 %v722, %v722
      %v1099 = vmin.f32 16.0, %v1098
      %v1100 = vmul.f32 %v1099, 2.1237322e-06
      %v1101 = vadd.f32 %v1100, 0.00028619796
      %v1102 = vmul.f32 %v1099, %v1101
      %v1103 = vadd.f32 %v1102, 0.0036580483
      %v1104 = vmul.f32 %v1099, %v1103
      %v1105 = vadd.f32 %v1104, 0.05243302
      %v1106 = vmul.f32 %v1099, %v1105
      %v1107 = vadd.f32 %v1106, 0.18741608
      %v1108 = vmul.f32 %v1099, %v1107
      %v1109 = vadd.f32 %v1108, 1.1283791
      %v1110 = vmul.f32 %v722, %v1109
      %v1111 = vmul.f32 %v1099, 3.8918573e-05
      %v1112 = vadd.f32 %v1111, 0.001143296
      %v1113 = vmul.f32 %v1099, %v1112
      %v1114 = vadd.f32 %v1113, 0.014752088
      %v1115 = vmul.f32 %v1099, %v1114
      %v1116 = vadd.f32 %v1115, 0.112945676
      %v1117 = vmul.f32 %v1099, %v1116
      %v1118 = vadd.f32 %v1117, 0.4994258
      %v1119 = vmul.f32 %v1099, %v1118
      %v1120 = vadd.f32 %v1119, 1.0
      %v1121 = vrcp.pop %v1120
      %v1122 = vmul.f32 %v1120, %v1121
      %v1123 = vsub.f32 1.0, %v1122
      %v1124 = vmul.f32 %v1121, %v1123
      %v1125 = vadd.f32 %v1121, %v1124
      %vm1126 = vweird.f32 %v1120
      %vm1127 = vweird.f32 %v1121
      %vm1128 = vmor %vm1126, %vm1127
      %v1129 = vsel %vm1128, %v1121, %v1125
      %v1130 = vand.u32 2147483647, %v1120
      %vm1131 = vcmp.eq.f32.partialorder %v1130, 8.507059e+37
      %v1132 = vand.u32 %v1120, 2147483648
      %v1133 = vor.u32 1.1754944e-38, %v1132
      %v1134 = vsel %vm1131, %v1133, %v1129
      %v1135 = vmul.f32 %v1110, %v1134
      %v1136 = vmin.f32 %v1135, 1.0
      %v1137 = vmax.f32 %v1136, -1.0
      %v1138 = vmul.f32 %v723, %v723
      %v1139 = vmin.f32 16.0, %v1138
      %v1140 = vmul.f32 %v1139, 2.1237322e-06
      %v1141 = vadd.f32 %v1140, 0.00028619796
      %v1142 = vmul.f32 %v1139, %v1141
      %v1143 = vadd.f32 %v1142, 0.0036580483
      %v1144 = vmul.f32 %v1139, %v1143
      %v1145 = vadd.f32 %v1144, 0.05243302
      %v1146 = vmul.f32 %v1139, %v1145
      %v1147 = vadd.f32 %v1146, 0.18741608
      %v1148 = vmul.f32 %v1139, %v1147
      %v1149 = vadd.f32 %v1148, 1.1283791
      %v1150 = vmul.f32 %v723, %v1149
      %v1151 = vmul.f32 %v1139, 3.8918573e-05
      %v1152 = vadd.f32 %v1151, 0.001143296
      %v1153 = vmul.f32 %v1139, %v1152
      %v1154 = vadd.f32 %v1153, 0.014752088
      %v1155 = vmul.f32 %v1139, %v1154
      %v1156 = vadd.f32 %v1155, 0.112945676
      %v1157 = vmul.f32 %v1139, %v1156
      %v1158 = vadd.f32 %v1157, 0.4994258
      %v1159 = vmul.f32 %v1139, %v1158
      %v1160 = vadd.f32 %v1159, 1.0
      %v1161 = vrcp.pop %v1160
      %v1162 = vmul.f32 %v1160, %v1161
      %v1163 = vsub.f32 1.0, %v1162
      %v1164 = vmul.f32 %v1161, %v1163
      %v1165 = vadd.f32 %v1161, %v1164
      %vm1166 = vweird.f32 %v1160
      %vm1167 = vweird.f32 %v1161
      %vm1168 = vmor %vm1166, %vm1167
      %v1169 = vsel %vm1168, %v1161, %v1165
      %v1170 = vand.u32 2147483647, %v1160
      %vm1171 = vcmp.eq.f32.partialorder %v1170, 8.507059e+37
      %v1172 = vand.u32 %v1160, 2147483648
      %v1173 = vor.u32 1.1754944e-38, %v1172
      %v1174 = vsel %vm1171, %v1173, %v1169
      %v1175 = vmul.f32 %v1150, %v1174
      %v1176 = vmin.f32 %v1175, 1.0
      %v1177 = vmax.f32 %v1176, -1.0
      %v1178 = vmul.f32 %v724, %v724
      %v1179 = vmin.f32 16.0, %v1178
      %v1180 = vmul.f32 %v1179, 2.1237322e-06
      %v1181 = vadd.f32 %v1180, 0.00028619796
      %v1182 = vmul.f32 %v1179, %v1181
      %v1183 = vadd.f32 %v1182, 0.0036580483
      %v1184 = vmul.f32 %v1179, %v1183
      %v1185 = vadd.f32 %v1184, 0.05243302
      %v1186 = vmul.f32 %v1179, %v1185
      %v1187 = vadd.f32 %v1186, 0.18741608
      %v1188 = vmul.f32 %v1179, %v1187
      %v1189 = vadd.f32 %v1188, 1.1283791
      %v1190 = vmul.f32 %v724, %v1189
      %v1191 = vmul.f32 %v1179, 3.8918573e-05
      %v1192 = vadd.f32 %v1191, 0.001143296
      %v1193 = vmul.f32 %v1179, %v1192
      %v1194 = vadd.f32 %v1193, 0.014752088
      %v1195 = vmul.f32 %v1179, %v1194
      %v1196 = vadd.f32 %v1195, 0.112945676
      %v1197 = vmul.f32 %v1179, %v1196
      %v1198 = vadd.f32 %v1197, 0.4994258
      %v1199 = vmul.f32 %v1179, %v1198
      %v1200 = vadd.f32 %v1199, 1.0
      %v1201 = vrcp.pop %v1200
      %v1202 = vmul.f32 %v1200, %v1201
      %v1203 = vsub.f32 1.0, %v1202
      %v1204 = vmul.f32 %v1201, %v1203
      %v1205 = vadd.f32 %v1201, %v1204
      %vm1206 = vweird.f32 %v1200
      %vm1207 = vweird.f32 %v1201
      %vm1208 = vmor %vm1206, %vm1207
      %v1209 = vsel %vm1208, %v1201, %v1205
      %v1210 = vand.u32 2147483647, %v1200
      %vm1211 = vcmp.eq.f32.partialorder %v1210, 8.507059e+37
      %v1212 = vand.u32 %v1200, 2147483648
      %v1213 = vor.u32 1.1754944e-38, %v1212
      %v1214 = vsel %vm1211, %v1213, %v1209
      %v1215 = vmul.f32 %v1190, %v1214
      %v1216 = vmin.f32 %v1215, 1.0
      %v1217 = vmax.f32 %v1216, -1.0
      %v1218 = vmul.f32 %v725, %v725
      %v1219 = vmin.f32 16.0, %v1218
      %v1220 = vmul.f32 %v1219, 2.1237322e-06
      %v1221 = vadd.f32 %v1220, 0.00028619796
      %v1222 = vmul.f32 %v1219, %v1221
      %v1223 = vadd.f32 %v1222, 0.0036580483
      %v1224 = vmul.f32 %v1219, %v1223
      %v1225 = vadd.f32 %v1224, 0.05243302
      %v1226 = vmul.f32 %v1219, %v1225
      %v1227 = vadd.f32 %v1226, 0.18741608
      %v1228 = vmul.f32 %v1219, %v1227
      %v1229 = vadd.f32 %v1228, 1.1283791
      %v1230 = vmul.f32 %v725, %v1229
      %v1231 = vmul.f32 %v1219, 3.8918573e-05
      %v1232 = vadd.f32 %v1231, 0.001143296
      %v1233 = vmul.f32 %v1219, %v1232
      %v1234 = vadd.f32 %v1233, 0.014752088
      %v1235 = vmul.f32 %v1219, %v1234
      %v1236 = vadd.f32 %v1235, 0.112945676
      %v1237 = vmul.f32 %v1219, %v1236
      %v1238 = vadd.f32 %v1237, 0.4994258
      %v1239 = vmul.f32 %v1219, %v1238
      %v1240 = vadd.f32 %v1239, 1.0
      %v1241 = vrcp.pop %v1240
      %v1242 = vmul.f32 %v1240, %v1241
      %v1243 = vsub.f32 1.0, %v1242
      %v1244 = vmul.f32 %v1241, %v1243
      %v1245 = vadd.f32 %v1241, %v1244
      %vm1246 = vweird.f32 %v1240
      %vm1247 = vweird.f32 %v1241
      %vm1248 = vmor %vm1246, %vm1247
      %v1249 = vsel %vm1248, %v1241, %v1245
      %v1250 = vand.u32 2147483647, %v1240
      %vm1251 = vcmp.eq.f32.partialorder %v1250, 8.507059e+37
      %v1252 = vand.u32 %v1240, 2147483648
      %v1253 = vor.u32 1.1754944e-38, %v1252
      %v1254 = vsel %vm1251, %v1253, %v1249
      %v1255 = vmul.f32 %v1230, %v1254
      %v1256 = vmin.f32 %v1255, 1.0
      %v1257 = vmax.f32 %v1256, -1.0
      %v1258 = vmul.f32 %v726, %v726
      %v1259 = vmin.f32 16.0, %v1258
      %v1260 = vmul.f32 %v1259, 2.1237322e-06
      %v1261 = vadd.f32 %v1260, 0.00028619796
      %v1262 = vmul.f32 %v1259, %v1261
      %v1263 = vadd.f32 %v1262, 0.0036580483
      %v1264 = vmul.f32 %v1259, %v1263
      %v1265 = vadd.f32 %v1264, 0.05243302
      %v1266 = vmul.f32 %v1259, %v1265
      %v1267 = vadd.f32 %v1266, 0.18741608
      %v1268 = vmul.f32 %v1259, %v1267
      %v1269 = vadd.f32 %v1268, 1.1283791
      %v1270 = vmul.f32 %v726, %v1269
      %v1271 = vmul.f32 %v1259, 3.8918573e-05
      %v1272 = vadd.f32 %v1271, 0.001143296
      %v1273 = vmul.f32 %v1259, %v1272
      %v1274 = vadd.f32 %v1273, 0.014752088
      %v1275 = vmul.f32 %v1259, %v1274
      %v1276 = vadd.f32 %v1275, 0.112945676
      %v1277 = vmul.f32 %v1259, %v1276
      %v1278 = vadd.f32 %v1277, 0.4994258
      %v1279 = vmul.f32 %v1259, %v1278
      %v1280 = vadd.f32 %v1279, 1.0
      %v1281 = vrcp.pop %v1280
      %v1282 = vmul.f32 %v1280, %v1281
      %v1283 = vsub.f32 1.0, %v1282
      %v1284 = vmul.f32 %v1281, %v1283
      %v1285 = vadd.f32 %v1281, %v1284
      %vm1286 = vweird.f32 %v1280
      %vm1287 = vweird.f32 %v1281
      %vm1288 = vmor %vm1286, %vm1287
      %v1289 = vsel %vm1288, %v1281, %v1285
      %v1290 = vand.u32 2147483647, %v1280
      %vm1291 = vcmp.eq.f32.partialorder %v1290, 8.507059e+37
      %v1292 = vand.u32 %v1280, 2147483648
      %v1293 = vor.u32 1.1754944e-38, %v1292
      %v1294 = vsel %vm1291, %v1293, %v1289
      %v1295 = vmul.f32 %v1270, %v1294
      %v1296 = vmin.f32 %v1295, 1.0
      %v1297 = vmax.f32 %v1296, -1.0
      %v1298 = vmul.f32 %v727, %v727
      %v1299 = vmin.f32 16.0, %v1298
      %v1300 = vmul.f32 %v1299, 2.1237322e-06
      %v1301 = vadd.f32 %v1300, 0.00028619796
      %v1302 = vmul.f32 %v1299, %v1301
      %v1303 = vadd.f32 %v1302, 0.0036580483
      %v1304 = vmul.f32 %v1299, %v1303
      %v1305 = vadd.f32 %v1304, 0.05243302
      %v1306 = vmul.f32 %v1299, %v1305
      %v1307 = vadd.f32 %v1306, 0.18741608
      %v1308 = vmul.f32 %v1299, %v1307
      %v1309 = vadd.f32 %v1308, 1.1283791
      %v1310 = vmul.f32 %v727, %v1309
      %v1311 = vmul.f32 %v1299, 3.8918573e-05
      %v1312 = vadd.f32 %v1311, 0.001143296
      %v1313 = vmul.f32 %v1299, %v1312
      %v1314 = vadd.f32 %v1313, 0.014752088
      %v1315 = vmul.f32 %v1299, %v1314
      %v1316 = vadd.f32 %v1315, 0.112945676
      %v1317 = vmul.f32 %v1299, %v1316
      %v1318 = vadd.f32 %v1317, 0.4994258
      %v1319 = vmul.f32 %v1299, %v1318
      %v1320 = vadd.f32 %v1319, 1.0
      %v1321 = vrcp.pop %v1320
      %v1322 = vmul.f32 %v1320, %v1321
      %v1323 = vsub.f32 1.0, %v1322
      %v1324 = vmul.f32 %v1321, %v1323
      %v1325 = vadd.f32 %v1321, %v1324
      %vm1326 = vweird.f32 %v1320
      %vm1327 = vweird.f32 %v1321
      %vm1328 = vmor %vm1326, %vm1327
      %v1329 = vsel %vm1328, %v1321, %v1325
      %v1330 = vand.u32 2147483647, %v1320
      %vm1331 = vcmp.eq.f32.partialorder %v1330, 8.507059e+37
      %v1332 = vand.u32 %v1320, 2147483648
      %v1333 = vor.u32 1.1754944e-38, %v1332
      %v1334 = vsel %vm1331, %v1333, %v1329
      %v1335 = vmul.f32 %v1310, %v1334
      %v1336 = vmin.f32 %v1335, 1.0
      %v1337 = vmax.f32 %v1336, -1.0
      %v1338 = vmul.f32 %v728, %v728
      %v1339 = vmin.f32 16.0, %v1338
      %v1340 = vmul.f32 %v1339, 2.1237322e-06
      %v1341 = vadd.f32 %v1340, 0.00028619796
      %v1342 = vmul.f32 %v1339, %v1341
      %v1343 = vadd.f32 %v1342, 0.0036580483
      %v1344 = vmul.f32 %v1339, %v1343
      %v1345 = vadd.f32 %v1344, 0.05243302
      %v1346 = vmul.f32 %v1339, %v1345
      %v1347 = vadd.f32 %v1346, 0.18741608
      %v1348 = vmul.f32 %v1339, %v1347
      %v1349 = vadd.f32 %v1348, 1.1283791
      %v1350 = vmul.f32 %v728, %v1349
      %v1351 = vmul.f32 %v1339, 3.8918573e-05
      %v1352 = vadd.f32 %v1351, 0.001143296
      %v1353 = vmul.f32 %v1339, %v1352
      %v1354 = vadd.f32 %v1353, 0.014752088
      %v1355 = vmul.f32 %v1339, %v1354
      %v1356 = vadd.f32 %v1355, 0.112945676
      %v1357 = vmul.f32 %v1339, %v1356
      %v1358 = vadd.f32 %v1357, 0.4994258
      %v1359 = vmul.f32 %v1339, %v1358
      %v1360 = vadd.f32 %v1359, 1.0
      %v1361 = vrcp.pop %v1360
      %v1362 = vmul.f32 %v1360, %v1361
      %v1363 = vsub.f32 1.0, %v1362
      %v1364 = vmul.f32 %v1361, %v1363
      %v1365 = vadd.f32 %v1361, %v1364
      %vm1366 = vweird.f32 %v1360
      %vm1367 = vweird.f32 %v1361
      %vm1368 = vmor %vm1366, %vm1367
      %v1369 = vsel %vm1368, %v1361, %v1365
      %v1370 = vand.u32 2147483647, %v1360
      %vm1371 = vcmp.eq.f32.partialorder %v1370, 8.507059e+37
      %v1372 = vand.u32 %v1360, 2147483648
      %v1373 = vor.u32 1.1754944e-38, %v1372
      %v1374 = vsel %vm1371, %v1373, %v1369
      %v1375 = vmul.f32 %v1350, %v1374
      %v1376 = vmin.f32 %v1375, 1.0
      %v1377 = vmax.f32 %v1376, -1.0
      %v1378 = vmul.f32 %v729, %v729
      %v1379 = vmin.f32 16.0, %v1378
      %v1380 = vmul.f32 %v1379, 2.1237322e-06
      %v1381 = vadd.f32 %v1380, 0.00028619796
      %v1382 = vmul.f32 %v1379, %v1381
      %v1383 = vadd.f32 %v1382, 0.0036580483
      %v1384 = vmul.f32 %v1379, %v1383
      %v1385 = vadd.f32 %v1384, 0.05243302
      %v1386 = vmul.f32 %v1379, %v1385
      %v1387 = vadd.f32 %v1386, 0.18741608
      %v1388 = vmul.f32 %v1379, %v1387
      %v1389 = vadd.f32 %v1388, 1.1283791
      %v1390 = vmul.f32 %v729, %v1389
      %v1391 = vmul.f32 %v1379, 3.8918573e-05
      %v1392 = vadd.f32 %v1391, 0.001143296
      %v1393 = vmul.f32 %v1379, %v1392
      %v1394 = vadd.f32 %v1393, 0.014752088
      %v1395 = vmul.f32 %v1379, %v1394
      %v1396 = vadd.f32 %v1395, 0.112945676
      %v1397 = vmul.f32 %v1379, %v1396
      %v1398 = vadd.f32 %v1397, 0.4994258
      %v1399 = vmul.f32 %v1379, %v1398
      %v1400 = vadd.f32 %v1399, 1.0
      %v1401 = vrcp.pop %v1400
      %v1402 = vmul.f32 %v1400, %v1401
      %v1403 = vsub.f32 1.0, %v1402
      %v1404 = vmul.f32 %v1401, %v1403
      %v1405 = vadd.f32 %v1401, %v1404
      %vm1406 = vweird.f32 %v1400
      %vm1407 = vweird.f32 %v1401
      %vm1408 = vmor %vm1406, %vm1407
      %v1409 = vsel %vm1408, %v1401, %v1405
      %v1410 = vand.u32 2147483647, %v1400
      %vm1411 = vcmp.eq.f32.partialorder %v1410, 8.507059e+37
      %v1412 = vand.u32 %v1400, 2147483648
      %v1413 = vor.u32 1.1754944e-38, %v1412
      %v1414 = vsel %vm1411, %v1413, %v1409
      %v1415 = vmul.f32 %v1390, %v1414
      %v1416 = vmin.f32 %v1415, 1.0
      %v1417 = vmax.f32 %v1416, -1.0
      %v1418 = vmul.f32 %v730, %v730
      %v1419 = vmin.f32 16.0, %v1418
      %v1420 = vmul.f32 %v1419, 2.1237322e-06
      %v1421 = vadd.f32 %v1420, 0.00028619796
      %v1422 = vmul.f32 %v1419, %v1421
      %v1423 = vadd.f32 %v1422, 0.0036580483
      %v1424 = vmul.f32 %v1419, %v1423
      %v1425 = vadd.f32 %v1424, 0.05243302
      %v1426 = vmul.f32 %v1419, %v1425
      %v1427 = vadd.f32 %v1426, 0.18741608
      %v1428 = vmul.f32 %v1419, %v1427
      %v1429 = vadd.f32 %v1428, 1.1283791
      %v1430 = vmul.f32 %v730, %v1429
      %v1431 = vmul.f32 %v1419, 3.8918573e-05
      %v1432 = vadd.f32 %v1431, 0.001143296
      %v1433 = vmul.f32 %v1419, %v1432
      %v1434 = vadd.f32 %v1433, 0.014752088
      %v1435 = vmul.f32 %v1419, %v1434
      %v1436 = vadd.f32 %v1435, 0.112945676
      %v1437 = vmul.f32 %v1419, %v1436
      %v1438 = vadd.f32 %v1437, 0.4994258
      %v1439 = vmul.f32 %v1419, %v1438
      %v1440 = vadd.f32 %v1439, 1.0
      %v1441 = vrcp.pop %v1440
      %v1442 = vmul.f32 %v1440, %v1441
      %v1443 = vsub.f32 1.0, %v1442
      %v1444 = vmul.f32 %v1441, %v1443
      %v1445 = vadd.f32 %v1441, %v1444
      %vm1446 = vweird.f32 %v1440
      %vm1447 = vweird.f32 %v1441
      %vm1448 = vmor %vm1446, %vm1447
      %v1449 = vsel %vm1448, %v1441, %v1445
      %v1450 = vand.u32 2147483647, %v1440
      %vm1451 = vcmp.eq.f32.partialorder %v1450, 8.507059e+37
      %v1452 = vand.u32 %v1440, 2147483648
      %v1453 = vor.u32 1.1754944e-38, %v1452
      %v1454 = vsel %vm1451, %v1453, %v1449
      %v1455 = vmul.f32 %v1430, %v1454
      %v1456 = vmin.f32 %v1455, 1.0
      %v1457 = vmax.f32 %v1456, -1.0
      %v1458 = vmul.f32 %v731, %v731
      %v1459 = vmin.f32 16.0, %v1458
      %v1460 = vmul.f32 %v1459, 2.1237322e-06
      %v1461 = vadd.f32 %v1460, 0.00028619796
      %v1462 = vmul.f32 %v1459, %v1461
      %v1463 = vadd.f32 %v1462, 0.0036580483
      %v1464 = vmul.f32 %v1459, %v1463
      %v1465 = vadd.f32 %v1464, 0.05243302
      %v1466 = vmul.f32 %v1459, %v1465
      %v1467 = vadd.f32 %v1466, 0.18741608
      %v1468 = vmul.f32 %v1459, %v1467
      %v1469 = vadd.f32 %v1468, 1.1283791
      %v1470 = vmul.f32 %v731, %v1469
      %v1471 = vmul.f32 %v1459, 3.8918573e-05
      %v1472 = vadd.f32 %v1471, 0.001143296
      %v1473 = vmul.f32 %v1459, %v1472
      %v1474 = vadd.f32 %v1473, 0.014752088
      %v1475 = vmul.f32 %v1459, %v1474
      %v1476 = vadd.f32 %v1475, 0.112945676
      %v1477 = vmul.f32 %v1459, %v1476
      %v1478 = vadd.f32 %v1477, 0.4994258
      %v1479 = vmul.f32 %v1459, %v1478
      %v1480 = vadd.f32 %v1479, 1.0
      %v1481 = vrcp.pop %v1480
      %v1482 = vmul.f32 %v1480, %v1481
      %v1483 = vsub.f32 1.0, %v1482
      %v1484 = vmul.f32 %v1481, %v1483
      %v1485 = vadd.f32 %v1481, %v1484
      %vm1486 = vweird.f32 %v1480
      %vm1487 = vweird.f32 %v1481
      %vm1488 = vmor %vm1486, %vm1487
      %v1489 = vsel %vm1488, %v1481, %v1485
      %v1490 = vand.u32 2147483647, %v1480
      %vm1491 = vcmp.eq.f32.partialorder %v1490, 8.507059e+37
      %v1492 = vand.u32 %v1480, 2147483648
      %v1493 = vor.u32 1.1754944e-38, %v1492
      %v1494 = vsel %vm1491, %v1493, %v1489
      %v1495 = vmul.f32 %v1470, %v1494
      %v1496 = vmin.f32 %v1495, 1.0
      %v1497 = vmax.f32 %v1496, -1.0
      %v1498 = vmul.f32 %v732, %v732
      %v1499 = vmin.f32 16.0, %v1498
      %v1500 = vmul.f32 %v1499, 2.1237322e-06
      %v1501 = vadd.f32 %v1500, 0.00028619796
      %v1502 = vmul.f32 %v1499, %v1501
      %v1503 = vadd.f32 %v1502, 0.0036580483
      %v1504 = vmul.f32 %v1499, %v1503
      %v1505 = vadd.f32 %v1504, 0.05243302
      %v1506 = vmul.f32 %v1499, %v1505
      %v1507 = vadd.f32 %v1506, 0.18741608
      %v1508 = vmul.f32 %v1499, %v1507
      %v1509 = vadd.f32 %v1508, 1.1283791
      %v1510 = vmul.f32 %v732, %v1509
      %v1511 = vmul.f32 %v1499, 3.8918573e-05
      %v1512 = vadd.f32 %v1511, 0.001143296
      %v1513 = vmul.f32 %v1499, %v1512
      %v1514 = vadd.f32 %v1513, 0.014752088
      %v1515 = vmul.f32 %v1499, %v1514
      %v1516 = vadd.f32 %v1515, 0.112945676
      %v1517 = vmul.f32 %v1499, %v1516
      %v1518 = vadd.f32 %v1517, 0.4994258
      %v1519 = vmul.f32 %v1499, %v1518
      %v1520 = vadd.f32 %v1519, 1.0
      %v1521 = vrcp.pop %v1520
      %v1522 = vmul.f32 %v1520, %v1521
      %v1523 = vsub.f32 1.0, %v1522
      %v1524 = vmul.f32 %v1521, %v1523
      %v1525 = vadd.f32 %v1521, %v1524
      %vm1526 = vweird.f32 %v1520
      %vm1527 = vweird.f32 %v1521
      %vm1528 = vmor %vm1526, %vm1527
      %v1529 = vsel %vm1528, %v1521, %v1525
      %v1530 = vand.u32 2147483647, %v1520
      %vm1531 = vcmp.eq.f32.partialorder %v1530, 8.507059e+37
      %v1532 = vand.u32 %v1520, 2147483648
      %v1533 = vor.u32 1.1754944e-38, %v1532
      %v1534 = vsel %vm1531, %v1533, %v1529
      %v1535 = vmul.f32 %v1510, %v1534
      %v1536 = vmin.f32 %v1535, 1.0
      %v1537 = vmax.f32 %v1536, -1.0
      %v1538 = vmul.f32 %v733, %v733
      %v1539 = vmin.f32 16.0, %v1538
      %v1540 = vmul.f32 %v1539, 2.1237322e-06
      %v1541 = vadd.f32 %v1540, 0.00028619796
      %v1542 = vmul.f32 %v1539, %v1541
      %v1543 = vadd.f32 %v1542, 0.0036580483
      %v1544 = vmul.f32 %v1539, %v1543
      %v1545 = vadd.f32 %v1544, 0.05243302
      %v1546 = vmul.f32 %v1539, %v1545
      %v1547 = vadd.f32 %v1546, 0.18741608
      %v1548 = vmul.f32 %v1539, %v1547
      %v1549 = vadd.f32 %v1548, 1.1283791
      %v1550 = vmul.f32 %v733, %v1549
      %v1551 = vmul.f32 %v1539, 3.8918573e-05
      %v1552 = vadd.f32 %v1551, 0.001143296
      %v1553 = vmul.f32 %v1539, %v1552
      %v1554 = vadd.f32 %v1553, 0.014752088
      %v1555 = vmul.f32 %v1539, %v1554
      %v1556 = vadd.f32 %v1555, 0.112945676
      %v1557 = vmul.f32 %v1539, %v1556
      %v1558 = vadd.f32 %v1557, 0.4994258
      %v1559 = vmul.f32 %v1539, %v1558
      %v1560 = vadd.f32 %v1559, 1.0
      %v1561 = vrcp.pop %v1560
      %v1562 = vmul.f32 %v1560, %v1561
      %v1563 = vsub.f32 1.0, %v1562
      %v1564 = vmul.f32 %v1561, %v1563
      %v1565 = vadd.f32 %v1561, %v1564
      %vm1566 = vweird.f32 %v1560
      %vm1567 = vweird.f32 %v1561
      %vm1568 = vmor %vm1566, %vm1567
      %v1569 = vsel %vm1568, %v1561, %v1565
      %v1570 = vand.u32 2147483647, %v1560
      %vm1571 = vcmp.eq.f32.partialorder %v1570, 8.507059e+37
      %v1572 = vand.u32 %v1560, 2147483648
      %v1573 = vor.u32 1.1754944e-38, %v1572
      %v1574 = vsel %vm1571, %v1573, %v1569
      %v1575 = vmul.f32 %v1550, %v1574
      %v1576 = vmin.f32 %v1575, 1.0
      %v1577 = vmax.f32 %v1576, -1.0
      %v1578 = vmul.f32 %v734, %v734
      %v1579 = vmin.f32 16.0, %v1578
      %v1580 = vmul.f32 %v1579, 2.1237322e-06
      %v1581 = vadd.f32 %v1580, 0.00028619796
      %v1582 = vmul.f32 %v1579, %v1581
      %v1583 = vadd.f32 %v1582, 0.0036580483
      %v1584 = vmul.f32 %v1579, %v1583
      %v1585 = vadd.f32 %v1584, 0.05243302
      %v1586 = vmul.f32 %v1579, %v1585
      %v1587 = vadd.f32 %v1586, 0.18741608
      %v1588 = vmul.f32 %v1579, %v1587
      %v1589 = vadd.f32 %v1588, 1.1283791
      %v1590 = vmul.f32 %v734, %v1589
      %v1591 = vmul.f32 %v1579, 3.8918573e-05
      %v1592 = vadd.f32 %v1591, 0.001143296
      %v1593 = vmul.f32 %v1579, %v1592
      %v1594 = vadd.f32 %v1593, 0.014752088
      %v1595 = vmul.f32 %v1579, %v1594
      %v1596 = vadd.f32 %v1595, 0.112945676
      %v1597 = vmul.f32 %v1579, %v1596
      %v1598 = vadd.f32 %v1597, 0.4994258
      %v1599 = vmul.f32 %v1579, %v1598
      %v1600 = vadd.f32 %v1599, 1.0
      %v1601 = vrcp.pop %v1600
      %v1602 = vmul.f32 %v1600, %v1601
      %v1603 = vsub.f32 1.0, %v1602
      %v1604 = vmul.f32 %v1601, %v1603
      %v1605 = vadd.f32 %v1601, %v1604
      %vm1606 = vweird.f32 %v1600
      %vm1607 = vweird.f32 %v1601
      %vm1608 = vmor %vm1606, %vm1607
      %v1609 = vsel %vm1608, %v1601, %v1605
      %v1610 = vand.u32 2147483647, %v1600
      %vm1611 = vcmp.eq.f32.partialorder %v1610, 8.507059e+37
      %v1612 = vand.u32 %v1600, 2147483648
      %v1613 = vor.u32 1.1754944e-38, %v1612
      %v1614 = vsel %vm1611, %v1613, %v1609
      %v1615 = vmul.f32 %v1590, %v1614
      %v1616 = vmin.f32 %v1615, 1.0
      %v1617 = vmax.f32 %v1616, -1.0
      %v1618 = vmul.f32 %v735, %v735
      %v1619 = vmin.f32 16.0, %v1618
      %v1620 = vmul.f32 %v1619, 2.1237322e-06
      %v1621 = vadd.f32 %v1620, 0.00028619796
      %v1622 = vmul.f32 %v1619, %v1621
      %v1623 = vadd.f32 %v1622, 0.0036580483
      %v1624 = vmul.f32 %v1619, %v1623
      %v1625 = vadd.f32 %v1624, 0.05243302
      %v1626 = vmul.f32 %v1619, %v1625
      %v1627 = vadd.f32 %v1626, 0.18741608
      %v1628 = vmul.f32 %v1619, %v1627
      %v1629 = vadd.f32 %v1628, 1.1283791
      %v1630 = vmul.f32 %v735, %v1629
      %v1631 = vmul.f32 %v1619, 3.8918573e-05
      %v1632 = vadd.f32 %v1631, 0.001143296
      %v1633 = vmul.f32 %v1619, %v1632
      %v1634 = vadd.f32 %v1633, 0.014752088
      %v1635 = vmul.f32 %v1619, %v1634
      %v1636 = vadd.f32 %v1635, 0.112945676
      %v1637 = vmul.f32 %v1619, %v1636
      %v1638 = vadd.f32 %v1637, 0.4994258
      %v1639 = vmul.f32 %v1619, %v1638
      %v1640 = vadd.f32 %v1639, 1.0
      %v1641 = vrcp.pop %v1640
      %v1642 = vmul.f32 %v1640, %v1641
      %v1643 = vsub.f32 1.0, %v1642
      %v1644 = vmul.f32 %v1641, %v1643
      %v1645 = vadd.f32 %v1641, %v1644
      %vm1646 = vweird.f32 %v1640
      %vm1647 = vweird.f32 %v1641
      %vm1648 = vmor %vm1646, %vm1647
      %v1649 = vsel %vm1648, %v1641, %v1645
      %v1650 = vand.u32 2147483647, %v1640
      %vm1651 = vcmp.eq.f32.partialorder %v1650, 8.507059e+37
      %v1652 = vand.u32 %v1640, 2147483648
      %v1653 = vor.u32 1.1754944e-38, %v1652
      %v1654 = vsel %vm1651, %v1653, %v1649
      %v1655 = vmul.f32 %v1630, %v1654
      %v1656 = vmin.f32 %v1655, 1.0
      %v1657 = vmax.f32 %v1656, -1.0
      %v1658 = vmul.f32 %v736, %v736
      %v1659 = vmin.f32 16.0, %v1658
      %v1660 = vmul.f32 %v1659, 2.1237322e-06
      %v1661 = vadd.f32 %v1660, 0.00028619796
      %v1662 = vmul.f32 %v1659, %v1661
      %v1663 = vadd.f32 %v1662, 0.0036580483
      %v1664 = vmul.f32 %v1659, %v1663
      %v1665 = vadd.f32 %v1664, 0.05243302
      %v1666 = vmul.f32 %v1659, %v1665
      %v1667 = vadd.f32 %v1666, 0.18741608
      %v1668 = vmul.f32 %v1659, %v1667
      %v1669 = vadd.f32 %v1668, 1.1283791
      %v1670 = vmul.f32 %v736, %v1669
      %v1671 = vmul.f32 %v1659, 3.8918573e-05
      %v1672 = vadd.f32 %v1671, 0.001143296
      %v1673 = vmul.f32 %v1659, %v1672
      %v1674 = vadd.f32 %v1673, 0.014752088
      %v1675 = vmul.f32 %v1659, %v1674
      %v1676 = vadd.f32 %v1675, 0.112945676
      %v1677 = vmul.f32 %v1659, %v1676
      %v1678 = vadd.f32 %v1677, 0.4994258
      %v1679 = vmul.f32 %v1659, %v1678
      %v1680 = vadd.f32 %v1679, 1.0
      %v1681 = vrcp.pop %v1680
      %v1682 = vmul.f32 %v1680, %v1681
      %v1683 = vsub.f32 1.0, %v1682
      %v1684 = vmul.f32 %v1681, %v1683
      %v1685 = vadd.f32 %v1681, %v1684
      %vm1686 = vweird.f32 %v1680
      %vm1687 = vweird.f32 %v1681
      %vm1688 = vmor %vm1686, %vm1687
      %v1689 = vsel %vm1688, %v1681, %v1685
      %v1690 = vand.u32 2147483647, %v1680
      %vm1691 = vcmp.eq.f32.partialorder %v1690, 8.507059e+37
      %v1692 = vand.u32 %v1680, 2147483648
      %v1693 = vor.u32 1.1754944e-38, %v1692
      %v1694 = vsel %vm1691, %v1693, %v1689
      %v1695 = vmul.f32 %v1670, %v1694
      %v1696 = vmin.f32 %v1695, 1.0
      %v1697 = vmax.f32 %v1696, -1.0
      %v1698 = vmul.f32 %v737, %v737
      %v1699 = vmin.f32 16.0, %v1698
      %v1700 = vmul.f32 %v1699, 2.1237322e-06
      %v1701 = vadd.f32 %v1700, 0.00028619796
      %v1702 = vmul.f32 %v1699, %v1701
      %v1703 = vadd.f32 %v1702, 0.0036580483
      %v1704 = vmul.f32 %v1699, %v1703
      %v1705 = vadd.f32 %v1704, 0.05243302
      %v1706 = vmul.f32 %v1699, %v1705
      %v1707 = vadd.f32 %v1706, 0.18741608
      %v1708 = vmul.f32 %v1699, %v1707
      %v1709 = vadd.f32 %v1708, 1.1283791
      %v1710 = vmul.f32 %v737, %v1709
      %v1711 = vmul.f32 %v1699, 3.8918573e-05
      %v1712 = vadd.f32 %v1711, 0.001143296
      %v1713 = vmul.f32 %v1699, %v1712
      %v1714 = vadd.f32 %v1713, 0.014752088
      %v1715 = vmul.f32 %v1699, %v1714
      %v1716 = vadd.f32 %v1715, 0.112945676
      %v1717 = vmul.f32 %v1699, %v1716
      %v1718 = vadd.f32 %v1717, 0.4994258
      %v1719 = vmul.f32 %v1699, %v1718
      %v1720 = vadd.f32 %v1719, 1.0
      %v1721 = vrcp.pop %v1720
      %v1722 = vmul.f32 %v1720, %v1721
      %v1723 = vsub.f32 1.0, %v1722
      %v1724 = vmul.f32 %v1721, %v1723
      %v1725 = vadd.f32 %v1721, %v1724
      %vm1726 = vweird.f32 %v1720
      %vm1727 = vweird.f32 %v1721
      %vm1728 = vmor %vm1726, %vm1727
      %v1729 = vsel %vm1728, %v1721, %v1725
      %v1730 = vand.u32 2147483647, %v1720
      %vm1731 = vcmp.eq.f32.partialorder %v1730, 8.507059e+37
      %v1732 = vand.u32 %v1720, 2147483648
      %v1733 = vor.u32 1.1754944e-38, %v1732
      %v1734 = vsel %vm1731, %v1733, %v1729
      %v1735 = vmul.f32 %v1710, %v1734
      %v1736 = vmin.f32 %v1735, 1.0
      %v1737 = vmax.f32 %v1736, -1.0
      %v1738 = vmul.f32 %v738, %v738
      %v1739 = vmin.f32 16.0, %v1738
      %v1740 = vmul.f32 %v1739, 2.1237322e-06
      %v1741 = vadd.f32 %v1740, 0.00028619796
      %v1742 = vmul.f32 %v1739, %v1741
      %v1743 = vadd.f32 %v1742, 0.0036580483
      %v1744 = vmul.f32 %v1739, %v1743
      %v1745 = vadd.f32 %v1744, 0.05243302
      %v1746 = vmul.f32 %v1739, %v1745
      %v1747 = vadd.f32 %v1746, 0.18741608
      %v1748 = vmul.f32 %v1739, %v1747
      %v1749 = vadd.f32 %v1748, 1.1283791
      %v1750 = vmul.f32 %v738, %v1749
      %v1751 = vmul.f32 %v1739, 3.8918573e-05
      %v1752 = vadd.f32 %v1751, 0.001143296
      %v1753 = vmul.f32 %v1739, %v1752
      %v1754 = vadd.f32 %v1753, 0.014752088
      %v1755 = vmul.f32 %v1739, %v1754
      %v1756 = vadd.f32 %v1755, 0.112945676
      %v1757 = vmul.f32 %v1739, %v1756
      %v1758 = vadd.f32 %v1757, 0.4994258
      %v1759 = vmul.f32 %v1739, %v1758
      %v1760 = vadd.f32 %v1759, 1.0
      %v1761 = vrcp.pop %v1760
      %v1762 = vmul.f32 %v1760, %v1761
      %v1763 = vsub.f32 1.0, %v1762
      %v1764 = vmul.f32 %v1761, %v1763
      %v1765 = vadd.f32 %v1761, %v1764
      %vm1766 = vweird.f32 %v1760
      %vm1767 = vweird.f32 %v1761
      %vm1768 = vmor %vm1766, %vm1767
      %v1769 = vsel %vm1768, %v1761, %v1765
      %v1770 = vand.u32 2147483647, %v1760
      %vm1771 = vcmp.eq.f32.partialorder %v1770, 8.507059e+37
      %v1772 = vand.u32 %v1760, 2147483648
      %v1773 = vor.u32 1.1754944e-38, %v1772
      %v1774 = vsel %vm1771, %v1773, %v1769
      %v1775 = vmul.f32 %v1750, %v1774
      %v1776 = vmin.f32 %v1775, 1.0
      %v1777 = vmax.f32 %v1776, -1.0
      %v1778 = vmul.f32 %v739, %v739
      %v1779 = vmin.f32 16.0, %v1778
      %v1780 = vmul.f32 %v1779, 2.1237322e-06
      %v1781 = vadd.f32 %v1780, 0.00028619796
      %v1782 = vmul.f32 %v1779, %v1781
      %v1783 = vadd.f32 %v1782, 0.0036580483
      %v1784 = vmul.f32 %v1779, %v1783
      %v1785 = vadd.f32 %v1784, 0.05243302
      %v1786 = vmul.f32 %v1779, %v1785
      %v1787 = vadd.f32 %v1786, 0.18741608
      %v1788 = vmul.f32 %v1779, %v1787
      %v1789 = vadd.f32 %v1788, 1.1283791
      %v1790 = vmul.f32 %v739, %v1789
      %v1791 = vmul.f32 %v1779, 3.8918573e-05
      %v1792 = vadd.f32 %v1791, 0.001143296
      %v1793 = vmul.f32 %v1779, %v1792
      %v1794 = vadd.f32 %v1793, 0.014752088
      %v1795 = vmul.f32 %v1779, %v1794
      %v1796 = vadd.f32 %v1795, 0.112945676
      %v1797 = vmul.f32 %v1779, %v1796
      %v1798 = vadd.f32 %v1797, 0.4994258
      %v1799 = vmul.f32 %v1779, %v1798
      %v1800 = vadd.f32 %v1799, 1.0
      %v1801 = vrcp.pop %v1800
      %v1802 = vmul.f32 %v1800, %v1801
      %v1803 = vsub.f32 1.0, %v1802
      %v1804 = vmul.f32 %v1801, %v1803
      %v1805 = vadd.f32 %v1801, %v1804
      %vm1806 = vweird.f32 %v1800
      %vm1807 = vweird.f32 %v1801
      %vm1808 = vmor %vm1806, %vm1807
      %v1809 = vsel %vm1808, %v1801, %v1805
      %v1810 = vand.u32 2147483647, %v1800
      %vm1811 = vcmp.eq.f32.partialorder %v1810, 8.507059e+37
      %v1812 = vand.u32 %v1800, 2147483648
      %v1813 = vor.u32 1.1754944e-38, %v1812
      %v1814 = vsel %vm1811, %v1813, %v1809
      %v1815 = vmul.f32 %v1790, %v1814
      %v1816 = vmin.f32 %v1815, 1.0
      %v1817 = vmax.f32 %v1816, -1.0
      %v1818 = vmul.f32 %v740, %v740
      %v1819 = vmin.f32 16.0, %v1818
      %v1820 = vmul.f32 %v1819, 2.1237322e-06
      %v1821 = vadd.f32 %v1820, 0.00028619796
      %v1822 = vmul.f32 %v1819, %v1821
      %v1823 = vadd.f32 %v1822, 0.0036580483
      %v1824 = vmul.f32 %v1819, %v1823
      %v1825 = vadd.f32 %v1824, 0.05243302
      %v1826 = vmul.f32 %v1819, %v1825
      %v1827 = vadd.f32 %v1826, 0.18741608
      %v1828 = vmul.f32 %v1819, %v1827
      %v1829 = vadd.f32 %v1828, 1.1283791
      %v1830 = vmul.f32 %v740, %v1829
      %v1831 = vmul.f32 %v1819, 3.8918573e-05
      %v1832 = vadd.f32 %v1831, 0.001143296
      %v1833 = vmul.f32 %v1819, %v1832
      %v1834 = vadd.f32 %v1833, 0.014752088
      %v1835 = vmul.f32 %v1819, %v1834
      %v1836 = vadd.f32 %v1835, 0.112945676
      %v1837 = vmul.f32 %v1819, %v1836
      %v1838 = vadd.f32 %v1837, 0.4994258
      %v1839 = vmul.f32 %v1819, %v1838
      %v1840 = vadd.f32 %v1839, 1.0
      %v1841 = vrcp.pop %v1840
      %v1842 = vmul.f32 %v1840, %v1841
      %v1843 = vsub.f32 1.0, %v1842
      %v1844 = vmul.f32 %v1841, %v1843
      %v1845 = vadd.f32 %v1841, %v1844
      %vm1846 = vweird.f32 %v1840
      %vm1847 = vweird.f32 %v1841
      %vm1848 = vmor %vm1846, %vm1847
      %v1849 = vsel %vm1848, %v1841, %v1845
      %v1850 = vand.u32 2147483647, %v1840
      %vm1851 = vcmp.eq.f32.partialorder %v1850, 8.507059e+37
      %v1852 = vand.u32 %v1840, 2147483648
      %v1853 = vor.u32 1.1754944e-38, %v1852
      %v1854 = vsel %vm1851, %v1853, %v1849
      %v1855 = vmul.f32 %v1830, %v1854
      %v1856 = vmin.f32 %v1855, 1.0
      %v1857 = vmax.f32 %v1856, -1.0
      %v1858 = vmul.f32 %v741, %v741
      %v1859 = vmin.f32 16.0, %v1858
      %v1860 = vmul.f32 %v1859, 2.1237322e-06
      %v1861 = vadd.f32 %v1860, 0.00028619796
      %v1862 = vmul.f32 %v1859, %v1861
      %v1863 = vadd.f32 %v1862, 0.0036580483
      %v1864 = vmul.f32 %v1859, %v1863
      %v1865 = vadd.f32 %v1864, 0.05243302
      %v1866 = vmul.f32 %v1859, %v1865
      %v1867 = vadd.f32 %v1866, 0.18741608
      %v1868 = vmul.f32 %v1859, %v1867
      %v1869 = vadd.f32 %v1868, 1.1283791
      %v1870 = vmul.f32 %v741, %v1869
      %v1871 = vmul.f32 %v1859, 3.8918573e-05
      %v1872 = vadd.f32 %v1871, 0.001143296
      %v1873 = vmul.f32 %v1859, %v1872
      %v1874 = vadd.f32 %v1873, 0.014752088
      %v1875 = vmul.f32 %v1859, %v1874
      %v1876 = vadd.f32 %v1875, 0.112945676
      %v1877 = vmul.f32 %v1859, %v1876
      %v1878 = vadd.f32 %v1877, 0.4994258
      %v1879 = vmul.f32 %v1859, %v1878
      %v1880 = vadd.f32 %v1879, 1.0
      %v1881 = vrcp.pop %v1880
      %v1882 = vmul.f32 %v1880, %v1881
      %v1883 = vsub.f32 1.0, %v1882
      %v1884 = vmul.f32 %v1881, %v1883
      %v1885 = vadd.f32 %v1881, %v1884
      %vm1886 = vweird.f32 %v1880
      %vm1887 = vweird.f32 %v1881
      %vm1888 = vmor %vm1886, %vm1887
      %v1889 = vsel %vm1888, %v1881, %v1885
      %v1890 = vand.u32 2147483647, %v1880
      %vm1891 = vcmp.eq.f32.partialorder %v1890, 8.507059e+37
      %v1892 = vand.u32 %v1880, 2147483648
      %v1893 = vor.u32 1.1754944e-38, %v1892
      %v1894 = vsel %vm1891, %v1893, %v1889
      %v1895 = vmul.f32 %v1870, %v1894
      %v1896 = vmin.f32 %v1895, 1.0
      %v1897 = vmax.f32 %v1896, -1.0
      %v1898 = vmul.f32 %v742, %v742
      %v1899 = vmin.f32 16.0, %v1898
      %v1900 = vmul.f32 %v1899, 2.1237322e-06
      %v1901 = vadd.f32 %v1900, 0.00028619796
      %v1902 = vmul.f32 %v1899, %v1901
      %v1903 = vadd.f32 %v1902, 0.0036580483
      %v1904 = vmul.f32 %v1899, %v1903
      %v1905 = vadd.f32 %v1904, 0.05243302
      %v1906 = vmul.f32 %v1899, %v1905
      %v1907 = vadd.f32 %v1906, 0.18741608
      %v1908 = vmul.f32 %v1899, %v1907
      %v1909 = vadd.f32 %v1908, 1.1283791
      %v1910 = vmul.f32 %v742, %v1909
      %v1911 = vmul.f32 %v1899, 3.8918573e-05
      %v1912 = vadd.f32 %v1911, 0.001143296
      %v1913 = vmul.f32 %v1899, %v1912
      %v1914 = vadd.f32 %v1913, 0.014752088
      %v1915 = vmul.f32 %v1899, %v1914
      %v1916 = vadd.f32 %v1915, 0.112945676
      %v1917 = vmul.f32 %v1899, %v1916
      %v1918 = vadd.f32 %v1917, 0.4994258
      %v1919 = vmul.f32 %v1899, %v1918
      %v1920 = vadd.f32 %v1919, 1.0
      %v1921 = vrcp.pop %v1920
      %v1922 = vmul.f32 %v1920, %v1921
      %v1923 = vsub.f32 1.0, %v1922
      %v1924 = vmul.f32 %v1921, %v1923
      %v1925 = vadd.f32 %v1921, %v1924
      %vm1926 = vweird.f32 %v1920
      %vm1927 = vweird.f32 %v1921
      %vm1928 = vmor %vm1926, %vm1927
      %v1929 = vsel %vm1928, %v1921, %v1925
      %v1930 = vand.u32 2147483647, %v1920
      %vm1931 = vcmp.eq.f32.partialorder %v1930, 8.507059e+37
      %v1932 = vand.u32 %v1920, 2147483648
      %v1933 = vor.u32 1.1754944e-38, %v1932
      %v1934 = vsel %vm1931, %v1933, %v1929
      %v1935 = vmul.f32 %v1910, %v1934
      %v1936 = vmin.f32 %v1935, 1.0
      %v1937 = vmax.f32 %v1936, -1.0
      %v1938 = vmul.f32 %v743, %v743
      %v1939 = vmin.f32 16.0, %v1938
      %v1940 = vmul.f32 %v1939, 2.1237322e-06
      %v1941 = vadd.f32 %v1940, 0.00028619796
      %v1942 = vmul.f32 %v1939, %v1941
      %v1943 = vadd.f32 %v1942, 0.0036580483
      %v1944 = vmul.f32 %v1939, %v1943
      %v1945 = vadd.f32 %v1944, 0.05243302
      %v1946 = vmul.f32 %v1939, %v1945
      %v1947 = vadd.f32 %v1946, 0.18741608
      %v1948 = vmul.f32 %v1939, %v1947
      %v1949 = vadd.f32 %v1948, 1.1283791
      %v1950 = vmul.f32 %v743, %v1949
      %v1951 = vmul.f32 %v1939, 3.8918573e-05
      %v1952 = vadd.f32 %v1951, 0.001143296
      %v1953 = vmul.f32 %v1939, %v1952
      %v1954 = vadd.f32 %v1953, 0.014752088
      %v1955 = vmul.f32 %v1939, %v1954
      %v1956 = vadd.f32 %v1955, 0.112945676
      %v1957 = vmul.f32 %v1939, %v1956
      %v1958 = vadd.f32 %v1957, 0.4994258
      %v1959 = vmul.f32 %v1939, %v1958
      %v1960 = vadd.f32 %v1959, 1.0
      %v1961 = vrcp.pop %v1960
      %v1962 = vmul.f32 %v1960, %v1961
      %v1963 = vsub.f32 1.0, %v1962
      %v1964 = vmul.f32 %v1961, %v1963
      %v1965 = vadd.f32 %v1961, %v1964
      %vm1966 = vweird.f32 %v1960
      %vm1967 = vweird.f32 %v1961
      %vm1968 = vmor %vm1966, %vm1967
      %v1969 = vsel %vm1968, %v1961, %v1965
      %v1970 = vand.u32 2147483647, %v1960
      %vm1971 = vcmp.eq.f32.partialorder %v1970, 8.507059e+37
      %v1972 = vand.u32 %v1960, 2147483648
      %v1973 = vor.u32 1.1754944e-38, %v1972
      %v1974 = vsel %vm1971, %v1973, %v1969
      %v1975 = vmul.f32 %v1950, %v1974
      %v1976 = vmin.f32 %v1975, 1.0
      %v1977 = vmax.f32 %v1976, -1.0
      %v1978 = vmul.f32 %v744, %v744
      %v1979 = vmin.f32 16.0, %v1978
      %v1980 = vmul.f32 %v1979, 2.1237322e-06
      %v1981 = vadd.f32 %v1980, 0.00028619796
      %v1982 = vmul.f32 %v1979, %v1981
      %v1983 = vadd.f32 %v1982, 0.0036580483
      %v1984 = vmul.f32 %v1979, %v1983
      %v1985 = vadd.f32 %v1984, 0.05243302
      %v1986 = vmul.f32 %v1979, %v1985
      %v1987 = vadd.f32 %v1986, 0.18741608
      %v1988 = vmul.f32 %v1979, %v1987
      %v1989 = vadd.f32 %v1988, 1.1283791
      %v1990 = vmul.f32 %v744, %v1989
      %v1991 = vmul.f32 %v1979, 3.8918573e-05
      %v1992 = vadd.f32 %v1991, 0.001143296
      %v1993 = vmul.f32 %v1979, %v1992
      %v1994 = vadd.f32 %v1993, 0.014752088
      %v1995 = vmul.f32 %v1979, %v1994
      %v1996 = vadd.f32 %v1995, 0.112945676
      %v1997 = vmul.f32 %v1979, %v1996
      %v1998 = vadd.f32 %v1997, 0.4994258
      %v1999 = vmul.f32 %v1979, %v1998
      %v2000 = vadd.f32 %v1999, 1.0
      %v2001 = vrcp.pop %v2000
      %v2002 = vmul.f32 %v2000, %v2001
      %v2003 = vsub.f32 1.0, %v2002
      %v2004 = vmul.f32 %v2001, %v2003
      %v2005 = vadd.f32 %v2001, %v2004
      %vm2006 = vweird.f32 %v2000
      %vm2007 = vweird.f32 %v2001
      %vm2008 = vmor %vm2006, %vm2007
      %v2009 = vsel %vm2008, %v2001, %v2005
      %v2010 = vand.u32 2147483647, %v2000
      %vm2011 = vcmp.eq.f32.partialorder %v2010, 8.507059e+37
      %v2012 = vand.u32 %v2000, 2147483648
      %v2013 = vor.u32 1.1754944e-38, %v2012
      %v2014 = vsel %vm2011, %v2013, %v2009
      %v2015 = vmul.f32 %v1990, %v2014
      %v2016 = vmin.f32 %v2015, 1.0
      %v2017 = vmax.f32 %v2016, -1.0
      %v2018 = vmul.f32 %v745, %v745
      %v2019 = vmin.f32 16.0, %v2018
      %v2020 = vmul.f32 %v2019, 2.1237322e-06
      %v2021 = vadd.f32 %v2020, 0.00028619796
      %v2022 = vmul.f32 %v2019, %v2021
      %v2023 = vadd.f32 %v2022, 0.0036580483
      %v2024 = vmul.f32 %v2019, %v2023
      %v2025 = vadd.f32 %v2024, 0.05243302
      %v2026 = vmul.f32 %v2019, %v2025
      %v2027 = vadd.f32 %v2026, 0.18741608
      %v2028 = vmul.f32 %v2019, %v2027
      %v2029 = vadd.f32 %v2028, 1.1283791
      %v2030 = vmul.f32 %v745, %v2029
      %v2031 = vmul.f32 %v2019, 3.8918573e-05
      %v2032 = vadd.f32 %v2031, 0.001143296
      %v2033 = vmul.f32 %v2019, %v2032
      %v2034 = vadd.f32 %v2033, 0.014752088
      %v2035 = vmul.f32 %v2019, %v2034
      %v2036 = vadd.f32 %v2035, 0.112945676
      %v2037 = vmul.f32 %v2019, %v2036
      %v2038 = vadd.f32 %v2037, 0.4994258
      %v2039 = vmul.f32 %v2019, %v2038
      %v2040 = vadd.f32 %v2039, 1.0
      %v2041 = vrcp.pop %v2040
      %v2042 = vmul.f32 %v2040, %v2041
      %v2043 = vsub.f32 1.0, %v2042
      %v2044 = vmul.f32 %v2041, %v2043
      %v2045 = vadd.f32 %v2041, %v2044
      %vm2046 = vweird.f32 %v2040
      %vm2047 = vweird.f32 %v2041
      %vm2048 = vmor %vm2046, %vm2047
      %v2049 = vsel %vm2048, %v2041, %v2045
      %v2050 = vand.u32 2147483647, %v2040
      %vm2051 = vcmp.eq.f32.partialorder %v2050, 8.507059e+37
      %v2052 = vand.u32 %v2040, 2147483648
      %v2053 = vor.u32 1.1754944e-38, %v2052
      %v2054 = vsel %vm2051, %v2053, %v2049
      %v2055 = vmul.f32 %v2030, %v2054
      %v2056 = vmin.f32 %v2055, 1.0
      %v2057 = vmax.f32 %v2056, -1.0
      %v2058 = vmul.f32 %v746, %v746
      %v2059 = vmin.f32 16.0, %v2058
      %v2060 = vmul.f32 %v2059, 2.1237322e-06
      %v2061 = vadd.f32 %v2060, 0.00028619796
      %v2062 = vmul.f32 %v2059, %v2061
      %v2063 = vadd.f32 %v2062, 0.0036580483
      %v2064 = vmul.f32 %v2059, %v2063
      %v2065 = vadd.f32 %v2064, 0.05243302
      %v2066 = vmul.f32 %v2059, %v2065
      %v2067 = vadd.f32 %v2066, 0.18741608
      %v2068 = vmul.f32 %v2059, %v2067
      %v2069 = vadd.f32 %v2068, 1.1283791
      %v2070 = vmul.f32 %v746, %v2069
      %v2071 = vmul.f32 %v2059, 3.8918573e-05
      %v2072 = vadd.f32 %v2071, 0.001143296
      %v2073 = vmul.f32 %v2059, %v2072
      %v2074 = vadd.f32 %v2073, 0.014752088
      %v2075 = vmul.f32 %v2059, %v2074
      %v2076 = vadd.f32 %v2075, 0.112945676
      %v2077 = vmul.f32 %v2059, %v2076
      %v2078 = vadd.f32 %v2077, 0.4994258
      %v2079 = vmul.f32 %v2059, %v2078
      %v2080 = vadd.f32 %v2079, 1.0
      %v2081 = vrcp.pop %v2080
      %v2082 = vmul.f32 %v2080, %v2081
      %v2083 = vsub.f32 1.0, %v2082
      %v2084 = vmul.f32 %v2081, %v2083
      %v2085 = vadd.f32 %v2081, %v2084
      %vm2086 = vweird.f32 %v2080
      %vm2087 = vweird.f32 %v2081
      %vm2088 = vmor %vm2086, %vm2087
      %v2089 = vsel %vm2088, %v2081, %v2085
      %v2090 = vand.u32 2147483647, %v2080
      %vm2091 = vcmp.eq.f32.partialorder %v2090, 8.507059e+37
      %v2092 = vand.u32 %v2080, 2147483648
      %v2093 = vor.u32 1.1754944e-38, %v2092
      %v2094 = vsel %vm2091, %v2093, %v2089
      %v2095 = vmul.f32 %v2070, %v2094
      %v2096 = vmin.f32 %v2095, 1.0
      %v2097 = vmax.f32 %v2096, -1.0
      %v2098 = vmul.f32 %v747, %v747
      %v2099 = vmin.f32 16.0, %v2098
      %v2100 = vmul.f32 %v2099, 2.1237322e-06
      %v2101 = vadd.f32 %v2100, 0.00028619796
      %v2102 = vmul.f32 %v2099, %v2101
      %v2103 = vadd.f32 %v2102, 0.0036580483
      %v2104 = vmul.f32 %v2099, %v2103
      %v2105 = vadd.f32 %v2104, 0.05243302
      %v2106 = vmul.f32 %v2099, %v2105
      %v2107 = vadd.f32 %v2106, 0.18741608
      %v2108 = vmul.f32 %v2099, %v2107
      %v2109 = vadd.f32 %v2108, 1.1283791
      %v2110 = vmul.f32 %v747, %v2109
      %v2111 = vmul.f32 %v2099, 3.8918573e-05
      %v2112 = vadd.f32 %v2111, 0.001143296
      %v2113 = vmul.f32 %v2099, %v2112
      %v2114 = vadd.f32 %v2113, 0.014752088
      %v2115 = vmul.f32 %v2099, %v2114
      %v2116 = vadd.f32 %v2115, 0.112945676
      %v2117 = vmul.f32 %v2099, %v2116
      %v2118 = vadd.f32 %v2117, 0.4994258
      %v2119 = vmul.f32 %v2099, %v2118
      %v2120 = vadd.f32 %v2119, 1.0
      %v2121 = vrcp.pop %v2120
      %v2122 = vmul.f32 %v2120, %v2121
      %v2123 = vsub.f32 1.0, %v2122
      %v2124 = vmul.f32 %v2121, %v2123
      %v2125 = vadd.f32 %v2121, %v2124
      %vm2126 = vweird.f32 %v2120
      %vm2127 = vweird.f32 %v2121
      %vm2128 = vmor %vm2126, %vm2127
      %v2129 = vsel %vm2128, %v2121, %v2125
      %v2130 = vand.u32 2147483647, %v2120
      %vm2131 = vcmp.eq.f32.partialorder %v2130, 8.507059e+37
      %v2132 = vand.u32 %v2120, 2147483648
      %v2133 = vor.u32 1.1754944e-38, %v2132
      %v2134 = vsel %vm2131, %v2133, %v2129
      %v2135 = vmul.f32 %v2110, %v2134
      %v2136 = vmin.f32 %v2135, 1.0
      %v2137 = vmax.f32 %v2136, -1.0
      %v2138 = vmul.f32 %v748, %v748
      %v2139 = vmin.f32 16.0, %v2138
      %v2140 = vmul.f32 %v2139, 2.1237322e-06
      %v2141 = vadd.f32 %v2140, 0.00028619796
      %v2142 = vmul.f32 %v2139, %v2141
      %v2143 = vadd.f32 %v2142, 0.0036580483
      %v2144 = vmul.f32 %v2139, %v2143
      %v2145 = vadd.f32 %v2144, 0.05243302
      %v2146 = vmul.f32 %v2139, %v2145
      %v2147 = vadd.f32 %v2146, 0.18741608
      %v2148 = vmul.f32 %v2139, %v2147
      %v2149 = vadd.f32 %v2148, 1.1283791
      %v2150 = vmul.f32 %v748, %v2149
      %v2151 = vmul.f32 %v2139, 3.8918573e-05
      %v2152 = vadd.f32 %v2151, 0.001143296
      %v2153 = vmul.f32 %v2139, %v2152
      %v2154 = vadd.f32 %v2153, 0.014752088
      %v2155 = vmul.f32 %v2139, %v2154
      %v2156 = vadd.f32 %v2155, 0.112945676
      %v2157 = vmul.f32 %v2139, %v2156
      %v2158 = vadd.f32 %v2157, 0.4994258
      %v2159 = vmul.f32 %v2139, %v2158
      %v2160 = vadd.f32 %v2159, 1.0
      %v2161 = vrcp.pop %v2160
      %v2162 = vmul.f32 %v2160, %v2161
      %v2163 = vsub.f32 1.0, %v2162
      %v2164 = vmul.f32 %v2161, %v2163
      %v2165 = vadd.f32 %v2161, %v2164
      %vm2166 = vweird.f32 %v2160
      %vm2167 = vweird.f32 %v2161
      %vm2168 = vmor %vm2166, %vm2167
      %v2169 = vsel %vm2168, %v2161, %v2165
      %v2170 = vand.u32 2147483647, %v2160
      %vm2171 = vcmp.eq.f32.partialorder %v2170, 8.507059e+37
      %v2172 = vand.u32 %v2160, 2147483648
      %v2173 = vor.u32 1.1754944e-38, %v2172
      %v2174 = vsel %vm2171, %v2173, %v2169
      %v2175 = vmul.f32 %v2150, %v2174
      %v2176 = vmin.f32 %v2175, 1.0
      %v2177 = vmax.f32 %v2176, -1.0
      %v2178 = vmul.f32 %v749, %v749
      %v2179 = vmin.f32 16.0, %v2178
      %v2180 = vmul.f32 %v2179, 2.1237322e-06
      %v2181 = vadd.f32 %v2180, 0.00028619796
      %v2182 = vmul.f32 %v2179, %v2181
      %v2183 = vadd.f32 %v2182, 0.0036580483
      %v2184 = vmul.f32 %v2179, %v2183
      %v2185 = vadd.f32 %v2184, 0.05243302
      %v2186 = vmul.f32 %v2179, %v2185
      %v2187 = vadd.f32 %v2186, 0.18741608
      %v2188 = vmul.f32 %v2179, %v2187
      %v2189 = vadd.f32 %v2188, 1.1283791
      %v2190 = vmul.f32 %v749, %v2189
      %v2191 = vmul.f32 %v2179, 3.8918573e-05
      %v2192 = vadd.f32 %v2191, 0.001143296
      %v2193 = vmul.f32 %v2179, %v2192
      %v2194 = vadd.f32 %v2193, 0.014752088
      %v2195 = vmul.f32 %v2179, %v2194
      %v2196 = vadd.f32 %v2195, 0.112945676
      %v2197 = vmul.f32 %v2179, %v2196
      %v2198 = vadd.f32 %v2197, 0.4994258
      %v2199 = vmul.f32 %v2179, %v2198
      %v2200 = vadd.f32 %v2199, 1.0
      %v2201 = vrcp.pop %v2200
      %v2202 = vmul.f32 %v2200, %v2201
      %v2203 = vsub.f32 1.0, %v2202
      %v2204 = vmul.f32 %v2201, %v2203
      %v2205 = vadd.f32 %v2201, %v2204
      %vm2206 = vweird.f32 %v2200
      %vm2207 = vweird.f32 %v2201
      %vm2208 = vmor %vm2206, %vm2207
      %v2209 = vsel %vm2208, %v2201, %v2205
      %v2210 = vand.u32 2147483647, %v2200
      %vm2211 = vcmp.eq.f32.partialorder %v2210, 8.507059e+37
      %v2212 = vand.u32 %v2200, 2147483648
      %v2213 = vor.u32 1.1754944e-38, %v2212
      %v2214 = vsel %vm2211, %v2213, %v2209
      %v2215 = vmul.f32 %v2190, %v2214
      %v2216 = vmin.f32 %v2215, 1.0
      %v2217 = vmax.f32 %v2216, -1.0
      %v2218 = vmul.f32 %v750, %v750
      %v2219 = vmin.f32 16.0, %v2218
      %v2220 = vmul.f32 %v2219, 2.1237322e-06
      %v2221 = vadd.f32 %v2220, 0.00028619796
      %v2222 = vmul.f32 %v2219, %v2221
      %v2223 = vadd.f32 %v2222, 0.0036580483
      %v2224 = vmul.f32 %v2219, %v2223
      %v2225 = vadd.f32 %v2224, 0.05243302
      %v2226 = vmul.f32 %v2219, %v2225
      %v2227 = vadd.f32 %v2226, 0.18741608
      %v2228 = vmul.f32 %v2219, %v2227
      %v2229 = vadd.f32 %v2228, 1.1283791
      %v2230 = vmul.f32 %v750, %v2229
      %v2231 = vmul.f32 %v2219, 3.8918573e-05
      %v2232 = vadd.f32 %v2231, 0.001143296
      %v2233 = vmul.f32 %v2219, %v2232
      %v2234 = vadd.f32 %v2233, 0.014752088
      %v2235 = vmul.f32 %v2219, %v2234
      %v2236 = vadd.f32 %v2235, 0.112945676
      %v2237 = vmul.f32 %v2219, %v2236
      %v2238 = vadd.f32 %v2237, 0.4994258
      %v2239 = vmul.f32 %v2219, %v2238
      %v2240 = vadd.f32 %v2239, 1.0
      %v2241 = vrcp.pop %v2240
      %v2242 = vmul.f32 %v2240, %v2241
      %v2243 = vsub.f32 1.0, %v2242
      %v2244 = vmul.f32 %v2241, %v2243
      %v2245 = vadd.f32 %v2241, %v2244
      %vm2246 = vweird.f32 %v2240
      %vm2247 = vweird.f32 %v2241
      %vm2248 = vmor %vm2246, %vm2247
      %v2249 = vsel %vm2248, %v2241, %v2245
      %v2250 = vand.u32 2147483647, %v2240
      %vm2251 = vcmp.eq.f32.partialorder %v2250, 8.507059e+37
      %v2252 = vand.u32 %v2240, 2147483648
      %v2253 = vor.u32 1.1754944e-38, %v2252
      %v2254 = vsel %vm2251, %v2253, %v2249
      %v2255 = vmul.f32 %v2230, %v2254
      %v2256 = vmin.f32 %v2255, 1.0
      %v2257 = vmax.f32 %v2256, -1.0
      %v2258 = vmul.f32 %v751, %v751
      %v2259 = vmin.f32 16.0, %v2258
      %v2260 = vmul.f32 %v2259, 2.1237322e-06
      %v2261 = vadd.f32 %v2260, 0.00028619796
      %v2262 = vmul.f32 %v2259, %v2261
      %v2263 = vadd.f32 %v2262, 0.0036580483
      %v2264 = vmul.f32 %v2259, %v2263
      %v2265 = vadd.f32 %v2264, 0.05243302
      %v2266 = vmul.f32 %v2259, %v2265
      %v2267 = vadd.f32 %v2266, 0.18741608
      %v2268 = vmul.f32 %v2259, %v2267
      %v2269 = vadd.f32 %v2268, 1.1283791
      %v2270 = vmul.f32 %v751, %v2269
      %v2271 = vmul.f32 %v2259, 3.8918573e-05
      %v2272 = vadd.f32 %v2271, 0.001143296
      %v2273 = vmul.f32 %v2259, %v2272
      %v2274 = vadd.f32 %v2273, 0.014752088
      %v2275 = vmul.f32 %v2259, %v2274
      %v2276 = vadd.f32 %v2275, 0.112945676
      %v2277 = vmul.f32 %v2259, %v2276
      %v2278 = vadd.f32 %v2277, 0.4994258
      %v2279 = vmul.f32 %v2259, %v2278
      %v2280 = vadd.f32 %v2279, 1.0
      %v2281 = vrcp.pop %v2280
      %v2282 = vmul.f32 %v2280, %v2281
      %v2283 = vsub.f32 1.0, %v2282
      %v2284 = vmul.f32 %v2281, %v2283
      %v2285 = vadd.f32 %v2281, %v2284
      %vm2286 = vweird.f32 %v2280
      %vm2287 = vweird.f32 %v2281
      %vm2288 = vmor %vm2286, %vm2287
      %v2289 = vsel %vm2288, %v2281, %v2285
      %v2290 = vand.u32 2147483647, %v2280
      %vm2291 = vcmp.eq.f32.partialorder %v2290, 8.507059e+37
      %v2292 = vand.u32 %v2280, 2147483648
      %v2293 = vor.u32 1.1754944e-38, %v2292
      %v2294 = vsel %vm2291, %v2293, %v2289
      %v2295 = vmul.f32 %v2270, %v2294
      %v2296 = vmin.f32 %v2295, 1.0
      %v2297 = vmax.f32 %v2296, -1.0
      %v2298 = vmul.f32 %v752, %v752
      %v2299 = vmin.f32 16.0, %v2298
      %v2300 = vmul.f32 %v2299, 2.1237322e-06
      %v2301 = vadd.f32 %v2300, 0.00028619796
      %v2302 = vmul.f32 %v2299, %v2301
      %v2303 = vadd.f32 %v2302, 0.0036580483
      %v2304 = vmul.f32 %v2299, %v2303
      %v2305 = vadd.f32 %v2304, 0.05243302
      %v2306 = vmul.f32 %v2299, %v2305
      %v2307 = vadd.f32 %v2306, 0.18741608
      %v2308 = vmul.f32 %v2299, %v2307
      %v2309 = vadd.f32 %v2308, 1.1283791
      %v2310 = vmul.f32 %v752, %v2309
      %v2311 = vmul.f32 %v2299, 3.8918573e-05
      %v2312 = vadd.f32 %v2311, 0.001143296
      %v2313 = vmul.f32 %v2299, %v2312
      %v2314 = vadd.f32 %v2313, 0.014752088
      %v2315 = vmul.f32 %v2299, %v2314
      %v2316 = vadd.f32 %v2315, 0.112945676
      %v2317 = vmul.f32 %v2299, %v2316
      %v2318 = vadd.f32 %v2317, 0.4994258
      %v2319 = vmul.f32 %v2299, %v2318
      %v2320 = vadd.f32 %v2319, 1.0
      %v2321 = vrcp.pop %v2320
      %v2322 = vmul.f32 %v2320, %v2321
      %v2323 = vsub.f32 1.0, %v2322
      %v2324 = vmul.f32 %v2321, %v2323
      %v2325 = vadd.f32 %v2321, %v2324
      %vm2326 = vweird.f32 %v2320
      %vm2327 = vweird.f32 %v2321
      %vm2328 = vmor %vm2326, %vm2327
      %v2329 = vsel %vm2328, %v2321, %v2325
      %v2330 = vand.u32 2147483647, %v2320
      %vm2331 = vcmp.eq.f32.partialorder %v2330, 8.507059e+37
      %v2332 = vand.u32 %v2320, 2147483648
      %v2333 = vor.u32 1.1754944e-38, %v2332
      %v2334 = vsel %vm2331, %v2333, %v2329
      %v2335 = vmul.f32 %v2310, %v2334
      %v2336 = vmin.f32 %v2335, 1.0
      %v2337 = vmax.f32 %v2336, -1.0
      %v2338 = vmul.f32 %v753, %v753
      %v2339 = vmin.f32 16.0, %v2338
      %v2340 = vmul.f32 %v2339, 2.1237322e-06
      %v2341 = vadd.f32 %v2340, 0.00028619796
      %v2342 = vmul.f32 %v2339, %v2341
      %v2343 = vadd.f32 %v2342, 0.0036580483
      %v2344 = vmul.f32 %v2339, %v2343
      %v2345 = vadd.f32 %v2344, 0.05243302
      %v2346 = vmul.f32 %v2339, %v2345
      %v2347 = vadd.f32 %v2346, 0.18741608
      %v2348 = vmul.f32 %v2339, %v2347
      %v2349 = vadd.f32 %v2348, 1.1283791
      %v2350 = vmul.f32 %v753, %v2349
      %v2351 = vmul.f32 %v2339, 3.8918573e-05
      %v2352 = vadd.f32 %v2351, 0.001143296
      %v2353 = vmul.f32 %v2339, %v2352
      %v2354 = vadd.f32 %v2353, 0.014752088
      %v2355 = vmul.f32 %v2339, %v2354
      %v2356 = vadd.f32 %v2355, 0.112945676
      %v2357 = vmul.f32 %v2339, %v2356
      %v2358 = vadd.f32 %v2357, 0.4994258
      %v2359 = vmul.f32 %v2339, %v2358
      %v2360 = vadd.f32 %v2359, 1.0
      %v2361 = vrcp.pop %v2360
      %v2362 = vmul.f32 %v2360, %v2361
      %v2363 = vsub.f32 1.0, %v2362
      %v2364 = vmul.f32 %v2361, %v2363
      %v2365 = vadd.f32 %v2361, %v2364
      %vm2366 = vweird.f32 %v2360
      %vm2367 = vweird.f32 %v2361
      %vm2368 = vmor %vm2366, %vm2367
      %v2369 = vsel %vm2368, %v2361, %v2365
      %v2370 = vand.u32 2147483647, %v2360
      %vm2371 = vcmp.eq.f32.partialorder %v2370, 8.507059e+37
      %v2372 = vand.u32 %v2360, 2147483648
      %v2373 = vor.u32 1.1754944e-38, %v2372
      %v2374 = vsel %vm2371, %v2373, %v2369
      %v2375 = vmul.f32 %v2350, %v2374
      %v2376 = vmin.f32 %v2375, 1.0
      %v2377 = vmax.f32 %v2376, -1.0
      %v2378 = vmul.f32 %v754, %v754
      %v2379 = vmin.f32 16.0, %v2378
      %v2380 = vmul.f32 %v2379, 2.1237322e-06
      %v2381 = vadd.f32 %v2380, 0.00028619796
      %v2382 = vmul.f32 %v2379, %v2381
      %v2383 = vadd.f32 %v2382, 0.0036580483
      %v2384 = vmul.f32 %v2379, %v2383
      %v2385 = vadd.f32 %v2384, 0.05243302
      %v2386 = vmul.f32 %v2379, %v2385
      %v2387 = vadd.f32 %v2386, 0.18741608
      %v2388 = vmul.f32 %v2379, %v2387
      %v2389 = vadd.f32 %v2388, 1.1283791
      %v2390 = vmul.f32 %v754, %v2389
      %v2391 = vmul.f32 %v2379, 3.8918573e-05
      %v2392 = vadd.f32 %v2391, 0.001143296
      %v2393 = vmul.f32 %v2379, %v2392
      %v2394 = vadd.f32 %v2393, 0.014752088
      %v2395 = vmul.f32 %v2379, %v2394
      %v2396 = vadd.f32 %v2395, 0.112945676
      %v2397 = vmul.f32 %v2379, %v2396
      %v2398 = vadd.f32 %v2397, 0.4994258
      %v2399 = vmul.f32 %v2379, %v2398
      %v2400 = vadd.f32 %v2399, 1.0
      %v2401 = vrcp.pop %v2400
      %v2402 = vmul.f32 %v2400, %v2401
      %v2403 = vsub.f32 1.0, %v2402
      %v2404 = vmul.f32 %v2401, %v2403
      %v2405 = vadd.f32 %v2401, %v2404
      %vm2406 = vweird.f32 %v2400
      %vm2407 = vweird.f32 %v2401
      %vm2408 = vmor %vm2406, %vm2407
      %v2409 = vsel %vm2408, %v2401, %v2405
      %v2410 = vand.u32 2147483647, %v2400
      %vm2411 = vcmp.eq.f32.partialorder %v2410, 8.507059e+37
      %v2412 = vand.u32 %v2400, 2147483648
      %v2413 = vor.u32 1.1754944e-38, %v2412
      %v2414 = vsel %vm2411, %v2413, %v2409
      %v2415 = vmul.f32 %v2390, %v2414
      %v2416 = vmin.f32 %v2415, 1.0
      %v2417 = vmax.f32 %v2416, -1.0
      %v2418 = vmul.f32 %v755, %v755
      %v2419 = vmin.f32 16.0, %v2418
      %v2420 = vmul.f32 %v2419, 2.1237322e-06
      %v2421 = vadd.f32 %v2420, 0.00028619796
      %v2422 = vmul.f32 %v2419, %v2421
      %v2423 = vadd.f32 %v2422, 0.0036580483
      %v2424 = vmul.f32 %v2419, %v2423
      %v2425 = vadd.f32 %v2424, 0.05243302
      %v2426 = vmul.f32 %v2419, %v2425
      %v2427 = vadd.f32 %v2426, 0.18741608
      %v2428 = vmul.f32 %v2419, %v2427
      %v2429 = vadd.f32 %v2428, 1.1283791
      %v2430 = vmul.f32 %v755, %v2429
      %v2431 = vmul.f32 %v2419, 3.8918573e-05
      %v2432 = vadd.f32 %v2431, 0.001143296
      %v2433 = vmul.f32 %v2419, %v2432
      %v2434 = vadd.f32 %v2433, 0.014752088
      %v2435 = vmul.f32 %v2419, %v2434
      %v2436 = vadd.f32 %v2435, 0.112945676
      %v2437 = vmul.f32 %v2419, %v2436
      %v2438 = vadd.f32 %v2437, 0.4994258
      %v2439 = vmul.f32 %v2419, %v2438
      %v2440 = vadd.f32 %v2439, 1.0
      %v2441 = vrcp.pop %v2440
      %v2442 = vmul.f32 %v2440, %v2441
      %v2443 = vsub.f32 1.0, %v2442
      %v2444 = vmul.f32 %v2441, %v2443
      %v2445 = vadd.f32 %v2441, %v2444
      %vm2446 = vweird.f32 %v2440
      %vm2447 = vweird.f32 %v2441
      %vm2448 = vmor %vm2446, %vm2447
      %v2449 = vsel %vm2448, %v2441, %v2445
      %v2450 = vand.u32 2147483647, %v2440
      %vm2451 = vcmp.eq.f32.partialorder %v2450, 8.507059e+37
      %v2452 = vand.u32 %v2440, 2147483648
      %v2453 = vor.u32 1.1754944e-38, %v2452
      %v2454 = vsel %vm2451, %v2453, %v2449
      %v2455 = vmul.f32 %v2430, %v2454
      %v2456 = vmin.f32 %v2455, 1.0
      %v2457 = vmax.f32 %v2456, -1.0
      %v2458 = vmul.f32 %v756, %v756
      %v2459 = vmin.f32 16.0, %v2458
      %v2460 = vmul.f32 %v2459, 2.1237322e-06
      %v2461 = vadd.f32 %v2460, 0.00028619796
      %v2462 = vmul.f32 %v2459, %v2461
      %v2463 = vadd.f32 %v2462, 0.0036580483
      %v2464 = vmul.f32 %v2459, %v2463
      %v2465 = vadd.f32 %v2464, 0.05243302
      %v2466 = vmul.f32 %v2459, %v2465
      %v2467 = vadd.f32 %v2466, 0.18741608
      %v2468 = vmul.f32 %v2459, %v2467
      %v2469 = vadd.f32 %v2468, 1.1283791
      %v2470 = vmul.f32 %v756, %v2469
      %v2471 = vmul.f32 %v2459, 3.8918573e-05
      %v2472 = vadd.f32 %v2471, 0.001143296
      %v2473 = vmul.f32 %v2459, %v2472
      %v2474 = vadd.f32 %v2473, 0.014752088
      %v2475 = vmul.f32 %v2459, %v2474
      %v2476 = vadd.f32 %v2475, 0.112945676
      %v2477 = vmul.f32 %v2459, %v2476
      %v2478 = vadd.f32 %v2477, 0.4994258
      %v2479 = vmul.f32 %v2459, %v2478
      %v2480 = vadd.f32 %v2479, 1.0
      %v2481 = vrcp.pop %v2480
      %v2482 = vmul.f32 %v2480, %v2481
      %v2483 = vsub.f32 1.0, %v2482
      %v2484 = vmul.f32 %v2481, %v2483
      %v2485 = vadd.f32 %v2481, %v2484
      %vm2486 = vweird.f32 %v2480
      %vm2487 = vweird.f32 %v2481
      %vm2488 = vmor %vm2486, %vm2487
      %v2489 = vsel %vm2488, %v2481, %v2485
      %v2490 = vand.u32 2147483647, %v2480
      %vm2491 = vcmp.eq.f32.partialorder %v2490, 8.507059e+37
      %v2492 = vand.u32 %v2480, 2147483648
      %v2493 = vor.u32 1.1754944e-38, %v2492
      %v2494 = vsel %vm2491, %v2493, %v2489
      %v2495 = vmul.f32 %v2470, %v2494
      %v2496 = vmin.f32 %v2495, 1.0
      %v2497 = vmax.f32 %v2496, -1.0
      %v2498 = vmul.f32 %v757, %v757
      %v2499 = vmin.f32 16.0, %v2498
      %v2500 = vmul.f32 %v2499, 2.1237322e-06
      %v2501 = vadd.f32 %v2500, 0.00028619796
      %v2502 = vmul.f32 %v2499, %v2501
      %v2503 = vadd.f32 %v2502, 0.0036580483
      %v2504 = vmul.f32 %v2499, %v2503
      %v2505 = vadd.f32 %v2504, 0.05243302
      %v2506 = vmul.f32 %v2499, %v2505
      %v2507 = vadd.f32 %v2506, 0.18741608
      %v2508 = vmul.f32 %v2499, %v2507
      %v2509 = vadd.f32 %v2508, 1.1283791
      %v2510 = vmul.f32 %v757, %v2509
      %v2511 = vmul.f32 %v2499, 3.8918573e-05
      %v2512 = vadd.f32 %v2511, 0.001143296
      %v2513 = vmul.f32 %v2499, %v2512
      %v2514 = vadd.f32 %v2513, 0.014752088
      %v2515 = vmul.f32 %v2499, %v2514
      %v2516 = vadd.f32 %v2515, 0.112945676
      %v2517 = vmul.f32 %v2499, %v2516
      %v2518 = vadd.f32 %v2517, 0.4994258
      %v2519 = vmul.f32 %v2499, %v2518
      %v2520 = vadd.f32 %v2519, 1.0
      %v2521 = vrcp.pop %v2520
      %v2522 = vmul.f32 %v2520, %v2521
      %v2523 = vsub.f32 1.0, %v2522
      %v2524 = vmul.f32 %v2521, %v2523
      %v2525 = vadd.f32 %v2521, %v2524
      %vm2526 = vweird.f32 %v2520
      %vm2527 = vweird.f32 %v2521
      %vm2528 = vmor %vm2526, %vm2527
      %v2529 = vsel %vm2528, %v2521, %v2525
      %v2530 = vand.u32 2147483647, %v2520
      %vm2531 = vcmp.eq.f32.partialorder %v2530, 8.507059e+37
      %v2532 = vand.u32 %v2520, 2147483648
      %v2533 = vor.u32 1.1754944e-38, %v2532
      %v2534 = vsel %vm2531, %v2533, %v2529
      %v2535 = vmul.f32 %v2510, %v2534
      %v2536 = vmin.f32 %v2535, 1.0
      %v2537 = vmax.f32 %v2536, -1.0
      %v2538 = vmul.f32 %v758, %v758
      %v2539 = vmin.f32 16.0, %v2538
      %v2540 = vmul.f32 %v2539, 2.1237322e-06
      %v2541 = vadd.f32 %v2540, 0.00028619796
      %v2542 = vmul.f32 %v2539, %v2541
      %v2543 = vadd.f32 %v2542, 0.0036580483
      %v2544 = vmul.f32 %v2539, %v2543
      %v2545 = vadd.f32 %v2544, 0.05243302
      %v2546 = vmul.f32 %v2539, %v2545
      %v2547 = vadd.f32 %v2546, 0.18741608
      %v2548 = vmul.f32 %v2539, %v2547
      %v2549 = vadd.f32 %v2548, 1.1283791
      %v2550 = vmul.f32 %v758, %v2549
      %v2551 = vmul.f32 %v2539, 3.8918573e-05
      %v2552 = vadd.f32 %v2551, 0.001143296
      %v2553 = vmul.f32 %v2539, %v2552
      %v2554 = vadd.f32 %v2553, 0.014752088
      %v2555 = vmul.f32 %v2539, %v2554
      %v2556 = vadd.f32 %v2555, 0.112945676
      %v2557 = vmul.f32 %v2539, %v2556
      %v2558 = vadd.f32 %v2557, 0.4994258
      %v2559 = vmul.f32 %v2539, %v2558
      %v2560 = vadd.f32 %v2559, 1.0
      %v2561 = vrcp.pop %v2560
      %v2562 = vmul.f32 %v2560, %v2561
      %v2563 = vsub.f32 1.0, %v2562
      %v2564 = vmul.f32 %v2561, %v2563
      %v2565 = vadd.f32 %v2561, %v2564
      %vm2566 = vweird.f32 %v2560
      %vm2567 = vweird.f32 %v2561
      %vm2568 = vmor %vm2566, %vm2567
      %v2569 = vsel %vm2568, %v2561, %v2565
      %v2570 = vand.u32 2147483647, %v2560
      %vm2571 = vcmp.eq.f32.partialorder %v2570, 8.507059e+37
      %v2572 = vand.u32 %v2560, 2147483648
      %v2573 = vor.u32 1.1754944e-38, %v2572
      %v2574 = vsel %vm2571, %v2573, %v2569
      %v2575 = vmul.f32 %v2550, %v2574
      %v2576 = vmin.f32 %v2575, 1.0
      %v2577 = vmax.f32 %v2576, -1.0
      %v2578 = vmul.f32 %v759, %v759
      %v2579 = vmin.f32 16.0, %v2578
      %v2580 = vmul.f32 %v2579, 2.1237322e-06
      %v2581 = vadd.f32 %v2580, 0.00028619796
      %v2582 = vmul.f32 %v2579, %v2581
      %v2583 = vadd.f32 %v2582, 0.0036580483
      %v2584 = vmul.f32 %v2579, %v2583
      %v2585 = vadd.f32 %v2584, 0.05243302
      %v2586 = vmul.f32 %v2579, %v2585
      %v2587 = vadd.f32 %v2586, 0.18741608
      %v2588 = vmul.f32 %v2579, %v2587
      %v2589 = vadd.f32 %v2588, 1.1283791
      %v2590 = vmul.f32 %v759, %v2589
      %v2591 = vmul.f32 %v2579, 3.8918573e-05
      %v2592 = vadd.f32 %v2591, 0.001143296
      %v2593 = vmul.f32 %v2579, %v2592
      %v2594 = vadd.f32 %v2593, 0.014752088
      %v2595 = vmul.f32 %v2579, %v2594
      %v2596 = vadd.f32 %v2595, 0.112945676
      %v2597 = vmul.f32 %v2579, %v2596
      %v2598 = vadd.f32 %v2597, 0.4994258
      %v2599 = vmul.f32 %v2579, %v2598
      %v2600 = vadd.f32 %v2599, 1.0
      %v2601 = vrcp.pop %v2600
      %v2602 = vmul.f32 %v2600, %v2601
      %v2603 = vsub.f32 1.0, %v2602
      %v2604 = vmul.f32 %v2601, %v2603
      %v2605 = vadd.f32 %v2601, %v2604
      %vm2606 = vweird.f32 %v2600
      %vm2607 = vweird.f32 %v2601
      %vm2608 = vmor %vm2606, %vm2607
      %v2609 = vsel %vm2608, %v2601, %v2605
      %v2610 = vand.u32 2147483647, %v2600
      %vm2611 = vcmp.eq.f32.partialorder %v2610, 8.507059e+37
      %v2612 = vand.u32 %v2600, 2147483648
      %v2613 = vor.u32 1.1754944e-38, %v2612
      %v2614 = vsel %vm2611, %v2613, %v2609
      %v2615 = vmul.f32 %v2590, %v2614
      %v2616 = vmin.f32 %v2615, 1.0
      %v2617 = vmax.f32 %v2616, -1.0
      %v2618 = vmul.f32 %v760, %v760
      %v2619 = vmin.f32 16.0, %v2618
      %v2620 = vmul.f32 %v2619, 2.1237322e-06
      %v2621 = vadd.f32 %v2620, 0.00028619796
      %v2622 = vmul.f32 %v2619, %v2621
      %v2623 = vadd.f32 %v2622, 0.0036580483
      %v2624 = vmul.f32 %v2619, %v2623
      %v2625 = vadd.f32 %v2624, 0.05243302
      %v2626 = vmul.f32 %v2619, %v2625
      %v2627 = vadd.f32 %v2626, 0.18741608
      %v2628 = vmul.f32 %v2619, %v2627
      %v2629 = vadd.f32 %v2628, 1.1283791
      %v2630 = vmul.f32 %v760, %v2629
      %v2631 = vmul.f32 %v2619, 3.8918573e-05
      %v2632 = vadd.f32 %v2631, 0.001143296
      %v2633 = vmul.f32 %v2619, %v2632
      %v2634 = vadd.f32 %v2633, 0.014752088
      %v2635 = vmul.f32 %v2619, %v2634
      %v2636 = vadd.f32 %v2635, 0.112945676
      %v2637 = vmul.f32 %v2619, %v2636
      %v2638 = vadd.f32 %v2637, 0.4994258
      %v2639 = vmul.f32 %v2619, %v2638
      %v2640 = vadd.f32 %v2639, 1.0
      %v2641 = vrcp.pop %v2640
      %v2642 = vmul.f32 %v2640, %v2641
      %v2643 = vsub.f32 1.0, %v2642
      %v2644 = vmul.f32 %v2641, %v2643
      %v2645 = vadd.f32 %v2641, %v2644
      %vm2646 = vweird.f32 %v2640
      %vm2647 = vweird.f32 %v2641
      %vm2648 = vmor %vm2646, %vm2647
      %v2649 = vsel %vm2648, %v2641, %v2645
      %v2650 = vand.u32 2147483647, %v2640
      %vm2651 = vcmp.eq.f32.partialorder %v2650, 8.507059e+37
      %v2652 = vand.u32 %v2640, 2147483648
      %v2653 = vor.u32 1.1754944e-38, %v2652
      %v2654 = vsel %vm2651, %v2653, %v2649
      %v2655 = vmul.f32 %v2630, %v2654
      %v2656 = vmin.f32 %v2655, 1.0
      %v2657 = vmax.f32 %v2656, -1.0
      %v2658 = vmul.f32 %v761, %v761
      %v2659 = vmin.f32 16.0, %v2658
      %v2660 = vmul.f32 %v2659, 2.1237322e-06
      %v2661 = vadd.f32 %v2660, 0.00028619796
      %v2662 = vmul.f32 %v2659, %v2661
      %v2663 = vadd.f32 %v2662, 0.0036580483
      %v2664 = vmul.f32 %v2659, %v2663
      %v2665 = vadd.f32 %v2664, 0.05243302
      %v2666 = vmul.f32 %v2659, %v2665
      %v2667 = vadd.f32 %v2666, 0.18741608
      %v2668 = vmul.f32 %v2659, %v2667
      %v2669 = vadd.f32 %v2668, 1.1283791
      %v2670 = vmul.f32 %v761, %v2669
      %v2671 = vmul.f32 %v2659, 3.8918573e-05
      %v2672 = vadd.f32 %v2671, 0.001143296
      %v2673 = vmul.f32 %v2659, %v2672
      %v2674 = vadd.f32 %v2673, 0.014752088
      %v2675 = vmul.f32 %v2659, %v2674
      %v2676 = vadd.f32 %v2675, 0.112945676
      %v2677 = vmul.f32 %v2659, %v2676
      %v2678 = vadd.f32 %v2677, 0.4994258
      %v2679 = vmul.f32 %v2659, %v2678
      %v2680 = vadd.f32 %v2679, 1.0
      %v2681 = vrcp.pop %v2680
      %v2682 = vmul.f32 %v2680, %v2681
      %v2683 = vsub.f32 1.0, %v2682
      %v2684 = vmul.f32 %v2681, %v2683
      %v2685 = vadd.f32 %v2681, %v2684
      %vm2686 = vweird.f32 %v2680
      %vm2687 = vweird.f32 %v2681
      %vm2688 = vmor %vm2686, %vm2687
      %v2689 = vsel %vm2688, %v2681, %v2685
      %v2690 = vand.u32 2147483647, %v2680
      %vm2691 = vcmp.eq.f32.partialorder %v2690, 8.507059e+37
      %v2692 = vand.u32 %v2680, 2147483648
      %v2693 = vor.u32 1.1754944e-38, %v2692
      %v2694 = vsel %vm2691, %v2693, %v2689
      %v2695 = vmul.f32 %v2670, %v2694
      %v2696 = vmin.f32 %v2695, 1.0
      %v2697 = vmax.f32 %v2696, -1.0
      %v2698 = vmul.f32 %v762, %v762
      %v2699 = vmin.f32 16.0, %v2698
      %v2700 = vmul.f32 %v2699, 2.1237322e-06
      %v2701 = vadd.f32 %v2700, 0.00028619796
      %v2702 = vmul.f32 %v2699, %v2701
      %v2703 = vadd.f32 %v2702, 0.0036580483
      %v2704 = vmul.f32 %v2699, %v2703
      %v2705 = vadd.f32 %v2704, 0.05243302
      %v2706 = vmul.f32 %v2699, %v2705
      %v2707 = vadd.f32 %v2706, 0.18741608
      %v2708 = vmul.f32 %v2699, %v2707
      %v2709 = vadd.f32 %v2708, 1.1283791
      %v2710 = vmul.f32 %v762, %v2709
      %v2711 = vmul.f32 %v2699, 3.8918573e-05
      %v2712 = vadd.f32 %v2711, 0.001143296
      %v2713 = vmul.f32 %v2699, %v2712
      %v2714 = vadd.f32 %v2713, 0.014752088
      %v2715 = vmul.f32 %v2699, %v2714
      %v2716 = vadd.f32 %v2715, 0.112945676
      %v2717 = vmul.f32 %v2699, %v2716
      %v2718 = vadd.f32 %v2717, 0.4994258
      %v2719 = vmul.f32 %v2699, %v2718
      %v2720 = vadd.f32 %v2719, 1.0
      %v2721 = vrcp.pop %v2720
      %v2722 = vmul.f32 %v2720, %v2721
      %v2723 = vsub.f32 1.0, %v2722
      %v2724 = vmul.f32 %v2721, %v2723
      %v2725 = vadd.f32 %v2721, %v2724
      %vm2726 = vweird.f32 %v2720
      %vm2727 = vweird.f32 %v2721
      %vm2728 = vmor %vm2726, %vm2727
      %v2729 = vsel %vm2728, %v2721, %v2725
      %v2730 = vand.u32 2147483647, %v2720
      %vm2731 = vcmp.eq.f32.partialorder %v2730, 8.507059e+37
      %v2732 = vand.u32 %v2720, 2147483648
      %v2733 = vor.u32 1.1754944e-38, %v2732
      %v2734 = vsel %vm2731, %v2733, %v2729
      %v2735 = vmul.f32 %v2710, %v2734
      %v2736 = vmin.f32 %v2735, 1.0
      %v2737 = vmax.f32 %v2736, -1.0
      %v2738 = vmul.f32 %v763, %v763
      %v2739 = vmin.f32 16.0, %v2738
      %v2740 = vmul.f32 %v2739, 2.1237322e-06
      %v2741 = vadd.f32 %v2740, 0.00028619796
      %v2742 = vmul.f32 %v2739, %v2741
      %v2743 = vadd.f32 %v2742, 0.0036580483
      %v2744 = vmul.f32 %v2739, %v2743
      %v2745 = vadd.f32 %v2744, 0.05243302
      %v2746 = vmul.f32 %v2739, %v2745
      %v2747 = vadd.f32 %v2746, 0.18741608
      %v2748 = vmul.f32 %v2739, %v2747
      %v2749 = vadd.f32 %v2748, 1.1283791
      %v2750 = vmul.f32 %v763, %v2749
      %v2751 = vmul.f32 %v2739, 3.8918573e-05
      %v2752 = vadd.f32 %v2751, 0.001143296
      %v2753 = vmul.f32 %v2739, %v2752
      %v2754 = vadd.f32 %v2753, 0.014752088
      %v2755 = vmul.f32 %v2739, %v2754
      %v2756 = vadd.f32 %v2755, 0.112945676
      %v2757 = vmul.f32 %v2739, %v2756
      %v2758 = vadd.f32 %v2757, 0.4994258
      %v2759 = vmul.f32 %v2739, %v2758
      %v2760 = vadd.f32 %v2759, 1.0
      %v2761 = vrcp.pop %v2760
      %v2762 = vmul.f32 %v2760, %v2761
      %v2763 = vsub.f32 1.0, %v2762
      %v2764 = vmul.f32 %v2761, %v2763
      %v2765 = vadd.f32 %v2761, %v2764
      %vm2766 = vweird.f32 %v2760
      %vm2767 = vweird.f32 %v2761
      %vm2768 = vmor %vm2766, %vm2767
      %v2769 = vsel %vm2768, %v2761, %v2765
      %v2770 = vand.u32 2147483647, %v2760
      %vm2771 = vcmp.eq.f32.partialorder %v2770, 8.507059e+37
      %v2772 = vand.u32 %v2760, 2147483648
      %v2773 = vor.u32 1.1754944e-38, %v2772
      %v2774 = vsel %vm2771, %v2773, %v2769
      %v2775 = vmul.f32 %v2750, %v2774
      %v2776 = vmin.f32 %v2775, 1.0
      %v2777 = vmax.f32 %v2776, -1.0
      %v2778 = vmul.f32 %v764, %v764
      %v2779 = vmin.f32 16.0, %v2778
      %v2780 = vmul.f32 %v2779, 2.1237322e-06
      %v2781 = vadd.f32 %v2780, 0.00028619796
      %v2782 = vmul.f32 %v2779, %v2781
      %v2783 = vadd.f32 %v2782, 0.0036580483
      %v2784 = vmul.f32 %v2779, %v2783
      %v2785 = vadd.f32 %v2784, 0.05243302
      %v2786 = vmul.f32 %v2779, %v2785
      %v2787 = vadd.f32 %v2786, 0.18741608
      %v2788 = vmul.f32 %v2779, %v2787
      %v2789 = vadd.f32 %v2788, 1.1283791
      %v2790 = vmul.f32 %v764, %v2789
      %v2791 = vmul.f32 %v2779, 3.8918573e-05
      %v2792 = vadd.f32 %v2791, 0.001143296
      %v2793 = vmul.f32 %v2779, %v2792
      %v2794 = vadd.f32 %v2793, 0.014752088
      %v2795 = vmul.f32 %v2779, %v2794
      %v2796 = vadd.f32 %v2795, 0.112945676
      %v2797 = vmul.f32 %v2779, %v2796
      %v2798 = vadd.f32 %v2797, 0.4994258
      %v2799 = vmul.f32 %v2779, %v2798
      %v2800 = vadd.f32 %v2799, 1.0
      %v2801 = vrcp.pop %v2800
      %v2802 = vmul.f32 %v2800, %v2801
      %v2803 = vsub.f32 1.0, %v2802
      %v2804 = vmul.f32 %v2801, %v2803
      %v2805 = vadd.f32 %v2801, %v2804
      %vm2806 = vweird.f32 %v2800
      %vm2807 = vweird.f32 %v2801
      %vm2808 = vmor %vm2806, %vm2807
      %v2809 = vsel %vm2808, %v2801, %v2805
      %v2810 = vand.u32 2147483647, %v2800
      %vm2811 = vcmp.eq.f32.partialorder %v2810, 8.507059e+37
      %v2812 = vand.u32 %v2800, 2147483648
      %v2813 = vor.u32 1.1754944e-38, %v2812
      %v2814 = vsel %vm2811, %v2813, %v2809
      %v2815 = vmul.f32 %v2790, %v2814
      %v2816 = vmin.f32 %v2815, 1.0
      %v2817 = vmax.f32 %v2816, -1.0
      %v2818 = vmul.f32 %v765, %v765
      %v2819 = vmin.f32 16.0, %v2818
      %v2820 = vmul.f32 %v2819, 2.1237322e-06
      %v2821 = vadd.f32 %v2820, 0.00028619796
      %v2822 = vmul.f32 %v2819, %v2821
      %v2823 = vadd.f32 %v2822, 0.0036580483
      %v2824 = vmul.f32 %v2819, %v2823
      %v2825 = vadd.f32 %v2824, 0.05243302
      %v2826 = vmul.f32 %v2819, %v2825
      %v2827 = vadd.f32 %v2826, 0.18741608
      %v2828 = vmul.f32 %v2819, %v2827
      %v2829 = vadd.f32 %v2828, 1.1283791
      %v2830 = vmul.f32 %v765, %v2829
      %v2831 = vmul.f32 %v2819, 3.8918573e-05
      %v2832 = vadd.f32 %v2831, 0.001143296
      %v2833 = vmul.f32 %v2819, %v2832
      %v2834 = vadd.f32 %v2833, 0.014752088
      %v2835 = vmul.f32 %v2819, %v2834
      %v2836 = vadd.f32 %v2835, 0.112945676
      %v2837 = vmul.f32 %v2819, %v2836
      %v2838 = vadd.f32 %v2837, 0.4994258
      %v2839 = vmul.f32 %v2819, %v2838
      %v2840 = vadd.f32 %v2839, 1.0
      %v2841 = vrcp.pop %v2840
      %v2842 = vmul.f32 %v2840, %v2841
      %v2843 = vsub.f32 1.0, %v2842
      %v2844 = vmul.f32 %v2841, %v2843
      %v2845 = vadd.f32 %v2841, %v2844
      %vm2846 = vweird.f32 %v2840
      %vm2847 = vweird.f32 %v2841
      %vm2848 = vmor %vm2846, %vm2847
      %v2849 = vsel %vm2848, %v2841, %v2845
      %v2850 = vand.u32 2147483647, %v2840
      %vm2851 = vcmp.eq.f32.partialorder %v2850, 8.507059e+37
      %v2852 = vand.u32 %v2840, 2147483648
      %v2853 = vor.u32 1.1754944e-38, %v2852
      %v2854 = vsel %vm2851, %v2853, %v2849
      %v2855 = vmul.f32 %v2830, %v2854
      %v2856 = vmin.f32 %v2855, 1.0
      %v2857 = vmax.f32 %v2856, -1.0
      %v2858 = vmul.f32 %v766, %v766
      %v2859 = vmin.f32 16.0, %v2858
      %v2860 = vmul.f32 %v2859, 2.1237322e-06
      %v2861 = vadd.f32 %v2860, 0.00028619796
      %v2862 = vmul.f32 %v2859, %v2861
      %v2863 = vadd.f32 %v2862, 0.0036580483
      %v2864 = vmul.f32 %v2859, %v2863
      %v2865 = vadd.f32 %v2864, 0.05243302
      %v2866 = vmul.f32 %v2859, %v2865
      %v2867 = vadd.f32 %v2866, 0.18741608
      %v2868 = vmul.f32 %v2859, %v2867
      %v2869 = vadd.f32 %v2868, 1.1283791
      %v2870 = vmul.f32 %v766, %v2869
      %v2871 = vmul.f32 %v2859, 3.8918573e-05
      %v2872 = vadd.f32 %v2871, 0.001143296
      %v2873 = vmul.f32 %v2859, %v2872
      %v2874 = vadd.f32 %v2873, 0.014752088
      %v2875 = vmul.f32 %v2859, %v2874
      %v2876 = vadd.f32 %v2875, 0.112945676
      %v2877 = vmul.f32 %v2859, %v2876
      %v2878 = vadd.f32 %v2877, 0.4994258
      %v2879 = vmul.f32 %v2859, %v2878
      %v2880 = vadd.f32 %v2879, 1.0
      %v2881 = vrcp.pop %v2880
      %v2882 = vmul.f32 %v2880, %v2881
      %v2883 = vsub.f32 1.0, %v2882
      %v2884 = vmul.f32 %v2881, %v2883
      %v2885 = vadd.f32 %v2881, %v2884
      %vm2886 = vweird.f32 %v2880
      %vm2887 = vweird.f32 %v2881
      %vm2888 = vmor %vm2886, %vm2887
      %v2889 = vsel %vm2888, %v2881, %v2885
      %v2890 = vand.u32 2147483647, %v2880
      %vm2891 = vcmp.eq.f32.partialorder %v2890, 8.507059e+37
      %v2892 = vand.u32 %v2880, 2147483648
      %v2893 = vor.u32 1.1754944e-38, %v2892
      %v2894 = vsel %vm2891, %v2893, %v2889
      %v2895 = vmul.f32 %v2870, %v2894
      %v2896 = vmin.f32 %v2895, 1.0
      %v2897 = vmax.f32 %v2896, -1.0
      %v2898 = vmul.f32 %v767, %v767
      %v2899 = vmin.f32 16.0, %v2898
      %v2900 = vmul.f32 %v2899, 2.1237322e-06
      %v2901 = vadd.f32 %v2900, 0.00028619796
      %v2902 = vmul.f32 %v2899, %v2901
      %v2903 = vadd.f32 %v2902, 0.0036580483
      %v2904 = vmul.f32 %v2899, %v2903
      %v2905 = vadd.f32 %v2904, 0.05243302
      %v2906 = vmul.f32 %v2899, %v2905
      %v2907 = vadd.f32 %v2906, 0.18741608
      %v2908 = vmul.f32 %v2899, %v2907
      %v2909 = vadd.f32 %v2908, 1.1283791
      %v2910 = vmul.f32 %v767, %v2909
      %v2911 = vmul.f32 %v2899, 3.8918573e-05
      %v2912 = vadd.f32 %v2911, 0.001143296
      %v2913 = vmul.f32 %v2899, %v2912
      %v2914 = vadd.f32 %v2913, 0.014752088
      %v2915 = vmul.f32 %v2899, %v2914
      %v2916 = vadd.f32 %v2915, 0.112945676
      %v2917 = vmul.f32 %v2899, %v2916
      %v2918 = vadd.f32 %v2917, 0.4994258
      %v2919 = vmul.f32 %v2899, %v2918
      %v2920 = vadd.f32 %v2919, 1.0
      %v2921 = vrcp.pop %v2920
      %v2922 = vmul.f32 %v2920, %v2921
      %v2923 = vsub.f32 1.0, %v2922
      %v2924 = vmul.f32 %v2921, %v2923
      %v2925 = vadd.f32 %v2921, %v2924
      %vm2926 = vweird.f32 %v2920
      %vm2927 = vweird.f32 %v2921
      %vm2928 = vmor %vm2926, %vm2927
      %v2929 = vsel %vm2928, %v2921, %v2925
      %v2930 = vand.u32 2147483647, %v2920
      %vm2931 = vcmp.eq.f32.partialorder %v2930, 8.507059e+37
      %v2932 = vand.u32 %v2920, 2147483648
      %v2933 = vor.u32 1.1754944e-38, %v2932
      %v2934 = vsel %vm2931, %v2933, %v2929
      %v2935 = vmul.f32 %v2910, %v2934
      %v2936 = vmin.f32 %v2935, 1.0
      %v2937 = vmax.f32 %v2936, -1.0
      %v2938 = vmul.f32 %v768, %v768
      %v2939 = vmin.f32 16.0, %v2938
      %v2940 = vmul.f32 %v2939, 2.1237322e-06
      %v2941 = vadd.f32 %v2940, 0.00028619796
      %v2942 = vmul.f32 %v2939, %v2941
      %v2943 = vadd.f32 %v2942, 0.0036580483
      %v2944 = vmul.f32 %v2939, %v2943
      %v2945 = vadd.f32 %v2944, 0.05243302
      %v2946 = vmul.f32 %v2939, %v2945
      %v2947 = vadd.f32 %v2946, 0.18741608
      %v2948 = vmul.f32 %v2939, %v2947
      %v2949 = vadd.f32 %v2948, 1.1283791
      %v2950 = vmul.f32 %v768, %v2949
      %v2951 = vmul.f32 %v2939, 3.8918573e-05
      %v2952 = vadd.f32 %v2951, 0.001143296
      %v2953 = vmul.f32 %v2939, %v2952
      %v2954 = vadd.f32 %v2953, 0.014752088
      %v2955 = vmul.f32 %v2939, %v2954
      %v2956 = vadd.f32 %v2955, 0.112945676
      %v2957 = vmul.f32 %v2939, %v2956
      %v2958 = vadd.f32 %v2957, 0.4994258
      %v2959 = vmul.f32 %v2939, %v2958
      %v2960 = vadd.f32 %v2959, 1.0
      %v2961 = vrcp.pop %v2960
      %v2962 = vmul.f32 %v2960, %v2961
      %v2963 = vsub.f32 1.0, %v2962
      %v2964 = vmul.f32 %v2961, %v2963
      %v2965 = vadd.f32 %v2961, %v2964
      %vm2966 = vweird.f32 %v2960
      %vm2967 = vweird.f32 %v2961
      %vm2968 = vmor %vm2966, %vm2967
      %v2969 = vsel %vm2968, %v2961, %v2965
      %v2970 = vand.u32 2147483647, %v2960
      %vm2971 = vcmp.eq.f32.partialorder %v2970, 8.507059e+37
      %v2972 = vand.u32 %v2960, 2147483648
      %v2973 = vor.u32 1.1754944e-38, %v2972
      %v2974 = vsel %vm2971, %v2973, %v2969
      %v2975 = vmul.f32 %v2950, %v2974
      %v2976 = vmin.f32 %v2975, 1.0
      %v2977 = vmax.f32 %v2976, -1.0
      %v2978 = vmul.f32 %v769, %v769
      %v2979 = vmin.f32 16.0, %v2978
      %v2980 = vmul.f32 %v2979, 2.1237322e-06
      %v2981 = vadd.f32 %v2980, 0.00028619796
      %v2982 = vmul.f32 %v2979, %v2981
      %v2983 = vadd.f32 %v2982, 0.0036580483
      %v2984 = vmul.f32 %v2979, %v2983
      %v2985 = vadd.f32 %v2984, 0.05243302
      %v2986 = vmul.f32 %v2979, %v2985
      %v2987 = vadd.f32 %v2986, 0.18741608
      %v2988 = vmul.f32 %v2979, %v2987
      %v2989 = vadd.f32 %v2988, 1.1283791
      %v2990 = vmul.f32 %v769, %v2989
      %v2991 = vmul.f32 %v2979, 3.8918573e-05
      %v2992 = vadd.f32 %v2991, 0.001143296
      %v2993 = vmul.f32 %v2979, %v2992
      %v2994 = vadd.f32 %v2993, 0.014752088
      %v2995 = vmul.f32 %v2979, %v2994
      %v2996 = vadd.f32 %v2995, 0.112945676
      %v2997 = vmul.f32 %v2979, %v2996
      %v2998 = vadd.f32 %v2997, 0.4994258
      %v2999 = vmul.f32 %v2979, %v2998
      %v3000 = vadd.f32 %v2999, 1.0
      %v3001 = vrcp.pop %v3000
      %v3002 = vmul.f32 %v3000, %v3001
      %v3003 = vsub.f32 1.0, %v3002
      %v3004 = vmul.f32 %v3001, %v3003
      %v3005 = vadd.f32 %v3001, %v3004
      %vm3006 = vweird.f32 %v3000
      %vm3007 = vweird.f32 %v3001
      %vm3008 = vmor %vm3006, %vm3007
      %v3009 = vsel %vm3008, %v3001, %v3005
      %v3010 = vand.u32 2147483647, %v3000
      %vm3011 = vcmp.eq.f32.partialorder %v3010, 8.507059e+37
      %v3012 = vand.u32 %v3000, 2147483648
      %v3013 = vor.u32 1.1754944e-38, %v3012
      %v3014 = vsel %vm3011, %v3013, %v3009
      %v3015 = vmul.f32 %v2990, %v3014
      %v3016 = vmin.f32 %v3015, 1.0
      %v3017 = vmax.f32 %v3016, -1.0
      %v3018 = vmul.f32 %v770, %v770
      %v3019 = vmin.f32 16.0, %v3018
      %v3020 = vmul.f32 %v3019, 2.1237322e-06
      %v3021 = vadd.f32 %v3020, 0.00028619796
      %v3022 = vmul.f32 %v3019, %v3021
      %v3023 = vadd.f32 %v3022, 0.0036580483
      %v3024 = vmul.f32 %v3019, %v3023
      %v3025 = vadd.f32 %v3024, 0.05243302
      %v3026 = vmul.f32 %v3019, %v3025
      %v3027 = vadd.f32 %v3026, 0.18741608
      %v3028 = vmul.f32 %v3019, %v3027
      %v3029 = vadd.f32 %v3028, 1.1283791
      %v3030 = vmul.f32 %v770, %v3029
      %v3031 = vmul.f32 %v3019, 3.8918573e-05
      %v3032 = vadd.f32 %v3031, 0.001143296
      %v3033 = vmul.f32 %v3019, %v3032
      %v3034 = vadd.f32 %v3033, 0.014752088
      %v3035 = vmul.f32 %v3019, %v3034
      %v3036 = vadd.f32 %v3035, 0.112945676
      %v3037 = vmul.f32 %v3019, %v3036
      %v3038 = vadd.f32 %v3037, 0.4994258
      %v3039 = vmul.f32 %v3019, %v3038
      %v3040 = vadd.f32 %v3039, 1.0
      %v3041 = vrcp.pop %v3040
      %v3042 = vmul.f32 %v3040, %v3041
      %v3043 = vsub.f32 1.0, %v3042
      %v3044 = vmul.f32 %v3041, %v3043
      %v3045 = vadd.f32 %v3041, %v3044
      %vm3046 = vweird.f32 %v3040
      %vm3047 = vweird.f32 %v3041
      %vm3048 = vmor %vm3046, %vm3047
      %v3049 = vsel %vm3048, %v3041, %v3045
      %v3050 = vand.u32 2147483647, %v3040
      %vm3051 = vcmp.eq.f32.partialorder %v3050, 8.507059e+37
      %v3052 = vand.u32 %v3040, 2147483648
      %v3053 = vor.u32 1.1754944e-38, %v3052
      %v3054 = vsel %vm3051, %v3053, %v3049
      %v3055 = vmul.f32 %v3030, %v3054
      %v3056 = vmin.f32 %v3055, 1.0
      %v3057 = vmax.f32 %v3056, -1.0
      %v3058 = vmul.f32 %v771, %v771
      %v3059 = vmin.f32 16.0, %v3058
      %v3060 = vmul.f32 %v3059, 2.1237322e-06
      %v3061 = vadd.f32 %v3060, 0.00028619796
      %v3062 = vmul.f32 %v3059, %v3061
      %v3063 = vadd.f32 %v3062, 0.0036580483
      %v3064 = vmul.f32 %v3059, %v3063
      %v3065 = vadd.f32 %v3064, 0.05243302
      %v3066 = vmul.f32 %v3059, %v3065
      %v3067 = vadd.f32 %v3066, 0.18741608
      %v3068 = vmul.f32 %v3059, %v3067
      %v3069 = vadd.f32 %v3068, 1.1283791
      %v3070 = vmul.f32 %v771, %v3069
      %v3071 = vmul.f32 %v3059, 3.8918573e-05
      %v3072 = vadd.f32 %v3071, 0.001143296
      %v3073 = vmul.f32 %v3059, %v3072
      %v3074 = vadd.f32 %v3073, 0.014752088
      %v3075 = vmul.f32 %v3059, %v3074
      %v3076 = vadd.f32 %v3075, 0.112945676
      %v3077 = vmul.f32 %v3059, %v3076
      %v3078 = vadd.f32 %v3077, 0.4994258
      %v3079 = vmul.f32 %v3059, %v3078
      %v3080 = vadd.f32 %v3079, 1.0
      %v3081 = vrcp.pop %v3080
      %v3082 = vmul.f32 %v3080, %v3081
      %v3083 = vsub.f32 1.0, %v3082
      %v3084 = vmul.f32 %v3081, %v3083
      %v3085 = vadd.f32 %v3081, %v3084
      %vm3086 = vweird.f32 %v3080
      %vm3087 = vweird.f32 %v3081
      %vm3088 = vmor %vm3086, %vm3087
      %v3089 = vsel %vm3088, %v3081, %v3085
      %v3090 = vand.u32 2147483647, %v3080
      %vm3091 = vcmp.eq.f32.partialorder %v3090, 8.507059e+37
      %v3092 = vand.u32 %v3080, 2147483648
      %v3093 = vor.u32 1.1754944e-38, %v3092
      %v3094 = vsel %vm3091, %v3093, %v3089
      %v3095 = vmul.f32 %v3070, %v3094
      %v3096 = vmin.f32 %v3095, 1.0
      %v3097 = vmax.f32 %v3096, -1.0
      %v3098 = vmul.f32 %v772, %v772
      %v3099 = vmin.f32 16.0, %v3098
      %v3100 = vmul.f32 %v3099, 2.1237322e-06
      %v3101 = vadd.f32 %v3100, 0.00028619796
      %v3102 = vmul.f32 %v3099, %v3101
      %v3103 = vadd.f32 %v3102, 0.0036580483
      %v3104 = vmul.f32 %v3099, %v3103
      %v3105 = vadd.f32 %v3104, 0.05243302
      %v3106 = vmul.f32 %v3099, %v3105
      %v3107 = vadd.f32 %v3106, 0.18741608
      %v3108 = vmul.f32 %v3099, %v3107
      %v3109 = vadd.f32 %v3108, 1.1283791
      %v3110 = vmul.f32 %v772, %v3109
      %v3111 = vmul.f32 %v3099, 3.8918573e-05
      %v3112 = vadd.f32 %v3111, 0.001143296
      %v3113 = vmul.f32 %v3099, %v3112
      %v3114 = vadd.f32 %v3113, 0.014752088
      %v3115 = vmul.f32 %v3099, %v3114
      %v3116 = vadd.f32 %v3115, 0.112945676
      %v3117 = vmul.f32 %v3099, %v3116
      %v3118 = vadd.f32 %v3117, 0.4994258
      %v3119 = vmul.f32 %v3099, %v3118
      %v3120 = vadd.f32 %v3119, 1.0
      %v3121 = vrcp.pop %v3120
      %v3122 = vmul.f32 %v3120, %v3121
      %v3123 = vsub.f32 1.0, %v3122
      %v3124 = vmul.f32 %v3121, %v3123
      %v3125 = vadd.f32 %v3121, %v3124
      %vm3126 = vweird.f32 %v3120
      %vm3127 = vweird.f32 %v3121
      %vm3128 = vmor %vm3126, %vm3127
      %v3129 = vsel %vm3128, %v3121, %v3125
      %v3130 = vand.u32 2147483647, %v3120
      %vm3131 = vcmp.eq.f32.partialorder %v3130, 8.507059e+37
      %v3132 = vand.u32 %v3120, 2147483648
      %v3133 = vor.u32 1.1754944e-38, %v3132
      %v3134 = vsel %vm3131, %v3133, %v3129
      %v3135 = vmul.f32 %v3110, %v3134
      %v3136 = vmin.f32 %v3135, 1.0
      %v3137 = vmax.f32 %v3136, -1.0
      %v3138 = vmul.f32 %v773, %v773
      %v3139 = vmin.f32 16.0, %v3138
      %v3140 = vmul.f32 %v3139, 2.1237322e-06
      %v3141 = vadd.f32 %v3140, 0.00028619796
      %v3142 = vmul.f32 %v3139, %v3141
      %v3143 = vadd.f32 %v3142, 0.0036580483
      %v3144 = vmul.f32 %v3139, %v3143
      %v3145 = vadd.f32 %v3144, 0.05243302
      %v3146 = vmul.f32 %v3139, %v3145
      %v3147 = vadd.f32 %v3146, 0.18741608
      %v3148 = vmul.f32 %v3139, %v3147
      %v3149 = vadd.f32 %v3148, 1.1283791
      %v3150 = vmul.f32 %v773, %v3149
      %v3151 = vmul.f32 %v3139, 3.8918573e-05
      %v3152 = vadd.f32 %v3151, 0.001143296
      %v3153 = vmul.f32 %v3139, %v3152
      %v3154 = vadd.f32 %v3153, 0.014752088
      %v3155 = vmul.f32 %v3139, %v3154
      %v3156 = vadd.f32 %v3155, 0.112945676
      %v3157 = vmul.f32 %v3139, %v3156
      %v3158 = vadd.f32 %v3157, 0.4994258
      %v3159 = vmul.f32 %v3139, %v3158
      %v3160 = vadd.f32 %v3159, 1.0
      %v3161 = vrcp.pop %v3160
      %v3162 = vmul.f32 %v3160, %v3161
      %v3163 = vsub.f32 1.0, %v3162
      %v3164 = vmul.f32 %v3161, %v3163
      %v3165 = vadd.f32 %v3161, %v3164
      %vm3166 = vweird.f32 %v3160
      %vm3167 = vweird.f32 %v3161
      %vm3168 = vmor %vm3166, %vm3167
      %v3169 = vsel %vm3168, %v3161, %v3165
      %v3170 = vand.u32 2147483647, %v3160
      %vm3171 = vcmp.eq.f32.partialorder %v3170, 8.507059e+37
      %v3172 = vand.u32 %v3160, 2147483648
      %v3173 = vor.u32 1.1754944e-38, %v3172
      %v3174 = vsel %vm3171, %v3173, %v3169
      %v3175 = vmul.f32 %v3150, %v3174
      %v3176 = vmin.f32 %v3175, 1.0
      %v3177 = vmax.f32 %v3176, -1.0
      %v3178 = vmul.f32 %v774, %v774
      %v3179 = vmin.f32 16.0, %v3178
      %v3180 = vmul.f32 %v3179, 2.1237322e-06
      %v3181 = vadd.f32 %v3180, 0.00028619796
      %v3182 = vmul.f32 %v3179, %v3181
      %v3183 = vadd.f32 %v3182, 0.0036580483
      %v3184 = vmul.f32 %v3179, %v3183
      %v3185 = vadd.f32 %v3184, 0.05243302
      %v3186 = vmul.f32 %v3179, %v3185
      %v3187 = vadd.f32 %v3186, 0.18741608
      %v3188 = vmul.f32 %v3179, %v3187
      %v3189 = vadd.f32 %v3188, 1.1283791
      %v3190 = vmul.f32 %v774, %v3189
      %v3191 = vmul.f32 %v3179, 3.8918573e-05
      %v3192 = vadd.f32 %v3191, 0.001143296
      %v3193 = vmul.f32 %v3179, %v3192
      %v3194 = vadd.f32 %v3193, 0.014752088
      %v3195 = vmul.f32 %v3179, %v3194
      %v3196 = vadd.f32 %v3195, 0.112945676
      %v3197 = vmul.f32 %v3179, %v3196
      %v3198 = vadd.f32 %v3197, 0.4994258
      %v3199 = vmul.f32 %v3179, %v3198
      %v3200 = vadd.f32 %v3199, 1.0
      %v3201 = vrcp.pop %v3200
      %v3202 = vmul.f32 %v3200, %v3201
      %v3203 = vsub.f32 1.0, %v3202
      %v3204 = vmul.f32 %v3201, %v3203
      %v3205 = vadd.f32 %v3201, %v3204
      %vm3206 = vweird.f32 %v3200
      %vm3207 = vweird.f32 %v3201
      %vm3208 = vmor %vm3206, %vm3207
      %v3209 = vsel %vm3208, %v3201, %v3205
      %v3210 = vand.u32 2147483647, %v3200
      %vm3211 = vcmp.eq.f32.partialorder %v3210, 8.507059e+37
      %v3212 = vand.u32 %v3200, 2147483648
      %v3213 = vor.u32 1.1754944e-38, %v3212
      %v3214 = vsel %vm3211, %v3213, %v3209
      %v3215 = vmul.f32 %v3190, %v3214
      %v3216 = vmin.f32 %v3215, 1.0
      %v3217 = vmax.f32 %v3216, -1.0
      %v3218 = vmul.f32 %v775, %v775
      %v3219 = vmin.f32 16.0, %v3218
      %v3220 = vmul.f32 %v3219, 2.1237322e-06
      %v3221 = vadd.f32 %v3220, 0.00028619796
      %v3222 = vmul.f32 %v3219, %v3221
      %v3223 = vadd.f32 %v3222, 0.0036580483
      %v3224 = vmul.f32 %v3219, %v3223
      %v3225 = vadd.f32 %v3224, 0.05243302
      %v3226 = vmul.f32 %v3219, %v3225
      %v3227 = vadd.f32 %v3226, 0.18741608
      %v3228 = vmul.f32 %v3219, %v3227
      %v3229 = vadd.f32 %v3228, 1.1283791
      %v3230 = vmul.f32 %v775, %v3229
      %v3231 = vmul.f32 %v3219, 3.8918573e-05
      %v3232 = vadd.f32 %v3231, 0.001143296
      %v3233 = vmul.f32 %v3219, %v3232
      %v3234 = vadd.f32 %v3233, 0.014752088
      %v3235 = vmul.f32 %v3219, %v3234
      %v3236 = vadd.f32 %v3235, 0.112945676
      %v3237 = vmul.f32 %v3219, %v3236
      %v3238 = vadd.f32 %v3237, 0.4994258
      %v3239 = vmul.f32 %v3219, %v3238
      %v3240 = vadd.f32 %v3239, 1.0
      %v3241 = vrcp.pop %v3240
      %v3242 = vmul.f32 %v3240, %v3241
      %v3243 = vsub.f32 1.0, %v3242
      %v3244 = vmul.f32 %v3241, %v3243
      %v3245 = vadd.f32 %v3241, %v3244
      %vm3246 = vweird.f32 %v3240
      %vm3247 = vweird.f32 %v3241
      %vm3248 = vmor %vm3246, %vm3247
      %v3249 = vsel %vm3248, %v3241, %v3245
      %v3250 = vand.u32 2147483647, %v3240
      %vm3251 = vcmp.eq.f32.partialorder %v3250, 8.507059e+37
      %v3252 = vand.u32 %v3240, 2147483648
      %v3253 = vor.u32 1.1754944e-38, %v3252
      %v3254 = vsel %vm3251, %v3253, %v3249
      %v3255 = vmul.f32 %v3230, %v3254
      %v3256 = vmin.f32 %v3255, 1.0
      %v3257 = vmax.f32 %v3256, -1.0
      %v3258 = vmul.f32 %v776, %v776
      %v3259 = vmin.f32 16.0, %v3258
      %v3260 = vmul.f32 %v3259, 2.1237322e-06
      %v3261 = vadd.f32 %v3260, 0.00028619796
      %v3262 = vmul.f32 %v3259, %v3261
      %v3263 = vadd.f32 %v3262, 0.0036580483
      %v3264 = vmul.f32 %v3259, %v3263
      %v3265 = vadd.f32 %v3264, 0.05243302
      %v3266 = vmul.f32 %v3259, %v3265
      %v3267 = vadd.f32 %v3266, 0.18741608
      %v3268 = vmul.f32 %v3259, %v3267
      %v3269 = vadd.f32 %v3268, 1.1283791
      %v3270 = vmul.f32 %v776, %v3269
      %v3271 = vmul.f32 %v3259, 3.8918573e-05
      %v3272 = vadd.f32 %v3271, 0.001143296
      %v3273 = vmul.f32 %v3259, %v3272
      %v3274 = vadd.f32 %v3273, 0.014752088
      %v3275 = vmul.f32 %v3259, %v3274
      %v3276 = vadd.f32 %v3275, 0.112945676
      %v3277 = vmul.f32 %v3259, %v3276
      %v3278 = vadd.f32 %v3277, 0.4994258
      %v3279 = vmul.f32 %v3259, %v3278
      %v3280 = vadd.f32 %v3279, 1.0
      %v3281 = vrcp.pop %v3280
      %v3282 = vmul.f32 %v3280, %v3281
      %v3283 = vsub.f32 1.0, %v3282
      %v3284 = vmul.f32 %v3281, %v3283
      %v3285 = vadd.f32 %v3281, %v3284
      %vm3286 = vweird.f32 %v3280
      %vm3287 = vweird.f32 %v3281
      %vm3288 = vmor %vm3286, %vm3287
      %v3289 = vsel %vm3288, %v3281, %v3285
      %v3290 = vand.u32 2147483647, %v3280
      %vm3291 = vcmp.eq.f32.partialorder %v3290, 8.507059e+37
      %v3292 = vand.u32 %v3280, 2147483648
      %v3293 = vor.u32 1.1754944e-38, %v3292
      %v3294 = vsel %vm3291, %v3293, %v3289
      %v3295 = vmul.f32 %v3270, %v3294
      %v3296 = vmin.f32 %v3295, 1.0
      %v3297 = vmax.f32 %v3296, -1.0
      %v3298 = vmul.f32 %v777, %v777
      %v3299 = vmin.f32 16.0, %v3298
      %v3300 = vmul.f32 %v3299, 2.1237322e-06
      %v3301 = vadd.f32 %v3300, 0.00028619796
      %v3302 = vmul.f32 %v3299, %v3301
      %v3303 = vadd.f32 %v3302, 0.0036580483
      %v3304 = vmul.f32 %v3299, %v3303
      %v3305 = vadd.f32 %v3304, 0.05243302
      %v3306 = vmul.f32 %v3299, %v3305
      %v3307 = vadd.f32 %v3306, 0.18741608
      %v3308 = vmul.f32 %v3299, %v3307
      %v3309 = vadd.f32 %v3308, 1.1283791
      %v3310 = vmul.f32 %v777, %v3309
      %v3311 = vmul.f32 %v3299, 3.8918573e-05
      %v3312 = vadd.f32 %v3311, 0.001143296
      %v3313 = vmul.f32 %v3299, %v3312
      %v3314 = vadd.f32 %v3313, 0.014752088
      %v3315 = vmul.f32 %v3299, %v3314
      %v3316 = vadd.f32 %v3315, 0.112945676
      %v3317 = vmul.f32 %v3299, %v3316
      %v3318 = vadd.f32 %v3317, 0.4994258
      %v3319 = vmul.f32 %v3299, %v3318
      %v3320 = vadd.f32 %v3319, 1.0
      %v3321 = vrcp.pop %v3320
      %v3322 = vmul.f32 %v3320, %v3321
      %v3323 = vsub.f32 1.0, %v3322
      %v3324 = vmul.f32 %v3321, %v3323
      %v3325 = vadd.f32 %v3321, %v3324
      %vm3326 = vweird.f32 %v3320
      %vm3327 = vweird.f32 %v3321
      %vm3328 = vmor %vm3326, %vm3327
      %v3329 = vsel %vm3328, %v3321, %v3325
      %v3330 = vand.u32 2147483647, %v3320
      %vm3331 = vcmp.eq.f32.partialorder %v3330, 8.507059e+37
      %v3332 = vand.u32 %v3320, 2147483648
      %v3333 = vor.u32 1.1754944e-38, %v3332
      %v3334 = vsel %vm3331, %v3333, %v3329
      %v3335 = vmul.f32 %v3310, %v3334
      %v3336 = vmin.f32 %v3335, 1.0
      %v3337 = vmax.f32 %v3336, -1.0
      %v3338 = vadd.f32 %v817, 1.0
      %v3339 = vadd.f32 %v857, 1.0
      %v3340 = vadd.f32 %v897, 1.0
      %v3341 = vadd.f32 %v937, 1.0
      %v3342 = vadd.f32 %v977, 1.0
      %v3343 = vadd.f32 %v1017, 1.0
      %v3344 = vadd.f32 %v1057, 1.0
      %v3345 = vadd.f32 %v1097, 1.0
      %v3346 = vadd.f32 %v1137, 1.0
      %v3347 = vadd.f32 %v1177, 1.0
      %v3348 = vadd.f32 %v1217, 1.0
      %v3349 = vadd.f32 %v1257, 1.0
      %v3350 = vadd.f32 %v1297, 1.0
      %v3351 = vadd.f32 %v1337, 1.0
      %v3352 = vadd.f32 %v1377, 1.0
      %v3353 = vadd.f32 %v1417, 1.0
      %v3354 = vadd.f32 %v1457, 1.0
      %v3355 = vadd.f32 %v1497, 1.0
      %v3356 = vadd.f32 %v1537, 1.0
      %v3357 = vadd.f32 %v1577, 1.0
      %v3358 = vadd.f32 %v1617, 1.0
      %v3359 = vadd.f32 %v1657, 1.0
      %v3360 = vadd.f32 %v1697, 1.0
      %v3361 = vadd.f32 %v1737, 1.0
      %v3362 = vadd.f32 %v1777, 1.0
      %v3363 = vadd.f32 %v1817, 1.0
      %v3364 = vadd.f32 %v1857, 1.0
      %v3365 = vadd.f32 %v1897, 1.0
      %v3366 = vadd.f32 %v1937, 1.0
      %v3367 = vadd.f32 %v1977, 1.0
      %v3368 = vadd.f32 %v2017, 1.0
      %v3369 = vadd.f32 %v2057, 1.0
      %v3370 = vadd.f32 %v2097, 1.0
      %v3371 = vadd.f32 %v2137, 1.0
      %v3372 = vadd.f32 %v2177, 1.0
      %v3373 = vadd.f32 %v2217, 1.0
      %v3374 = vadd.f32 %v2257, 1.0
      %v3375 = vadd.f32 %v2297, 1.0
      %v3376 = vadd.f32 %v2337, 1.0
      %v3377 = vadd.f32 %v2377, 1.0
      %v3378 = vadd.f32 %v2417, 1.0
      %v3379 = vadd.f32 %v2457, 1.0
      %v3380 = vadd.f32 %v2497, 1.0
      %v3381 = vadd.f32 %v2537, 1.0
      %v3382 = vadd.f32 %v2577, 1.0
      %v3383 = vadd.f32 %v2617, 1.0
      %v3384 = vadd.f32 %v2657, 1.0
      %v3385 = vadd.f32 %v2697, 1.0
      %v3386 = vadd.f32 %v2737, 1.0
      %v3387 = vadd.f32 %v2777, 1.0
      %v3388 = vadd.f32 %v2817, 1.0
      %v3389 = vadd.f32 %v2857, 1.0
      %v3390 = vadd.f32 %v2897, 1.0
      %v3391 = vadd.f32 %v2937, 1.0
      %v3392 = vadd.f32 %v2977, 1.0
      %v3393 = vadd.f32 %v3017, 1.0
      %v3394 = vadd.f32 %v3057, 1.0
      %v3395 = vadd.f32 %v3097, 1.0
      %v3396 = vadd.f32 %v3137, 1.0
      %v3397 = vadd.f32 %v3177, 1.0
      %v3398 = vadd.f32 %v3217, 1.0
      %v3399 = vadd.f32 %v3257, 1.0
      %v3400 = vadd.f32 %v3297, 1.0
      %v3401 = vadd.f32 %v3337, 1.0
      %v3402 = vmul.f32 %v650, %v3338
      %v3403 = vmul.f32 %v651, %v3339
      %v3404 = vmul.f32 %v652, %v3340
      %v3405 = vmul.f32 %v653, %v3341
      %v3406 = vmul.f32 %v654, %v3342
      %v3407 = vmul.f32 %v655, %v3343
      %v3408 = vmul.f32 %v656, %v3344
      %v3409 = vmul.f32 %v657, %v3345
      %v3410 = vmul.f32 %v658, %v3346
      %v3411 = vmul.f32 %v659, %v3347
      %v3412 = vmul.f32 %v660, %v3348
      %v3413 = vmul.f32 %v661, %v3349
      %v3414 = vmul.f32 %v662, %v3350
      %v3415 = vmul.f32 %v663, %v3351
      %v3416 = vmul.f32 %v664, %v3352
      %v3417 = vmul.f32 %v665, %v3353
      %v3418 = vmul.f32 %v666, %v3354
      %v3419 = vmul.f32 %v667, %v3355
      %v3420 = vmul.f32 %v668, %v3356
      %v3421 = vmul.f32 %v669, %v3357
      %v3422 = vmul.f32 %v670, %v3358
      %v3423 = vmul.f32 %v671, %v3359
      %v3424 = vmul.f32 %v672, %v3360
      %v3425 = vmul.f32 %v673, %v3361
      %v3426 = vmul.f32 %v674, %v3362
      %v3427 = vmul.f32 %v675, %v3363
      %v3428 = vmul.f32 %v676, %v3364
      %v3429 = vmul.f32 %v677, %v3365
      %v3430 = vmul.f32 %v678, %v3366
      %v3431 = vmul.f32 %v679, %v3367
      %v3432 = vmul.f32 %v680, %v3368
      %v3433 = vmul.f32 %v681, %v3369
      %v3434 = vmul.f32 %v682, %v3370
      %v3435 = vmul.f32 %v683, %v3371
      %v3436 = vmul.f32 %v684, %v3372
      %v3437 = vmul.f32 %v685, %v3373
      %v3438 = vmul.f32 %v686, %v3374
      %v3439 = vmul.f32 %v687, %v3375
      %v3440 = vmul.f32 %v688, %v3376
      %v3441 = vmul.f32 %v689, %v3377
      %v3442 = vmul.f32 %v690, %v3378
      %v3443 = vmul.f32 %v691, %v3379
      %v3444 = vmul.f32 %v692, %v3380
      %v3445 = vmul.f32 %v693, %v3381
      %v3446 = vmul.f32 %v694, %v3382
      %v3447 = vmul.f32 %v695, %v3383
      %v3448 = vmul.f32 %v696, %v3384
      %v3449 = vmul.f32 %v697, %v3385
      %v3450 = vmul.f32 %v698, %v3386
      %v3451 = vmul.f32 %v699, %v3387
      %v3452 = vmul.f32 %v700, %v3388
      %v3453 = vmul.f32 %v701, %v3389
      %v3454 = vmul.f32 %v702, %v3390
      %v3455 = vmul.f32 %v703, %v3391
      %v3456 = vmul.f32 %v704, %v3392
      %v3457 = vmul.f32 %v705, %v3393
      %v3458 = vmul.f32 %v706, %v3394
      %v3459 = vmul.f32 %v707, %v3395
      %v3460 = vmul.f32 %v708, %v3396
      %v3461 = vmul.f32 %v709, %v3397
      %v3462 = vmul.f32 %v710, %v3398
      %v3463 = vmul.f32 %v711, %v3399
      %v3464 = vmul.f32 %v712, %v3400
      %v3465 = vmul.f32 %v713, %v3401
      %v3466 = vpack.c.bf16 %v3406, %v3402
      %v3467 = vpack.c.bf16 %v3407, %v3403
      %v3468 = vpack.c.bf16 %v3408, %v3404
      %v3469 = vpack.c.bf16 %v3409, %v3405
      %v3470 = vpack.c.bf16 %v3414, %v3410
      %v3471 = vpack.c.bf16 %v3415, %v3411
      %v3472 = vpack.c.bf16 %v3416, %v3412
      %v3473 = vpack.c.bf16 %v3417, %v3413
      %v3474 = vpack.c.bf16 %v3422, %v3418
      %v3475 = vpack.c.bf16 %v3423, %v3419
      %v3476 = vpack.c.bf16 %v3424, %v3420
      %v3477 = vpack.c.bf16 %v3425, %v3421
      %v3478 = vpack.c.bf16 %v3430, %v3426
      %v3479 = vpack.c.bf16 %v3431, %v3427
      %v3480 = vpack.c.bf16 %v3432, %v3428
      %v3481 = vpack.c.bf16 %v3433, %v3429
      %v3482 = vpack.c.bf16 %v3438, %v3434
      %v3483 = vpack.c.bf16 %v3439, %v3435
      %v3484 = vpack.c.bf16 %v3440, %v3436
      %v3485 = vpack.c.bf16 %v3441, %v3437
      %v3486 = vpack.c.bf16 %v3446, %v3442
      %v3487 = vpack.c.bf16 %v3447, %v3443
      %v3488 = vpack.c.bf16 %v3448, %v3444
      %v3489 = vpack.c.bf16 %v3449, %v3445
      %v3490 = vpack.c.bf16 %v3454, %v3450
      %v3491 = vpack.c.bf16 %v3455, %v3451
      %v3492 = vpack.c.bf16 %v3456, %v3452
      %v3493 = vpack.c.bf16 %v3457, %v3453
      %v3494 = vpack.c.bf16 %v3462, %v3458
      %v3495 = vpack.c.bf16 %v3463, %v3459
      %v3496 = vpack.c.bf16 %v3464, %v3460
      %v3497 = vpack.c.bf16 %v3465, %v3461
      %v3498 = vld [vmem:[%s3] sm:$0xf]
      %v3499 = vld [vmem:[%s3 + $0x4] sm:$0xf]
      %v3500 = vld [vmem:[%s3 + $0x8] sm:$0xf]
      %v3501 = vld [vmem:[%s3 + $0xc] sm:$0xf]
      %v3502 = vld [vmem:[%s3 + $0x10] sm:$0xf]
      %v3503 = vld [vmem:[%s3 + $0x14] sm:$0xf]
      %v3504 = vld [vmem:[%s3 + $0x18] sm:$0xf]
      %v3505 = vld [vmem:[%s3 + $0x1c] sm:$0xf]
      %v3506 = vld [vmem:[%s3 + $0x20] sm:$0xf]
      %v3507 = vld [vmem:[%s3 + $0x24] sm:$0xf]
      %v3508 = vld [vmem:[%s3 + $0x28] sm:$0xf]
      %v3509 = vld [vmem:[%s3 + $0x2c] sm:$0xf]
      %v3510 = vld [vmem:[%s3 + $0x30] sm:$0xf]
      %v3511 = vld [vmem:[%s3 + $0x34] sm:$0xf]
      %v3512 = vld [vmem:[%s3 + $0x38] sm:$0xf]
      %v3513 = vld [vmem:[%s3 + $0x3c] sm:$0xf]
      %v3514 = vld [vmem:[%s3 + $0x40] sm:$0xf]
      %v3515 = vld [vmem:[%s3 + $0x44] sm:$0xf]
      %v3516 = vld [vmem:[%s3 + $0x48] sm:$0xf]
      %v3517 = vld [vmem:[%s3 + $0x4c] sm:$0xf]
      %v3518 = vld [vmem:[%s3 + $0x50] sm:$0xf]
      %v3519 = vld [vmem:[%s3 + $0x54] sm:$0xf]
      %v3520 = vld [vmem:[%s3 + $0x58] sm:$0xf]
      %v3521 = vld [vmem:[%s3 + $0x5c] sm:$0xf]
      %v3522 = vld [vmem:[%s3 + $0x60] sm:$0xf]
      %v3523 = vld [vmem:[%s3 + $0x64] sm:$0xf]
      %v3524 = vld [vmem:[%s3 + $0x68] sm:$0xf]
      %v3525 = vld [vmem:[%s3 + $0x6c] sm:$0xf]
      %v3526 = vld [vmem:[%s3 + $0x70] sm:$0xf]
      %v3527 = vld [vmem:[%s3 + $0x74] sm:$0xf]
      %v3528 = vld [vmem:[%s3 + $0x78] sm:$0xf]
      %v3529 = vld [vmem:[%s3 + $0x7c] sm:$0xf]
      %v3530 = vld [vmem:[%s3 + $0x80] sm:$0xf]
      %v3531 = vld [vmem:[%s3 + $0x84] sm:$0xf]
      %v3532 = vld [vmem:[%s3 + $0x88] sm:$0xf]
      %v3533 = vld [vmem:[%s3 + $0x8c] sm:$0xf]
      %v3534 = vld [vmem:[%s3 + $0x90] sm:$0xf]
      %v3535 = vld [vmem:[%s3 + $0x94] sm:$0xf]
      %v3536 = vld [vmem:[%s3 + $0x98] sm:$0xf]
      %v3537 = vld [vmem:[%s3 + $0x9c] sm:$0xf]
      %v3538 = vld [vmem:[%s3 + $0xa0] sm:$0xf]
      %v3539 = vld [vmem:[%s3 + $0xa4] sm:$0xf]
      %v3540 = vld [vmem:[%s3 + $0xa8] sm:$0xf]
      %v3541 = vld [vmem:[%s3 + $0xac] sm:$0xf]
      %v3542 = vld [vmem:[%s3 + $0xb0] sm:$0xf]
      %v3543 = vld [vmem:[%s3 + $0xb4] sm:$0xf]
      %v3544 = vld [vmem:[%s3 + $0xb8] sm:$0xf]
      %v3545 = vld [vmem:[%s3 + $0xbc] sm:$0xf]
      %v3546 = vld [vmem:[%s3 + $0xc0] sm:$0xf]
      %v3547 = vld [vmem:[%s3 + $0xc4] sm:$0xf]
      %v3548 = vld [vmem:[%s3 + $0xc8] sm:$0xf]
      %v3549 = vld [vmem:[%s3 + $0xcc] sm:$0xf]
      %v3550 = vld [vmem:[%s3 + $0xd0] sm:$0xf]
      %v3551 = vld [vmem:[%s3 + $0xd4] sm:$0xf]
      %v3552 = vld [vmem:[%s3 + $0xd8] sm:$0xf]
      %v3553 = vld [vmem:[%s3 + $0xdc] sm:$0xf]
      %v3554 = vld [vmem:[%s3 + $0xe0] sm:$0xf]
      %v3555 = vld [vmem:[%s3 + $0xe4] sm:$0xf]
      %v3556 = vld [vmem:[%s3 + $0xe8] sm:$0xf]
      %v3557 = vld [vmem:[%s3 + $0xec] sm:$0xf]
      %v3558 = vld [vmem:[%s3 + $0xf0] sm:$0xf]
      %v3559 = vld [vmem:[%s3 + $0xf4] sm:$0xf]
      %v3560 = vld [vmem:[%s3 + $0xf8] sm:$0xf]
      %v3561 = vld [vmem:[%s3 + $0xfc] sm:$0xf]
      %v3562 = vld [vmem:[%s4] sm:$0x1]
      %v3564 = vperm.slane %v3562, 0
      %v3630 = vunpack.c.l.b16 %v3498
      %v3631 = vunpack.c.l.b16 %v3499
      %v3632 = vunpack.c.l.b16 %v3500
      %v3633 = vunpack.c.l.b16 %v3501
      %v3634 = vunpack.c.l.b16 %v3502
      %v3635 = vunpack.c.l.b16 %v3503
      %v3636 = vunpack.c.l.b16 %v3504
      %v3637 = vunpack.c.l.b16 %v3505
      %v3638 = vunpack.c.l.b16 %v3506
      %v3639 = vunpack.c.l.b16 %v3507
      %v3640 = vunpack.c.l.b16 %v3508
      %v3641 = vunpack.c.l.b16 %v3509
      %v3642 = vunpack.c.l.b16 %v3510
      %v3643 = vunpack.c.l.b16 %v3511
      %v3644 = vunpack.c.l.b16 %v3512
      %v3645 = vunpack.c.l.b16 %v3513
      %v3646 = vunpack.c.l.b16 %v3514
      %v3647 = vunpack.c.l.b16 %v3515
      %v3648 = vunpack.c.l.b16 %v3516
      %v3649 = vunpack.c.l.b16 %v3517
      %v3650 = vunpack.c.l.b16 %v3518
      %v3651 = vunpack.c.l.b16 %v3519
      %v3652 = vunpack.c.l.b16 %v3520
      %v3653 = vunpack.c.l.b16 %v3521
      %v3654 = vunpack.c.l.b16 %v3522
      %v3655 = vunpack.c.l.b16 %v3523
      %v3656 = vunpack.c.l.b16 %v3524
      %v3657 = vunpack.c.l.b16 %v3525
      %v3658 = vunpack.c.l.b16 %v3526
      %v3659 = vunpack.c.l.b16 %v3527
      %v3660 = vunpack.c.l.b16 %v3528
      %v3661 = vunpack.c.l.b16 %v3529
      %v3662 = vunpack.c.l.b16 %v3530
      %v3663 = vunpack.c.l.b16 %v3531
      %v3664 = vunpack.c.l.b16 %v3532
      %v3665 = vunpack.c.l.b16 %v3533
      %v3666 = vunpack.c.l.b16 %v3534
      %v3667 = vunpack.c.l.b16 %v3535
      %v3668 = vunpack.c.l.b16 %v3536
      %v3669 = vunpack.c.l.b16 %v3537
      %v3670 = vunpack.c.l.b16 %v3538
      %v3671 = vunpack.c.l.b16 %v3539
      %v3672 = vunpack.c.l.b16 %v3540
      %v3673 = vunpack.c.l.b16 %v3541
      %v3674 = vunpack.c.l.b16 %v3542
      %v3675 = vunpack.c.l.b16 %v3543
      %v3676 = vunpack.c.l.b16 %v3544
      %v3677 = vunpack.c.l.b16 %v3545
      %v3678 = vunpack.c.l.b16 %v3546
      %v3679 = vunpack.c.l.b16 %v3547
      %v3680 = vunpack.c.l.b16 %v3548
      %v3681 = vunpack.c.l.b16 %v3549
      %v3682 = vunpack.c.l.b16 %v3550
      %v3683 = vunpack.c.l.b16 %v3551
      %v3684 = vunpack.c.l.b16 %v3552
      %v3685 = vunpack.c.l.b16 %v3553
      %v3686 = vunpack.c.l.b16 %v3554
      %v3687 = vunpack.c.l.b16 %v3555
      %v3688 = vunpack.c.l.b16 %v3556
      %v3689 = vunpack.c.l.b16 %v3557
      %v3690 = vunpack.c.l.b16 %v3558
      %v3691 = vunpack.c.l.b16 %v3559
      %v3692 = vunpack.c.l.b16 %v3560
      %v3693 = vunpack.c.l.b16 %v3561
      %v3694 = vpack.c.b16 %v3631, %v3630
      %v3695 = vpack.c.b16 %v3633, %v3632
      %v3696 = vpack.c.b16 %v3635, %v3634
      %v3697 = vpack.c.b16 %v3637, %v3636
      %v3698 = vpack.c.b16 %v3639, %v3638
      %v3699 = vpack.c.b16 %v3641, %v3640
      %v3700 = vpack.c.b16 %v3643, %v3642
      %v3701 = vpack.c.b16 %v3645, %v3644
      %v3702 = vpack.c.b16 %v3647, %v3646
      %v3703 = vpack.c.b16 %v3649, %v3648
      %v3704 = vpack.c.b16 %v3651, %v3650
      %v3705 = vpack.c.b16 %v3653, %v3652
      %v3706 = vpack.c.b16 %v3655, %v3654
      %v3707 = vpack.c.b16 %v3657, %v3656
      %v3708 = vpack.c.b16 %v3659, %v3658
      %v3709 = vpack.c.b16 %v3661, %v3660
      %v3710 = vpack.c.b16 %v3663, %v3662
      %v3711 = vpack.c.b16 %v3665, %v3664
      %v3712 = vpack.c.b16 %v3667, %v3666
      %v3713 = vpack.c.b16 %v3669, %v3668
      %v3714 = vpack.c.b16 %v3671, %v3670
      %v3715 = vpack.c.b16 %v3673, %v3672
      %v3716 = vpack.c.b16 %v3675, %v3674
      %v3717 = vpack.c.b16 %v3677, %v3676
      %v3718 = vpack.c.b16 %v3679, %v3678
      %v3719 = vpack.c.b16 %v3681, %v3680
      %v3720 = vpack.c.b16 %v3683, %v3682
      %v3721 = vpack.c.b16 %v3685, %v3684
      %v3722 = vpack.c.b16 %v3687, %v3686
      %v3723 = vpack.c.b16 %v3689, %v3688
      %v3724 = vpack.c.b16 %v3691, %v3690
      %v3725 = vpack.c.b16 %v3693, %v3692
      %3758 = vmatpush.bf16.msra.mxu0 %v3701
      %3759 = vmatpush.bf16.msra.mxu0 %v3700
      %3760 = vmatpush.bf16.msra.mxu0 %v3699
      %3761 = vmatpush.bf16.msra.mxu0 %v3698
      %3762 = vmatpush.bf16.msra.mxu0 %v3697
      %3763 = vmatpush.bf16.msra.mxu0 %v3696
      %3764 = vmatpush.bf16.msra.mxu0 %v3695
      %3765 = vmatpush.bf16.msra.mxu0 %v3694
      %3766 = vmatmul.bf16.gmra.mxu0 %v3466
      %v3767 = vpop.f32.mrf.mxu0
      %v3768 = vadd.f32 %v3564, %v3767
      %v3769 = vpop.f32.mrf.mxu0
      %v3770 = vadd.f32 %v3564, %v3769
      %3771 = vmatmul.bf16.gmra.mxu0 %v3470
      %v3772 = vpop.f32.mrf.mxu0
      %v3773 = vadd.f32 %v3564, %v3772
      %v3774 = vpop.f32.mrf.mxu0
      %v3775 = vadd.f32 %v3564, %v3774
      %3776 = vmatmul.bf16.gmra.mxu0 %v3474
      %v3777 = vpop.f32.mrf.mxu0
      %v3778 = vadd.f32 %v3564, %v3777
      %v3779 = vpop.f32.mrf.mxu0
      %v3780 = vadd.f32 %v3564, %v3779
      %3781 = vmatmul.bf16.gmra.mxu0 %v3478
      %v3782 = vpop.f32.mrf.mxu0
      %v3783 = vadd.f32 %v3564, %v3782
      %v3784 = vpop.f32.mrf.mxu0
      %v3785 = vadd.f32 %v3564, %v3784
      %3786 = vmatmul.bf16.gmra.mxu0 %v3482
      %v3787 = vpop.f32.mrf.mxu0
      %v3788 = vadd.f32 %v3564, %v3787
      %v3789 = vpop.f32.mrf.mxu0
      %v3790 = vadd.f32 %v3564, %v3789
      %3791 = vmatmul.bf16.gmra.mxu0 %v3486
      %v3792 = vpop.f32.mrf.mxu0
      %v3793 = vadd.f32 %v3564, %v3792
      %v3794 = vpop.f32.mrf.mxu0
      %v3795 = vadd.f32 %v3564, %v3794
      %3796 = vmatmul.bf16.gmra.mxu0 %v3490
      %v3797 = vpop.f32.mrf.mxu0
      %v3798 = vadd.f32 %v3564, %v3797
      %v3799 = vpop.f32.mrf.mxu0
      %v3800 = vadd.f32 %v3564, %v3799
      %3801 = vmatmul.bf16.gmra.mxu0 %v3494
      %v3802 = vpop.f32.mrf.mxu0
      %v3803 = vadd.f32 %v3564, %v3802
      %v3804 = vpop.f32.mrf.mxu0
      %v3805 = vadd.f32 %v3564, %v3804
      %3806 = vdwg.mxu0
      %3807 = vmatpush.bf16.msra.mxu0 %v3709
      %3808 = vmatpush.bf16.msra.mxu0 %v3708
      %3809 = vmatpush.bf16.msra.mxu0 %v3707
      %3810 = vmatpush.bf16.msra.mxu0 %v3706
      %3811 = vmatpush.bf16.msra.mxu0 %v3705
      %3812 = vmatpush.bf16.msra.mxu0 %v3704
      %3813 = vmatpush.bf16.msra.mxu0 %v3703
      %3814 = vmatpush.bf16.msra.mxu0 %v3702
      %3815 = vmatmul.bf16.gmra.mxu0 %v3467
      %v3816 = vpop.f32.mrf.mxu0
      %v3817 = vadd.f32 %v3768, %v3816
      %v3818 = vpop.f32.mrf.mxu0
      %v3819 = vadd.f32 %v3770, %v3818
      %3820 = vmatmul.bf16.gmra.mxu0 %v3471
      %v3821 = vpop.f32.mrf.mxu0
      %v3822 = vadd.f32 %v3773, %v3821
      %v3823 = vpop.f32.mrf.mxu0
      %v3824 = vadd.f32 %v3775, %v3823
      %3825 = vmatmul.bf16.gmra.mxu0 %v3475
      %v3826 = vpop.f32.mrf.mxu0
      %v3827 = vadd.f32 %v3778, %v3826
      %v3828 = vpop.f32.mrf.mxu0
      %v3829 = vadd.f32 %v3780, %v3828
      %3830 = vmatmul.bf16.gmra.mxu0 %v3479
      %v3831 = vpop.f32.mrf.mxu0
      %v3832 = vadd.f32 %v3783, %v3831
      %v3833 = vpop.f32.mrf.mxu0
      %v3834 = vadd.f32 %v3785, %v3833
      %3835 = vmatmul.bf16.gmra.mxu0 %v3483
      %v3836 = vpop.f32.mrf.mxu0
      %v3837 = vadd.f32 %v3788, %v3836
      %v3838 = vpop.f32.mrf.mxu0
      %v3839 = vadd.f32 %v3790, %v3838
      %3840 = vmatmul.bf16.gmra.mxu0 %v3487
      %v3841 = vpop.f32.mrf.mxu0
      %v3842 = vadd.f32 %v3793, %v3841
      %v3843 = vpop.f32.mrf.mxu0
      %v3844 = vadd.f32 %v3795, %v3843
      %3845 = vmatmul.bf16.gmra.mxu0 %v3491
      %v3846 = vpop.f32.mrf.mxu0
      %v3847 = vadd.f32 %v3798, %v3846
      %v3848 = vpop.f32.mrf.mxu0
      %v3849 = vadd.f32 %v3800, %v3848
      %3850 = vmatmul.bf16.gmra.mxu0 %v3495
      %v3851 = vpop.f32.mrf.mxu0
      %v3852 = vadd.f32 %v3803, %v3851
      %v3853 = vpop.f32.mrf.mxu0
      %v3854 = vadd.f32 %v3805, %v3853
      %3855 = vdwg.mxu0
      %3856 = vmatpush.bf16.msra.mxu0 %v3717
      %3857 = vmatpush.bf16.msra.mxu0 %v3716
      %3858 = vmatpush.bf16.msra.mxu0 %v3715
      %3859 = vmatpush.bf16.msra.mxu0 %v3714
      %3860 = vmatpush.bf16.msra.mxu0 %v3713
      %3861 = vmatpush.bf16.msra.mxu0 %v3712
      %3862 = vmatpush.bf16.msra.mxu0 %v3711
      %3863 = vmatpush.bf16.msra.mxu0 %v3710
      %3864 = vmatmul.bf16.gmra.mxu0 %v3468
      %v3865 = vpop.f32.mrf.mxu0
      %v3866 = vadd.f32 %v3817, %v3865
      %v3867 = vpop.f32.mrf.mxu0
      %v3868 = vadd.f32 %v3819, %v3867
      %3869 = vmatmul.bf16.gmra.mxu0 %v3472
      %v3870 = vpop.f32.mrf.mxu0
      %v3871 = vadd.f32 %v3822, %v3870
      %v3872 = vpop.f32.mrf.mxu0
      %v3873 = vadd.f32 %v3824, %v3872
      %3874 = vmatmul.bf16.gmra.mxu0 %v3476
      %v3875 = vpop.f32.mrf.mxu0
      %v3876 = vadd.f32 %v3827, %v3875
      %v3877 = vpop.f32.mrf.mxu0
      %v3878 = vadd.f32 %v3829, %v3877
      %3879 = vmatmul.bf16.gmra.mxu0 %v3480
      %v3880 = vpop.f32.mrf.mxu0
      %v3881 = vadd.f32 %v3832, %v3880
      %v3882 = vpop.f32.mrf.mxu0
      %v3883 = vadd.f32 %v3834, %v3882
      %3884 = vmatmul.bf16.gmra.mxu0 %v3484
      %v3885 = vpop.f32.mrf.mxu0
      %v3886 = vadd.f32 %v3837, %v3885
      %v3887 = vpop.f32.mrf.mxu0
      %v3888 = vadd.f32 %v3839, %v3887
      %3889 = vmatmul.bf16.gmra.mxu0 %v3488
      %v3890 = vpop.f32.mrf.mxu0
      %v3891 = vadd.f32 %v3842, %v3890
      %v3892 = vpop.f32.mrf.mxu0
      %v3893 = vadd.f32 %v3844, %v3892
      %3894 = vmatmul.bf16.gmra.mxu0 %v3492
      %v3895 = vpop.f32.mrf.mxu0
      %v3896 = vadd.f32 %v3847, %v3895
      %v3897 = vpop.f32.mrf.mxu0
      %v3898 = vadd.f32 %v3849, %v3897
      %3899 = vmatmul.bf16.gmra.mxu0 %v3496
      %v3900 = vpop.f32.mrf.mxu0
      %v3901 = vadd.f32 %v3852, %v3900
      %v3902 = vpop.f32.mrf.mxu0
      %v3903 = vadd.f32 %v3854, %v3902
      %3904 = vdwg.mxu0
      %3905 = vmatpush.bf16.msra.mxu0 %v3725
      %3906 = vmatpush.bf16.msra.mxu0 %v3724
      %3907 = vmatpush.bf16.msra.mxu0 %v3723
      %3908 = vmatpush.bf16.msra.mxu0 %v3722
      %3909 = vmatpush.bf16.msra.mxu0 %v3721
      %3910 = vmatpush.bf16.msra.mxu0 %v3720
      %3911 = vmatpush.bf16.msra.mxu0 %v3719
      %3912 = vmatpush.bf16.msra.mxu0 %v3718
      %3913 = vmatmul.bf16.gmra.mxu0 %v3469
      %v3914 = vpop.f32.mrf.mxu0
      %v3915 = vadd.f32 %v3866, %v3914
      %v3916 = vpop.f32.mrf.mxu0
      %v3917 = vadd.f32 %v3868, %v3916
      %3918 = vmatmul.bf16.gmra.mxu0 %v3473
      %v3919 = vpop.f32.mrf.mxu0
      %v3920 = vadd.f32 %v3871, %v3919
      %v3921 = vpop.f32.mrf.mxu0
      %v3922 = vadd.f32 %v3873, %v3921
      %3923 = vmatmul.bf16.gmra.mxu0 %v3477
      %v3924 = vpop.f32.mrf.mxu0
      %v3925 = vadd.f32 %v3876, %v3924
      %v3926 = vpop.f32.mrf.mxu0
      %v3927 = vadd.f32 %v3878, %v3926
      %3928 = vmatmul.bf16.gmra.mxu0 %v3481
      %v3929 = vpop.f32.mrf.mxu0
      %v3930 = vadd.f32 %v3881, %v3929
      %v3931 = vpop.f32.mrf.mxu0
      %v3932 = vadd.f32 %v3883, %v3931
      %3933 = vmatmul.bf16.gmra.mxu0 %v3485
      %v3934 = vpop.f32.mrf.mxu0
      %v3935 = vadd.f32 %v3886, %v3934
      %v3936 = vpop.f32.mrf.mxu0
      %v3937 = vadd.f32 %v3888, %v3936
      %3938 = vmatmul.bf16.gmra.mxu0 %v3489
      %v3939 = vpop.f32.mrf.mxu0
      %v3940 = vadd.f32 %v3891, %v3939
      %v3941 = vpop.f32.mrf.mxu0
      %v3942 = vadd.f32 %v3893, %v3941
      %3943 = vmatmul.bf16.gmra.mxu0 %v3493
      %v3944 = vpop.f32.mrf.mxu0
      %v3945 = vadd.f32 %v3896, %v3944
      %v3946 = vpop.f32.mrf.mxu0
      %v3947 = vadd.f32 %v3898, %v3946
      %3948 = vmatmul.bf16.gmra.mxu0 %v3497
      %v3949 = vpop.f32.mrf.mxu0
      %v3950 = vadd.f32 %v3901, %v3949
      %v3951 = vpop.f32.mrf.mxu0
      %v3952 = vadd.f32 %v3903, %v3951
      %3953 = vdwg.mxu0
      %3954 = vst [vmem:[%s226] sm:$0xff] %v3915
      %3955 = vst [vmem:[%s226 + $0x8] sm:$0xff] %v3917
      %3956 = vst [vmem:[%s226 + $0x10] sm:$0xff] %v3920
      %3957 = vst [vmem:[%s226 + $0x18] sm:$0xff] %v3922
      %3958 = vst [vmem:[%s226 + $0x20] sm:$0xff] %v3925
      %3959 = vst [vmem:[%s226 + $0x28] sm:$0xff] %v3927
      %3960 = vst [vmem:[%s226 + $0x30] sm:$0xff] %v3930
      %3961 = vst [vmem:[%s226 + $0x38] sm:$0xff] %v3932
      %3962 = vst [vmem:[%s226 + $0x40] sm:$0xff] %v3935
      %3963 = vst [vmem:[%s226 + $0x48] sm:$0xff] %v3937
      %3964 = vst [vmem:[%s226 + $0x50] sm:$0xff] %v3940
      %3965 = vst [vmem:[%s226 + $0x58] sm:$0xff] %v3942
      %3966 = vst [vmem:[%s226 + $0x60] sm:$0xff] %v3945
      %3967 = vst [vmem:[%s226 + $0x68] sm:$0xff] %v3947
      %3968 = vst [vmem:[%s226 + $0x70] sm:$0xff] %v3950
      %3969 = vst [vmem:[%s226 + $0x78] sm:$0xff] %v3952
      %s3970 = smul.u32 16, %s16
      %p3971 = scmp.lt.s32.totalorder %s3970, 31
      %s3972 = scalar_select %p3971, %s3970, 31
      %s3973 = smul.addr %s3972, 8
      %s3974 = scalar_lea.vmem %s5, %s3973
      // Predicated region
      $region41: #{afno_transformer_block.4} parent=39 // pred_check
        %p3975 = pneg %p144
      $region42: #{afno_transformer_block.4} parent=39 // pred_check_branch
        %3977 = sbr.rel (%p3975) target = $region44
      $region43: #{afno_transformer_block.4} parent=39 // pred_region
        %s3978 = smul.u32 16, %s16
      $region44: #{afno_transformer_block.4} parent=39 // pred_fallthru
        _
    $region40: #{afno_transformer_block.4} parent=5 // pred_fallthru
      _
    %p3979 = scmp.le.s32.totalorder 2, %s11
    // Predicated region
    $region45: #{afno_transformer_block.4} parent=5 // pred_check
      %p3980 = pneg %p3979
    $region46: #{afno_transformer_block.4} parent=5 // pred_check_branch
      %3982 = sbr.rel (%p3980) target = $region48
    $region47: #{afno_transformer_block.4} parent=5 // pred_region
      %s3983 = ssub.s32 %s11, 2
      // Predicated region
      $region49: #{afno_transformer_block.4} parent=47 // pred_check
        %p3984 = pneg %p150
      $region50: #{afno_transformer_block.4} parent=47 // pred_check_branch
        %3986 = sbr.rel (%p3984) target = $region52
      $region51: #{afno_transformer_block.4} parent=47 // pred_region
        %s3987 = smul.u32 16, %s17
        %p3988 = scmp.lt.s32.totalorder %s3987, 31
        %s3989 = scalar_select %p3988, %s3987, 31
        %s3990 = smul.addr %s3989, 8
        %s3991 = scalar_lea.vmem %s5, %s3990
      $region52: #{afno_transformer_block.4} parent=47 // pred_fallthru
        _
    $region48: #{afno_transformer_block.4} parent=5 // pred_fallthru
      _
  $region6: #{afno_transformer_block.4} parent=0 // loop_footer
    %s15 = sadd.s32 1, %s11
  $region7: #{afno_transformer_block.4} parent=0 // loop_footer_branch
    %10 = sbr.rel target = $region3
  $region8: #{afno_transformer_block.4} parent=0 // loop_exit
    _

// kernel: afno_transformer_block.5
$region0: #{afno_transformer_block.5}
  #allocation0 [shape = 'u32[]', space=smem, size = 0x4, offset = 0x4, fixed_abs, tag = 'smem constant byte address 0x4 - core index']
  #allocation1 [shape = 'u32[72,128]{1,0:T(1,128)}', space=vmem, size = 0x9000, scoped, tag = 'internal scratch']
  %s0 = inlined_call_operand.vmem [shape: f32[512,32], index: 0, kind: input, shape index: {}]
  %s1 = inlined_call_operand.vmem [shape: f32[512,32], index: 1, kind: input, shape index: {}]
  %s2 = inlined_call_operand.vmem [shape: f32[1,32], index: 2, kind: input, shape index: {}]
  %s3 = inlined_call_operand.vmem [shape: f32[1,32], index: 3, kind: input, shape index: {}]
  %s4 = inlined_call_operand.vmem [shape: bf16[32,64], index: 4, kind: input, shape index: {}]
  %s5 = inlined_call_operand.vmem [shape: f32[1,64], index: 5, kind: input, shape index: {}]
  %s6 = inlined_call_operand.vmem [shape: bf16[64,32], index: 6, kind: input, shape index: {}]
  %s7 = inlined_call_operand.vmem [shape: f32[1,32], index: 7, kind: input, shape index: {}]
  %s8 = inlined_call_operand.hbm [shape: f32[512,32], index: 8, kind: output, shape index: {}]
  %s9 = sld [smem:[#allocation0]]
  $region65: #{afno_transformer_block.5} parent=0
    _
  %s11 = ssub.s32 1, %s9
  %s12 = scalar_select 0, %s11, %s9
  $region1: #{afno_transformer_block.5} parent=0
    #allocation2 [shape = 'u8[262144]{0}', space=vmem, size = 0x40000, scoped, tag = 'output window, operand 0']
    #allocation3 [shape = 's32[2]{0}', space=sflag, size = 0x8, scoped, tag = 'scoped memory for afno_transformer_block.5']
    %13 = vsyncpa [#allocation3], 0
    %s14 = scalar_lea.sflag [#allocation3], 1
    %15 = vsyncpa %s14, 0
    loop: start=0, step=1, limit=4
    $region2: #{afno_transformer_block.5} parent=1 // loop_pre_header
      _
    $region3: #{afno_transformer_block.5} parent=1 // loop_header
      %s17 = sphi 0, %s21
      %p18 = scmp.ge.s32.totalorder %s17, 4
      %s27 = sphi 0, %s29
      %s30 = sphi 0, %s27
      %s31 = sphi 0, %s30
      %s47 = sphi 0, %s31
      %s53 = sphi 0, %s55
      %s56 = sphi 0, %s53
      %s57 = sphi 0, %s56
      %s73 = sphi 0, %s57
      %s77 = sphi 0, %s77
      %s79 = sphi 0, %s77
      %s80 = sphi 0, %s79
      %s94 = sphi 0, %s80
      %s98 = sphi 0, %s98
      %s100 = sphi 0, %s98
      %s101 = sphi 0, %s100
      %s115 = sphi 0, %s101
      %s119 = sphi 0, %s119
      %s121 = sphi 0, %s119
      %s122 = sphi 0, %s121
      %s136 = sphi 0, %s122
      %s140 = sphi 0, %s140
      %s142 = sphi 0, %s140
      %s143 = sphi 0, %s142
      %s157 = sphi 0, %s143
      %s161 = sphi 0, %s161
      %s163 = sphi 0, %s161
      %s164 = sphi 0, %s163
      %s178 = sphi 0, %s164
      %s182 = sphi 0, %s182
      %s184 = sphi 0, %s182
      %s185 = sphi 0, %s184
      %s199 = sphi 0, %s185
      %s205 = sphi 0, %s207
      %s208 = sphi 0, %s205
      %s209 = sphi 0, %s208
      %s225 = sphi 0, %s209
    $region4: #{afno_transformer_block.5} parent=1 // loop_header_branch
      %20 = sbr.rel (%p18) target = $region8
    $region5: #{afno_transformer_block.5} parent=1 // loop_body
      %s22 = ssub.s32 %s17, 1
      %s23 = ssub.s32 %s17, 2
      %s24 = sadd.s32 %s17, 1
      %s25 = ssub.s32 %s17, %s24
      %p26 = scmp.eq.s32.totalorder %s25, 0
      %s28 = sadd.s32 %s27, 1
      %s29 = scalar_select %p26, %s27, %s28
      %p32 = pneg %p26
      %p33 = scmp.eq.s32.totalorder %s17, 1
      %p34 = por %p32, %p33
      %p35 = scmp.ne.s32.totalorder %s27, %s30
      %p36 = scmp.eq.s32.totalorder %s17, 0
      %p37 = por %p35, %p36
      %p38 = scmp.ne.s32.totalorder %s27, %s30
      %p39 = scmp.eq.s32.totalorder %s22, 1
      %p40 = por %p38, %p39
      %p41 = scmp.ne.s32.totalorder %s30, %s31
      %p42 = scmp.eq.s32.totalorder %s22, 0
      %p43 = por %p41, %p42
      %p44 = scmp.ne.s32.totalorder %s30, %s31
      %p45 = scmp.eq.s32.totalorder %s23, 1
      %p46 = por %p44, %p45
      %p48 = scmp.ne.s32.totalorder %s31, %s47
      %p49 = scmp.eq.s32.totalorder %s23, 0
      %p50 = por %p48, %p49
      %s51 = ssub.s32 %s17, %s24
      %p52 = scmp.eq.s32.totalorder %s51, 0
      %s54 = sadd.s32 %s53, 1
      %s55 = scalar_select %p52, %s53, %s54
      %p58 = pneg %p52
      %p59 = scmp.eq.s32.totalorder %s17, 1
      %p60 = por %p58, %p59
      %p61 = scmp.ne.s32.totalorder %s53, %s56
      %p62 = scmp.eq.s32.totalorder %s17, 0
      %p63 = por %p61, %p62
      %p64 = scmp.ne.s32.totalorder %s53, %s56
      %p65 = scmp.eq.s32.totalorder %s22, 1
      %p66 = por %p64, %p65
      %p67 = scmp.ne.s32.totalorder %s56, %s57
      %p68 = scmp.eq.s32.totalorder %s22, 0
      %p69 = por %p67, %p68
      %p70 = scmp.ne.s32.totalorder %s56, %s57
      %p71 = scmp.eq.s32.totalorder %s23, 1
      %p72 = por %p70, %p71
      %p74 = scmp.ne.s32.totalorder %s57, %s73
      %p75 = scmp.eq.s32.totalorder %s23, 0
      %p76 = por %p74, %p75
      %s78 = sadd.s32 %s77, 1
      %p81 = scmp.eq.s32.totalorder %s17, 1
      %p82 = scmp.ne.s32.totalorder %s77, %s79
      %p83 = scmp.eq.s32.totalorder %s17, 0
      %p84 = por %p82, %p83
      %p85 = scmp.ne.s32.totalorder %s77, %s79
      %p86 = scmp.eq.s32.totalorder %s22, 1
      %p87 = por %p85, %p86
      %p88 = scmp.ne.s32.totalorder %s79, %s80
      %p89 = scmp.eq.s32.totalorder %s22, 0
      %p90 = por %p88, %p89
      %p91 = scmp.ne.s32.totalorder %s79, %s80
      %p92 = scmp.eq.s32.totalorder %s23, 1
      %p93 = por %p91, %p92
      %p95 = scmp.ne.s32.totalorder %s80, %s94
      %p96 = scmp.eq.s32.totalorder %s23, 0
      %p97 = por %p95, %p96
      %s99 = sadd.s32 %s98, 1
      %p102 = scmp.eq.s32.totalorder %s17, 1
      %p103 = scmp.ne.s32.totalorder %s98, %s100
      %p104 = scmp.eq.s32.totalorder %s17, 0
      %p105 = por %p103, %p104
      %p106 = scmp.ne.s32.totalorder %s98, %s100
      %p107 = scmp.eq.s32.totalorder %s22, 1
      %p108 = por %p106, %p107
      %p109 = scmp.ne.s32.totalorder %s100, %s101
      %p110 = scmp.eq.s32.totalorder %s22, 0
      %p111 = por %p109, %p110
      %p112 = scmp.ne.s32.totalorder %s100, %s101
      %p113 = scmp.eq.s32.totalorder %s23, 1
      %p114 = por %p112, %p113
      %p116 = scmp.ne.s32.totalorder %s101, %s115
      %p117 = scmp.eq.s32.totalorder %s23, 0
      %p118 = por %p116, %p117
      %s120 = sadd.s32 %s119, 1
      %p123 = scmp.eq.s32.totalorder %s17, 1
      %p124 = scmp.ne.s32.totalorder %s119, %s121
      %p125 = scmp.eq.s32.totalorder %s17, 0
      %p126 = por %p124, %p125
      %p127 = scmp.ne.s32.totalorder %s119, %s121
      %p128 = scmp.eq.s32.totalorder %s22, 1
      %p129 = por %p127, %p128
      %p130 = scmp.ne.s32.totalorder %s121, %s122
      %p131 = scmp.eq.s32.totalorder %s22, 0
      %p132 = por %p130, %p131
      %p133 = scmp.ne.s32.totalorder %s121, %s122
      %p134 = scmp.eq.s32.totalorder %s23, 1
      %p135 = por %p133, %p134
      %p137 = scmp.ne.s32.totalorder %s122, %s136
      %p138 = scmp.eq.s32.totalorder %s23, 0
      %p139 = por %p137, %p138
      %s141 = sadd.s32 %s140, 1
      %p144 = scmp.eq.s32.totalorder %s17, 1
      %p145 = scmp.ne.s32.totalorder %s140, %s142
      %p146 = scmp.eq.s32.totalorder %s17, 0
      %p147 = por %p145, %p146
      %p148 = scmp.ne.s32.totalorder %s140, %s142
      %p149 = scmp.eq.s32.totalorder %s22, 1
      %p150 = por %p148, %p149
      %p151 = scmp.ne.s32.totalorder %s142, %s143
      %p152 = scmp.eq.s32.totalorder %s22, 0
      %p153 = por %p151, %p152
      %p154 = scmp.ne.s32.totalorder %s142, %s143
      %p155 = scmp.eq.s32.totalorder %s23, 1
      %p156 = por %p154, %p155
      %p158 = scmp.ne.s32.totalorder %s143, %s157
      %p159 = scmp.eq.s32.totalorder %s23, 0
      %p160 = por %p158, %p159
      %s162 = sadd.s32 %s161, 1
      %p165 = scmp.eq.s32.totalorder %s17, 1
      %p166 = scmp.ne.s32.totalorder %s161, %s163
      %p167 = scmp.eq.s32.totalorder %s17, 0
      %p168 = por %p166, %p167
      %p169 = scmp.ne.s32.totalorder %s161, %s163
      %p170 = scmp.eq.s32.totalorder %s22, 1
      %p171 = por %p169, %p170
      %p172 = scmp.ne.s32.totalorder %s163, %s164
      %p173 = scmp.eq.s32.totalorder %s22, 0
      %p174 = por %p172, %p173
      %p175 = scmp.ne.s32.totalorder %s163, %s164
      %p176 = scmp.eq.s32.totalorder %s23, 1
      %p177 = por %p175, %p176
      %p179 = scmp.ne.s32.totalorder %s164, %s178
      %p180 = scmp.eq.s32.totalorder %s23, 0
      %p181 = por %p179, %p180
      %s183 = sadd.s32 %s182, 1
      %p186 = scmp.eq.s32.totalorder %s17, 1
      %p187 = scmp.ne.s32.totalorder %s182, %s184
      %p188 = scmp.eq.s32.totalorder %s17, 0
      %p189 = por %p187, %p188
      %p190 = scmp.ne.s32.totalorder %s182, %s184
      %p191 = scmp.eq.s32.totalorder %s22, 1
      %p192 = por %p190, %p191
      %p193 = scmp.ne.s32.totalorder %s184, %s185
      %p194 = scmp.eq.s32.totalorder %s22, 0
      %p195 = por %p193, %p194
      %p196 = scmp.ne.s32.totalorder %s184, %s185
      %p197 = scmp.eq.s32.totalorder %s23, 1
      %p198 = por %p196, %p197
      %p200 = scmp.ne.s32.totalorder %s185, %s199
      %p201 = scmp.eq.s32.totalorder %s23, 0
      %p202 = por %p200, %p201
      %s203 = ssub.s32 %s17, %s24
      %p204 = scmp.eq.s32.totalorder %s203, 0
      %s206 = sadd.s32 %s205, 1
      %s207 = scalar_select %p204, %s205, %s206
      %p210 = pneg %p204
      %p211 = scmp.eq.s32.totalorder %s17, 1
      %p212 = por %p210, %p211
      %p213 = scmp.ne.s32.totalorder %s205, %s208
      %p214 = scmp.eq.s32.totalorder %s17, 0
      %p215 = por %p213, %p214
      %p216 = scmp.ne.s32.totalorder %s205, %s208
      %p217 = scmp.eq.s32.totalorder %s22, 1
      %p218 = por %p216, %p217
      %p219 = scmp.ne.s32.totalorder %s208, %s209
      %p220 = scmp.eq.s32.totalorder %s22, 0
      %p221 = por %p219, %p220
      %p222 = scmp.ne.s32.totalorder %s208, %s209
      %p223 = scmp.eq.s32.totalorder %s23, 1
      %p224 = por %p222, %p223
      %p226 = scmp.ne.s32.totalorder %s209, %s225
      %p227 = scmp.eq.s32.totalorder %s23, 0
      %p228 = por %p226, %p227
      %p229 = scmp.le.s32.totalorder 1, %s17
      %p230 = scmp.lt.s32.totalorder %s17, 3
      %p231 = pnand %p229, %p230
      %p232 = pneg %p231
      // Predicated region
      $region9: #{afno_transformer_block.5} parent=5 // pred_check
        _
      $region10: #{afno_transformer_block.5} parent=5 // pred_check_branch
        %234 = sbr.rel (%p231) target = $region12
      $region11: #{afno_transformer_block.5} parent=5 // pred_region
        %s235 = ssub.s32 %s17, 1
        // Predicated region
        $region13: #{afno_transformer_block.5} parent=11 // pred_check
          %p236 = pneg %p90
        $region14: #{afno_transformer_block.5} parent=11 // pred_check_branch
          %238 = sbr.rel (%p236) target = $region16
        $region15: #{afno_transformer_block.5} parent=11 // pred_region
          _
        $region16: #{afno_transformer_block.5} parent=11 // pred_fallthru
          _
        // Predicated region
        $region17: #{afno_transformer_block.5} parent=11 // pred_check
          %p239 = pneg %p111
        $region18: #{afno_transformer_block.5} parent=11 // pred_check_branch
          %241 = sbr.rel (%p239) target = $region20
        $region19: #{afno_transformer_block.5} parent=11 // pred_region
          _
        $region20: #{afno_transformer_block.5} parent=11 // pred_fallthru
          _
        // Predicated region
        $region21: #{afno_transformer_block.5} parent=11 // pred_check
          %p242 = pneg %p132
        $region22: #{afno_transformer_block.5} parent=11 // pred_check_branch
          %244 = sbr.rel (%p242) target = $region24
        $region23: #{afno_transformer_block.5} parent=11 // pred_region
          _
        $region24: #{afno_transformer_block.5} parent=11 // pred_fallthru
          _
        // Predicated region
        $region25: #{afno_transformer_block.5} parent=11 // pred_check
          %p245 = pneg %p153
        $region26: #{afno_transformer_block.5} parent=11 // pred_check_branch
          %247 = sbr.rel (%p245) target = $region28
        $region27: #{afno_transformer_block.5} parent=11 // pred_region
          _
        $region28: #{afno_transformer_block.5} parent=11 // pred_fallthru
          _
        // Predicated region
        $region29: #{afno_transformer_block.5} parent=11 // pred_check
          %p248 = pneg %p174
        $region30: #{afno_transformer_block.5} parent=11 // pred_check_branch
          %250 = sbr.rel (%p248) target = $region32
        $region31: #{afno_transformer_block.5} parent=11 // pred_region
          _
        $region32: #{afno_transformer_block.5} parent=11 // pred_fallthru
          _
        // Predicated region
        $region33: #{afno_transformer_block.5} parent=11 // pred_check
          %p251 = pneg %p195
        $region34: #{afno_transformer_block.5} parent=11 // pred_check_branch
          %253 = sbr.rel (%p251) target = $region36
        $region35: #{afno_transformer_block.5} parent=11 // pred_region
          _
        $region36: #{afno_transformer_block.5} parent=11 // pred_fallthru
          _
      $region12: #{afno_transformer_block.5} parent=5 // pred_fallthru
        _
      %p254 = scmp.lt.s32.totalorder %s17, 2
      // Predicated region
      $region37: #{afno_transformer_block.5} parent=5 // pred_check
        %p255 = pneg %p254
      $region38: #{afno_transformer_block.5} parent=5 // pred_check_branch
        %257 = sbr.rel (%p255) target = $region40
      $region39: #{afno_transformer_block.5} parent=5 // pred_region
        // Predicated region
        $region41: #{afno_transformer_block.5} parent=39 // pred_check
          %p258 = pneg %p37
        $region42: #{afno_transformer_block.5} parent=39 // pred_check_branch
          %260 = sbr.rel (%p258) target = $region44
        $region43: #{afno_transformer_block.5} parent=39 // pred_region
          %s261 = smul.u32 32, %s17
          %p262 = scmp.lt.s32.totalorder %s261, 63
          %s263 = scalar_select %p262, %s261, 63
          %s264 = smul.addr %s263, 8
          %s265 = scalar_lea.vmem %s0, %s264
          %s266 = smul.u32 32, %s17
        $region44: #{afno_transformer_block.5} parent=39 // pred_fallthru
          _
        // Predicated region
        $region45: #{afno_transformer_block.5} parent=39 // pred_check
          %p267 = pneg %p63
        $region46: #{afno_transformer_block.5} parent=39 // pred_check_branch
          %269 = sbr.rel (%p267) target = $region48
        $region47: #{afno_transformer_block.5} parent=39 // pred_region
          %s270 = smul.u32 32, %s17
          %p271 = scmp.lt.s32.totalorder %s270, 63
          %s272 = scalar_select %p271, %s270, 63
          %s273 = smul.addr %s272, 8
          %s274 = scalar_lea.vmem %s1, %s273
          %s275 = smul.u32 32, %s17
        $region48: #{afno_transformer_block.5} parent=39 // pred_fallthru
          _
      $region40: #{afno_transformer_block.5} parent=5 // pred_fallthru
        _
      %p276 = scmp.le.s32.totalorder 1, %s17
      %p277 = scmp.lt.s32.totalorder %s17, 3
      %p278 = pnand %p276, %p277
      %p279 = pneg %p278
      // Predicated region
      $region49: #{afno_transformer_block.5} parent=5 // pred_check
        _
      $region50: #{afno_transformer_block.5} parent=5 // pred_check_branch
        %281 = sbr.rel (%p278) target = $region52
      $region51: #{afno_transformer_block.5} parent=5 // pred_region
        %s282 = ssub.s32 %s17, 1
        %s283 = smul.u32 32, %s22
        %p284 = scmp.lt.s32.totalorder %s283, 63
        %s285 = scalar_select %p284, %s283, 63
        %s286 = smul.addr %s285, 8
        %s287 = scalar_lea.vmem %s0, %s286
        %p288 = pneg %p43
        %p289 = pneg %p40
        %s290 = smul.u32 32, %s22
        %p291 = scmp.lt.s32.totalorder %s290, 63
        %s292 = scalar_select %p291, %s290, 63
        %s293 = smul.addr %s292, 8
        %s294 = scalar_lea.vmem %s1, %s293
        %p295 = pneg %p69
        %p296 = pneg %p66
        %p297 = pneg %p90
        %p298 = pneg %p87
        %p299 = pneg %p111
        %p300 = pneg %p108
        %p301 = pneg %p132
        %p302 = pneg %p129
        %p303 = pneg %p153
        %p304 = pneg %p150
        %p305 = pneg %p174
        %p306 = pneg %p171
        %p307 = pneg %p195
        %p308 = pneg %p192
        %p309 = pneg %p221
        %p310 = pneg %p218
        %s311 = sand.u32 %s208, 1
        %s312 = scalar_lea.sflag [#allocation3], %s311
        %s313 = sand.u32 %s208, 1
        %s314 = smul.addr %s313, 256
        %s315 = scalar_lea.vmem [#allocation2], %s314
        %s316 = smul.u32 32, %s22
        %p317 = scmp.lt.s32.totalorder %s316, 63
        %s318 = scalar_select %p317, %s316, 63
        %s319 = smul.addr %s318, 8
        %s320 = scalar_lea.vmem %s0, %s319
        %s321 = smul.u32 32, %s22
        %s322 = smul.u32 32, %s22
        %p323 = scmp.lt.s32.totalorder %s322, 63
        %s324 = scalar_select %p323, %s322, 63
        %s325 = smul.addr %s324, 8
        %s326 = scalar_lea.vmem %s1, %s325
        %s327 = smul.u32 32, %s22
        %s328 = smul.u32 32, %s22
        %v330 = vld [vmem:[%s320] sm:$0xff]
        %v331 = vld [vmem:[%s320 + $0x8] sm:$0xff]
        %v332 = vld [vmem:[%s320 + $0x10] sm:$0xff]
        %v333 = vld [vmem:[%s320 + $0x18] sm:$0xff]
        %v334 = vld [vmem:[%s320 + $0x20] sm:$0xff]
        %v335 = vld [vmem:[%s320 + $0x28] sm:$0xff]
        %v336 = vld [vmem:[%s320 + $0x30] sm:$0xff]
        %v337 = vld [vmem:[%s320 + $0x38] sm:$0xff]
        %v338 = vld [vmem:[%s320 + $0x40] sm:$0xff]
        %v339 = vld [vmem:[%s320 + $0x48] sm:$0xff]
        %v340 = vld [vmem:[%s320 + $0x50] sm:$0xff]
        %v341 = vld [vmem:[%s320 + $0x58] sm:$0xff]
        %v342 = vld [vmem:[%s320 + $0x60] sm:$0xff]
        %v343 = vld [vmem:[%s320 + $0x68] sm:$0xff]
        %v344 = vld [vmem:[%s320 + $0x70] sm:$0xff]
        %v345 = vld [vmem:[%s320 + $0x78] sm:$0xff]
        %v346 = vld [vmem:[%s320 + $0x80] sm:$0xff]
        %v347 = vld [vmem:[%s320 + $0x88] sm:$0xff]
        %v348 = vld [vmem:[%s320 + $0x90] sm:$0xff]
        %v349 = vld [vmem:[%s320 + $0x98] sm:$0xff]
        %v350 = vld [vmem:[%s320 + $0xa0] sm:$0xff]
        %v351 = vld [vmem:[%s320 + $0xa8] sm:$0xff]
        %v352 = vld [vmem:[%s320 + $0xb0] sm:$0xff]
        %v353 = vld [vmem:[%s320 + $0xb8] sm:$0xff]
        %v354 = vld [vmem:[%s320 + $0xc0] sm:$0xff]
        %v355 = vld [vmem:[%s320 + $0xc8] sm:$0xff]
        %v356 = vld [vmem:[%s320 + $0xd0] sm:$0xff]
        %v357 = vld [vmem:[%s320 + $0xd8] sm:$0xff]
        %v358 = vld [vmem:[%s320 + $0xe0] sm:$0xff]
        %v359 = vld [vmem:[%s320 + $0xe8] sm:$0xff]
        %v360 = vld [vmem:[%s320 + $0xf0] sm:$0xff]
        %v361 = vld [vmem:[%s320 + $0xf8] sm:$0xff]
        %v362 = vld [vmem:[%s326] sm:$0xff]
        %v363 = vld [vmem:[%s326 + $0x8] sm:$0xff]
        %v364 = vld [vmem:[%s326 + $0x10] sm:$0xff]
        %v365 = vld [vmem:[%s326 + $0x18] sm:$0xff]
        %v366 = vld [vmem:[%s326 + $0x20] sm:$0xff]
        %v367 = vld [vmem:[%s326 + $0x28] sm:$0xff]
        %v368 = vld [vmem:[%s326 + $0x30] sm:$0xff]
        %v369 = vld [vmem:[%s326 + $0x38] sm:$0xff]
        %v370 = vld [vmem:[%s326 + $0x40] sm:$0xff]
        %v371 = vld [vmem:[%s326 + $0x48] sm:$0xff]
        %v372 = vld [vmem:[%s326 + $0x50] sm:$0xff]
        %v373 = vld [vmem:[%s326 + $0x58] sm:$0xff]
        %v374 = vld [vmem:[%s326 + $0x60] sm:$0xff]
        %v375 = vld [vmem:[%s326 + $0x68] sm:$0xff]
        %v376 = vld [vmem:[%s326 + $0x70] sm:$0xff]
        %v377 = vld [vmem:[%s326 + $0x78] sm:$0xff]
        %v378 = vld [vmem:[%s326 + $0x80] sm:$0xff]
        %v379 = vld [vmem:[%s326 + $0x88] sm:$0xff]
        %v380 = vld [vmem:[%s326 + $0x90] sm:$0xff]
        %v381 = vld [vmem:[%s326 + $0x98] sm:$0xff]
        %v382 = vld [vmem:[%s326 + $0xa0] sm:$0xff]
        %v383 = vld [vmem:[%s326 + $0xa8] sm:$0xff]
        %v384 = vld [vmem:[%s326 + $0xb0] sm:$0xff]
        %v385 = vld [vmem:[%s326 + $0xb8] sm:$0xff]
        %v386 = vld [vmem:[%s326 + $0xc0] sm:$0xff]
        %v387 = vld [vmem:[%s326 + $0xc8] sm:$0xff]
        %v388 = vld [vmem:[%s326 + $0xd0] sm:$0xff]
        %v389 = vld [vmem:[%s326 + $0xd8] sm:$0xff]
        %v390 = vld [vmem:[%s326 + $0xe0] sm:$0xff]
        %v391 = vld [vmem:[%s326 + $0xe8] sm:$0xff]
        %v392 = vld [vmem:[%s326 + $0xf0] sm:$0xff]
        %v393 = vld [vmem:[%s326 + $0xf8] sm:$0xff]
        %v394 = vadd.f32 %v330, %v362
        %v395 = vadd.f32 %v331, %v363
        %v396 = vadd.f32 %v332, %v364
        %v397 = vadd.f32 %v333, %v365
        %v398 = vadd.f32 %v334, %v366
        %v399 = vadd.f32 %v335, %v367
        %v400 = vadd.f32 %v336, %v368
        %v401 = vadd.f32 %v337, %v369
        %v402 = vadd.f32 %v338, %v370
        %v403 = vadd.f32 %v339, %v371
        %v404 = vadd.f32 %v340, %v372
        %v405 = vadd.f32 %v341, %v373
        %v406 = vadd.f32 %v342, %v374
        %v407 = vadd.f32 %v343, %v375
        %v408 = vadd.f32 %v344, %v376
        %v409 = vadd.f32 %v345, %v377
        %v410 = vadd.f32 %v346, %v378
        %v411 = vadd.f32 %v347, %v379
        %v412 = vadd.f32 %v348, %v380
        %v413 = vadd.f32 %v349, %v381
        %v414 = vadd.f32 %v350, %v382
        %v415 = vadd.f32 %v351, %v383
        %v416 = vadd.f32 %v352, %v384
        %v417 = vadd.f32 %v353, %v385
        %v418 = vadd.f32 %v354, %v386
        %v419 = vadd.f32 %v355, %v387
        %v420 = vadd.f32 %v356, %v388
        %v421 = vadd.f32 %v357, %v389
        %v422 = vadd.f32 %v358, %v390
        %v423 = vadd.f32 %v359, %v391
        %v424 = vadd.f32 %v360, %v392
        %v425 = vadd.f32 %v361, %v393
        %vm426 = vcmask 261120
        %v427 = vsel %vm426, %v394, 0.0
        %428 = vadd.xlane.f32.xlu0 %v427
        %v429 = vpop.xlane.xlu0 %428
        %v430 = vsel %vm426, %v395, 0.0
        %431 = vadd.xlane.f32.xlu0 %v430
        %v432 = vpop.xlane.xlu0 %431
        %v433 = vsel %vm426, %v396, 0.0
        %434 = vadd.xlane.f32.xlu0 %v433
        %v435 = vpop.xlane.xlu0 %434
        %v436 = vsel %vm426, %v397, 0.0
        %437 = vadd.xlane.f32.xlu0 %v436
        %v438 = vpop.xlane.xlu0 %437
        %v439 = vsel %vm426, %v398, 0.0
        %440 = vadd.xlane.f32.xlu0 %v439
        %v441 = vpop.xlane.xlu0 %440
        %v442 = vsel %vm426, %v399, 0.0
        %443 = vadd.xlane.f32.xlu0 %v442
        %v444 = vpop.xlane.xlu0 %443
        %v445 = vsel %vm426, %v400, 0.0
        %446 = vadd.xlane.f32.xlu0 %v445
        %v447 = vpop.xlane.xlu0 %446
        %v448 = vsel %vm426, %v401, 0.0
        %449 = vadd.xlane.f32.xlu0 %v448
        %v450 = vpop.xlane.xlu0 %449
        %v451 = vsel %vm426, %v402, 0.0
        %452 = vadd.xlane.f32.xlu0 %v451
        %v453 = vpop.xlane.xlu0 %452
        %v454 = vsel %vm426, %v403, 0.0
        %455 = vadd.xlane.f32.xlu0 %v454
        %v456 = vpop.xlane.xlu0 %455
        %v457 = vsel %vm426, %v404, 0.0
        %458 = vadd.xlane.f32.xlu0 %v457
        %v459 = vpop.xlane.xlu0 %458
        %v460 = vsel %vm426, %v405, 0.0
        %461 = vadd.xlane.f32.xlu0 %v460
        %v462 = vpop.xlane.xlu0 %461
        %v463 = vsel %vm426, %v406, 0.0
        %464 = vadd.xlane.f32.xlu0 %v463
        %v465 = vpop.xlane.xlu0 %464
        %v466 = vsel %vm426, %v407, 0.0
        %467 = vadd.xlane.f32.xlu0 %v466
        %v468 = vpop.xlane.xlu0 %467
        %v469 = vsel %vm426, %v408, 0.0
        %470 = vadd.xlane.f32.xlu0 %v469
        %v471 = vpop.xlane.xlu0 %470
        %v472 = vsel %vm426, %v409, 0.0
        %473 = vadd.xlane.f32.xlu0 %v472
        %v474 = vpop.xlane.xlu0 %473
        %v475 = vsel %vm426, %v410, 0.0
        %476 = vadd.xlane.f32.xlu0 %v475
        %v477 = vpop.xlane.xlu0 %476
        %v478 = vsel %vm426, %v411, 0.0
        %479 = vadd.xlane.f32.xlu0 %v478
        %v480 = vpop.xlane.xlu0 %479
        %v481 = vsel %vm426, %v412, 0.0
        %482 = vadd.xlane.f32.xlu0 %v481
        %v483 = vpop.xlane.xlu0 %482
        %v484 = vsel %vm426, %v413, 0.0
        %485 = vadd.xlane.f32.xlu0 %v484
        %v486 = vpop.xlane.xlu0 %485
        %v487 = vsel %vm426, %v414, 0.0
        %488 = vadd.xlane.f32.xlu0 %v487
        %v489 = vpop.xlane.xlu0 %488
        %v490 = vsel %vm426, %v415, 0.0
        %491 = vadd.xlane.f32.xlu0 %v490
        %v492 = vpop.xlane.xlu0 %491
        %v493 = vsel %vm426, %v416, 0.0
        %494 = vadd.xlane.f32.xlu0 %v493
        %v495 = vpop.xlane.xlu0 %494
        %v496 = vsel %vm426, %v417, 0.0
        %497 = vadd.xlane.f32.xlu0 %v496
        %v498 = vpop.xlane.xlu0 %497
        %v499 = vsel %vm426, %v418, 0.0
        %500 = vadd.xlane.f32.xlu0 %v499
        %v501 = vpop.xlane.xlu0 %500
        %v502 = vsel %vm426, %v419, 0.0
        %503 = vadd.xlane.f32.xlu0 %v502
        %v504 = vpop.xlane.xlu0 %503
        %v505 = vsel %vm426, %v420, 0.0
        %506 = vadd.xlane.f32.xlu0 %v505
        %v507 = vpop.xlane.xlu0 %506
        %v508 = vsel %vm426, %v421, 0.0
        %509 = vadd.xlane.f32.xlu0 %v508
        %v510 = vpop.xlane.xlu0 %509
        %v511 = vsel %vm426, %v422, 0.0
        %512 = vadd.xlane.f32.xlu0 %v511
        %v513 = vpop.xlane.xlu0 %512
        %v514 = vsel %vm426, %v423, 0.0
        %515 = vadd.xlane.f32.xlu0 %v514
        %v516 = vpop.xlane.xlu0 %515
        %v517 = vsel %vm426, %v424, 0.0
        %518 = vadd.xlane.f32.xlu0 %v517
        %v519 = vpop.xlane.xlu0 %518
        %v520 = vsel %vm426, %v425, 0.0
        %521 = vadd.xlane.f32.xlu0 %v520
        %v522 = vpop.xlane.xlu0 %521
        %v523 = vrcp.pop 32.0
        %v524 = vmul.f32 32.0, %v523
        %v525 = vsub.f32 1.0, %v524
        %v526 = vmul.f32 %v523, %v525
        %v527 = vadd.f32 %v523, %v526
        %vm528 = vweird.f32 %v523
        %v529 = vsel %vm528, %v523, %v527
        %v530 = vmul.f32 %v429, %v529
        %v531 = vmul.f32 %v432, %v529
        %v532 = vmul.f32 %v435, %v529
        %v533 = vmul.f32 %v438, %v529
        %v534 = vmul.f32 %v441, %v529
        %v535 = vmul.f32 %v444, %v529
        %v536 = vmul.f32 %v447, %v529
        %v537 = vmul.f32 %v450, %v529
        %v538 = vmul.f32 %v453, %v529
        %v539 = vmul.f32 %v456, %v529
        %v540 = vmul.f32 %v459, %v529
        %v541 = vmul.f32 %v462, %v529
        %v542 = vmul.f32 %v465, %v529
        %v543 = vmul.f32 %v468, %v529
        %v544 = vmul.f32 %v471, %v529
        %v545 = vmul.f32 %v474, %v529
        %v546 = vmul.f32 %v477, %v529
        %v547 = vmul.f32 %v480, %v529
        %v548 = vmul.f32 %v483, %v529
        %v549 = vmul.f32 %v486, %v529
        %v550 = vmul.f32 %v489, %v529
        %v551 = vmul.f32 %v492, %v529
        %v552 = vmul.f32 %v495, %v529
        %v553 = vmul.f32 %v498, %v529
        %v554 = vmul.f32 %v501, %v529
        %v555 = vmul.f32 %v504, %v529
        %v556 = vmul.f32 %v507, %v529
        %v557 = vmul.f32 %v510, %v529
        %v558 = vmul.f32 %v513, %v529
        %v559 = vmul.f32 %v516, %v529
        %v560 = vmul.f32 %v519, %v529
        %v561 = vmul.f32 %v522, %v529
        %v562 = vsub.f32 %v394, %v530
        %v563 = vsub.f32 %v395, %v531
        %v564 = vsub.f32 %v396, %v532
        %v565 = vsub.f32 %v397, %v533
        %v566 = vsub.f32 %v398, %v534
        %v567 = vsub.f32 %v399, %v535
        %v568 = vsub.f32 %v400, %v536
        %v569 = vsub.f32 %v401, %v537
        %v570 = vsub.f32 %v402, %v538
        %v571 = vsub.f32 %v403, %v539
        %v572 = vsub.f32 %v404, %v540
        %v573 = vsub.f32 %v405, %v541
        %v574 = vsub.f32 %v406, %v542
        %v575 = vsub.f32 %v407, %v543
        %v576 = vsub.f32 %v408, %v544
        %v577 = vsub.f32 %v409, %v545
        %v578 = vsub.f32 %v410, %v546
        %v579 = vsub.f32 %v411, %v547
        %v580 = vsub.f32 %v412, %v548
        %v581 = vsub.f32 %v413, %v549
        %v582 = vsub.f32 %v414, %v550
        %v583 = vsub.f32 %v415, %v551
        %v584 = vsub.f32 %v416, %v552
        %v585 = vsub.f32 %v417, %v553
        %v586 = vsub.f32 %v418, %v554
        %v587 = vsub.f32 %v419, %v555
        %v588 = vsub.f32 %v420, %v556
        %v589 = vsub.f32 %v421, %v557
        %v590 = vsub.f32 %v422, %v558
        %v591 = vsub.f32 %v423, %v559
        %v592 = vsub.f32 %v424, %v560
        %v593 = vsub.f32 %v425, %v561
        %v594 = vmul.f32 %v562, %v562
        %v595 = vmul.f32 %v563, %v563
        %v596 = vmul.f32 %v564, %v564
        %v597 = vmul.f32 %v565, %v565
        %v598 = vmul.f32 %v566, %v566
        %v599 = vmul.f32 %v567, %v567
        %v600 = vmul.f32 %v568, %v568
        %v601 = vmul.f32 %v569, %v569
        %v602 = vmul.f32 %v570, %v570
        %v603 = vmul.f32 %v571, %v571
        %v604 = vmul.f32 %v572, %v572
        %v605 = vmul.f32 %v573, %v573
        %v606 = vmul.f32 %v574, %v574
        %v607 = vmul.f32 %v575, %v575
        %v608 = vmul.f32 %v576, %v576
        %v609 = vmul.f32 %v577, %v577
        %v610 = vmul.f32 %v578, %v578
        %v611 = vmul.f32 %v579, %v579
        %v612 = vmul.f32 %v580, %v580
        %v613 = vmul.f32 %v581, %v581
        %v614 = vmul.f32 %v582, %v582
        %v615 = vmul.f32 %v583, %v583
        %v616 = vmul.f32 %v584, %v584
        %v617 = vmul.f32 %v585, %v585
        %v618 = vmul.f32 %v586, %v586
        %v619 = vmul.f32 %v587, %v587
        %v620 = vmul.f32 %v588, %v588
        %v621 = vmul.f32 %v589, %v589
        %v622 = vmul.f32 %v590, %v590
        %v623 = vmul.f32 %v591, %v591
        %v624 = vmul.f32 %v592, %v592
        %v625 = vmul.f32 %v593, %v593
        %v626 = vsel %vm426, %v594, 0.0
        %627 = vadd.xlane.f32.xlu0 %v626
        %v628 = vpop.xlane.xlu0 %627
        %v629 = vsel %vm426, %v595, 0.0
        %630 = vadd.xlane.f32.xlu0 %v629
        %v631 = vpop.xlane.xlu0 %630
        %v632 = vsel %vm426, %v596, 0.0
        %633 = vadd.xlane.f32.xlu0 %v632
        %v634 = vpop.xlane.xlu0 %633
        %v635 = vsel %vm426, %v597, 0.0
        %636 = vadd.xlane.f32.xlu0 %v635
        %v637 = vpop.xlane.xlu0 %636
        %v638 = vsel %vm426, %v598, 0.0
        %639 = vadd.xlane.f32.xlu0 %v638
        %v640 = vpop.xlane.xlu0 %639
        %v641 = vsel %vm426, %v599, 0.0
        %642 = vadd.xlane.f32.xlu0 %v641
        %v643 = vpop.xlane.xlu0 %642
        %v644 = vsel %vm426, %v600, 0.0
        %645 = vadd.xlane.f32.xlu0 %v644
        %v646 = vpop.xlane.xlu0 %645
        %v647 = vsel %vm426, %v601, 0.0
        %648 = vadd.xlane.f32.xlu0 %v647
        %v649 = vpop.xlane.xlu0 %648
        %v650 = vsel %vm426, %v602, 0.0
        %651 = vadd.xlane.f32.xlu0 %v650
        %v652 = vpop.xlane.xlu0 %651
        %v653 = vsel %vm426, %v603, 0.0
        %654 = vadd.xlane.f32.xlu0 %v653
        %v655 = vpop.xlane.xlu0 %654
        %v656 = vsel %vm426, %v604, 0.0
        %657 = vadd.xlane.f32.xlu0 %v656
        %v658 = vpop.xlane.xlu0 %657
        %v659 = vsel %vm426, %v605, 0.0
        %660 = vadd.xlane.f32.xlu0 %v659
        %v661 = vpop.xlane.xlu0 %660
        %v662 = vsel %vm426, %v606, 0.0
        %663 = vadd.xlane.f32.xlu0 %v662
        %v664 = vpop.xlane.xlu0 %663
        %v665 = vsel %vm426, %v607, 0.0
        %666 = vadd.xlane.f32.xlu0 %v665
        %v667 = vpop.xlane.xlu0 %666
        %v668 = vsel %vm426, %v608, 0.0
        %669 = vadd.xlane.f32.xlu0 %v668
        %v670 = vpop.xlane.xlu0 %669
        %v671 = vsel %vm426, %v609, 0.0
        %672 = vadd.xlane.f32.xlu0 %v671
        %v673 = vpop.xlane.xlu0 %672
        %v674 = vsel %vm426, %v610, 0.0
        %675 = vadd.xlane.f32.xlu0 %v674
        %v676 = vpop.xlane.xlu0 %675
        %v677 = vsel %vm426, %v611, 0.0
        %678 = vadd.xlane.f32.xlu0 %v677
        %v679 = vpop.xlane.xlu0 %678
        %v680 = vsel %vm426, %v612, 0.0
        %681 = vadd.xlane.f32.xlu0 %v680
        %v682 = vpop.xlane.xlu0 %681
        %v683 = vsel %vm426, %v613, 0.0
        %684 = vadd.xlane.f32.xlu0 %v683
        %v685 = vpop.xlane.xlu0 %684
        %v686 = vsel %vm426, %v614, 0.0
        %687 = vadd.xlane.f32.xlu0 %v686
        %v688 = vpop.xlane.xlu0 %687
        %v689 = vsel %vm426, %v615, 0.0
        %690 = vadd.xlane.f32.xlu0 %v689
        %v691 = vpop.xlane.xlu0 %690
        %v692 = vsel %vm426, %v616, 0.0
        %693 = vadd.xlane.f32.xlu0 %v692
        %v694 = vpop.xlane.xlu0 %693
        %v695 = vsel %vm426, %v617, 0.0
        %696 = vadd.xlane.f32.xlu0 %v695
        %v697 = vpop.xlane.xlu0 %696
        %v698 = vsel %vm426, %v618, 0.0
        %699 = vadd.xlane.f32.xlu0 %v698
        %v700 = vpop.xlane.xlu0 %699
        %v701 = vsel %vm426, %v619, 0.0
        %702 = vadd.xlane.f32.xlu0 %v701
        %v703 = vpop.xlane.xlu0 %702
        %v704 = vsel %vm426, %v620, 0.0
        %705 = vadd.xlane.f32.xlu0 %v704
        %v706 = vpop.xlane.xlu0 %705
        %v707 = vsel %vm426, %v621, 0.0
        %708 = vadd.xlane.f32.xlu0 %v707
        %v709 = vpop.xlane.xlu0 %708
        %v710 = vsel %vm426, %v622, 0.0
        %711 = vadd.xlane.f32.xlu0 %v710
        %v712 = vpop.xlane.xlu0 %711
        %v713 = vsel %vm426, %v623, 0.0
        %714 = vadd.xlane.f32.xlu0 %v713
        %v715 = vpop.xlane.xlu0 %714
        %v716 = vsel %vm426, %v624, 0.0
        %717 = vadd.xlane.f32.xlu0 %v716
        %v718 = vpop.xlane.xlu0 %717
        %v719 = vsel %vm426, %v625, 0.0
        %720 = vadd.xlane.f32.xlu0 %v719
        %v721 = vpop.xlane.xlu0 %720
        %v722 = vmul.f32 %v628, %v529
        %v723 = vmul.f32 %v631, %v529
        %v724 = vmul.f32 %v634, %v529
        %v725 = vmul.f32 %v637, %v529
        %v726 = vmul.f32 %v640, %v529
        %v727 = vmul.f32 %v643, %v529
        %v728 = vmul.f32 %v646, %v529
        %v729 = vmul.f32 %v649, %v529
        %v730 = vmul.f32 %v652, %v529
        %v731 = vmul.f32 %v655, %v529
        %v732 = vmul.f32 %v658, %v529
        %v733 = vmul.f32 %v661, %v529
        %v734 = vmul.f32 %v664, %v529
        %v735 = vmul.f32 %v667, %v529
        %v736 = vmul.f32 %v670, %v529
        %v737 = vmul.f32 %v673, %v529
        %v738 = vmul.f32 %v676, %v529
        %v739 = vmul.f32 %v679, %v529
        %v740 = vmul.f32 %v682, %v529
        %v741 = vmul.f32 %v685, %v529
        %v742 = vmul.f32 %v688, %v529
        %v743 = vmul.f32 %v691, %v529
        %v744 = vmul.f32 %v694, %v529
        %v745 = vmul.f32 %v697, %v529
        %v746 = vmul.f32 %v700, %v529
        %v747 = vmul.f32 %v703, %v529
        %v748 = vmul.f32 %v706, %v529
        %v749 = vmul.f32 %v709, %v529
        %v750 = vmul.f32 %v712, %v529
        %v751 = vmul.f32 %v715, %v529
        %v752 = vmul.f32 %v718, %v529
        %v753 = vmul.f32 %v721, %v529
        %v754 = vadd.f32 %v722, 1e-05
        %v755 = vadd.f32 %v723, 1e-05
        %v756 = vadd.f32 %v724, 1e-05
        %v757 = vadd.f32 %v725, 1e-05
        %v758 = vadd.f32 %v726, 1e-05
        %v759 = vadd.f32 %v727, 1e-05
        %v760 = vadd.f32 %v728, 1e-05
        %v761 = vadd.f32 %v729, 1e-05
        %v762 = vadd.f32 %v730, 1e-05
        %v763 = vadd.f32 %v731, 1e-05
        %v764 = vadd.f32 %v732, 1e-05
        %v765 = vadd.f32 %v733, 1e-05
        %v766 = vadd.f32 %v734, 1e-05
        %v767 = vadd.f32 %v735, 1e-05
        %v768 = vadd.f32 %v736, 1e-05
        %v769 = vadd.f32 %v737, 1e-05
        %v770 = vadd.f32 %v738, 1e-05
        %v771 = vadd.f32 %v739, 1e-05
        %v772 = vadd.f32 %v740, 1e-05
        %v773 = vadd.f32 %v741, 1e-05
        %v774 = vadd.f32 %v742, 1e-05
        %v775 = vadd.f32 %v743, 1e-05
        %v776 = vadd.f32 %v744, 1e-05
        %v777 = vadd.f32 %v745, 1e-05
        %v778 = vadd.f32 %v746, 1e-05
        %v779 = vadd.f32 %v747, 1e-05
        %v780 = vadd.f32 %v748, 1e-05
        %v781 = vadd.f32 %v749, 1e-05
        %v782 = vadd.f32 %v750, 1e-05
        %v783 = vadd.f32 %v751, 1e-05
        %v784 = vadd.f32 %v752, 1e-05
        %v785 = vadd.f32 %v753, 1e-05
        %v786 = vrsqrt.pop %v754
        %v787 = vmul.f32 %v786, %v754
        %v788 = vmul.f32 %v787, %v786
        %v789 = vmul.f32 0.5, %v788
        %v790 = vsub.f32 1.5, %v789
        %v791 = vmul.f32 %v786, %v790
        %vm792 = vweird.f32 %v754
        %vm793 = vweird.f32 %v786
        %vm794 = vmor %vm792, %vm793
        %v795 = vsel %vm794, %v786, %v791
        %v796 = vrsqrt.pop %v755
        %v797 = vmul.f32 %v796, %v755
        %v798 = vmul.f32 %v797, %v796
        %v799 = vmul.f32 0.5, %v798
        %v800 = vsub.f32 1.5, %v799
        %v801 = vmul.f32 %v796, %v800
        %vm802 = vweird.f32 %v755
        %vm803 = vweird.f32 %v796
        %vm804 = vmor %vm802, %vm803
        %v805 = vsel %vm804, %v796, %v801
        %v806 = vrsqrt.pop %v756
        %v807 = vmul.f32 %v806, %v756
        %v808 = vmul.f32 %v807, %v806
        %v809 = vmul.f32 0.5, %v808
        %v810 = vsub.f32 1.5, %v809
        %v811 = vmul.f32 %v806, %v810
        %vm812 = vweird.f32 %v756
        %vm813 = vweird.f32 %v806
        %vm814 = vmor %vm812, %vm813
        %v815 = vsel %vm814, %v806, %v811
        %v816 = vrsqrt.pop %v757
        %v817 = vmul.f32 %v816, %v757
        %v818 = vmul.f32 %v817, %v816
        %v819 = vmul.f32 0.5, %v818
        %v820 = vsub.f32 1.5, %v819
        %v821 = vmul.f32 %v816, %v820
        %vm822 = vweird.f32 %v757
        %vm823 = vweird.f32 %v816
        %vm824 = vmor %vm822, %vm823
        %v825 = vsel %vm824, %v816, %v821
        %v826 = vrsqrt.pop %v758
        %v827 = vmul.f32 %v826, %v758
        %v828 = vmul.f32 %v827, %v826
        %v829 = vmul.f32 0.5, %v828
        %v830 = vsub.f32 1.5, %v829
        %v831 = vmul.f32 %v826, %v830
        %vm832 = vweird.f32 %v758
        %vm833 = vweird.f32 %v826
        %vm834 = vmor %vm832, %vm833
        %v835 = vsel %vm834, %v826, %v831
        %v836 = vrsqrt.pop %v759
        %v837 = vmul.f32 %v836, %v759
        %v838 = vmul.f32 %v837, %v836
        %v839 = vmul.f32 0.5, %v838
        %v840 = vsub.f32 1.5, %v839
        %v841 = vmul.f32 %v836, %v840
        %vm842 = vweird.f32 %v759
        %vm843 = vweird.f32 %v836
        %vm844 = vmor %vm842, %vm843
        %v845 = vsel %vm844, %v836, %v841
        %v846 = vrsqrt.pop %v760
        %v847 = vmul.f32 %v846, %v760
        %v848 = vmul.f32 %v847, %v846
        %v849 = vmul.f32 0.5, %v848
        %v850 = vsub.f32 1.5, %v849
        %v851 = vmul.f32 %v846, %v850
        %vm852 = vweird.f32 %v760
        %vm853 = vweird.f32 %v846
        %vm854 = vmor %vm852, %vm853
        %v855 = vsel %vm854, %v846, %v851
        %v856 = vrsqrt.pop %v761
        %v857 = vmul.f32 %v856, %v761
        %v858 = vmul.f32 %v857, %v856
        %v859 = vmul.f32 0.5, %v858
        %v860 = vsub.f32 1.5, %v859
        %v861 = vmul.f32 %v856, %v860
        %vm862 = vweird.f32 %v761
        %vm863 = vweird.f32 %v856
        %vm864 = vmor %vm862, %vm863
        %v865 = vsel %vm864, %v856, %v861
        %v866 = vrsqrt.pop %v762
        %v867 = vmul.f32 %v866, %v762
        %v868 = vmul.f32 %v867, %v866
        %v869 = vmul.f32 0.5, %v868
        %v870 = vsub.f32 1.5, %v869
        %v871 = vmul.f32 %v866, %v870
        %vm872 = vweird.f32 %v762
        %vm873 = vweird.f32 %v866
        %vm874 = vmor %vm872, %vm873
        %v875 = vsel %vm874, %v866, %v871
        %v876 = vrsqrt.pop %v763
        %v877 = vmul.f32 %v876, %v763
        %v878 = vmul.f32 %v877, %v876
        %v879 = vmul.f32 0.5, %v878
        %v880 = vsub.f32 1.5, %v879
        %v881 = vmul.f32 %v876, %v880
        %vm882 = vweird.f32 %v763
        %vm883 = vweird.f32 %v876
        %vm884 = vmor %vm882, %vm883
        %v885 = vsel %vm884, %v876, %v881
        %v886 = vrsqrt.pop %v764
        %v887 = vmul.f32 %v886, %v764
        %v888 = vmul.f32 %v887, %v886
        %v889 = vmul.f32 0.5, %v888
        %v890 = vsub.f32 1.5, %v889
        %v891 = vmul.f32 %v886, %v890
        %vm892 = vweird.f32 %v764
        %vm893 = vweird.f32 %v886
        %vm894 = vmor %vm892, %vm893
        %v895 = vsel %vm894, %v886, %v891
        %v896 = vrsqrt.pop %v765
        %v897 = vmul.f32 %v896, %v765
        %v898 = vmul.f32 %v897, %v896
        %v899 = vmul.f32 0.5, %v898
        %v900 = vsub.f32 1.5, %v899
        %v901 = vmul.f32 %v896, %v900
        %vm902 = vweird.f32 %v765
        %vm903 = vweird.f32 %v896
        %vm904 = vmor %vm902, %vm903
        %v905 = vsel %vm904, %v896, %v901
        %v906 = vrsqrt.pop %v766
        %v907 = vmul.f32 %v906, %v766
        %v908 = vmul.f32 %v907, %v906
        %v909 = vmul.f32 0.5, %v908
        %v910 = vsub.f32 1.5, %v909
        %v911 = vmul.f32 %v906, %v910
        %vm912 = vweird.f32 %v766
        %vm913 = vweird.f32 %v906
        %vm914 = vmor %vm912, %vm913
        %v915 = vsel %vm914, %v906, %v911
        %v916 = vrsqrt.pop %v767
        %v917 = vmul.f32 %v916, %v767
        %v918 = vmul.f32 %v917, %v916
        %v919 = vmul.f32 0.5, %v918
        %v920 = vsub.f32 1.5, %v919
        %v921 = vmul.f32 %v916, %v920
        %vm922 = vweird.f32 %v767
        %vm923 = vweird.f32 %v916
        %vm924 = vmor %vm922, %vm923
        %v925 = vsel %vm924, %v916, %v921
        %v926 = vrsqrt.pop %v768
        %v927 = vmul.f32 %v926, %v768
        %v928 = vmul.f32 %v927, %v926
        %v929 = vmul.f32 0.5, %v928
        %v930 = vsub.f32 1.5, %v929
        %v931 = vmul.f32 %v926, %v930
        %vm932 = vweird.f32 %v768
        %vm933 = vweird.f32 %v926
        %vm934 = vmor %vm932, %vm933
        %v935 = vsel %vm934, %v926, %v931
        %v936 = vrsqrt.pop %v769
        %v937 = vmul.f32 %v936, %v769
        %v938 = vmul.f32 %v937, %v936
        %v939 = vmul.f32 0.5, %v938
        %v940 = vsub.f32 1.5, %v939
        %v941 = vmul.f32 %v936, %v940
        %vm942 = vweird.f32 %v769
        %vm943 = vweird.f32 %v936
        %vm944 = vmor %vm942, %vm943
        %v945 = vsel %vm944, %v936, %v941
        %v946 = vrsqrt.pop %v770
        %v947 = vmul.f32 %v946, %v770
        %v948 = vmul.f32 %v947, %v946
        %v949 = vmul.f32 0.5, %v948
        %v950 = vsub.f32 1.5, %v949
        %v951 = vmul.f32 %v946, %v950
        %vm952 = vweird.f32 %v770
        %vm953 = vweird.f32 %v946
        %vm954 = vmor %vm952, %vm953
        %v955 = vsel %vm954, %v946, %v951
        %v956 = vrsqrt.pop %v771
        %v957 = vmul.f32 %v956, %v771
        %v958 = vmul.f32 %v957, %v956
        %v959 = vmul.f32 0.5, %v958
        %v960 = vsub.f32 1.5, %v959
        %v961 = vmul.f32 %v956, %v960
        %vm962 = vweird.f32 %v771
        %vm963 = vweird.f32 %v956
        %vm964 = vmor %vm962, %vm963
        %v965 = vsel %vm964, %v956, %v961
        %v966 = vrsqrt.pop %v772
        %v967 = vmul.f32 %v966, %v772
        %v968 = vmul.f32 %v967, %v966
        %v969 = vmul.f32 0.5, %v968
        %v970 = vsub.f32 1.5, %v969
        %v971 = vmul.f32 %v966, %v970
        %vm972 = vweird.f32 %v772
        %vm973 = vweird.f32 %v966
        %vm974 = vmor %vm972, %vm973
        %v975 = vsel %vm974, %v966, %v971
        %v976 = vrsqrt.pop %v773
        %v977 = vmul.f32 %v976, %v773
        %v978 = vmul.f32 %v977, %v976
        %v979 = vmul.f32 0.5, %v978
        %v980 = vsub.f32 1.5, %v979
        %v981 = vmul.f32 %v976, %v980
        %vm982 = vweird.f32 %v773
        %vm983 = vweird.f32 %v976
        %vm984 = vmor %vm982, %vm983
        %v985 = vsel %vm984, %v976, %v981
        %v986 = vrsqrt.pop %v774
        %v987 = vmul.f32 %v986, %v774
        %v988 = vmul.f32 %v987, %v986
        %v989 = vmul.f32 0.5, %v988
        %v990 = vsub.f32 1.5, %v989
        %v991 = vmul.f32 %v986, %v990
        %vm992 = vweird.f32 %v774
        %vm993 = vweird.f32 %v986
        %vm994 = vmor %vm992, %vm993
        %v995 = vsel %vm994, %v986, %v991
        %v996 = vrsqrt.pop %v775
        %v997 = vmul.f32 %v996, %v775
        %v998 = vmul.f32 %v997, %v996
        %v999 = vmul.f32 0.5, %v998
        %v1000 = vsub.f32 1.5, %v999
        %v1001 = vmul.f32 %v996, %v1000
        %vm1002 = vweird.f32 %v775
        %vm1003 = vweird.f32 %v996
        %vm1004 = vmor %vm1002, %vm1003
        %v1005 = vsel %vm1004, %v996, %v1001
        %v1006 = vrsqrt.pop %v776
        %v1007 = vmul.f32 %v1006, %v776
        %v1008 = vmul.f32 %v1007, %v1006
        %v1009 = vmul.f32 0.5, %v1008
        %v1010 = vsub.f32 1.5, %v1009
        %v1011 = vmul.f32 %v1006, %v1010
        %vm1012 = vweird.f32 %v776
        %vm1013 = vweird.f32 %v1006
        %vm1014 = vmor %vm1012, %vm1013
        %v1015 = vsel %vm1014, %v1006, %v1011
        %v1016 = vrsqrt.pop %v777
        %v1017 = vmul.f32 %v1016, %v777
        %v1018 = vmul.f32 %v1017, %v1016
        %v1019 = vmul.f32 0.5, %v1018
        %v1020 = vsub.f32 1.5, %v1019
        %v1021 = vmul.f32 %v1016, %v1020
        %vm1022 = vweird.f32 %v777
        %vm1023 = vweird.f32 %v1016
        %vm1024 = vmor %vm1022, %vm1023
        %v1025 = vsel %vm1024, %v1016, %v1021
        %v1026 = vrsqrt.pop %v778
        %v1027 = vmul.f32 %v1026, %v778
        %v1028 = vmul.f32 %v1027, %v1026
        %v1029 = vmul.f32 0.5, %v1028
        %v1030 = vsub.f32 1.5, %v1029
        %v1031 = vmul.f32 %v1026, %v1030
        %vm1032 = vweird.f32 %v778
        %vm1033 = vweird.f32 %v1026
        %vm1034 = vmor %vm1032, %vm1033
        %v1035 = vsel %vm1034, %v1026, %v1031
        %v1036 = vrsqrt.pop %v779
        %v1037 = vmul.f32 %v1036, %v779
        %v1038 = vmul.f32 %v1037, %v1036
        %v1039 = vmul.f32 0.5, %v1038
        %v1040 = vsub.f32 1.5, %v1039
        %v1041 = vmul.f32 %v1036, %v1040
        %vm1042 = vweird.f32 %v779
        %vm1043 = vweird.f32 %v1036
        %vm1044 = vmor %vm1042, %vm1043
        %v1045 = vsel %vm1044, %v1036, %v1041
        %v1046 = vrsqrt.pop %v780
        %v1047 = vmul.f32 %v1046, %v780
        %v1048 = vmul.f32 %v1047, %v1046
        %v1049 = vmul.f32 0.5, %v1048
        %v1050 = vsub.f32 1.5, %v1049
        %v1051 = vmul.f32 %v1046, %v1050
        %vm1052 = vweird.f32 %v780
        %vm1053 = vweird.f32 %v1046
        %vm1054 = vmor %vm1052, %vm1053
        %v1055 = vsel %vm1054, %v1046, %v1051
        %v1056 = vrsqrt.pop %v781
        %v1057 = vmul.f32 %v1056, %v781
        %v1058 = vmul.f32 %v1057, %v1056
        %v1059 = vmul.f32 0.5, %v1058
        %v1060 = vsub.f32 1.5, %v1059
        %v1061 = vmul.f32 %v1056, %v1060
        %vm1062 = vweird.f32 %v781
        %vm1063 = vweird.f32 %v1056
        %vm1064 = vmor %vm1062, %vm1063
        %v1065 = vsel %vm1064, %v1056, %v1061
        %v1066 = vrsqrt.pop %v782
        %v1067 = vmul.f32 %v1066, %v782
        %v1068 = vmul.f32 %v1067, %v1066
        %v1069 = vmul.f32 0.5, %v1068
        %v1070 = vsub.f32 1.5, %v1069
        %v1071 = vmul.f32 %v1066, %v1070
        %vm1072 = vweird.f32 %v782
        %vm1073 = vweird.f32 %v1066
        %vm1074 = vmor %vm1072, %vm1073
        %v1075 = vsel %vm1074, %v1066, %v1071
        %v1076 = vrsqrt.pop %v783
        %v1077 = vmul.f32 %v1076, %v783
        %v1078 = vmul.f32 %v1077, %v1076
        %v1079 = vmul.f32 0.5, %v1078
        %v1080 = vsub.f32 1.5, %v1079
        %v1081 = vmul.f32 %v1076, %v1080
        %vm1082 = vweird.f32 %v783
        %vm1083 = vweird.f32 %v1076
        %vm1084 = vmor %vm1082, %vm1083
        %v1085 = vsel %vm1084, %v1076, %v1081
        %v1086 = vrsqrt.pop %v784
        %v1087 = vmul.f32 %v1086, %v784
        %v1088 = vmul.f32 %v1087, %v1086
        %v1089 = vmul.f32 0.5, %v1088
        %v1090 = vsub.f32 1.5, %v1089
        %v1091 = vmul.f32 %v1086, %v1090
        %vm1092 = vweird.f32 %v784
        %vm1093 = vweird.f32 %v1086
        %vm1094 = vmor %vm1092, %vm1093
        %v1095 = vsel %vm1094, %v1086, %v1091
        %v1096 = vrsqrt.pop %v785
        %v1097 = vmul.f32 %v1096, %v785
        %v1098 = vmul.f32 %v1097, %v1096
        %v1099 = vmul.f32 0.5, %v1098
        %v1100 = vsub.f32 1.5, %v1099
        %v1101 = vmul.f32 %v1096, %v1100
        %vm1102 = vweird.f32 %v785
        %vm1103 = vweird.f32 %v1096
        %vm1104 = vmor %vm1102, %vm1103
        %v1105 = vsel %vm1104, %v1096, %v1101
        %v1106 = vmul.f32 %v562, %v795
        %v1107 = vmul.f32 %v563, %v805
        %v1108 = vmul.f32 %v564, %v815
        %v1109 = vmul.f32 %v565, %v825
        %v1110 = vmul.f32 %v566, %v835
        %v1111 = vmul.f32 %v567, %v845
        %v1112 = vmul.f32 %v568, %v855
        %v1113 = vmul.f32 %v569, %v865
        %v1114 = vmul.f32 %v570, %v875
        %v1115 = vmul.f32 %v571, %v885
        %v1116 = vmul.f32 %v572, %v895
        %v1117 = vmul.f32 %v573, %v905
        %v1118 = vmul.f32 %v574, %v915
        %v1119 = vmul.f32 %v575, %v925
        %v1120 = vmul.f32 %v576, %v935
        %v1121 = vmul.f32 %v577, %v945
        %v1122 = vmul.f32 %v578, %v955
        %v1123 = vmul.f32 %v579, %v965
        %v1124 = vmul.f32 %v580, %v975
        %v1125 = vmul.f32 %v581, %v985
        %v1126 = vmul.f32 %v582, %v995
        %v1127 = vmul.f32 %v583, %v1005
        %v1128 = vmul.f32 %v584, %v1015
        %v1129 = vmul.f32 %v585, %v1025
        %v1130 = vmul.f32 %v586, %v1035
        %v1131 = vmul.f32 %v587, %v1045
        %v1132 = vmul.f32 %v588, %v1055
        %v1133 = vmul.f32 %v589, %v1065
        %v1134 = vmul.f32 %v590, %v1075
        %v1135 = vmul.f32 %v591, %v1085
        %v1136 = vmul.f32 %v592, %v1095
        %v1137 = vmul.f32 %v593, %v1105
        %v1138 = vld [vmem:[%s2] sm:$0x1]
        %v1140 = vperm.slane %v1138, 0
        %v1142 = vmul.f32 %v1106, %v1140
        %v1143 = vmul.f32 %v1107, %v1140
        %v1144 = vmul.f32 %v1108, %v1140
        %v1145 = vmul.f32 %v1109, %v1140
        %v1146 = vmul.f32 %v1110, %v1140
        %v1147 = vmul.f32 %v1111, %v1140
        %v1148 = vmul.f32 %v1112, %v1140
        %v1149 = vmul.f32 %v1113, %v1140
        %v1150 = vmul.f32 %v1114, %v1140
        %v1151 = vmul.f32 %v1115, %v1140
        %v1152 = vmul.f32 %v1116, %v1140
        %v1153 = vmul.f32 %v1117, %v1140
        %v1154 = vmul.f32 %v1118, %v1140
        %v1155 = vmul.f32 %v1119, %v1140
        %v1156 = vmul.f32 %v1120, %v1140
        %v1157 = vmul.f32 %v1121, %v1140
        %v1158 = vmul.f32 %v1122, %v1140
        %v1159 = vmul.f32 %v1123, %v1140
        %v1160 = vmul.f32 %v1124, %v1140
        %v1161 = vmul.f32 %v1125, %v1140
        %v1162 = vmul.f32 %v1126, %v1140
        %v1163 = vmul.f32 %v1127, %v1140
        %v1164 = vmul.f32 %v1128, %v1140
        %v1165 = vmul.f32 %v1129, %v1140
        %v1166 = vmul.f32 %v1130, %v1140
        %v1167 = vmul.f32 %v1131, %v1140
        %v1168 = vmul.f32 %v1132, %v1140
        %v1169 = vmul.f32 %v1133, %v1140
        %v1170 = vmul.f32 %v1134, %v1140
        %v1171 = vmul.f32 %v1135, %v1140
        %v1172 = vmul.f32 %v1136, %v1140
        %v1173 = vmul.f32 %v1137, %v1140
        %v1174 = vld [vmem:[%s3] sm:$0x1]
        %v1176 = vperm.slane %v1174, 0
        %v1178 = vadd.f32 %v1142, %v1176
        %v1179 = vadd.f32 %v1143, %v1176
        %v1180 = vadd.f32 %v1144, %v1176
        %v1181 = vadd.f32 %v1145, %v1176
        %v1182 = vadd.f32 %v1146, %v1176
        %v1183 = vadd.f32 %v1147, %v1176
        %v1184 = vadd.f32 %v1148, %v1176
        %v1185 = vadd.f32 %v1149, %v1176
        %v1186 = vadd.f32 %v1150, %v1176
        %v1187 = vadd.f32 %v1151, %v1176
        %v1188 = vadd.f32 %v1152, %v1176
        %v1189 = vadd.f32 %v1153, %v1176
        %v1190 = vadd.f32 %v1154, %v1176
        %v1191 = vadd.f32 %v1155, %v1176
        %v1192 = vadd.f32 %v1156, %v1176
        %v1193 = vadd.f32 %v1157, %v1176
        %v1194 = vadd.f32 %v1158, %v1176
        %v1195 = vadd.f32 %v1159, %v1176
        %v1196 = vadd.f32 %v1160, %v1176
        %v1197 = vadd.f32 %v1161, %v1176
        %v1198 = vadd.f32 %v1162, %v1176
        %v1199 = vadd.f32 %v1163, %v1176
        %v1200 = vadd.f32 %v1164, %v1176
        %v1201 = vadd.f32 %v1165, %v1176
        %v1202 = vadd.f32 %v1166, %v1176
        %v1203 = vadd.f32 %v1167, %v1176
        %v1204 = vadd.f32 %v1168, %v1176
        %v1205 = vadd.f32 %v1169, %v1176
        %v1206 = vadd.f32 %v1170, %v1176
        %v1207 = vadd.f32 %v1171, %v1176
        %v1208 = vadd.f32 %v1172, %v1176
        %v1209 = vadd.f32 %v1173, %v1176
        %v1210 = vpack.c.bf16 %v1179, %v1178
        %v1211 = vpack.c.bf16 %v1181, %v1180
        %v1212 = vpack.c.bf16 %v1183, %v1182
        %v1213 = vpack.c.bf16 %v1185, %v1184
        %v1214 = vpack.c.bf16 %v1187, %v1186
        %v1215 = vpack.c.bf16 %v1189, %v1188
        %v1216 = vpack.c.bf16 %v1191, %v1190
        %v1217 = vpack.c.bf16 %v1193, %v1192
        %v1218 = vpack.c.bf16 %v1195, %v1194
        %v1219 = vpack.c.bf16 %v1197, %v1196
        %v1220 = vpack.c.bf16 %v1199, %v1198
        %v1221 = vpack.c.bf16 %v1201, %v1200
        %v1222 = vpack.c.bf16 %v1203, %v1202
        %v1223 = vpack.c.bf16 %v1205, %v1204
        %v1224 = vpack.c.bf16 %v1207, %v1206
        %v1225 = vpack.c.bf16 %v1209, %v1208
        %v1226 = vld [vmem:[%s4] sm:$0xf]
        %v1227 = vld [vmem:[%s4 + $0x4] sm:$0xf]
        %v1228 = vld [vmem:[%s4 + $0x8] sm:$0xf]
        %v1229 = vld [vmem:[%s4 + $0xc] sm:$0xf]
        %v1230 = vld [vmem:[%s5] sm:$0x1]
        %v1232 = vperm.slane %v1230, 0
        %v1238 = vunpack.c.l.b16 %v1226
        %v1239 = vunpack.c.l.b16 %v1227
        %v1240 = vunpack.c.l.b16 %v1228
        %v1241 = vunpack.c.l.b16 %v1229
        %v1242 = vpack.c.b16 %v1239, %v1238
        %v1243 = vpack.c.b16 %v1241, %v1240
        %v1247 = vsel %vm426, %v1210, 0
        %v1250 = vsel %vm426, %v1211, 0
        %v1253 = vsel %vm426, %v1212, 0
        %v1256 = vsel %vm426, %v1213, 0
        %v1259 = vsel %vm426, %v1214, 0
        %v1262 = vsel %vm426, %v1215, 0
        %v1265 = vsel %vm426, %v1216, 0
        %v1268 = vsel %vm426, %v1217, 0
        %v1271 = vsel %vm426, %v1218, 0
        %v1274 = vsel %vm426, %v1219, 0
        %v1277 = vsel %vm426, %v1220, 0
        %v1280 = vsel %vm426, %v1221, 0
        %v1283 = vsel %vm426, %v1222, 0
        %v1286 = vsel %vm426, %v1223, 0
        %v1289 = vsel %vm426, %v1224, 0
        %v1292 = vsel %vm426, %v1225, 0
        %1294 = vmatpush.bf16.msra.mxu0 0
        %1295 = vmatpush.bf16.msra.mxu0 0
        %1296 = vmatpush.bf16.msra.mxu0 0
        %1297 = vmatpush.bf16.msra.mxu0 0
        %1298 = vmatpush.bf16.msra.mxu0 0
        %1299 = vmatpush.bf16.msra.mxu0 0
        %1300 = vmatpush.bf16.msra.mxu0 %v1243
        %1301 = vmatpush.bf16.msra.mxu0 %v1242
        %1302 = vmatmul.bf16.gmra.mxu0 %v1247
        %v1303 = vpop.f32.mrf.mxu0
        %v1304 = vadd.f32 %v1232, %v1303
        %v1305 = vpop.f32.mrf.mxu0
        %v1306 = vadd.f32 %v1232, %v1305
        %1307 = vmatmul.bf16.gmra.mxu0 %v1250
        %v1308 = vpop.f32.mrf.mxu0
        %v1309 = vadd.f32 %v1232, %v1308
        %v1310 = vpop.f32.mrf.mxu0
        %v1311 = vadd.f32 %v1232, %v1310
        %1312 = vmatmul.bf16.gmra.mxu0 %v1253
        %v1313 = vpop.f32.mrf.mxu0
        %v1314 = vadd.f32 %v1232, %v1313
        %v1315 = vpop.f32.mrf.mxu0
        %v1316 = vadd.f32 %v1232, %v1315
        %1317 = vmatmul.bf16.gmra.mxu0 %v1256
        %v1318 = vpop.f32.mrf.mxu0
        %v1319 = vadd.f32 %v1232, %v1318
        %v1320 = vpop.f32.mrf.mxu0
        %v1321 = vadd.f32 %v1232, %v1320
        %1322 = vmatmul.bf16.gmra.mxu0 %v1259
        %v1323 = vpop.f32.mrf.mxu0
        %v1324 = vadd.f32 %v1232, %v1323
        %v1325 = vpop.f32.mrf.mxu0
        %v1326 = vadd.f32 %v1232, %v1325
        %1327 = vmatmul.bf16.gmra.mxu0 %v1262
        %v1328 = vpop.f32.mrf.mxu0
        %v1329 = vadd.f32 %v1232, %v1328
        %v1330 = vpop.f32.mrf.mxu0
        %v1331 = vadd.f32 %v1232, %v1330
        %1332 = vmatmul.bf16.gmra.mxu0 %v1265
        %v1333 = vpop.f32.mrf.mxu0
        %v1334 = vadd.f32 %v1232, %v1333
        %v1335 = vpop.f32.mrf.mxu0
        %v1336 = vadd.f32 %v1232, %v1335
        %1337 = vmatmul.bf16.gmra.mxu0 %v1268
        %v1338 = vpop.f32.mrf.mxu0
        %v1339 = vadd.f32 %v1232, %v1338
        %v1340 = vpop.f32.mrf.mxu0
        %v1341 = vadd.f32 %v1232, %v1340
        %1342 = vmatmul.bf16.gmra.mxu0 %v1271
        %v1343 = vpop.f32.mrf.mxu0
        %v1344 = vadd.f32 %v1232, %v1343
        %v1345 = vpop.f32.mrf.mxu0
        %v1346 = vadd.f32 %v1232, %v1345
        %1347 = vmatmul.bf16.gmra.mxu0 %v1274
        %v1348 = vpop.f32.mrf.mxu0
        %v1349 = vadd.f32 %v1232, %v1348
        %v1350 = vpop.f32.mrf.mxu0
        %v1351 = vadd.f32 %v1232, %v1350
        %1352 = vmatmul.bf16.gmra.mxu0 %v1277
        %v1353 = vpop.f32.mrf.mxu0
        %v1354 = vadd.f32 %v1232, %v1353
        %v1355 = vpop.f32.mrf.mxu0
        %v1356 = vadd.f32 %v1232, %v1355
        %1357 = vmatmul.bf16.gmra.mxu0 %v1280
        %v1358 = vpop.f32.mrf.mxu0
        %v1359 = vadd.f32 %v1232, %v1358
        %v1360 = vpop.f32.mrf.mxu0
        %v1361 = vadd.f32 %v1232, %v1360
        %1362 = vmatmul.bf16.gmra.mxu0 %v1283
        %v1363 = vpop.f32.mrf.mxu0
        %v1364 = vadd.f32 %v1232, %v1363
        %v1365 = vpop.f32.mrf.mxu0
        %v1366 = vadd.f32 %v1232, %v1365
        %1367 = vmatmul.bf16.gmra.mxu0 %v1286
        %v1368 = vpop.f32.mrf.mxu0
        %v1369 = vadd.f32 %v1232, %v1368
        %v1370 = vpop.f32.mrf.mxu0
        %v1371 = vadd.f32 %v1232, %v1370
        %1372 = vmatmul.bf16.gmra.mxu0 %v1289
        %v1373 = vpop.f32.mrf.mxu0
        %v1374 = vadd.f32 %v1232, %v1373
        %v1375 = vpop.f32.mrf.mxu0
        %v1376 = vadd.f32 %v1232, %v1375
        %1377 = vmatmul.bf16.gmra.mxu0 %v1292
        %v1378 = vpop.f32.mrf.mxu0
        %v1379 = vadd.f32 %v1232, %v1378
        %v1380 = vpop.f32.mrf.mxu0
        %v1381 = vadd.f32 %v1232, %v1380
        %1382 = vdwg.mxu0
        %v1383 = vmul.f32 %v1304, 0.5
        %v1384 = vmul.f32 %v1306, 0.5
        %v1385 = vmul.f32 %v1309, 0.5
        %v1386 = vmul.f32 %v1311, 0.5
        %v1387 = vmul.f32 %v1314, 0.5
        %v1388 = vmul.f32 %v1316, 0.5
        %v1389 = vmul.f32 %v1319, 0.5
        %v1390 = vmul.f32 %v1321, 0.5
        %v1391 = vmul.f32 %v1324, 0.5
        %v1392 = vmul.f32 %v1326, 0.5
        %v1393 = vmul.f32 %v1329, 0.5
        %v1394 = vmul.f32 %v1331, 0.5
        %v1395 = vmul.f32 %v1334, 0.5
        %v1396 = vmul.f32 %v1336, 0.5
        %v1397 = vmul.f32 %v1339, 0.5
        %v1398 = vmul.f32 %v1341, 0.5
        %v1399 = vmul.f32 %v1344, 0.5
        %v1400 = vmul.f32 %v1346, 0.5
        %v1401 = vmul.f32 %v1349, 0.5
        %v1402 = vmul.f32 %v1351, 0.5
        %v1403 = vmul.f32 %v1354, 0.5
        %v1404 = vmul.f32 %v1356, 0.5
        %v1405 = vmul.f32 %v1359, 0.5
        %v1406 = vmul.f32 %v1361, 0.5
        %v1407 = vmul.f32 %v1364, 0.5
        %v1408 = vmul.f32 %v1366, 0.5
        %v1409 = vmul.f32 %v1369, 0.5
        %v1410 = vmul.f32 %v1371, 0.5
        %v1411 = vmul.f32 %v1374, 0.5
        %v1412 = vmul.f32 %v1376, 0.5
        %v1413 = vmul.f32 %v1379, 0.5
        %v1414 = vmul.f32 %v1381, 0.5
        %v1415 = vmul.f32 %v1304, 0.70710677
        %v1416 = vmul.f32 %v1306, 0.70710677
        %v1417 = vmul.f32 %v1309, 0.70710677
        %v1418 = vmul.f32 %v1311, 0.70710677
        %v1419 = vmul.f32 %v1314, 0.70710677
        %v1420 = vmul.f32 %v1316, 0.70710677
        %v1421 = vmul.f32 %v1319, 0.70710677
        %v1422 = vmul.f32 %v1321, 0.70710677
        %v1423 = vmul.f32 %v1324, 0.70710677
        %v1424 = vmul.f32 %v1326, 0.70710677
        %v1425 = vmul.f32 %v1329, 0.70710677
        %v1426 = vmul.f32 %v1331, 0.70710677
        %v1427 = vmul.f32 %v1334, 0.70710677
        %v1428 = vmul.f32 %v1336, 0.70710677
        %v1429 = vmul.f32 %v1339, 0.70710677
        %v1430 = vmul.f32 %v1341, 0.70710677
        %v1431 = vmul.f32 %v1344, 0.70710677
        %v1432 = vmul.f32 %v1346, 0.70710677
        %v1433 = vmul.f32 %v1349, 0.70710677
        %v1434 = vmul.f32 %v1351, 0.70710677
        %v1435 = vmul.f32 %v1354, 0.70710677
        %v1436 = vmul.f32 %v1356, 0.70710677
        %v1437 = vmul.f32 %v1359, 0.70710677
        %v1438 = vmul.f32 %v1361, 0.70710677
        %v1439 = vmul.f32 %v1364, 0.70710677
        %v1440 = vmul.f32 %v1366, 0.70710677
        %v1441 = vmul.f32 %v1369, 0.70710677
        %v1442 = vmul.f32 %v1371, 0.70710677
        %v1443 = vmul.f32 %v1374, 0.70710677
        %v1444 = vmul.f32 %v1376, 0.70710677
        %v1445 = vmul.f32 %v1379, 0.70710677
        %v1446 = vmul.f32 %v1381, 0.70710677
        %v1447 = vmul.f32 %v1415, %v1415
        %v1448 = vmin.f32 16.0, %v1447
        %v1449 = vmul.f32 %v1448, 2.1237322e-06
        %v1450 = vadd.f32 %v1449, 0.00028619796
        %v1451 = vmul.f32 %v1448, %v1450
        %v1452 = vadd.f32 %v1451, 0.0036580483
        %v1453 = vmul.f32 %v1448, %v1452
        %v1454 = vadd.f32 %v1453, 0.05243302
        %v1455 = vmul.f32 %v1448, %v1454
        %v1456 = vadd.f32 %v1455, 0.18741608
        %v1457 = vmul.f32 %v1448, %v1456
        %v1458 = vadd.f32 %v1457, 1.1283791
        %v1459 = vmul.f32 %v1415, %v1458
        %v1460 = vmul.f32 %v1448, 3.8918573e-05
        %v1461 = vadd.f32 %v1460, 0.001143296
        %v1462 = vmul.f32 %v1448, %v1461
        %v1463 = vadd.f32 %v1462, 0.014752088
        %v1464 = vmul.f32 %v1448, %v1463
        %v1465 = vadd.f32 %v1464, 0.112945676
        %v1466 = vmul.f32 %v1448, %v1465
        %v1467 = vadd.f32 %v1466, 0.4994258
        %v1468 = vmul.f32 %v1448, %v1467
        %v1469 = vadd.f32 %v1468, 1.0
        %v1470 = vrcp.pop %v1469
        %v1471 = vmul.f32 %v1469, %v1470
        %v1472 = vsub.f32 1.0, %v1471
        %v1473 = vmul.f32 %v1470, %v1472
        %v1474 = vadd.f32 %v1470, %v1473
        %vm1475 = vweird.f32 %v1469
        %vm1476 = vweird.f32 %v1470
        %vm1477 = vmor %vm1475, %vm1476
        %v1478 = vsel %vm1477, %v1470, %v1474
        %v1479 = vand.u32 2147483647, %v1469
        %vm1480 = vcmp.eq.f32.partialorder %v1479, 8.507059e+37
        %v1481 = vand.u32 %v1469, 2147483648
        %v1482 = vor.u32 1.1754944e-38, %v1481
        %v1483 = vsel %vm1480, %v1482, %v1478
        %v1484 = vmul.f32 %v1459, %v1483
        %v1485 = vmin.f32 %v1484, 1.0
        %v1486 = vmax.f32 %v1485, -1.0
        %v1487 = vmul.f32 %v1416, %v1416
        %v1488 = vmin.f32 16.0, %v1487
        %v1489 = vmul.f32 %v1488, 2.1237322e-06
        %v1490 = vadd.f32 %v1489, 0.00028619796
        %v1491 = vmul.f32 %v1488, %v1490
        %v1492 = vadd.f32 %v1491, 0.0036580483
        %v1493 = vmul.f32 %v1488, %v1492
        %v1494 = vadd.f32 %v1493, 0.05243302
        %v1495 = vmul.f32 %v1488, %v1494
        %v1496 = vadd.f32 %v1495, 0.18741608
        %v1497 = vmul.f32 %v1488, %v1496
        %v1498 = vadd.f32 %v1497, 1.1283791
        %v1499 = vmul.f32 %v1416, %v1498
        %v1500 = vmul.f32 %v1488, 3.8918573e-05
        %v1501 = vadd.f32 %v1500, 0.001143296
        %v1502 = vmul.f32 %v1488, %v1501
        %v1503 = vadd.f32 %v1502, 0.014752088
        %v1504 = vmul.f32 %v1488, %v1503
        %v1505 = vadd.f32 %v1504, 0.112945676
        %v1506 = vmul.f32 %v1488, %v1505
        %v1507 = vadd.f32 %v1506, 0.4994258
        %v1508 = vmul.f32 %v1488, %v1507
        %v1509 = vadd.f32 %v1508, 1.0
        %v1510 = vrcp.pop %v1509
        %v1511 = vmul.f32 %v1509, %v1510
        %v1512 = vsub.f32 1.0, %v1511
        %v1513 = vmul.f32 %v1510, %v1512
        %v1514 = vadd.f32 %v1510, %v1513
        %vm1515 = vweird.f32 %v1509
        %vm1516 = vweird.f32 %v1510
        %vm1517 = vmor %vm1515, %vm1516
        %v1518 = vsel %vm1517, %v1510, %v1514
        %v1519 = vand.u32 2147483647, %v1509
        %vm1520 = vcmp.eq.f32.partialorder %v1519, 8.507059e+37
        %v1521 = vand.u32 %v1509, 2147483648
        %v1522 = vor.u32 1.1754944e-38, %v1521
        %v1523 = vsel %vm1520, %v1522, %v1518
        %v1524 = vmul.f32 %v1499, %v1523
        %v1525 = vmin.f32 %v1524, 1.0
        %v1526 = vmax.f32 %v1525, -1.0
        %v1527 = vmul.f32 %v1417, %v1417
        %v1528 = vmin.f32 16.0, %v1527
        %v1529 = vmul.f32 %v1528, 2.1237322e-06
        %v1530 = vadd.f32 %v1529, 0.00028619796
        %v1531 = vmul.f32 %v1528, %v1530
        %v1532 = vadd.f32 %v1531, 0.0036580483
        %v1533 = vmul.f32 %v1528, %v1532
        %v1534 = vadd.f32 %v1533, 0.05243302
        %v1535 = vmul.f32 %v1528, %v1534
        %v1536 = vadd.f32 %v1535, 0.18741608
        %v1537 = vmul.f32 %v1528, %v1536
        %v1538 = vadd.f32 %v1537, 1.1283791
        %v1539 = vmul.f32 %v1417, %v1538
        %v1540 = vmul.f32 %v1528, 3.8918573e-05
        %v1541 = vadd.f32 %v1540, 0.001143296
        %v1542 = vmul.f32 %v1528, %v1541
        %v1543 = vadd.f32 %v1542, 0.014752088
        %v1544 = vmul.f32 %v1528, %v1543
        %v1545 = vadd.f32 %v1544, 0.112945676
        %v1546 = vmul.f32 %v1528, %v1545
        %v1547 = vadd.f32 %v1546, 0.4994258
        %v1548 = vmul.f32 %v1528, %v1547
        %v1549 = vadd.f32 %v1548, 1.0
        %v1550 = vrcp.pop %v1549
        %v1551 = vmul.f32 %v1549, %v1550
        %v1552 = vsub.f32 1.0, %v1551
        %v1553 = vmul.f32 %v1550, %v1552
        %v1554 = vadd.f32 %v1550, %v1553
        %vm1555 = vweird.f32 %v1549
        %vm1556 = vweird.f32 %v1550
        %vm1557 = vmor %vm1555, %vm1556
        %v1558 = vsel %vm1557, %v1550, %v1554
        %v1559 = vand.u32 2147483647, %v1549
        %vm1560 = vcmp.eq.f32.partialorder %v1559, 8.507059e+37
        %v1561 = vand.u32 %v1549, 2147483648
        %v1562 = vor.u32 1.1754944e-38, %v1561
        %v1563 = vsel %vm1560, %v1562, %v1558
        %v1564 = vmul.f32 %v1539, %v1563
        %v1565 = vmin.f32 %v1564, 1.0
        %v1566 = vmax.f32 %v1565, -1.0
        %v1567 = vmul.f32 %v1418, %v1418
        %v1568 = vmin.f32 16.0, %v1567
        %v1569 = vmul.f32 %v1568, 2.1237322e-06
        %v1570 = vadd.f32 %v1569, 0.00028619796
        %v1571 = vmul.f32 %v1568, %v1570
        %v1572 = vadd.f32 %v1571, 0.0036580483
        %v1573 = vmul.f32 %v1568, %v1572
        %v1574 = vadd.f32 %v1573, 0.05243302
        %v1575 = vmul.f32 %v1568, %v1574
        %v1576 = vadd.f32 %v1575, 0.18741608
        %v1577 = vmul.f32 %v1568, %v1576
        %v1578 = vadd.f32 %v1577, 1.1283791
        %v1579 = vmul.f32 %v1418, %v1578
        %v1580 = vmul.f32 %v1568, 3.8918573e-05
        %v1581 = vadd.f32 %v1580, 0.001143296
        %v1582 = vmul.f32 %v1568, %v1581
        %v1583 = vadd.f32 %v1582, 0.014752088
        %v1584 = vmul.f32 %v1568, %v1583
        %v1585 = vadd.f32 %v1584, 0.112945676
        %v1586 = vmul.f32 %v1568, %v1585
        %v1587 = vadd.f32 %v1586, 0.4994258
        %v1588 = vmul.f32 %v1568, %v1587
        %v1589 = vadd.f32 %v1588, 1.0
        %v1590 = vrcp.pop %v1589
        %v1591 = vmul.f32 %v1589, %v1590
        %v1592 = vsub.f32 1.0, %v1591
        %v1593 = vmul.f32 %v1590, %v1592
        %v1594 = vadd.f32 %v1590, %v1593
        %vm1595 = vweird.f32 %v1589
        %vm1596 = vweird.f32 %v1590
        %vm1597 = vmor %vm1595, %vm1596
        %v1598 = vsel %vm1597, %v1590, %v1594
        %v1599 = vand.u32 2147483647, %v1589
        %vm1600 = vcmp.eq.f32.partialorder %v1599, 8.507059e+37
        %v1601 = vand.u32 %v1589, 2147483648
        %v1602 = vor.u32 1.1754944e-38, %v1601
        %v1603 = vsel %vm1600, %v1602, %v1598
        %v1604 = vmul.f32 %v1579, %v1603
        %v1605 = vmin.f32 %v1604, 1.0
        %v1606 = vmax.f32 %v1605, -1.0
        %v1607 = vmul.f32 %v1419, %v1419
        %v1608 = vmin.f32 16.0, %v1607
        %v1609 = vmul.f32 %v1608, 2.1237322e-06
        %v1610 = vadd.f32 %v1609, 0.00028619796
        %v1611 = vmul.f32 %v1608, %v1610
        %v1612 = vadd.f32 %v1611, 0.0036580483
        %v1613 = vmul.f32 %v1608, %v1612
        %v1614 = vadd.f32 %v1613, 0.05243302
        %v1615 = vmul.f32 %v1608, %v1614
        %v1616 = vadd.f32 %v1615, 0.18741608
        %v1617 = vmul.f32 %v1608, %v1616
        %v1618 = vadd.f32 %v1617, 1.1283791
        %v1619 = vmul.f32 %v1419, %v1618
        %v1620 = vmul.f32 %v1608, 3.8918573e-05
        %v1621 = vadd.f32 %v1620, 0.001143296
        %v1622 = vmul.f32 %v1608, %v1621
        %v1623 = vadd.f32 %v1622, 0.014752088
        %v1624 = vmul.f32 %v1608, %v1623
        %v1625 = vadd.f32 %v1624, 0.112945676
        %v1626 = vmul.f32 %v1608, %v1625
        %v1627 = vadd.f32 %v1626, 0.4994258
        %v1628 = vmul.f32 %v1608, %v1627
        %v1629 = vadd.f32 %v1628, 1.0
        %v1630 = vrcp.pop %v1629
        %v1631 = vmul.f32 %v1629, %v1630
        %v1632 = vsub.f32 1.0, %v1631
        %v1633 = vmul.f32 %v1630, %v1632
        %v1634 = vadd.f32 %v1630, %v1633
        %vm1635 = vweird.f32 %v1629
        %vm1636 = vweird.f32 %v1630
        %vm1637 = vmor %vm1635, %vm1636
        %v1638 = vsel %vm1637, %v1630, %v1634
        %v1639 = vand.u32 2147483647, %v1629
        %vm1640 = vcmp.eq.f32.partialorder %v1639, 8.507059e+37
        %v1641 = vand.u32 %v1629, 2147483648
        %v1642 = vor.u32 1.1754944e-38, %v1641
        %v1643 = vsel %vm1640, %v1642, %v1638
        %v1644 = vmul.f32 %v1619, %v1643
        %v1645 = vmin.f32 %v1644, 1.0
        %v1646 = vmax.f32 %v1645, -1.0
        %v1647 = vmul.f32 %v1420, %v1420
        %v1648 = vmin.f32 16.0, %v1647
        %v1649 = vmul.f32 %v1648, 2.1237322e-06
        %v1650 = vadd.f32 %v1649, 0.00028619796
        %v1651 = vmul.f32 %v1648, %v1650
        %v1652 = vadd.f32 %v1651, 0.0036580483
        %v1653 = vmul.f32 %v1648, %v1652
        %v1654 = vadd.f32 %v1653, 0.05243302
        %v1655 = vmul.f32 %v1648, %v1654
        %v1656 = vadd.f32 %v1655, 0.18741608
        %v1657 = vmul.f32 %v1648, %v1656
        %v1658 = vadd.f32 %v1657, 1.1283791
        %v1659 = vmul.f32 %v1420, %v1658
        %v1660 = vmul.f32 %v1648, 3.8918573e-05
        %v1661 = vadd.f32 %v1660, 0.001143296
        %v1662 = vmul.f32 %v1648, %v1661
        %v1663 = vadd.f32 %v1662, 0.014752088
        %v1664 = vmul.f32 %v1648, %v1663
        %v1665 = vadd.f32 %v1664, 0.112945676
        %v1666 = vmul.f32 %v1648, %v1665
        %v1667 = vadd.f32 %v1666, 0.4994258
        %v1668 = vmul.f32 %v1648, %v1667
        %v1669 = vadd.f32 %v1668, 1.0
        %v1670 = vrcp.pop %v1669
        %v1671 = vmul.f32 %v1669, %v1670
        %v1672 = vsub.f32 1.0, %v1671
        %v1673 = vmul.f32 %v1670, %v1672
        %v1674 = vadd.f32 %v1670, %v1673
        %vm1675 = vweird.f32 %v1669
        %vm1676 = vweird.f32 %v1670
        %vm1677 = vmor %vm1675, %vm1676
        %v1678 = vsel %vm1677, %v1670, %v1674
        %v1679 = vand.u32 2147483647, %v1669
        %vm1680 = vcmp.eq.f32.partialorder %v1679, 8.507059e+37
        %v1681 = vand.u32 %v1669, 2147483648
        %v1682 = vor.u32 1.1754944e-38, %v1681
        %v1683 = vsel %vm1680, %v1682, %v1678
        %v1684 = vmul.f32 %v1659, %v1683
        %v1685 = vmin.f32 %v1684, 1.0
        %v1686 = vmax.f32 %v1685, -1.0
        %v1687 = vmul.f32 %v1421, %v1421
        %v1688 = vmin.f32 16.0, %v1687
        %v1689 = vmul.f32 %v1688, 2.1237322e-06
        %v1690 = vadd.f32 %v1689, 0.00028619796
        %v1691 = vmul.f32 %v1688, %v1690
        %v1692 = vadd.f32 %v1691, 0.0036580483
        %v1693 = vmul.f32 %v1688, %v1692
        %v1694 = vadd.f32 %v1693, 0.05243302
        %v1695 = vmul.f32 %v1688, %v1694
        %v1696 = vadd.f32 %v1695, 0.18741608
        %v1697 = vmul.f32 %v1688, %v1696
        %v1698 = vadd.f32 %v1697, 1.1283791
        %v1699 = vmul.f32 %v1421, %v1698
        %v1700 = vmul.f32 %v1688, 3.8918573e-05
        %v1701 = vadd.f32 %v1700, 0.001143296
        %v1702 = vmul.f32 %v1688, %v1701
        %v1703 = vadd.f32 %v1702, 0.014752088
        %v1704 = vmul.f32 %v1688, %v1703
        %v1705 = vadd.f32 %v1704, 0.112945676
        %v1706 = vmul.f32 %v1688, %v1705
        %v1707 = vadd.f32 %v1706, 0.4994258
        %v1708 = vmul.f32 %v1688, %v1707
        %v1709 = vadd.f32 %v1708, 1.0
        %v1710 = vrcp.pop %v1709
        %v1711 = vmul.f32 %v1709, %v1710
        %v1712 = vsub.f32 1.0, %v1711
        %v1713 = vmul.f32 %v1710, %v1712
        %v1714 = vadd.f32 %v1710, %v1713
        %vm1715 = vweird.f32 %v1709
        %vm1716 = vweird.f32 %v1710
        %vm1717 = vmor %vm1715, %vm1716
        %v1718 = vsel %vm1717, %v1710, %v1714
        %v1719 = vand.u32 2147483647, %v1709
        %vm1720 = vcmp.eq.f32.partialorder %v1719, 8.507059e+37
        %v1721 = vand.u32 %v1709, 2147483648
        %v1722 = vor.u32 1.1754944e-38, %v1721
        %v1723 = vsel %vm1720, %v1722, %v1718
        %v1724 = vmul.f32 %v1699, %v1723
        %v1725 = vmin.f32 %v1724, 1.0
        %v1726 = vmax.f32 %v1725, -1.0
        %v1727 = vmul.f32 %v1422, %v1422
        %v1728 = vmin.f32 16.0, %v1727
        %v1729 = vmul.f32 %v1728, 2.1237322e-06
        %v1730 = vadd.f32 %v1729, 0.00028619796
        %v1731 = vmul.f32 %v1728, %v1730
        %v1732 = vadd.f32 %v1731, 0.0036580483
        %v1733 = vmul.f32 %v1728, %v1732
        %v1734 = vadd.f32 %v1733, 0.05243302
        %v1735 = vmul.f32 %v1728, %v1734
        %v1736 = vadd.f32 %v1735, 0.18741608
        %v1737 = vmul.f32 %v1728, %v1736
        %v1738 = vadd.f32 %v1737, 1.1283791
        %v1739 = vmul.f32 %v1422, %v1738
        %v1740 = vmul.f32 %v1728, 3.8918573e-05
        %v1741 = vadd.f32 %v1740, 0.001143296
        %v1742 = vmul.f32 %v1728, %v1741
        %v1743 = vadd.f32 %v1742, 0.014752088
        %v1744 = vmul.f32 %v1728, %v1743
        %v1745 = vadd.f32 %v1744, 0.112945676
        %v1746 = vmul.f32 %v1728, %v1745
        %v1747 = vadd.f32 %v1746, 0.4994258
        %v1748 = vmul.f32 %v1728, %v1747
        %v1749 = vadd.f32 %v1748, 1.0
        %v1750 = vrcp.pop %v1749
        %v1751 = vmul.f32 %v1749, %v1750
        %v1752 = vsub.f32 1.0, %v1751
        %v1753 = vmul.f32 %v1750, %v1752
        %v1754 = vadd.f32 %v1750, %v1753
        %vm1755 = vweird.f32 %v1749
        %vm1756 = vweird.f32 %v1750
        %vm1757 = vmor %vm1755, %vm1756
        %v1758 = vsel %vm1757, %v1750, %v1754
        %v1759 = vand.u32 2147483647, %v1749
        %vm1760 = vcmp.eq.f32.partialorder %v1759, 8.507059e+37
        %v1761 = vand.u32 %v1749, 2147483648
        %v1762 = vor.u32 1.1754944e-38, %v1761
        %v1763 = vsel %vm1760, %v1762, %v1758
        %v1764 = vmul.f32 %v1739, %v1763
        %v1765 = vmin.f32 %v1764, 1.0
        %v1766 = vmax.f32 %v1765, -1.0
        %v1767 = vmul.f32 %v1423, %v1423
        %v1768 = vmin.f32 16.0, %v1767
        %v1769 = vmul.f32 %v1768, 2.1237322e-06
        %v1770 = vadd.f32 %v1769, 0.00028619796
        %v1771 = vmul.f32 %v1768, %v1770
        %v1772 = vadd.f32 %v1771, 0.0036580483
        %v1773 = vmul.f32 %v1768, %v1772
        %v1774 = vadd.f32 %v1773, 0.05243302
        %v1775 = vmul.f32 %v1768, %v1774
        %v1776 = vadd.f32 %v1775, 0.18741608
        %v1777 = vmul.f32 %v1768, %v1776
        %v1778 = vadd.f32 %v1777, 1.1283791
        %v1779 = vmul.f32 %v1423, %v1778
        %v1780 = vmul.f32 %v1768, 3.8918573e-05
        %v1781 = vadd.f32 %v1780, 0.001143296
        %v1782 = vmul.f32 %v1768, %v1781
        %v1783 = vadd.f32 %v1782, 0.014752088
        %v1784 = vmul.f32 %v1768, %v1783
        %v1785 = vadd.f32 %v1784, 0.112945676
        %v1786 = vmul.f32 %v1768, %v1785
        %v1787 = vadd.f32 %v1786, 0.4994258
        %v1788 = vmul.f32 %v1768, %v1787
        %v1789 = vadd.f32 %v1788, 1.0
        %v1790 = vrcp.pop %v1789
        %v1791 = vmul.f32 %v1789, %v1790
        %v1792 = vsub.f32 1.0, %v1791
        %v1793 = vmul.f32 %v1790, %v1792
        %v1794 = vadd.f32 %v1790, %v1793
        %vm1795 = vweird.f32 %v1789
        %vm1796 = vweird.f32 %v1790
        %vm1797 = vmor %vm1795, %vm1796
        %v1798 = vsel %vm1797, %v1790, %v1794
        %v1799 = vand.u32 2147483647, %v1789
        %vm1800 = vcmp.eq.f32.partialorder %v1799, 8.507059e+37
        %v1801 = vand.u32 %v1789, 2147483648
        %v1802 = vor.u32 1.1754944e-38, %v1801
        %v1803 = vsel %vm1800, %v1802, %v1798
        %v1804 = vmul.f32 %v1779, %v1803
        %v1805 = vmin.f32 %v1804, 1.0
        %v1806 = vmax.f32 %v1805, -1.0
        %v1807 = vmul.f32 %v1424, %v1424
        %v1808 = vmin.f32 16.0, %v1807
        %v1809 = vmul.f32 %v1808, 2.1237322e-06
        %v1810 = vadd.f32 %v1809, 0.00028619796
        %v1811 = vmul.f32 %v1808, %v1810
        %v1812 = vadd.f32 %v1811, 0.0036580483
        %v1813 = vmul.f32 %v1808, %v1812
        %v1814 = vadd.f32 %v1813, 0.05243302
        %v1815 = vmul.f32 %v1808, %v1814
        %v1816 = vadd.f32 %v1815, 0.18741608
        %v1817 = vmul.f32 %v1808, %v1816
        %v1818 = vadd.f32 %v1817, 1.1283791
        %v1819 = vmul.f32 %v1424, %v1818
        %v1820 = vmul.f32 %v1808, 3.8918573e-05
        %v1821 = vadd.f32 %v1820, 0.001143296
        %v1822 = vmul.f32 %v1808, %v1821
        %v1823 = vadd.f32 %v1822, 0.014752088
        %v1824 = vmul.f32 %v1808, %v1823
        %v1825 = vadd.f32 %v1824, 0.112945676
        %v1826 = vmul.f32 %v1808, %v1825
        %v1827 = vadd.f32 %v1826, 0.4994258
        %v1828 = vmul.f32 %v1808, %v1827
        %v1829 = vadd.f32 %v1828, 1.0
        %v1830 = vrcp.pop %v1829
        %v1831 = vmul.f32 %v1829, %v1830
        %v1832 = vsub.f32 1.0, %v1831
        %v1833 = vmul.f32 %v1830, %v1832
        %v1834 = vadd.f32 %v1830, %v1833
        %vm1835 = vweird.f32 %v1829
        %vm1836 = vweird.f32 %v1830
        %vm1837 = vmor %vm1835, %vm1836
        %v1838 = vsel %vm1837, %v1830, %v1834
        %v1839 = vand.u32 2147483647, %v1829
        %vm1840 = vcmp.eq.f32.partialorder %v1839, 8.507059e+37
        %v1841 = vand.u32 %v1829, 2147483648
        %v1842 = vor.u32 1.1754944e-38, %v1841
        %v1843 = vsel %vm1840, %v1842, %v1838
        %v1844 = vmul.f32 %v1819, %v1843
        %v1845 = vmin.f32 %v1844, 1.0
        %v1846 = vmax.f32 %v1845, -1.0
        %v1847 = vmul.f32 %v1425, %v1425
        %v1848 = vmin.f32 16.0, %v1847
        %v1849 = vmul.f32 %v1848, 2.1237322e-06
        %v1850 = vadd.f32 %v1849, 0.00028619796
        %v1851 = vmul.f32 %v1848, %v1850
        %v1852 = vadd.f32 %v1851, 0.0036580483
        %v1853 = vmul.f32 %v1848, %v1852
        %v1854 = vadd.f32 %v1853, 0.05243302
        %v1855 = vmul.f32 %v1848, %v1854
        %v1856 = vadd.f32 %v1855, 0.18741608
        %v1857 = vmul.f32 %v1848, %v1856
        %v1858 = vadd.f32 %v1857, 1.1283791
        %v1859 = vmul.f32 %v1425, %v1858
        %v1860 = vmul.f32 %v1848, 3.8918573e-05
        %v1861 = vadd.f32 %v1860, 0.001143296
        %v1862 = vmul.f32 %v1848, %v1861
        %v1863 = vadd.f32 %v1862, 0.014752088
        %v1864 = vmul.f32 %v1848, %v1863
        %v1865 = vadd.f32 %v1864, 0.112945676
        %v1866 = vmul.f32 %v1848, %v1865
        %v1867 = vadd.f32 %v1866, 0.4994258
        %v1868 = vmul.f32 %v1848, %v1867
        %v1869 = vadd.f32 %v1868, 1.0
        %v1870 = vrcp.pop %v1869
        %v1871 = vmul.f32 %v1869, %v1870
        %v1872 = vsub.f32 1.0, %v1871
        %v1873 = vmul.f32 %v1870, %v1872
        %v1874 = vadd.f32 %v1870, %v1873
        %vm1875 = vweird.f32 %v1869
        %vm1876 = vweird.f32 %v1870
        %vm1877 = vmor %vm1875, %vm1876
        %v1878 = vsel %vm1877, %v1870, %v1874
        %v1879 = vand.u32 2147483647, %v1869
        %vm1880 = vcmp.eq.f32.partialorder %v1879, 8.507059e+37
        %v1881 = vand.u32 %v1869, 2147483648
        %v1882 = vor.u32 1.1754944e-38, %v1881
        %v1883 = vsel %vm1880, %v1882, %v1878
        %v1884 = vmul.f32 %v1859, %v1883
        %v1885 = vmin.f32 %v1884, 1.0
        %v1886 = vmax.f32 %v1885, -1.0
        %v1887 = vmul.f32 %v1426, %v1426
        %v1888 = vmin.f32 16.0, %v1887
        %v1889 = vmul.f32 %v1888, 2.1237322e-06
        %v1890 = vadd.f32 %v1889, 0.00028619796
        %v1891 = vmul.f32 %v1888, %v1890
        %v1892 = vadd.f32 %v1891, 0.0036580483
        %v1893 = vmul.f32 %v1888, %v1892
        %v1894 = vadd.f32 %v1893, 0.05243302
        %v1895 = vmul.f32 %v1888, %v1894
        %v1896 = vadd.f32 %v1895, 0.18741608
        %v1897 = vmul.f32 %v1888, %v1896
        %v1898 = vadd.f32 %v1897, 1.1283791
        %v1899 = vmul.f32 %v1426, %v1898
        %v1900 = vmul.f32 %v1888, 3.8918573e-05
        %v1901 = vadd.f32 %v1900, 0.001143296
        %v1902 = vmul.f32 %v1888, %v1901
        %v1903 = vadd.f32 %v1902, 0.014752088
        %v1904 = vmul.f32 %v1888, %v1903
        %v1905 = vadd.f32 %v1904, 0.112945676
        %v1906 = vmul.f32 %v1888, %v1905
        %v1907 = vadd.f32 %v1906, 0.4994258
        %v1908 = vmul.f32 %v1888, %v1907
        %v1909 = vadd.f32 %v1908, 1.0
        %v1910 = vrcp.pop %v1909
        %v1911 = vmul.f32 %v1909, %v1910
        %v1912 = vsub.f32 1.0, %v1911
        %v1913 = vmul.f32 %v1910, %v1912
        %v1914 = vadd.f32 %v1910, %v1913
        %vm1915 = vweird.f32 %v1909
        %vm1916 = vweird.f32 %v1910
        %vm1917 = vmor %vm1915, %vm1916
        %v1918 = vsel %vm1917, %v1910, %v1914
        %v1919 = vand.u32 2147483647, %v1909
        %vm1920 = vcmp.eq.f32.partialorder %v1919, 8.507059e+37
        %v1921 = vand.u32 %v1909, 2147483648
        %v1922 = vor.u32 1.1754944e-38, %v1921
        %v1923 = vsel %vm1920, %v1922, %v1918
        %v1924 = vmul.f32 %v1899, %v1923
        %v1925 = vmin.f32 %v1924, 1.0
        %v1926 = vmax.f32 %v1925, -1.0
        %v1927 = vmul.f32 %v1427, %v1427
        %v1928 = vmin.f32 16.0, %v1927
        %v1929 = vmul.f32 %v1928, 2.1237322e-06
        %v1930 = vadd.f32 %v1929, 0.00028619796
        %v1931 = vmul.f32 %v1928, %v1930
        %v1932 = vadd.f32 %v1931, 0.0036580483
        %v1933 = vmul.f32 %v1928, %v1932
        %v1934 = vadd.f32 %v1933, 0.05243302
        %v1935 = vmul.f32 %v1928, %v1934
        %v1936 = vadd.f32 %v1935, 0.18741608
        %v1937 = vmul.f32 %v1928, %v1936
        %v1938 = vadd.f32 %v1937, 1.1283791
        %v1939 = vmul.f32 %v1427, %v1938
        %v1940 = vmul.f32 %v1928, 3.8918573e-05
        %v1941 = vadd.f32 %v1940, 0.001143296
        %v1942 = vmul.f32 %v1928, %v1941
        %v1943 = vadd.f32 %v1942, 0.014752088
        %v1944 = vmul.f32 %v1928, %v1943
        %v1945 = vadd.f32 %v1944, 0.112945676
        %v1946 = vmul.f32 %v1928, %v1945
        %v1947 = vadd.f32 %v1946, 0.4994258
        %v1948 = vmul.f32 %v1928, %v1947
        %v1949 = vadd.f32 %v1948, 1.0
        %v1950 = vrcp.pop %v1949
        %v1951 = vmul.f32 %v1949, %v1950
        %v1952 = vsub.f32 1.0, %v1951
        %v1953 = vmul.f32 %v1950, %v1952
        %v1954 = vadd.f32 %v1950, %v1953
        %vm1955 = vweird.f32 %v1949
        %vm1956 = vweird.f32 %v1950
        %vm1957 = vmor %vm1955, %vm1956
        %v1958 = vsel %vm1957, %v1950, %v1954
        %v1959 = vand.u32 2147483647, %v1949
        %vm1960 = vcmp.eq.f32.partialorder %v1959, 8.507059e+37
        %v1961 = vand.u32 %v1949, 2147483648
        %v1962 = vor.u32 1.1754944e-38, %v1961
        %v1963 = vsel %vm1960, %v1962, %v1958
        %v1964 = vmul.f32 %v1939, %v1963
        %v1965 = vmin.f32 %v1964, 1.0
        %v1966 = vmax.f32 %v1965, -1.0
        %v1967 = vmul.f32 %v1428, %v1428
        %v1968 = vmin.f32 16.0, %v1967
        %v1969 = vmul.f32 %v1968, 2.1237322e-06
        %v1970 = vadd.f32 %v1969, 0.00028619796
        %v1971 = vmul.f32 %v1968, %v1970
        %v1972 = vadd.f32 %v1971, 0.0036580483
        %v1973 = vmul.f32 %v1968, %v1972
        %v1974 = vadd.f32 %v1973, 0.05243302
        %v1975 = vmul.f32 %v1968, %v1974
        %v1976 = vadd.f32 %v1975, 0.18741608
        %v1977 = vmul.f32 %v1968, %v1976
        %v1978 = vadd.f32 %v1977, 1.1283791
        %v1979 = vmul.f32 %v1428, %v1978
        %v1980 = vmul.f32 %v1968, 3.8918573e-05
        %v1981 = vadd.f32 %v1980, 0.001143296
        %v1982 = vmul.f32 %v1968, %v1981
        %v1983 = vadd.f32 %v1982, 0.014752088
        %v1984 = vmul.f32 %v1968, %v1983
        %v1985 = vadd.f32 %v1984, 0.112945676
        %v1986 = vmul.f32 %v1968, %v1985
        %v1987 = vadd.f32 %v1986, 0.4994258
        %v1988 = vmul.f32 %v1968, %v1987
        %v1989 = vadd.f32 %v1988, 1.0
        %v1990 = vrcp.pop %v1989
        %v1991 = vmul.f32 %v1989, %v1990
        %v1992 = vsub.f32 1.0, %v1991
        %v1993 = vmul.f32 %v1990, %v1992
        %v1994 = vadd.f32 %v1990, %v1993
        %vm1995 = vweird.f32 %v1989
        %vm1996 = vweird.f32 %v1990
        %vm1997 = vmor %vm1995, %vm1996
        %v1998 = vsel %vm1997, %v1990, %v1994
        %v1999 = vand.u32 2147483647, %v1989
        %vm2000 = vcmp.eq.f32.partialorder %v1999, 8.507059e+37
        %v2001 = vand.u32 %v1989, 2147483648
        %v2002 = vor.u32 1.1754944e-38, %v2001
        %v2003 = vsel %vm2000, %v2002, %v1998
        %v2004 = vmul.f32 %v1979, %v2003
        %v2005 = vmin.f32 %v2004, 1.0
        %v2006 = vmax.f32 %v2005, -1.0
        %v2007 = vmul.f32 %v1429, %v1429
        %v2008 = vmin.f32 16.0, %v2007
        %v2009 = vmul.f32 %v2008, 2.1237322e-06
        %v2010 = vadd.f32 %v2009, 0.00028619796
        %v2011 = vmul.f32 %v2008, %v2010
        %v2012 = vadd.f32 %v2011, 0.0036580483
        %v2013 = vmul.f32 %v2008, %v2012
        %v2014 = vadd.f32 %v2013, 0.05243302
        %v2015 = vmul.f32 %v2008, %v2014
        %v2016 = vadd.f32 %v2015, 0.18741608
        %v2017 = vmul.f32 %v2008, %v2016
        %v2018 = vadd.f32 %v2017, 1.1283791
        %v2019 = vmul.f32 %v1429, %v2018
        %v2020 = vmul.f32 %v2008, 3.8918573e-05
        %v2021 = vadd.f32 %v2020, 0.001143296
        %v2022 = vmul.f32 %v2008, %v2021
        %v2023 = vadd.f32 %v2022, 0.014752088
        %v2024 = vmul.f32 %v2008, %v2023
        %v2025 = vadd.f32 %v2024, 0.112945676
        %v2026 = vmul.f32 %v2008, %v2025
        %v2027 = vadd.f32 %v2026, 0.4994258
        %v2028 = vmul.f32 %v2008, %v2027
        %v2029 = vadd.f32 %v2028, 1.0
        %v2030 = vrcp.pop %v2029
        %v2031 = vmul.f32 %v2029, %v2030
        %v2032 = vsub.f32 1.0, %v2031
        %v2033 = vmul.f32 %v2030, %v2032
        %v2034 = vadd.f32 %v2030, %v2033
        %vm2035 = vweird.f32 %v2029
        %vm2036 = vweird.f32 %v2030
        %vm2037 = vmor %vm2035, %vm2036
        %v2038 = vsel %vm2037, %v2030, %v2034
        %v2039 = vand.u32 2147483647, %v2029
        %vm2040 = vcmp.eq.f32.partialorder %v2039, 8.507059e+37
        %v2041 = vand.u32 %v2029, 2147483648
        %v2042 = vor.u32 1.1754944e-38, %v2041
        %v2043 = vsel %vm2040, %v2042, %v2038
        %v2044 = vmul.f32 %v2019, %v2043
        %v2045 = vmin.f32 %v2044, 1.0
        %v2046 = vmax.f32 %v2045, -1.0
        %v2047 = vmul.f32 %v1430, %v1430
        %v2048 = vmin.f32 16.0, %v2047
        %v2049 = vmul.f32 %v2048, 2.1237322e-06
        %v2050 = vadd.f32 %v2049, 0.00028619796
        %v2051 = vmul.f32 %v2048, %v2050
        %v2052 = vadd.f32 %v2051, 0.0036580483
        %v2053 = vmul.f32 %v2048, %v2052
        %v2054 = vadd.f32 %v2053, 0.05243302
        %v2055 = vmul.f32 %v2048, %v2054
        %v2056 = vadd.f32 %v2055, 0.18741608
        %v2057 = vmul.f32 %v2048, %v2056
        %v2058 = vadd.f32 %v2057, 1.1283791
        %v2059 = vmul.f32 %v1430, %v2058
        %v2060 = vmul.f32 %v2048, 3.8918573e-05
        %v2061 = vadd.f32 %v2060, 0.001143296
        %v2062 = vmul.f32 %v2048, %v2061
        %v2063 = vadd.f32 %v2062, 0.014752088
        %v2064 = vmul.f32 %v2048, %v2063
        %v2065 = vadd.f32 %v2064, 0.112945676
        %v2066 = vmul.f32 %v2048, %v2065
        %v2067 = vadd.f32 %v2066, 0.4994258
        %v2068 = vmul.f32 %v2048, %v2067
        %v2069 = vadd.f32 %v2068, 1.0
        %v2070 = vrcp.pop %v2069
        %v2071 = vmul.f32 %v2069, %v2070
        %v2072 = vsub.f32 1.0, %v2071
        %v2073 = vmul.f32 %v2070, %v2072
        %v2074 = vadd.f32 %v2070, %v2073
        %vm2075 = vweird.f32 %v2069
        %vm2076 = vweird.f32 %v2070
        %vm2077 = vmor %vm2075, %vm2076
        %v2078 = vsel %vm2077, %v2070, %v2074
        %v2079 = vand.u32 2147483647, %v2069
        %vm2080 = vcmp.eq.f32.partialorder %v2079, 8.507059e+37
        %v2081 = vand.u32 %v2069, 2147483648
        %v2082 = vor.u32 1.1754944e-38, %v2081
        %v2083 = vsel %vm2080, %v2082, %v2078
        %v2084 = vmul.f32 %v2059, %v2083
        %v2085 = vmin.f32 %v2084, 1.0
        %v2086 = vmax.f32 %v2085, -1.0
        %v2087 = vmul.f32 %v1431, %v1431
        %v2088 = vmin.f32 16.0, %v2087
        %v2089 = vmul.f32 %v2088, 2.1237322e-06
        %v2090 = vadd.f32 %v2089, 0.00028619796
        %v2091 = vmul.f32 %v2088, %v2090
        %v2092 = vadd.f32 %v2091, 0.0036580483
        %v2093 = vmul.f32 %v2088, %v2092
        %v2094 = vadd.f32 %v2093, 0.05243302
        %v2095 = vmul.f32 %v2088, %v2094
        %v2096 = vadd.f32 %v2095, 0.18741608
        %v2097 = vmul.f32 %v2088, %v2096
        %v2098 = vadd.f32 %v2097, 1.1283791
        %v2099 = vmul.f32 %v1431, %v2098
        %v2100 = vmul.f32 %v2088, 3.8918573e-05
        %v2101 = vadd.f32 %v2100, 0.001143296
        %v2102 = vmul.f32 %v2088, %v2101
        %v2103 = vadd.f32 %v2102, 0.014752088
        %v2104 = vmul.f32 %v2088, %v2103
        %v2105 = vadd.f32 %v2104, 0.112945676
        %v2106 = vmul.f32 %v2088, %v2105
        %v2107 = vadd.f32 %v2106, 0.4994258
        %v2108 = vmul.f32 %v2088, %v2107
        %v2109 = vadd.f32 %v2108, 1.0
        %v2110 = vrcp.pop %v2109
        %v2111 = vmul.f32 %v2109, %v2110
        %v2112 = vsub.f32 1.0, %v2111
        %v2113 = vmul.f32 %v2110, %v2112
        %v2114 = vadd.f32 %v2110, %v2113
        %vm2115 = vweird.f32 %v2109
        %vm2116 = vweird.f32 %v2110
        %vm2117 = vmor %vm2115, %vm2116
        %v2118 = vsel %vm2117, %v2110, %v2114
        %v2119 = vand.u32 2147483647, %v2109
        %vm2120 = vcmp.eq.f32.partialorder %v2119, 8.507059e+37
        %v2121 = vand.u32 %v2109, 2147483648
        %v2122 = vor.u32 1.1754944e-38, %v2121
        %v2123 = vsel %vm2120, %v2122, %v2118
        %v2124 = vmul.f32 %v2099, %v2123
        %v2125 = vmin.f32 %v2124, 1.0
        %v2126 = vmax.f32 %v2125, -1.0
        %v2127 = vmul.f32 %v1432, %v1432
        %v2128 = vmin.f32 16.0, %v2127
        %v2129 = vmul.f32 %v2128, 2.1237322e-06
        %v2130 = vadd.f32 %v2129, 0.00028619796
        %v2131 = vmul.f32 %v2128, %v2130
        %v2132 = vadd.f32 %v2131, 0.0036580483
        %v2133 = vmul.f32 %v2128, %v2132
        %v2134 = vadd.f32 %v2133, 0.05243302
        %v2135 = vmul.f32 %v2128, %v2134
        %v2136 = vadd.f32 %v2135, 0.18741608
        %v2137 = vmul.f32 %v2128, %v2136
        %v2138 = vadd.f32 %v2137, 1.1283791
        %v2139 = vmul.f32 %v1432, %v2138
        %v2140 = vmul.f32 %v2128, 3.8918573e-05
        %v2141 = vadd.f32 %v2140, 0.001143296
        %v2142 = vmul.f32 %v2128, %v2141
        %v2143 = vadd.f32 %v2142, 0.014752088
        %v2144 = vmul.f32 %v2128, %v2143
        %v2145 = vadd.f32 %v2144, 0.112945676
        %v2146 = vmul.f32 %v2128, %v2145
        %v2147 = vadd.f32 %v2146, 0.4994258
        %v2148 = vmul.f32 %v2128, %v2147
        %v2149 = vadd.f32 %v2148, 1.0
        %v2150 = vrcp.pop %v2149
        %v2151 = vmul.f32 %v2149, %v2150
        %v2152 = vsub.f32 1.0, %v2151
        %v2153 = vmul.f32 %v2150, %v2152
        %v2154 = vadd.f32 %v2150, %v2153
        %vm2155 = vweird.f32 %v2149
        %vm2156 = vweird.f32 %v2150
        %vm2157 = vmor %vm2155, %vm2156
        %v2158 = vsel %vm2157, %v2150, %v2154
        %v2159 = vand.u32 2147483647, %v2149
        %vm2160 = vcmp.eq.f32.partialorder %v2159, 8.507059e+37
        %v2161 = vand.u32 %v2149, 2147483648
        %v2162 = vor.u32 1.1754944e-38, %v2161
        %v2163 = vsel %vm2160, %v2162, %v2158
        %v2164 = vmul.f32 %v2139, %v2163
        %v2165 = vmin.f32 %v2164, 1.0
        %v2166 = vmax.f32 %v2165, -1.0
        %v2167 = vmul.f32 %v1433, %v1433
        %v2168 = vmin.f32 16.0, %v2167
        %v2169 = vmul.f32 %v2168, 2.1237322e-06
        %v2170 = vadd.f32 %v2169, 0.00028619796
        %v2171 = vmul.f32 %v2168, %v2170
        %v2172 = vadd.f32 %v2171, 0.0036580483
        %v2173 = vmul.f32 %v2168, %v2172
        %v2174 = vadd.f32 %v2173, 0.05243302
        %v2175 = vmul.f32 %v2168, %v2174
        %v2176 = vadd.f32 %v2175, 0.18741608
        %v2177 = vmul.f32 %v2168, %v2176
        %v2178 = vadd.f32 %v2177, 1.1283791
        %v2179 = vmul.f32 %v1433, %v2178
        %v2180 = vmul.f32 %v2168, 3.8918573e-05
        %v2181 = vadd.f32 %v2180, 0.001143296
        %v2182 = vmul.f32 %v2168, %v2181
        %v2183 = vadd.f32 %v2182, 0.014752088
        %v2184 = vmul.f32 %v2168, %v2183
        %v2185 = vadd.f32 %v2184, 0.112945676
        %v2186 = vmul.f32 %v2168, %v2185
        %v2187 = vadd.f32 %v2186, 0.4994258
        %v2188 = vmul.f32 %v2168, %v2187
        %v2189 = vadd.f32 %v2188, 1.0
        %v2190 = vrcp.pop %v2189
        %v2191 = vmul.f32 %v2189, %v2190
        %v2192 = vsub.f32 1.0, %v2191
        %v2193 = vmul.f32 %v2190, %v2192
        %v2194 = vadd.f32 %v2190, %v2193
        %vm2195 = vweird.f32 %v2189
        %vm2196 = vweird.f32 %v2190
        %vm2197 = vmor %vm2195, %vm2196
        %v2198 = vsel %vm2197, %v2190, %v2194
        %v2199 = vand.u32 2147483647, %v2189
        %vm2200 = vcmp.eq.f32.partialorder %v2199, 8.507059e+37
        %v2201 = vand.u32 %v2189, 2147483648
        %v2202 = vor.u32 1.1754944e-38, %v2201
        %v2203 = vsel %vm2200, %v2202, %v2198
        %v2204 = vmul.f32 %v2179, %v2203
        %v2205 = vmin.f32 %v2204, 1.0
        %v2206 = vmax.f32 %v2205, -1.0
        %v2207 = vmul.f32 %v1434, %v1434
        %v2208 = vmin.f32 16.0, %v2207
        %v2209 = vmul.f32 %v2208, 2.1237322e-06
        %v2210 = vadd.f32 %v2209, 0.00028619796
        %v2211 = vmul.f32 %v2208, %v2210
        %v2212 = vadd.f32 %v2211, 0.0036580483
        %v2213 = vmul.f32 %v2208, %v2212
        %v2214 = vadd.f32 %v2213, 0.05243302
        %v2215 = vmul.f32 %v2208, %v2214
        %v2216 = vadd.f32 %v2215, 0.18741608
        %v2217 = vmul.f32 %v2208, %v2216
        %v2218 = vadd.f32 %v2217, 1.1283791
        %v2219 = vmul.f32 %v1434, %v2218
        %v2220 = vmul.f32 %v2208, 3.8918573e-05
        %v2221 = vadd.f32 %v2220, 0.001143296
        %v2222 = vmul.f32 %v2208, %v2221
        %v2223 = vadd.f32 %v2222, 0.014752088
        %v2224 = vmul.f32 %v2208, %v2223
        %v2225 = vadd.f32 %v2224, 0.112945676
        %v2226 = vmul.f32 %v2208, %v2225
        %v2227 = vadd.f32 %v2226, 0.4994258
        %v2228 = vmul.f32 %v2208, %v2227
        %v2229 = vadd.f32 %v2228, 1.0
        %v2230 = vrcp.pop %v2229
        %v2231 = vmul.f32 %v2229, %v2230
        %v2232 = vsub.f32 1.0, %v2231
        %v2233 = vmul.f32 %v2230, %v2232
        %v2234 = vadd.f32 %v2230, %v2233
        %vm2235 = vweird.f32 %v2229
        %vm2236 = vweird.f32 %v2230
        %vm2237 = vmor %vm2235, %vm2236
        %v2238 = vsel %vm2237, %v2230, %v2234
        %v2239 = vand.u32 2147483647, %v2229
        %vm2240 = vcmp.eq.f32.partialorder %v2239, 8.507059e+37
        %v2241 = vand.u32 %v2229, 2147483648
        %v2242 = vor.u32 1.1754944e-38, %v2241
        %v2243 = vsel %vm2240, %v2242, %v2238
        %v2244 = vmul.f32 %v2219, %v2243
        %v2245 = vmin.f32 %v2244, 1.0
        %v2246 = vmax.f32 %v2245, -1.0
        %v2247 = vmul.f32 %v1435, %v1435
        %v2248 = vmin.f32 16.0, %v2247
        %v2249 = vmul.f32 %v2248, 2.1237322e-06
        %v2250 = vadd.f32 %v2249, 0.00028619796
        %v2251 = vmul.f32 %v2248, %v2250
        %v2252 = vadd.f32 %v2251, 0.0036580483
        %v2253 = vmul.f32 %v2248, %v2252
        %v2254 = vadd.f32 %v2253, 0.05243302
        %v2255 = vmul.f32 %v2248, %v2254
        %v2256 = vadd.f32 %v2255, 0.18741608
        %v2257 = vmul.f32 %v2248, %v2256
        %v2258 = vadd.f32 %v2257, 1.1283791
        %v2259 = vmul.f32 %v1435, %v2258
        %v2260 = vmul.f32 %v2248, 3.8918573e-05
        %v2261 = vadd.f32 %v2260, 0.001143296
        %v2262 = vmul.f32 %v2248, %v2261
        %v2263 = vadd.f32 %v2262, 0.014752088
        %v2264 = vmul.f32 %v2248, %v2263
        %v2265 = vadd.f32 %v2264, 0.112945676
        %v2266 = vmul.f32 %v2248, %v2265
        %v2267 = vadd.f32 %v2266, 0.4994258
        %v2268 = vmul.f32 %v2248, %v2267
        %v2269 = vadd.f32 %v2268, 1.0
        %v2270 = vrcp.pop %v2269
        %v2271 = vmul.f32 %v2269, %v2270
        %v2272 = vsub.f32 1.0, %v2271
        %v2273 = vmul.f32 %v2270, %v2272
        %v2274 = vadd.f32 %v2270, %v2273
        %vm2275 = vweird.f32 %v2269
        %vm2276 = vweird.f32 %v2270
        %vm2277 = vmor %vm2275, %vm2276
        %v2278 = vsel %vm2277, %v2270, %v2274
        %v2279 = vand.u32 2147483647, %v2269
        %vm2280 = vcmp.eq.f32.partialorder %v2279, 8.507059e+37
        %v2281 = vand.u32 %v2269, 2147483648
        %v2282 = vor.u32 1.1754944e-38, %v2281
        %v2283 = vsel %vm2280, %v2282, %v2278
        %v2284 = vmul.f32 %v2259, %v2283
        %v2285 = vmin.f32 %v2284, 1.0
        %v2286 = vmax.f32 %v2285, -1.0
        %v2287 = vmul.f32 %v1436, %v1436
        %v2288 = vmin.f32 16.0, %v2287
        %v2289 = vmul.f32 %v2288, 2.1237322e-06
        %v2290 = vadd.f32 %v2289, 0.00028619796
        %v2291 = vmul.f32 %v2288, %v2290
        %v2292 = vadd.f32 %v2291, 0.0036580483
        %v2293 = vmul.f32 %v2288, %v2292
        %v2294 = vadd.f32 %v2293, 0.05243302
        %v2295 = vmul.f32 %v2288, %v2294
        %v2296 = vadd.f32 %v2295, 0.18741608
        %v2297 = vmul.f32 %v2288, %v2296
        %v2298 = vadd.f32 %v2297, 1.1283791
        %v2299 = vmul.f32 %v1436, %v2298
        %v2300 = vmul.f32 %v2288, 3.8918573e-05
        %v2301 = vadd.f32 %v2300, 0.001143296
        %v2302 = vmul.f32 %v2288, %v2301
        %v2303 = vadd.f32 %v2302, 0.014752088
        %v2304 = vmul.f32 %v2288, %v2303
        %v2305 = vadd.f32 %v2304, 0.112945676
        %v2306 = vmul.f32 %v2288, %v2305
        %v2307 = vadd.f32 %v2306, 0.4994258
        %v2308 = vmul.f32 %v2288, %v2307
        %v2309 = vadd.f32 %v2308, 1.0
        %v2310 = vrcp.pop %v2309
        %v2311 = vmul.f32 %v2309, %v2310
        %v2312 = vsub.f32 1.0, %v2311
        %v2313 = vmul.f32 %v2310, %v2312
        %v2314 = vadd.f32 %v2310, %v2313
        %vm2315 = vweird.f32 %v2309
        %vm2316 = vweird.f32 %v2310
        %vm2317 = vmor %vm2315, %vm2316
        %v2318 = vsel %vm2317, %v2310, %v2314
        %v2319 = vand.u32 2147483647, %v2309
        %vm2320 = vcmp.eq.f32.partialorder %v2319, 8.507059e+37
        %v2321 = vand.u32 %v2309, 2147483648
        %v2322 = vor.u32 1.1754944e-38, %v2321
        %v2323 = vsel %vm2320, %v2322, %v2318
        %v2324 = vmul.f32 %v2299, %v2323
        %v2325 = vmin.f32 %v2324, 1.0
        %v2326 = vmax.f32 %v2325, -1.0
        %v2327 = vmul.f32 %v1437, %v1437
        %v2328 = vmin.f32 16.0, %v2327
        %v2329 = vmul.f32 %v2328, 2.1237322e-06
        %v2330 = vadd.f32 %v2329, 0.00028619796
        %v2331 = vmul.f32 %v2328, %v2330
        %v2332 = vadd.f32 %v2331, 0.0036580483
        %v2333 = vmul.f32 %v2328, %v2332
        %v2334 = vadd.f32 %v2333, 0.05243302
        %v2335 = vmul.f32 %v2328, %v2334
        %v2336 = vadd.f32 %v2335, 0.18741608
        %v2337 = vmul.f32 %v2328, %v2336
        %v2338 = vadd.f32 %v2337, 1.1283791
        %v2339 = vmul.f32 %v1437, %v2338
        %v2340 = vmul.f32 %v2328, 3.8918573e-05
        %v2341 = vadd.f32 %v2340, 0.001143296
        %v2342 = vmul.f32 %v2328, %v2341
        %v2343 = vadd.f32 %v2342, 0.014752088
        %v2344 = vmul.f32 %v2328, %v2343
        %v2345 = vadd.f32 %v2344, 0.112945676
        %v2346 = vmul.f32 %v2328, %v2345
        %v2347 = vadd.f32 %v2346, 0.4994258
        %v2348 = vmul.f32 %v2328, %v2347
        %v2349 = vadd.f32 %v2348, 1.0
        %v2350 = vrcp.pop %v2349
        %v2351 = vmul.f32 %v2349, %v2350
        %v2352 = vsub.f32 1.0, %v2351
        %v2353 = vmul.f32 %v2350, %v2352
        %v2354 = vadd.f32 %v2350, %v2353
        %vm2355 = vweird.f32 %v2349
        %vm2356 = vweird.f32 %v2350
        %vm2357 = vmor %vm2355, %vm2356
        %v2358 = vsel %vm2357, %v2350, %v2354
        %v2359 = vand.u32 2147483647, %v2349
        %vm2360 = vcmp.eq.f32.partialorder %v2359, 8.507059e+37
        %v2361 = vand.u32 %v2349, 2147483648
        %v2362 = vor.u32 1.1754944e-38, %v2361
        %v2363 = vsel %vm2360, %v2362, %v2358
        %v2364 = vmul.f32 %v2339, %v2363
        %v2365 = vmin.f32 %v2364, 1.0
        %v2366 = vmax.f32 %v2365, -1.0
        %v2367 = vmul.f32 %v1438, %v1438
        %v2368 = vmin.f32 16.0, %v2367
        %v2369 = vmul.f32 %v2368, 2.1237322e-06
        %v2370 = vadd.f32 %v2369, 0.00028619796
        %v2371 = vmul.f32 %v2368, %v2370
        %v2372 = vadd.f32 %v2371, 0.0036580483
        %v2373 = vmul.f32 %v2368, %v2372
        %v2374 = vadd.f32 %v2373, 0.05243302
        %v2375 = vmul.f32 %v2368, %v2374
        %v2376 = vadd.f32 %v2375, 0.18741608
        %v2377 = vmul.f32 %v2368, %v2376
        %v2378 = vadd.f32 %v2377, 1.1283791
        %v2379 = vmul.f32 %v1438, %v2378
        %v2380 = vmul.f32 %v2368, 3.8918573e-05
        %v2381 = vadd.f32 %v2380, 0.001143296
        %v2382 = vmul.f32 %v2368, %v2381
        %v2383 = vadd.f32 %v2382, 0.014752088
        %v2384 = vmul.f32 %v2368, %v2383
        %v2385 = vadd.f32 %v2384, 0.112945676
        %v2386 = vmul.f32 %v2368, %v2385
        %v2387 = vadd.f32 %v2386, 0.4994258
        %v2388 = vmul.f32 %v2368, %v2387
        %v2389 = vadd.f32 %v2388, 1.0
        %v2390 = vrcp.pop %v2389
        %v2391 = vmul.f32 %v2389, %v2390
        %v2392 = vsub.f32 1.0, %v2391
        %v2393 = vmul.f32 %v2390, %v2392
        %v2394 = vadd.f32 %v2390, %v2393
        %vm2395 = vweird.f32 %v2389
        %vm2396 = vweird.f32 %v2390
        %vm2397 = vmor %vm2395, %vm2396
        %v2398 = vsel %vm2397, %v2390, %v2394
        %v2399 = vand.u32 2147483647, %v2389
        %vm2400 = vcmp.eq.f32.partialorder %v2399, 8.507059e+37
        %v2401 = vand.u32 %v2389, 2147483648
        %v2402 = vor.u32 1.1754944e-38, %v2401
        %v2403 = vsel %vm2400, %v2402, %v2398
        %v2404 = vmul.f32 %v2379, %v2403
        %v2405 = vmin.f32 %v2404, 1.0
        %v2406 = vmax.f32 %v2405, -1.0
        %v2407 = vmul.f32 %v1439, %v1439
        %v2408 = vmin.f32 16.0, %v2407
        %v2409 = vmul.f32 %v2408, 2.1237322e-06
        %v2410 = vadd.f32 %v2409, 0.00028619796
        %v2411 = vmul.f32 %v2408, %v2410
        %v2412 = vadd.f32 %v2411, 0.0036580483
        %v2413 = vmul.f32 %v2408, %v2412
        %v2414 = vadd.f32 %v2413, 0.05243302
        %v2415 = vmul.f32 %v2408, %v2414
        %v2416 = vadd.f32 %v2415, 0.18741608
        %v2417 = vmul.f32 %v2408, %v2416
        %v2418 = vadd.f32 %v2417, 1.1283791
        %v2419 = vmul.f32 %v1439, %v2418
        %v2420 = vmul.f32 %v2408, 3.8918573e-05
        %v2421 = vadd.f32 %v2420, 0.001143296
        %v2422 = vmul.f32 %v2408, %v2421
        %v2423 = vadd.f32 %v2422, 0.014752088
        %v2424 = vmul.f32 %v2408, %v2423
        %v2425 = vadd.f32 %v2424, 0.112945676
        %v2426 = vmul.f32 %v2408, %v2425
        %v2427 = vadd.f32 %v2426, 0.4994258
        %v2428 = vmul.f32 %v2408, %v2427
        %v2429 = vadd.f32 %v2428, 1.0
        %v2430 = vrcp.pop %v2429
        %v2431 = vmul.f32 %v2429, %v2430
        %v2432 = vsub.f32 1.0, %v2431
        %v2433 = vmul.f32 %v2430, %v2432
        %v2434 = vadd.f32 %v2430, %v2433
        %vm2435 = vweird.f32 %v2429
        %vm2436 = vweird.f32 %v2430
        %vm2437 = vmor %vm2435, %vm2436
        %v2438 = vsel %vm2437, %v2430, %v2434
        %v2439 = vand.u32 2147483647, %v2429
        %vm2440 = vcmp.eq.f32.partialorder %v2439, 8.507059e+37
        %v2441 = vand.u32 %v2429, 2147483648
        %v2442 = vor.u32 1.1754944e-38, %v2441
        %v2443 = vsel %vm2440, %v2442, %v2438
        %v2444 = vmul.f32 %v2419, %v2443
        %v2445 = vmin.f32 %v2444, 1.0
        %v2446 = vmax.f32 %v2445, -1.0
        %v2447 = vmul.f32 %v1440, %v1440
        %v2448 = vmin.f32 16.0, %v2447
        %v2449 = vmul.f32 %v2448, 2.1237322e-06
        %v2450 = vadd.f32 %v2449, 0.00028619796
        %v2451 = vmul.f32 %v2448, %v2450
        %v2452 = vadd.f32 %v2451, 0.0036580483
        %v2453 = vmul.f32 %v2448, %v2452
        %v2454 = vadd.f32 %v2453, 0.05243302
        %v2455 = vmul.f32 %v2448, %v2454
        %v2456 = vadd.f32 %v2455, 0.18741608
        %v2457 = vmul.f32 %v2448, %v2456
        %v2458 = vadd.f32 %v2457, 1.1283791
        %v2459 = vmul.f32 %v1440, %v2458
        %v2460 = vmul.f32 %v2448, 3.8918573e-05
        %v2461 = vadd.f32 %v2460, 0.001143296
        %v2462 = vmul.f32 %v2448, %v2461
        %v2463 = vadd.f32 %v2462, 0.014752088
        %v2464 = vmul.f32 %v2448, %v2463
        %v2465 = vadd.f32 %v2464, 0.112945676
        %v2466 = vmul.f32 %v2448, %v2465
        %v2467 = vadd.f32 %v2466, 0.4994258
        %v2468 = vmul.f32 %v2448, %v2467
        %v2469 = vadd.f32 %v2468, 1.0
        %v2470 = vrcp.pop %v2469
        %v2471 = vmul.f32 %v2469, %v2470
        %v2472 = vsub.f32 1.0, %v2471
        %v2473 = vmul.f32 %v2470, %v2472
        %v2474 = vadd.f32 %v2470, %v2473
        %vm2475 = vweird.f32 %v2469
        %vm2476 = vweird.f32 %v2470
        %vm2477 = vmor %vm2475, %vm2476
        %v2478 = vsel %vm2477, %v2470, %v2474
        %v2479 = vand.u32 2147483647, %v2469
        %vm2480 = vcmp.eq.f32.partialorder %v2479, 8.507059e+37
        %v2481 = vand.u32 %v2469, 2147483648
        %v2482 = vor.u32 1.1754944e-38, %v2481
        %v2483 = vsel %vm2480, %v2482, %v2478
        %v2484 = vmul.f32 %v2459, %v2483
        %v2485 = vmin.f32 %v2484, 1.0
        %v2486 = vmax.f32 %v2485, -1.0
        %v2487 = vmul.f32 %v1441, %v1441
        %v2488 = vmin.f32 16.0, %v2487
        %v2489 = vmul.f32 %v2488, 2.1237322e-06
        %v2490 = vadd.f32 %v2489, 0.00028619796
        %v2491 = vmul.f32 %v2488, %v2490
        %v2492 = vadd.f32 %v2491, 0.0036580483
        %v2493 = vmul.f32 %v2488, %v2492
        %v2494 = vadd.f32 %v2493, 0.05243302
        %v2495 = vmul.f32 %v2488, %v2494
        %v2496 = vadd.f32 %v2495, 0.18741608
        %v2497 = vmul.f32 %v2488, %v2496
        %v2498 = vadd.f32 %v2497, 1.1283791
        %v2499 = vmul.f32 %v1441, %v2498
        %v2500 = vmul.f32 %v2488, 3.8918573e-05
        %v2501 = vadd.f32 %v2500, 0.001143296
        %v2502 = vmul.f32 %v2488, %v2501
        %v2503 = vadd.f32 %v2502, 0.014752088
        %v2504 = vmul.f32 %v2488, %v2503
        %v2505 = vadd.f32 %v2504, 0.112945676
        %v2506 = vmul.f32 %v2488, %v2505
        %v2507 = vadd.f32 %v2506, 0.4994258
        %v2508 = vmul.f32 %v2488, %v2507
        %v2509 = vadd.f32 %v2508, 1.0
        %v2510 = vrcp.pop %v2509
        %v2511 = vmul.f32 %v2509, %v2510
        %v2512 = vsub.f32 1.0, %v2511
        %v2513 = vmul.f32 %v2510, %v2512
        %v2514 = vadd.f32 %v2510, %v2513
        %vm2515 = vweird.f32 %v2509
        %vm2516 = vweird.f32 %v2510
        %vm2517 = vmor %vm2515, %vm2516
        %v2518 = vsel %vm2517, %v2510, %v2514
        %v2519 = vand.u32 2147483647, %v2509
        %vm2520 = vcmp.eq.f32.partialorder %v2519, 8.507059e+37
        %v2521 = vand.u32 %v2509, 2147483648
        %v2522 = vor.u32 1.1754944e-38, %v2521
        %v2523 = vsel %vm2520, %v2522, %v2518
        %v2524 = vmul.f32 %v2499, %v2523
        %v2525 = vmin.f32 %v2524, 1.0
        %v2526 = vmax.f32 %v2525, -1.0
        %v2527 = vmul.f32 %v1442, %v1442
        %v2528 = vmin.f32 16.0, %v2527
        %v2529 = vmul.f32 %v2528, 2.1237322e-06
        %v2530 = vadd.f32 %v2529, 0.00028619796
        %v2531 = vmul.f32 %v2528, %v2530
        %v2532 = vadd.f32 %v2531, 0.0036580483
        %v2533 = vmul.f32 %v2528, %v2532
        %v2534 = vadd.f32 %v2533, 0.05243302
        %v2535 = vmul.f32 %v2528, %v2534
        %v2536 = vadd.f32 %v2535, 0.18741608
        %v2537 = vmul.f32 %v2528, %v2536
        %v2538 = vadd.f32 %v2537, 1.1283791
        %v2539 = vmul.f32 %v1442, %v2538
        %v2540 = vmul.f32 %v2528, 3.8918573e-05
        %v2541 = vadd.f32 %v2540, 0.001143296
        %v2542 = vmul.f32 %v2528, %v2541
        %v2543 = vadd.f32 %v2542, 0.014752088
        %v2544 = vmul.f32 %v2528, %v2543
        %v2545 = vadd.f32 %v2544, 0.112945676
        %v2546 = vmul.f32 %v2528, %v2545
        %v2547 = vadd.f32 %v2546, 0.4994258
        %v2548 = vmul.f32 %v2528, %v2547
        %v2549 = vadd.f32 %v2548, 1.0
        %v2550 = vrcp.pop %v2549
        %v2551 = vmul.f32 %v2549, %v2550
        %v2552 = vsub.f32 1.0, %v2551
        %v2553 = vmul.f32 %v2550, %v2552
        %v2554 = vadd.f32 %v2550, %v2553
        %vm2555 = vweird.f32 %v2549
        %vm2556 = vweird.f32 %v2550
        %vm2557 = vmor %vm2555, %vm2556
        %v2558 = vsel %vm2557, %v2550, %v2554
        %v2559 = vand.u32 2147483647, %v2549
        %vm2560 = vcmp.eq.f32.partialorder %v2559, 8.507059e+37
        %v2561 = vand.u32 %v2549, 2147483648
        %v2562 = vor.u32 1.1754944e-38, %v2561
        %v2563 = vsel %vm2560, %v2562, %v2558
        %v2564 = vmul.f32 %v2539, %v2563
        %v2565 = vmin.f32 %v2564, 1.0
        %v2566 = vmax.f32 %v2565, -1.0
        %v2567 = vmul.f32 %v1443, %v1443
        %v2568 = vmin.f32 16.0, %v2567
        %v2569 = vmul.f32 %v2568, 2.1237322e-06
        %v2570 = vadd.f32 %v2569, 0.00028619796
        %v2571 = vmul.f32 %v2568, %v2570
        %v2572 = vadd.f32 %v2571, 0.0036580483
        %v2573 = vmul.f32 %v2568, %v2572
        %v2574 = vadd.f32 %v2573, 0.05243302
        %v2575 = vmul.f32 %v2568, %v2574
        %v2576 = vadd.f32 %v2575, 0.18741608
        %v2577 = vmul.f32 %v2568, %v2576
        %v2578 = vadd.f32 %v2577, 1.1283791
        %v2579 = vmul.f32 %v1443, %v2578
        %v2580 = vmul.f32 %v2568, 3.8918573e-05
        %v2581 = vadd.f32 %v2580, 0.001143296
        %v2582 = vmul.f32 %v2568, %v2581
        %v2583 = vadd.f32 %v2582, 0.014752088
        %v2584 = vmul.f32 %v2568, %v2583
        %v2585 = vadd.f32 %v2584, 0.112945676
        %v2586 = vmul.f32 %v2568, %v2585
        %v2587 = vadd.f32 %v2586, 0.4994258
        %v2588 = vmul.f32 %v2568, %v2587
        %v2589 = vadd.f32 %v2588, 1.0
        %v2590 = vrcp.pop %v2589
        %v2591 = vmul.f32 %v2589, %v2590
        %v2592 = vsub.f32 1.0, %v2591
        %v2593 = vmul.f32 %v2590, %v2592
        %v2594 = vadd.f32 %v2590, %v2593
        %vm2595 = vweird.f32 %v2589
        %vm2596 = vweird.f32 %v2590
        %vm2597 = vmor %vm2595, %vm2596
        %v2598 = vsel %vm2597, %v2590, %v2594
        %v2599 = vand.u32 2147483647, %v2589
        %vm2600 = vcmp.eq.f32.partialorder %v2599, 8.507059e+37
        %v2601 = vand.u32 %v2589, 2147483648
        %v2602 = vor.u32 1.1754944e-38, %v2601
        %v2603 = vsel %vm2600, %v2602, %v2598
        %v2604 = vmul.f32 %v2579, %v2603
        %v2605 = vmin.f32 %v2604, 1.0
        %v2606 = vmax.f32 %v2605, -1.0
        %v2607 = vmul.f32 %v1444, %v1444
        %v2608 = vmin.f32 16.0, %v2607
        %v2609 = vmul.f32 %v2608, 2.1237322e-06
        %v2610 = vadd.f32 %v2609, 0.00028619796
        %v2611 = vmul.f32 %v2608, %v2610
        %v2612 = vadd.f32 %v2611, 0.0036580483
        %v2613 = vmul.f32 %v2608, %v2612
        %v2614 = vadd.f32 %v2613, 0.05243302
        %v2615 = vmul.f32 %v2608, %v2614
        %v2616 = vadd.f32 %v2615, 0.18741608
        %v2617 = vmul.f32 %v2608, %v2616
        %v2618 = vadd.f32 %v2617, 1.1283791
        %v2619 = vmul.f32 %v1444, %v2618
        %v2620 = vmul.f32 %v2608, 3.8918573e-05
        %v2621 = vadd.f32 %v2620, 0.001143296
        %v2622 = vmul.f32 %v2608, %v2621
        %v2623 = vadd.f32 %v2622, 0.014752088
        %v2624 = vmul.f32 %v2608, %v2623
        %v2625 = vadd.f32 %v2624, 0.112945676
        %v2626 = vmul.f32 %v2608, %v2625
        %v2627 = vadd.f32 %v2626, 0.4994258
        %v2628 = vmul.f32 %v2608, %v2627
        %v2629 = vadd.f32 %v2628, 1.0
        %v2630 = vrcp.pop %v2629
        %v2631 = vmul.f32 %v2629, %v2630
        %v2632 = vsub.f32 1.0, %v2631
        %v2633 = vmul.f32 %v2630, %v2632
        %v2634 = vadd.f32 %v2630, %v2633
        %vm2635 = vweird.f32 %v2629
        %vm2636 = vweird.f32 %v2630
        %vm2637 = vmor %vm2635, %vm2636
        %v2638 = vsel %vm2637, %v2630, %v2634
        %v2639 = vand.u32 2147483647, %v2629
        %vm2640 = vcmp.eq.f32.partialorder %v2639, 8.507059e+37
        %v2641 = vand.u32 %v2629, 2147483648
        %v2642 = vor.u32 1.1754944e-38, %v2641
        %v2643 = vsel %vm2640, %v2642, %v2638
        %v2644 = vmul.f32 %v2619, %v2643
        %v2645 = vmin.f32 %v2644, 1.0
        %v2646 = vmax.f32 %v2645, -1.0
        %v2647 = vmul.f32 %v1445, %v1445
        %v2648 = vmin.f32 16.0, %v2647
        %v2649 = vmul.f32 %v2648, 2.1237322e-06
        %v2650 = vadd.f32 %v2649, 0.00028619796
        %v2651 = vmul.f32 %v2648, %v2650
        %v2652 = vadd.f32 %v2651, 0.0036580483
        %v2653 = vmul.f32 %v2648, %v2652
        %v2654 = vadd.f32 %v2653, 0.05243302
        %v2655 = vmul.f32 %v2648, %v2654
        %v2656 = vadd.f32 %v2655, 0.18741608
        %v2657 = vmul.f32 %v2648, %v2656
        %v2658 = vadd.f32 %v2657, 1.1283791
        %v2659 = vmul.f32 %v1445, %v2658
        %v2660 = vmul.f32 %v2648, 3.8918573e-05
        %v2661 = vadd.f32 %v2660, 0.001143296
        %v2662 = vmul.f32 %v2648, %v2661
        %v2663 = vadd.f32 %v2662, 0.014752088
        %v2664 = vmul.f32 %v2648, %v2663
        %v2665 = vadd.f32 %v2664, 0.112945676
        %v2666 = vmul.f32 %v2648, %v2665
        %v2667 = vadd.f32 %v2666, 0.4994258
        %v2668 = vmul.f32 %v2648, %v2667
        %v2669 = vadd.f32 %v2668, 1.0
        %v2670 = vrcp.pop %v2669
        %v2671 = vmul.f32 %v2669, %v2670
        %v2672 = vsub.f32 1.0, %v2671
        %v2673 = vmul.f32 %v2670, %v2672
        %v2674 = vadd.f32 %v2670, %v2673
        %vm2675 = vweird.f32 %v2669
        %vm2676 = vweird.f32 %v2670
        %vm2677 = vmor %vm2675, %vm2676
        %v2678 = vsel %vm2677, %v2670, %v2674
        %v2679 = vand.u32 2147483647, %v2669
        %vm2680 = vcmp.eq.f32.partialorder %v2679, 8.507059e+37
        %v2681 = vand.u32 %v2669, 2147483648
        %v2682 = vor.u32 1.1754944e-38, %v2681
        %v2683 = vsel %vm2680, %v2682, %v2678
        %v2684 = vmul.f32 %v2659, %v2683
        %v2685 = vmin.f32 %v2684, 1.0
        %v2686 = vmax.f32 %v2685, -1.0
        %v2687 = vmul.f32 %v1446, %v1446
        %v2688 = vmin.f32 16.0, %v2687
        %v2689 = vmul.f32 %v2688, 2.1237322e-06
        %v2690 = vadd.f32 %v2689, 0.00028619796
        %v2691 = vmul.f32 %v2688, %v2690
        %v2692 = vadd.f32 %v2691, 0.0036580483
        %v2693 = vmul.f32 %v2688, %v2692
        %v2694 = vadd.f32 %v2693, 0.05243302
        %v2695 = vmul.f32 %v2688, %v2694
        %v2696 = vadd.f32 %v2695, 0.18741608
        %v2697 = vmul.f32 %v2688, %v2696
        %v2698 = vadd.f32 %v2697, 1.1283791
        %v2699 = vmul.f32 %v1446, %v2698
        %v2700 = vmul.f32 %v2688, 3.8918573e-05
        %v2701 = vadd.f32 %v2700, 0.001143296
        %v2702 = vmul.f32 %v2688, %v2701
        %v2703 = vadd.f32 %v2702, 0.014752088
        %v2704 = vmul.f32 %v2688, %v2703
        %v2705 = vadd.f32 %v2704, 0.112945676
        %v2706 = vmul.f32 %v2688, %v2705
        %v2707 = vadd.f32 %v2706, 0.4994258
        %v2708 = vmul.f32 %v2688, %v2707
        %v2709 = vadd.f32 %v2708, 1.0
        %v2710 = vrcp.pop %v2709
        %v2711 = vmul.f32 %v2709, %v2710
        %v2712 = vsub.f32 1.0, %v2711
        %v2713 = vmul.f32 %v2710, %v2712
        %v2714 = vadd.f32 %v2710, %v2713
        %vm2715 = vweird.f32 %v2709
        %vm2716 = vweird.f32 %v2710
        %vm2717 = vmor %vm2715, %vm2716
        %v2718 = vsel %vm2717, %v2710, %v2714
        %v2719 = vand.u32 2147483647, %v2709
        %vm2720 = vcmp.eq.f32.partialorder %v2719, 8.507059e+37
        %v2721 = vand.u32 %v2709, 2147483648
        %v2722 = vor.u32 1.1754944e-38, %v2721
        %v2723 = vsel %vm2720, %v2722, %v2718
        %v2724 = vmul.f32 %v2699, %v2723
        %v2725 = vmin.f32 %v2724, 1.0
        %v2726 = vmax.f32 %v2725, -1.0
        %v2727 = vadd.f32 %v1486, 1.0
        %v2728 = vadd.f32 %v1526, 1.0
        %v2729 = vadd.f32 %v1566, 1.0
        %v2730 = vadd.f32 %v1606, 1.0
        %v2731 = vadd.f32 %v1646, 1.0
        %v2732 = vadd.f32 %v1686, 1.0
        %v2733 = vadd.f32 %v1726, 1.0
        %v2734 = vadd.f32 %v1766, 1.0
        %v2735 = vadd.f32 %v1806, 1.0
        %v2736 = vadd.f32 %v1846, 1.0
        %v2737 = vadd.f32 %v1886, 1.0
        %v2738 = vadd.f32 %v1926, 1.0
        %v2739 = vadd.f32 %v1966, 1.0
        %v2740 = vadd.f32 %v2006, 1.0
        %v2741 = vadd.f32 %v2046, 1.0
        %v2742 = vadd.f32 %v2086, 1.0
        %v2743 = vadd.f32 %v2126, 1.0
        %v2744 = vadd.f32 %v2166, 1.0
        %v2745 = vadd.f32 %v2206, 1.0
        %v2746 = vadd.f32 %v2246, 1.0
        %v2747 = vadd.f32 %v2286, 1.0
        %v2748 = vadd.f32 %v2326, 1.0
        %v2749 = vadd.f32 %v2366, 1.0
        %v2750 = vadd.f32 %v2406, 1.0
        %v2751 = vadd.f32 %v2446, 1.0
        %v2752 = vadd.f32 %v2486, 1.0
        %v2753 = vadd.f32 %v2526, 1.0
        %v2754 = vadd.f32 %v2566, 1.0
        %v2755 = vadd.f32 %v2606, 1.0
        %v2756 = vadd.f32 %v2646, 1.0
        %v2757 = vadd.f32 %v2686, 1.0
        %v2758 = vadd.f32 %v2726, 1.0
        %v2759 = vmul.f32 %v1383, %v2727
        %v2760 = vmul.f32 %v1384, %v2728
        %v2761 = vmul.f32 %v1385, %v2729
        %v2762 = vmul.f32 %v1386, %v2730
        %v2763 = vmul.f32 %v1387, %v2731
        %v2764 = vmul.f32 %v1388, %v2732
        %v2765 = vmul.f32 %v1389, %v2733
        %v2766 = vmul.f32 %v1390, %v2734
        %v2767 = vmul.f32 %v1391, %v2735
        %v2768 = vmul.f32 %v1392, %v2736
        %v2769 = vmul.f32 %v1393, %v2737
        %v2770 = vmul.f32 %v1394, %v2738
        %v2771 = vmul.f32 %v1395, %v2739
        %v2772 = vmul.f32 %v1396, %v2740
        %v2773 = vmul.f32 %v1397, %v2741
        %v2774 = vmul.f32 %v1398, %v2742
        %v2775 = vmul.f32 %v1399, %v2743
        %v2776 = vmul.f32 %v1400, %v2744
        %v2777 = vmul.f32 %v1401, %v2745
        %v2778 = vmul.f32 %v1402, %v2746
        %v2779 = vmul.f32 %v1403, %v2747
        %v2780 = vmul.f32 %v1404, %v2748
        %v2781 = vmul.f32 %v1405, %v2749
        %v2782 = vmul.f32 %v1406, %v2750
        %v2783 = vmul.f32 %v1407, %v2751
        %v2784 = vmul.f32 %v1408, %v2752
        %v2785 = vmul.f32 %v1409, %v2753
        %v2786 = vmul.f32 %v1410, %v2754
        %v2787 = vmul.f32 %v1411, %v2755
        %v2788 = vmul.f32 %v1412, %v2756
        %v2789 = vmul.f32 %v1413, %v2757
        %v2790 = vmul.f32 %v1414, %v2758
        %v2791 = vpack.c.bf16 %v2760, %v2759
        %v2792 = vpack.c.bf16 %v2762, %v2761
        %v2793 = vpack.c.bf16 %v2764, %v2763
        %v2794 = vpack.c.bf16 %v2766, %v2765
        %v2795 = vpack.c.bf16 %v2768, %v2767
        %v2796 = vpack.c.bf16 %v2770, %v2769
        %v2797 = vpack.c.bf16 %v2772, %v2771
        %v2798 = vpack.c.bf16 %v2774, %v2773
        %v2799 = vpack.c.bf16 %v2776, %v2775
        %v2800 = vpack.c.bf16 %v2778, %v2777
        %v2801 = vpack.c.bf16 %v2780, %v2779
        %v2802 = vpack.c.bf16 %v2782, %v2781
        %v2803 = vpack.c.bf16 %v2784, %v2783
        %v2804 = vpack.c.bf16 %v2786, %v2785
        %v2805 = vpack.c.bf16 %v2788, %v2787
        %v2806 = vpack.c.bf16 %v2790, %v2789
        %v2807 = vld [vmem:[%s6] sm:$0xf]
        %v2808 = vld [vmem:[%s6 + $0x4] sm:$0xf]
        %v2809 = vld [vmem:[%s6 + $0x8] sm:$0xf]
        %v2810 = vld [vmem:[%s6 + $0xc] sm:$0xf]
        %v2811 = vld [vmem:[%s6 + $0x10] sm:$0xf]
        %v2812 = vld [vmem:[%s6 + $0x14] sm:$0xf]
        %v2813 = vld [vmem:[%s6 + $0x18] sm:$0xf]
        %v2814 = vld [vmem:[%s6 + $0x1c] sm:$0xf]
        %v2815 = vld [vmem:[%s7] sm:$0x1]
        %v2817 = vperm.slane %v2815, 0
        %v2827 = vunpack.c.l.b16 %v2807
        %v2828 = vunpack.c.l.b16 %v2808
        %v2829 = vunpack.c.l.b16 %v2809
        %v2830 = vunpack.c.l.b16 %v2810
        %v2831 = vunpack.c.l.b16 %v2811
        %v2832 = vunpack.c.l.b16 %v2812
        %v2833 = vunpack.c.l.b16 %v2813
        %v2834 = vunpack.c.l.b16 %v2814
        %v2835 = vpack.c.b16 %v2828, %v2827
        %v2836 = vpack.c.b16 %v2830, %v2829
        %v2837 = vpack.c.b16 %v2832, %v2831
        %v2838 = vpack.c.b16 %v2834, %v2833
        %vm2843 = vcmask 523264
        %v2845 = vsel %vm2843, %v2791, 0
        %v2848 = vsel %vm2843, %v2792, 0
        %v2851 = vsel %vm2843, %v2793, 0
        %v2854 = vsel %vm2843, %v2794, 0
        %v2857 = vsel %vm2843, %v2795, 0
        %v2860 = vsel %vm2843, %v2796, 0
        %v2863 = vsel %vm2843, %v2797, 0
        %v2866 = vsel %vm2843, %v2798, 0
        %v2869 = vsel %vm2843, %v2799, 0
        %v2872 = vsel %vm2843, %v2800, 0
        %v2875 = vsel %vm2843, %v2801, 0
        %v2878 = vsel %vm2843, %v2802, 0
        %v2881 = vsel %vm2843, %v2803, 0
        %v2884 = vsel %vm2843, %v2804, 0
        %v2887 = vsel %vm2843, %v2805, 0
        %v2890 = vsel %vm2843, %v2806, 0
        %2892 = vmatpush.bf16.msra.mxu0 0
        %2893 = vmatpush.bf16.msra.mxu0 0
        %2894 = vmatpush.bf16.msra.mxu0 0
        %2895 = vmatpush.bf16.msra.mxu0 0
        %2896 = vmatpush.bf16.msra.mxu0 %v2838
        %2897 = vmatpush.bf16.msra.mxu0 %v2837
        %2898 = vmatpush.bf16.msra.mxu0 %v2836
        %2899 = vmatpush.bf16.msra.mxu0 %v2835
        %2900 = vmatmul.bf16.gmra.mxu0 %v2845
        %v2901 = vpop.f32.mrf.mxu0
        %v2902 = vadd.f32 %v2817, %v2901
        %v2903 = vpop.f32.mrf.mxu0
        %v2904 = vadd.f32 %v2817, %v2903
        %2905 = vmatmul.bf16.gmra.mxu0 %v2848
        %v2906 = vpop.f32.mrf.mxu0
        %v2907 = vadd.f32 %v2817, %v2906
        %v2908 = vpop.f32.mrf.mxu0
        %v2909 = vadd.f32 %v2817, %v2908
        %2910 = vmatmul.bf16.gmra.mxu0 %v2851
        %v2911 = vpop.f32.mrf.mxu0
        %v2912 = vadd.f32 %v2817, %v2911
        %v2913 = vpop.f32.mrf.mxu0
        %v2914 = vadd.f32 %v2817, %v2913
        %2915 = vmatmul.bf16.gmra.mxu0 %v2854
        %v2916 = vpop.f32.mrf.mxu0
        %v2917 = vadd.f32 %v2817, %v2916
        %v2918 = vpop.f32.mrf.mxu0
        %v2919 = vadd.f32 %v2817, %v2918
        %2920 = vmatmul.bf16.gmra.mxu0 %v2857
        %v2921 = vpop.f32.mrf.mxu0
        %v2922 = vadd.f32 %v2817, %v2921
        %v2923 = vpop.f32.mrf.mxu0
        %v2924 = vadd.f32 %v2817, %v2923
        %2925 = vmatmul.bf16.gmra.mxu0 %v2860
        %v2926 = vpop.f32.mrf.mxu0
        %v2927 = vadd.f32 %v2817, %v2926
        %v2928 = vpop.f32.mrf.mxu0
        %v2929 = vadd.f32 %v2817, %v2928
        %2930 = vmatmul.bf16.gmra.mxu0 %v2863
        %v2931 = vpop.f32.mrf.mxu0
        %v2932 = vadd.f32 %v2817, %v2931
        %v2933 = vpop.f32.mrf.mxu0
        %v2934 = vadd.f32 %v2817, %v2933
        %2935 = vmatmul.bf16.gmra.mxu0 %v2866
        %v2936 = vpop.f32.mrf.mxu0
        %v2937 = vadd.f32 %v2817, %v2936
        %v2938 = vpop.f32.mrf.mxu0
        %v2939 = vadd.f32 %v2817, %v2938
        %2940 = vmatmul.bf16.gmra.mxu0 %v2869
        %v2941 = vpop.f32.mrf.mxu0
        %v2942 = vadd.f32 %v2817, %v2941
        %v2943 = vpop.f32.mrf.mxu0
        %v2944 = vadd.f32 %v2817, %v2943
        %2945 = vmatmul.bf16.gmra.mxu0 %v2872
        %v2946 = vpop.f32.mrf.mxu0
        %v2947 = vadd.f32 %v2817, %v2946
        %v2948 = vpop.f32.mrf.mxu0
        %v2949 = vadd.f32 %v2817, %v2948
        %2950 = vmatmul.bf16.gmra.mxu0 %v2875
        %v2951 = vpop.f32.mrf.mxu0
        %v2952 = vadd.f32 %v2817, %v2951
        %v2953 = vpop.f32.mrf.mxu0
        %v2954 = vadd.f32 %v2817, %v2953
        %2955 = vmatmul.bf16.gmra.mxu0 %v2878
        %v2956 = vpop.f32.mrf.mxu0
        %v2957 = vadd.f32 %v2817, %v2956
        %v2958 = vpop.f32.mrf.mxu0
        %v2959 = vadd.f32 %v2817, %v2958
        %2960 = vmatmul.bf16.gmra.mxu0 %v2881
        %v2961 = vpop.f32.mrf.mxu0
        %v2962 = vadd.f32 %v2817, %v2961
        %v2963 = vpop.f32.mrf.mxu0
        %v2964 = vadd.f32 %v2817, %v2963
        %2965 = vmatmul.bf16.gmra.mxu0 %v2884
        %v2966 = vpop.f32.mrf.mxu0
        %v2967 = vadd.f32 %v2817, %v2966
        %v2968 = vpop.f32.mrf.mxu0
        %v2969 = vadd.f32 %v2817, %v2968
        %2970 = vmatmul.bf16.gmra.mxu0 %v2887
        %v2971 = vpop.f32.mrf.mxu0
        %v2972 = vadd.f32 %v2817, %v2971
        %v2973 = vpop.f32.mrf.mxu0
        %v2974 = vadd.f32 %v2817, %v2973
        %2975 = vmatmul.bf16.gmra.mxu0 %v2890
        %v2976 = vpop.f32.mrf.mxu0
        %v2977 = vadd.f32 %v2817, %v2976
        %v2978 = vpop.f32.mrf.mxu0
        %v2979 = vadd.f32 %v2817, %v2978
        %2980 = vdwg.mxu0
        %v2981 = vadd.f32 %v2902, %v394
        %v2982 = vadd.f32 %v2904, %v395
        %v2983 = vadd.f32 %v2907, %v396
        %v2984 = vadd.f32 %v2909, %v397
        %v2985 = vadd.f32 %v2912, %v398
        %v2986 = vadd.f32 %v2914, %v399
        %v2987 = vadd.f32 %v2917, %v400
        %v2988 = vadd.f32 %v2919, %v401
        %v2989 = vadd.f32 %v2922, %v402
        %v2990 = vadd.f32 %v2924, %v403
        %v2991 = vadd.f32 %v2927, %v404
        %v2992 = vadd.f32 %v2929, %v405
        %v2993 = vadd.f32 %v2932, %v406
        %v2994 = vadd.f32 %v2934, %v407
        %v2995 = vadd.f32 %v2937, %v408
        %v2996 = vadd.f32 %v2939, %v409
        %v2997 = vadd.f32 %v2942, %v410
        %v2998 = vadd.f32 %v2944, %v411
        %v2999 = vadd.f32 %v2947, %v412
        %v3000 = vadd.f32 %v2949, %v413
        %v3001 = vadd.f32 %v2952, %v414
        %v3002 = vadd.f32 %v2954, %v415
        %v3003 = vadd.f32 %v2957, %v416
        %v3004 = vadd.f32 %v2959, %v417
        %v3005 = vadd.f32 %v2962, %v418
        %v3006 = vadd.f32 %v2964, %v419
        %v3007 = vadd.f32 %v2967, %v420
        %v3008 = vadd.f32 %v2969, %v421
        %v3009 = vadd.f32 %v2972, %v422
        %v3010 = vadd.f32 %v2974, %v423
        %v3011 = vadd.f32 %v2977, %v424
        %v3012 = vadd.f32 %v2979, %v425
        %3013 = vst.msk [vmem:[%s315] sm:$0xff] %vm426, %v2981
        %3014 = vst.msk [vmem:[%s315 + $0x8] sm:$0xff] %vm426, %v2982
        %3015 = vst.msk [vmem:[%s315 + $0x10] sm:$0xff] %vm426, %v2983
        %3016 = vst.msk [vmem:[%s315 + $0x18] sm:$0xff] %vm426, %v2984
        %3017 = vst.msk [vmem:[%s315 + $0x20] sm:$0xff] %vm426, %v2985
        %3018 = vst.msk [vmem:[%s315 + $0x28] sm:$0xff] %vm426, %v2986
        %3019 = vst.msk [vmem:[%s315 + $0x30] sm:$0xff] %vm426, %v2987
        %3020 = vst.msk [vmem:[%s315 + $0x38] sm:$0xff] %vm426, %v2988
        %3021 = vst.msk [vmem:[%s315 + $0x40] sm:$0xff] %vm426, %v2989
        %3022 = vst.msk [vmem:[%s315 + $0x48] sm:$0xff] %vm426, %v2990
        %3023 = vst.msk [vmem:[%s315 + $0x50] sm:$0xff] %vm426, %v2991
        %3024 = vst.msk [vmem:[%s315 + $0x58] sm:$0xff] %vm426, %v2992
        %3025 = vst.msk [vmem:[%s315 + $0x60] sm:$0xff] %vm426, %v2993
        %3026 = vst.msk [vmem:[%s315 + $0x68] sm:$0xff] %vm426, %v2994
        %3027 = vst.msk [vmem:[%s315 + $0x70] sm:$0xff] %vm426, %v2995
        %3028 = vst.msk [vmem:[%s315 + $0x78] sm:$0xff] %vm426, %v2996
        %3029 = vst.msk [vmem:[%s315 + $0x80] sm:$0xff] %vm426, %v2997
        %3030 = vst.msk [vmem:[%s315 + $0x88] sm:$0xff] %vm426, %v2998
        %3031 = vst.msk [vmem:[%s315 + $0x90] sm:$0xff] %vm426, %v2999
        %3032 = vst.msk [vmem:[%s315 + $0x98] sm:$0xff] %vm426, %v3000
        %3033 = vst.msk [vmem:[%s315 + $0xa0] sm:$0xff] %vm426, %v3001
        %3034 = vst.msk [vmem:[%s315 + $0xa8] sm:$0xff] %vm426, %v3002
        %3035 = vst.msk [vmem:[%s315 + $0xb0] sm:$0xff] %vm426, %v3003
        %3036 = vst.msk [vmem:[%s315 + $0xb8] sm:$0xff] %vm426, %v3004
        %3037 = vst.msk [vmem:[%s315 + $0xc0] sm:$0xff] %vm426, %v3005
        %3038 = vst.msk [vmem:[%s315 + $0xc8] sm:$0xff] %vm426, %v3006
        %3039 = vst.msk [vmem:[%s315 + $0xd0] sm:$0xff] %vm426, %v3007
        %3040 = vst.msk [vmem:[%s315 + $0xd8] sm:$0xff] %vm426, %v3008
        %3041 = vst.msk [vmem:[%s315 + $0xe0] sm:$0xff] %vm426, %v3009
        %3042 = vst.msk [vmem:[%s315 + $0xe8] sm:$0xff] %vm426, %v3010
        %3043 = vst.msk [vmem:[%s315 + $0xf0] sm:$0xff] %vm426, %v3011
        %3044 = vst.msk [vmem:[%s315 + $0xf8] sm:$0xff] %vm426, %v3012
        %s3045 = sand.u32 %s208, 1
        %s3046 = scalar_lea.sflag [#allocation3], %s3045
        %s3047 = sand.u32 %s208, 1
        %s3048 = smul.addr %s3047, 256
        %s3049 = scalar_lea.vmem [#allocation2], %s3048
        // Predicated region
        $region53: #{afno_transformer_block.5} parent=51 // pred_check
          %p3050 = pneg %p218
        $region54: #{afno_transformer_block.5} parent=51 // pred_check_branch
          %3052 = sbr.rel (%p3050) target = $region56
        $region55: #{afno_transformer_block.5} parent=51 // pred_region
          %s3053 = smul.u32 32, %s22
          %3055 = vsyncadd %s3046, 0
          %s3056 = smul.addr %s3053, 8
          %s3057 = scalar_lea.hbm %s8, %s3056
          %s3058 = sshll.u32 %s3049, 4
          %s3059 = int_to_ptr.vmem [resolvable:$true] %s3058
          %s3060 = sshll.u32 %s3057, 4
          %s3061 = int_to_ptr.hbm [resolvable:$true] %s3060
          %3066 = dma.vmem_to_hbm [thread:$0]  %s3059, 4096, %s3061, %s3046, 128, 128, 8
        $region56: #{afno_transformer_block.5} parent=51 // pred_fallthru
          _
      $region52: #{afno_transformer_block.5} parent=5 // pred_fallthru
        _
      %p3067 = scmp.le.s32.totalorder 2, %s17
      // Predicated region
      $region57: #{afno_transformer_block.5} parent=5 // pred_check
        %p3068 = pneg %p3067
      $region58: #{afno_transformer_block.5} parent=5 // pred_check_branch
        %3070 = sbr.rel (%p3068) target = $region60
      $region59: #{afno_transformer_block.5} parent=5 // pred_region
        %s3071 = ssub.s32 %s17, 2
        // Predicated region
        $region61: #{afno_transformer_block.5} parent=59 // pred_check
          %p3072 = pneg %p224
        $region62: #{afno_transformer_block.5} parent=59 // pred_check_branch
          %3074 = sbr.rel (%p3072) target = $region64
        $region63: #{afno_transformer_block.5} parent=59 // pred_region
          %s3075 = sand.u32 %s209, 1
          %s3076 = scalar_lea.sflag [#allocation3], %s3075
          %s3077 = sand.u32 %s209, 1
          %s3078 = smul.addr %s3077, 256
          %s3079 = scalar_lea.vmem [#allocation2], %s3078
          %3081 = dma.done %s3076, 4096
        $region64: #{afno_transformer_block.5} parent=59 // pred_fallthru
          _
      $region60: #{afno_transformer_block.5} parent=5 // pred_fallthru
        _
    $region6: #{afno_transformer_block.5} parent=1 // loop_footer
      %s21 = sadd.s32 1, %s17
    $region7: #{afno_transformer_block.5} parent=1 // loop_footer_branch
      %16 = sbr.rel target = $region3
    $region8: #{afno_transformer_block.5} parent=1 // loop_exit
      _
    %3082 = vsyncpa [#allocation3], 1
    %s3083 = scalar_lea.sflag [#allocation3], 1
    %3084 = vsyncpa %s3083, 1

</llo_original>
